<compile_context>
chip_gen: v6e
topology: v6e:2x2x1
jax: 0.10.0
libtpu: 0.0.40
codegen_flags: <defaults>
</compile_context>

<pallas_src>
import functools

import jax
import jax.numpy as jnp
from jax.experimental import pallas as pl
from jax.experimental.pallas import tpu as pltpu

LANE = 128            # TPU lane width; all channel dims padded to this
_BF16 = jnp.bfloat16


def _round_up(x, m):
    return (x + m - 1) // m * m


def _tile_m(mp):
    # mp is always a multiple of LANE.  Prefer >=2 grid steps so v7x's two
    # TensorCores can shard the (parallel) M axis; cap tm at 512 so the
    # double-buffered blocks stay inside v5e's scoped-VMEM budget.
    for tm in (512, 256, 128):
        if mp % tm == 0 and mp // tm >= 2:
            return tm
    for tm in (512, 256, 128):
        if mp % tm == 0:
            return tm
    return mp


def _tile_n(coutp, m_steps):
    # If the M grid collapses to one step, split Cout so the grid still has
    # >=2 parallel steps (megacore sharding + DMA/compute overlap).
    if m_steps == 1:
        for tn in (256, 128):
            if coutp % tn == 0 and coutp // tn >= 2:
                return tn
    return coutp


def _cparams(sem, *block_bytes):
    # Explicit scoped-VMEM limit: double-buffered blocks + generous headroom.
    limit = int(2 * sum(block_bytes) + (8 << 20))
    return pltpu.CompilerParams(dimension_semantics=sem,
                                vmem_limit_bytes=limit)


# ----------------------------------------------------------------------------
# Pallas kernels
# ----------------------------------------------------------------------------
def _matmul_bn_kernel(x_ref, w_ref, b_ref, o_ref, *, relu):
    # x: [tm, K] bf16, w: [K, tn] bf16 (BN scale pre-folded), b: [1, tn] f32
    acc = jnp.dot(x_ref[...], w_ref[...], preferred_element_type=jnp.float32)
    y = acc + b_ref[...]
    if relu:
        y = jnp.maximum(y, 0.0)
    o_ref[...] = y.astype(o_ref.dtype)


def _matmul_bn_res_kernel(x_ref, w_ref, b_ref, r_ref, o_ref, *, relu):
    # fused residual add (bottleneck tail), done in f32 before the ReLU
    acc = jnp.dot(x_ref[...], w_ref[...], preferred_element_type=jnp.float32)
    y = acc + b_ref[...] + r_ref[...].astype(jnp.float32)
    if relu:
        y = jnp.maximum(y, 0.0)
    o_ref[...] = y.astype(o_ref.dtype)


def _conv3x3_kernel(x_ref, w_ref, b_ref, o_ref, *, wpd, m_out, relu):
    # Implicit-GEMM stride-1 3x3 conv.
    #   x: [1, L, Cin] flattened padded map (bf16)
    #   w: [3, 3*Cin, Cout] bf16, taps grouped by kw (dx); within a group the
    #      dy = 0,1,2 taps are stacked along the K axis.
    #   b: [1, Cout] f32, o: [1, m_out, Cout] bf16.
    # Group g concatenates three row-shifted slices of the SAME resident
    # block along channels -> K = 3*Cin per matmul (fills the 256-deep MXU),
    # and the partial products accumulate in a register/MRB-resident f32
    # value, stored exactly once (no per-tap VMEM scratch traffic).
    acc = None
    for g in range(3):
        lhs = jnp.concatenate(
            [x_ref[0, pl.ds(dy * wpd + g, m_out), :] for dy in range(3)],
            axis=-1)
        part = jnp.dot(lhs, w_ref[g], preferred_element_type=jnp.float32)
        acc = part if acc is None else acc + part
    y = acc + b_ref[...]
    if relu:
        y = jnp.maximum(y, 0.0)
    o_ref[0] = y.astype(o_ref.dtype)


def _maxpool3x3_s2_kernel(x_ref, o_ref, *, ho, wo, c):
    # 3x3 / stride-2 / pad-1 maxpool, fully decimated inside the kernel.
    # The wrapper presents the padded map reshaped (pure row-major view) to
    # [1, Hp/2, 2, Wp/2, 2C], so even/odd rows are plain indexed reads and
    # even/odd columns are lane-aligned channel slices -> no strided loads,
    # and only the stride-2 output is written back to HBM.
    r_even_lo = x_ref[0, 0:ho, 0, :, :]        # padded rows 2i
    r_odd = x_ref[0, 0:ho, 1, :, :]            # padded rows 2i+1
    r_even_hi = x_ref[0, 1:ho + 1, 0, :, :]    # padded rows 2i+2
    vmax = jnp.maximum(jnp.maximum(r_even_lo, r_odd), r_even_hi)
    a = vmax[:, :, 0:c]                        # padded columns 2j
    b = vmax[:, :, c:2 * c]                    # padded columns 2j+1
    hmax = jnp.maximum(jnp.maximum(a[:, 0:wo, :], b[:, 0:wo, :]),
                       a[:, 1:wo + 1, :])      # column 2j+2 == a[:, j+1]
    o_ref[0] = hmax


# ----------------------------------------------------------------------------
# Pallas wrappers
# ----------------------------------------------------------------------------
def matmul_bn(x2d, w2d, shift, residual=None, relu=True):
    """x2d: [M, K] bf16, w2d: [K, Coutp] bf16, shift: [1, Coutp] f32,
    residual: [M, Coutp] bf16 or None.  Returns [M, Coutp] bf16."""
    m, k = x2d.shape
    coutp = w2d.shape[1]
    mp = _round_up(m, LANE)                    # keep every M tile pipelineable
    if mp != m:
        x2d = jnp.pad(x2d, ((0, mp - m), (0, 0)))
        if residual is not None:
            residual = jnp.pad(residual, ((0, mp - m), (0, 0)))
    tm = _tile_m(mp)
    tn = _tile_n(coutp, mp // tm)

    in_specs = [
        pl.BlockSpec((tm, k), lambda i, j: (i, 0)),
        pl.BlockSpec((k, tn), lambda i, j: (0, j)),
        pl.BlockSpec((1, tn), lambda i, j: (0, j)),
    ]
    args = [x2d, w2d, shift]
    block_bytes = [2 * tm * k, 2 * k * tn, 4 * tn, 2 * tm * tn]
    if residual is not None:
        in_specs.append(pl.BlockSpec((tm, tn), lambda i, j: (i, j)))
        args.append(residual)
        block_bytes.append(2 * tm * tn)
        kernel = functools.partial(_matmul_bn_res_kernel, relu=relu)
    else:
        kernel = functools.partial(_matmul_bn_kernel, relu=relu)

    out = pl.pallas_call(
        kernel,
        out_shape=jax.ShapeDtypeStruct((mp, coutp), _BF16),
        grid_spec=pltpu.PrefetchScalarGridSpec(
            num_scalar_prefetch=0,
            grid=(mp // tm, coutp // tn),
            in_specs=in_specs,
            out_specs=pl.BlockSpec((tm, tn), lambda i, j: (i, j)),
        ),
        compiler_params=_cparams(("parallel", "parallel"), *block_bytes),
    )(*args)
    return out[:m] if mp != m else out


def conv1x1_bn(x, w, shift, stride=1, relu=True, residual=None):
    """1x1 conv: no im2col, just a reshape + fused matmul.  stride>1 is a
    top-left decimation of the input (exactly 1x1/s semantics)."""
    if stride != 1:
        # TODO(synk): fold this stride-2 decimation into the kernel (pair
        #             reshape trick as in maxpool) to avoid the XLA gather.
        x = x[:, ::stride, ::stride, :]
    n, h, wd, c = x.shape
    res = None
    if residual is not None:
        res = residual.reshape(n * h * wd, residual.shape[-1])
    out = matmul_bn(x.reshape(n * h * wd, c), w, shift, residual=res, relu=relu)
    return out.reshape(n, h, wd, -1)


def conv3x3_s1_bn(x, w3, shift, relu=True):
    """Fused stride-1 3x3 conv (pad=1).  x: [N,H,W,Cinp] bf16,
    w3: [3, 3*Cinp, Coutp] bf16 (taps grouped by kw), shift: [1, Coutp] f32."""
    n, h, w, cinp = x.shape
    coutp = w3.shape[2]
    wpd = w + 2
    # spatial pad=1; two extra bottom rows keep every shifted flat slab
    # (max tap offset 2*wpd+2) strictly in-bounds.
    xp = jnp.pad(x, ((0, 0), (1, 3), (1, 1), (0, 0)))
    l = (h + 4) * wpd
    xf = xp.reshape(n, l, cinp)
    m_out = h * wpd                             # valid cols are [:w] per row
    block_bytes = [2 * l * cinp, 2 * 9 * cinp * coutp, 4 * coutp,
                   2 * m_out * coutp]

    out = pl.pallas_call(
        functools.partial(_conv3x3_kernel, wpd=wpd, m_out=m_out, relu=relu),
        out_shape=jax.ShapeDtypeStruct((n, m_out, coutp), _BF16),
        grid_spec=pltpu.PrefetchScalarGridSpec(
            num_scalar_prefetch=0,
            grid=(n,),
            in_specs=[
                pl.BlockSpec((1, l, cinp), lambda b: (b, 0, 0)),
                pl.BlockSpec((3, 3 * cinp, coutp), lambda b: (0, 0, 0)),
                pl.BlockSpec((1, coutp), lambda b: (0, 0)),
            ],
            out_specs=pl.BlockSpec((1, m_out, coutp), lambda b: (b, 0, 0)),
        ),
        compiler_params=_cparams(("parallel",), *block_bytes),
    )(xf, w3, shift)
    return out.reshape(n, h, wpd, coutp)[:, :, :w, :]


def _im2col(x, kh, kw, stride, pad):
    n, h, w, c = x.shape
    xp = jnp.pad(x, ((0, 0), (pad, pad), (pad, pad), (0, 0)))
    hp, wp = h + 2 * pad, w + 2 * pad
    ho = (hp - kh) // stride + 1
    wo = (wp - kw) // stride + 1
    cols = []
    for dy in range(kh):
        for dx in range(kw):
            cols.append(xp[:, dy:dy + stride * ho:stride,
                           dx:dx + stride * wo:stride, :])
    patches = jnp.stack(cols, axis=3)           # [N, Ho, Wo, kh*kw, C]
    return patches.reshape(n * ho * wo, kh * kw * c), (n, ho, wo)


def conv_im2col_bn(x, w_flat, shift, kh, kw, stride, pad, relu=True):
    # Only used for conv1 (7x7/s2 on a tiny 3-channel image) and the two
    # stride-2 3x3 convs; every stride-1 3x3 conv uses the fused kernel.
    patches, (n, ho, wo) = _im2col(x, kh, kw, stride, pad)
    kdim = patches.shape[1]
    kpad = w_flat.shape[0]
    if kpad != kdim:
        # weight K was zero-padded to a lane-aligned size (e.g. 147 -> 256);
        # pad the patches to match - the extra zero rows are inert.
        patches = jnp.pad(patches, ((0, 0), (0, kpad - kdim)))
    out = matmul_bn(patches, w_flat, shift, relu=relu)
    return out.reshape(n, ho, wo, -1)


def maxpool3x3_s2(x):
    """3x3 / stride 2 / pad 1, fully decimated inside the kernel.  Zero
    padding is equivalent to -inf here because inputs are post-ReLU (>=0)."""
    n, h, w, c = x.shape
    assert h % 2 == 0 and w % 2 == 0, "maxpool kernel expects even spatial dims"
    xp = jnp.pad(x, ((0, 0), (1, 1), (1, 1), (0, 0)))
    hp2, wq = (h + 2) // 2, (w + 2) // 2
    ho, wo = h // 2, w // 2
    x5 = xp.reshape(n, hp2, 2, wq, 2 * c)       # pure row-major view
    block_bytes = [2 * hp2 * 2 * wq * 2 * c, 2 * ho * wo * c]
    return pl.pallas_call(
        functools.partial(_maxpool3x3_s2_kernel, ho=ho, wo=wo, c=c),
        out_shape=jax.ShapeDtypeStruct((n, ho, wo, c), x.dtype),
        grid_spec=pltpu.PrefetchScalarGridSpec(
            num_scalar_prefetch=0,
            grid=(n,),
            in_specs=[pl.BlockSpec((1, hp2, 2, wq, 2 * c),
                                   lambda b: (b, 0, 0, 0, 0))],
            out_specs=pl.BlockSpec((1, ho, wo, c), lambda b: (b, 0, 0, 0)),
        ),
        compiler_params=_cparams(("parallel",), *block_bytes),
    )(x5)


# ----------------------------------------------------------------------------
# Parameter construction (deterministic, synthetic) + kernel-ready prep
# ----------------------------------------------------------------------------
def _init_conv(key, kh, kw, cin, cout):
    fan_in = kh * kw * cin
    w = jax.random.normal(key, (kh, kw, cin, cout), dtype=jnp.float32)
    return w / jnp.sqrt(jnp.float32(fan_in))


def _init_bn(key, c):
    k1, k2, k3, k4 = jax.random.split(key, 4)
    gamma = 1.0 + 0.1 * jax.random.normal(k1, (c,), dtype=jnp.float32)
    beta = 0.1 * jax.random.normal(k2, (c,), dtype=jnp.float32)
    mean = 0.1 * jax.random.normal(k3, (c,), dtype=jnp.float32)
    var = 1.0 + 0.1 * jax.random.uniform(k4, (c,), dtype=jnp.float32)
    scale = gamma / jnp.sqrt(var + 1e-5)
    shift = beta - mean * scale
    return scale, shift


def _make_bottleneck(key, cin, planes, stride):
    ks = jax.random.split(key, 8)
    cout = planes * 4
    p = {"stride": stride}
    p["w1"] = _init_conv(ks[0], 1, 1, cin, planes)
    p["s1"], p["b1"] = _init_bn(ks[1], planes)
    p["w2"] = _init_conv(ks[2], 3, 3, planes, planes)
    p["s2"], p["b2"] = _init_bn(ks[3], planes)
    p["w3"] = _init_conv(ks[4], 1, 1, planes, cout)
    p["s3"], p["b3"] = _init_bn(ks[5], cout)
    if stride != 1 or cin != cout:
        p["wd"] = _init_conv(ks[6], 1, 1, cin, cout)
        p["sd"], p["bd"] = _init_bn(ks[7], cout)
    return p, cout


def make_params(key, in_ch=3, base=8, blocks=(2, 2, 2)):
    # real resnet101 uses base=64 and blocks=(3, 4, 23); scaled down here for
    # a small synthetic kernel (block structure is identical).
    keys = jax.random.split(key, 2 + sum(blocks))
    params = {}
    params["conv1_w"] = _init_conv(keys[0], 7, 7, in_ch, base)
    params["conv1_s"], params["conv1_b"] = _init_bn(keys[1], base)
    cin = base
    ki = 2
    for li, (nblocks, stage_stride) in enumerate(zip(blocks, (1, 2, 2))):
        planes = base * (2 ** li)
        layer = []
        for b in range(nblocks):
            stride = stage_stride if b == 0 else 1
            blk, cin = _make_bottleneck(keys[ki], cin, planes, stride)
            layer.append(blk)
            ki += 1
        params[f"layer{li + 1}"] = layer
    return params


def _fold_pad(w, scale, shift, cinp, coutp):
    """Fold BN scale into the conv weights, zero-pad Cin/Cout to lane-dense
    sizes, cast weights to bf16 (shift stays f32, added post-accumulate)."""
    kh, kw, cin, cout = w.shape
    wf = w * scale
    wpad = jnp.zeros((kh, kw, cinp, coutp), jnp.float32)
    wpad = wpad.at[:, :, :cin, :cout].set(wf)
    bpad = jnp.zeros((1, coutp), jnp.float32).at[0, :cout].set(shift)
    return wpad.astype(_BF16), bpad


def prepare_params(params):
    prep = {}
    w = params["conv1_w"]
    kh, kw, cin, cout = w.shape
    coutp = _round_up(cout, LANE)
    wpad, prep["conv1_b"] = _fold_pad(w, params["conv1_s"], params["conv1_b"],
                                      cin, coutp)
    wk = wpad.reshape(kh * kw * cin, coutp)
    kfull = kh * kw * cin
    kp = _round_up(kfull, LANE)                 # 147 -> 256: lane-aligned K,
    if kp != kfull:                             # full MXU depth; zero rows inert
        wk = jnp.pad(wk, ((0, kp - kfull), (0, 0)))
    prep["conv1_w"] = wk
    c4 = cout
    for name in ("layer1", "layer2", "layer3"):
        blocks = []
        for blk in params[name]:
            q = {"stride": blk["stride"]}
            for tag in ("1", "2", "3"):
                wb = blk["w" + tag]
                _, _, ci, co = wb.shape
                cip, cop = _round_up(ci, LANE), _round_up(co, LANE)
                wpad, q["b" + tag] = _fold_pad(wb, blk["s" + tag],
                                               blk["b" + tag], cip, cop)
                if tag == "2":
                    if blk["stride"] == 1:
                        # group taps by kw (dx); within a group stack the
                        # dy = 0,1,2 taps along K -> [3, 3*Cin, Cout]
                        q["w2"] = wpad.transpose(1, 0, 2, 3).reshape(
                            3, 3 * cip, cop)
                    else:
                        q["w2"] = wpad.reshape(9 * cip, cop)     # im2col K
                else:
                    q["w" + tag] = wpad.reshape(cip, cop)
                if tag == "3":
                    c4 = co
            if "wd" in blk:
                wb = blk["wd"]
                _, _, ci, co = wb.shape
                cip, cop = _round_up(ci, LANE), _round_up(co, LANE)
                wpad, q["bd"] = _fold_pad(wb, blk["sd"], blk["bd"], cip, cop)
                q["wd"] = wpad.reshape(cip, cop)
            blocks.append(q)
        prep[name] = blocks
    prep["c4"] = c4
    return prep


# ----------------------------------------------------------------------------
# Forward pass (ResnetC4: conv1 -> bn -> relu -> maxpool -> layer1..layer3)
# ----------------------------------------------------------------------------
def _bottleneck_forward(x, p):
    identity = x
    out = conv1x1_bn(x, p["w1"], p["b1"], stride=1, relu=True)
    if p["stride"] == 1:
        out = conv3x3_s1_bn(out, p["w2"], p["b2"], relu=True)
    else:
        out = conv_im2col_bn(out, p["w2"], p["b2"], 3, 3, p["stride"], 1,
                             relu=True)
    if "wd" in p:
        identity = conv1x1_bn(x, p["wd"], p["bd"], stride=p["stride"],
                              relu=False)
    # final 1x1 conv + BN shift + residual add + ReLU fused in one kernel
    out = conv1x1_bn(out, p["w3"], p["b3"], stride=1, relu=True,
                     residual=identity)
    return out


def resnet_c4_forward(x_nchw, prep):
    x = jnp.transpose(x_nchw, (0, 2, 3, 1)).astype(_BF16)    # NCHW -> NHWC
    x = conv_im2col_bn(x, prep["conv1_w"], prep["conv1_b"], 7, 7, 2, 3,
                       relu=True)
    x = maxpool3x3_s2(x)
    for name in ("layer1", "layer2", "layer3"):
        for blk in prep[name]:
            x = _bottleneck_forward(x, blk)
    x = x[:, :, :, :prep["c4"]]                 # drop lane padding
    return jnp.transpose(x, (0, 3, 1, 2)).astype(jnp.float32)  # back to NCHW


if __name__ == "__main__":
    key = jax.random.PRNGKey(0)
    kx, kp = jax.random.split(key)
    x = jax.random.normal(kx, (2, 3, 32, 32), dtype=jnp.float32)  # NCHW
    params = make_params(kp, in_ch=3, base=8, blocks=(2, 2, 2))
    prep = prepare_params(params)

    fwd = jax.jit(lambda inp: resnet_c4_forward(inp, prep))
    out = jax.block_until_ready(fwd(x))

    # 32x32 input -> /2 (conv1) -> /2 (maxpool) -> /2 (layer2) -> /2 (layer3)
    assert out.shape == (2, 8 * 4 * 4, 2, 2), out.shape
    assert out.dtype == jnp.float32
    assert bool(jnp.all(jnp.isfinite(out)))
    print("KERNEL_OK")
</pallas_src>

<mosaic_0001>
module attributes {stable_mosaic.version = 11 : i64} {
  func.func @_matmul_bn_kernel(%arg0: i32, %arg1: i32, %arg2: memref<256x256xbf16, #tpu.memory_space<vmem>>, %arg3: memref<256x128xbf16, #tpu.memory_space<vmem>>, %arg4: memref<1x128xf32, #tpu.memory_space<vmem>>, %arg5: memref<256x128xbf16, #tpu.memory_space<vmem>>) attributes {dimension_semantics = [#tpu.dimension_semantics<parallel>, #tpu.dimension_semantics<parallel>], iteration_bounds = array<i64: 2, 1>, scalar_prefetch = 0 : i64, scratch_operands = 0 : i64, tpu.core_type = #tpu.core_type<tc>, window_params = [{transform_indices = @transform_0, window_bounds = array<i64: 256, 256>}, {transform_indices = @transform_1, window_bounds = array<i64: 256, 128>}, {transform_indices = @transform_2, window_bounds = array<i64: 1, 128>}, {transform_indices = @transform_3, window_bounds = array<i64: 256, 128>}]} {
    %c0 = arith.constant 0 : index
    %c0_0 = arith.constant 0 : index
    %0 = vector.load %arg2[%c0, %c0_0] : memref<256x256xbf16, #tpu.memory_space<vmem>>, vector<256x256xbf16>
    %c0_1 = arith.constant 0 : index
    %c0_2 = arith.constant 0 : index
    %1 = vector.load %arg3[%c0_1, %c0_2] : memref<256x128xbf16, #tpu.memory_space<vmem>>, vector<256x128xbf16>
    %cst = arith.constant dense<0.000000e+00> : vector<256x128xf32>
    %2 = tpu.matmul %0, %1, %cst {dimension_numbers = #tpu.dot_dimension_numbers<[1], [0], [0], [1], [0, 0, 1, 1], [], []>} : vector<256x256xbf16>, vector<256x128xbf16>, vector<256x128xf32> -> vector<256x128xf32>
    %c0_3 = arith.constant 0 : index
    %c0_4 = arith.constant 0 : index
    %3 = vector.load %arg4[%c0_3, %c0_4] : memref<1x128xf32, #tpu.memory_space<vmem>>, vector<1x128xf32>
    %4 = vector.broadcast %3 : vector<1x128xf32> to vector<256x128xf32>
    %5 = arith.addf %2, %4 : vector<256x128xf32>
    %cst_5 = arith.constant 0.000000e+00 : f32
    %6 = vector.broadcast %cst_5 : f32 to vector<256x128xf32>
    %7 = arith.maximumf %5, %6 : vector<256x128xf32>
    %8 = arith.truncf %7 : vector<256x128xf32> to vector<256x128xbf16>
    %c0_6 = arith.constant 0 : index
    %c0_7 = arith.constant 0 : index
    %9 = vector.load %arg5[%c0_6, %c0_7] : memref<256x128xbf16, #tpu.memory_space<vmem>>, vector<256x128xbf16>
    tpu.vector_store %arg5[%c0_6, %c0_7], %8 {strides = array<i32>} : memref<256x128xbf16, #tpu.memory_space<vmem>>, vector<256x128xbf16>,
    return
  }
  func.func @transform_0(%arg0: i32, %arg1: i32) -> (i32, i32) {
    %c0_i32 = arith.constant 0 : i32
    %c0_i32_0 = arith.constant 0 : i32
    return %arg0, %c0_i32 : i32, i32
  }
  func.func @transform_1(%arg0: i32, %arg1: i32) -> (i32, i32) {
    %c0_i32 = arith.constant 0 : i32
    %c0_i32_0 = arith.constant 0 : i32
    return %c0_i32, %arg1 : i32, i32
  }
  func.func @transform_2(%arg0: i32, %arg1: i32) -> (i32, i32) {
    %c0_i32 = arith.constant 0 : i32
    %c0_i32_0 = arith.constant 0 : i32
    return %c0_i32, %arg1 : i32, i32
  }
  func.func @transform_3(%arg0: i32, %arg1: i32) -> (i32, i32) {
    %c0_i32 = arith.constant 0 : i32
    return %arg0, %arg1 : i32, i32
  }
}

module attributes {stable_mosaic.version = 11 : i64} {
  func.func @_maxpool3x3_s2_kernel(%arg0: i32, %arg1: memref<1x9x2x9x256xbf16, #tpu.memory_space<vmem>>, %arg2: memref<1x8x8x128xbf16, #tpu.memory_space<vmem>>) attributes {dimension_semantics = [#tpu.dimension_semantics<parallel>], iteration_bounds = array<i64: 2>, scalar_prefetch = 0 : i64, scratch_operands = 0 : i64, tpu.core_type = #tpu.core_type<tc>, window_params = [{transform_indices = @transform_0, window_bounds = array<i64: 1, 9, 2, 9, 256>}, {transform_indices = @transform_1, window_bounds = array<i64: 1, 8, 8, 128>}]} {
    %c0 = arith.constant 0 : index
    %c0_0 = arith.constant 0 : index
    %c0_1 = arith.constant 0 : index
    %c0_2 = arith.constant 0 : index
    %c0_3 = arith.constant 0 : index
    %0 = vector.load %arg1[%c0, %c0_0, %c0_1, %c0_2, %c0_3] : memref<1x9x2x9x256xbf16, #tpu.memory_space<vmem>>, vector<1x8x1x9x256xbf16>
    %1 = vector.shape_cast %0 : vector<1x8x1x9x256xbf16> to vector<8x9x256xbf16>
    %c0_4 = arith.constant 0 : index
    %c0_5 = arith.constant 0 : index
    %c1 = arith.constant 1 : index
    %c0_6 = arith.constant 0 : index
    %c0_7 = arith.constant 0 : index
    %2 = vector.load %arg1[%c0_4, %c0_5, %c1, %c0_6, %c0_7] : memref<1x9x2x9x256xbf16, #tpu.memory_space<vmem>>, vector<1x8x1x9x256xbf16>
    %3 = vector.shape_cast %2 : vector<1x8x1x9x256xbf16> to vector<8x9x256xbf16>
    %c0_8 = arith.constant 0 : index
    %c1_9 = arith.constant 1 : index
    %c0_10 = arith.constant 0 : index
    %c0_11 = arith.constant 0 : index
    %c0_12 = arith.constant 0 : index
    %4 = vector.load %arg1[%c0_8, %c1_9, %c0_10, %c0_11, %c0_12] : memref<1x9x2x9x256xbf16, #tpu.memory_space<vmem>>, vector<1x8x1x9x256xbf16>
    %5 = vector.shape_cast %4 : vector<1x8x1x9x256xbf16> to vector<8x9x256xbf16>
    %6 = arith.maximumf %1, %3 : vector<8x9x256xbf16>
    %7 = arith.maximumf %6, %5 : vector<8x9x256xbf16>
    %8 = vector.extract_strided_slice %7 {offsets = [0, 0, 0], sizes = [8, 9, 128], strides = [1, 1, 1]} : vector<8x9x256xbf16> to vector<8x9x128xbf16>
    %9 = vector.extract_strided_slice %7 {offsets = [0, 0, 128], sizes = [8, 9, 128], strides = [1, 1, 1]} : vector<8x9x256xbf16> to vector<8x9x128xbf16>
    %10 = vector.extract_strided_slice %8 {offsets = [0, 0, 0], sizes = [8, 8, 128], strides = [1, 1, 1]} : vector<8x9x128xbf16> to vector<8x8x128xbf16>
    %11 = vector.extract_strided_slice %9 {offsets = [0, 0, 0], sizes = [8, 8, 128], strides = [1, 1, 1]} : vector<8x9x128xbf16> to vector<8x8x128xbf16>
    %12 = arith.maximumf %10, %11 : vector<8x8x128xbf16>
    %13 = vector.extract_strided_slice %8 {offsets = [0, 1, 0], sizes = [8, 8, 128], strides = [1, 1, 1]} : vector<8x9x128xbf16> to vector<8x8x128xbf16>
    %14 = arith.maximumf %12, %13 : vector<8x8x128xbf16>
    %c0_13 = arith.constant 0 : index
    %c0_14 = arith.constant 0 : index
    %c0_15 = arith.constant 0 : index
    %c0_16 = arith.constant 0 : index
    %15 = vector.load %arg2[%c0_13, %c0_14, %c0_15, %c0_16] : memref<1x8x8x128xbf16, #tpu.memory_space<vmem>>, vector<1x8x8x128xbf16>
    %16 = vector.shape_cast %15 : vector<1x8x8x128xbf16> to vector<8x8x128xbf16>
    %17 = vector.shape_cast %14 : vector<8x8x128xbf16> to vector<1x8x8x128xbf16>
    tpu.vector_store %arg2[%c0_13, %c0_14, %c0_15, %c0_16], %17 {strides = array<i32>} : memref<1x8x8x128xbf16, #tpu.memory_space<vmem>>, vector<1x8x8x128xbf16>,
    return
  }
  func.func @transform_0(%arg0: i32) -> (i32, i32, i32, i32, i32) {
    %c0_i32 = arith.constant 0 : i32
    %c0_i32_0 = arith.constant 0 : i32
    %c0_i32_1 = arith.constant 0 : i32
    %c0_i32_2 = arith.constant 0 : i32
    %c0_i32_3 = arith.constant 0 : i32
    return %arg0, %c0_i32, %c0_i32_0, %c0_i32_1, %c0_i32_2 : i32, i32, i32, i32, i32
  }
  func.func @transform_1(%arg0: i32) -> (i32, i32, i32, i32) {
    %c0_i32 = arith.constant 0 : i32
    %c0_i32_0 = arith.constant 0 : i32
    %c0_i32_1 = arith.constant 0 : i32
    %c0_i32_2 = arith.constant 0 : i32
    return %arg0, %c0_i32, %c0_i32_0, %c0_i32_1 : i32, i32, i32, i32
  }
}

module attributes {stable_mosaic.version = 11 : i64} {
  func.func @_matmul_bn_kernel(%arg0: i32, %arg1: i32, %arg2: memref<128x128xbf16, #tpu.memory_space<vmem>>, %arg3: memref<128x128xbf16, #tpu.memory_space<vmem>>, %arg4: memref<1x128xf32, #tpu.memory_space<vmem>>, %arg5: memref<128x128xbf16, #tpu.memory_space<vmem>>) attributes {dimension_semantics = [#tpu.dimension_semantics<parallel>, #tpu.dimension_semantics<parallel>], iteration_bounds = array<i64: 1, 1>, scalar_prefetch = 0 : i64, scratch_operands = 0 : i64, tpu.core_type = #tpu.core_type<tc>, window_params = [{transform_indices = @transform_0, window_bounds = array<i64: 128, 128>}, {transform_indices = @transform_1, window_bounds = array<i64: 128, 128>}, {transform_indices = @transform_2, window_bounds = array<i64: 1, 128>}, {transform_indices = @transform_3, window_bounds = array<i64: 128, 128>}]} {
    %c0 = arith.constant 0 : index
    %c0_0 = arith.constant 0 : index
    %0 = vector.load %arg2[%c0, %c0_0] : memref<128x128xbf16, #tpu.memory_space<vmem>>, vector<128x128xbf16>
    %c0_1 = arith.constant 0 : index
    %c0_2 = arith.constant 0 : index
    %1 = vector.load %arg3[%c0_1, %c0_2] : memref<128x128xbf16, #tpu.memory_space<vmem>>, vector<128x128xbf16>
    %cst = arith.constant dense<0.000000e+00> : vector<128x128xf32>
    %2 = tpu.matmul %0, %1, %cst {dimension_numbers = #tpu.dot_dimension_numbers<[1], [0], [0], [1], [0, 0, 1, 1], [], []>} : vector<128x128xbf16>, vector<128x128xbf16>, vector<128x128xf32> -> vector<128x128xf32>
    %c0_3 = arith.constant 0 : index
    %c0_4 = arith.constant 0 : index
    %3 = vector.load %arg4[%c0_3, %c0_4] : memref<1x128xf32, #tpu.memory_space<vmem>>, vector<1x128xf32>
    %4 = vector.broadcast %3 : vector<1x128xf32> to vector<128x128xf32>
    %5 = arith.addf %2, %4 : vector<128x128xf32>
    %cst_5 = arith.constant 0.000000e+00 : f32
    %6 = vector.broadcast %cst_5 : f32 to vector<128x128xf32>
    %7 = arith.maximumf %5, %6 : vector<128x128xf32>
    %8 = arith.truncf %7 : vector<128x128xf32> to vector<128x128xbf16>
    %c0_6 = arith.constant 0 : index
    %c0_7 = arith.constant 0 : index
    %9 = vector.load %arg5[%c0_6, %c0_7] : memref<128x128xbf16, #tpu.memory_space<vmem>>, vector<128x128xbf16>
    tpu.vector_store %arg5[%c0_6, %c0_7], %8 {strides = array<i32>} : memref<128x128xbf16, #tpu.memory_space<vmem>>, vector<128x128xbf16>,
    return
  }
  func.func @transform_0(%arg0: i32, %arg1: i32) -> (i32, i32) {
    %c0_i32 = arith.constant 0 : i32
    %c0_i32_0 = arith.constant 0 : i32
    return %arg0, %c0_i32 : i32, i32
  }
  func.func @transform_1(%arg0: i32, %arg1: i32) -> (i32, i32) {
    %c0_i32 = arith.constant 0 : i32
    %c0_i32_0 = arith.constant 0 : i32
    return %c0_i32, %arg1 : i32, i32
  }
  func.func @transform_2(%arg0: i32, %arg1: i32) -> (i32, i32) {
    %c0_i32 = arith.constant 0 : i32
    %c0_i32_0 = arith.constant 0 : i32
    return %c0_i32, %arg1 : i32, i32
  }
  func.func @transform_3(%arg0: i32, %arg1: i32) -> (i32, i32) {
    %c0_i32 = arith.constant 0 : i32
    return %arg0, %arg1 : i32, i32
  }
}

module attributes {stable_mosaic.version = 11 : i64} {
  func.func @_conv3x3_kernel(%arg0: i32, %arg1: memref<1x120x128xbf16, #tpu.memory_space<vmem>>, %arg2: memref<3x384x128xbf16, #tpu.memory_space<vmem>>, %arg3: memref<1x128xf32, #tpu.memory_space<vmem>>, %arg4: memref<1x80x128xbf16, #tpu.memory_space<vmem>>) attributes {dimension_semantics = [#tpu.dimension_semantics<parallel>], iteration_bounds = array<i64: 2>, scalar_prefetch = 0 : i64, scratch_operands = 0 : i64, tpu.core_type = #tpu.core_type<tc>, window_params = [{transform_indices = @transform_0, window_bounds = array<i64: 1, 120, 128>}, {pipeline_mode = #tpu.pipeline_mode<synchronous>, transform_indices = @transform_1, window_bounds = array<i64: 3, 384, 128>}, {pipeline_mode = #tpu.pipeline_mode<synchronous>, transform_indices = @transform_2, window_bounds = array<i64: 1, 128>}, {transform_indices = @transform_3, window_bounds = array<i64: 1, 80, 128>}]} {
    %c0 = arith.constant 0 : index
    %c0_0 = arith.constant 0 : index
    %c0_1 = arith.constant 0 : index
    %0 = vector.load %arg1[%c0, %c0_0, %c0_1] : memref<1x120x128xbf16, #tpu.memory_space<vmem>>, vector<1x80x128xbf16>
    %1 = vector.shape_cast %0 : vector<1x80x128xbf16> to vector<80x128xbf16>
    %c0_2 = arith.constant 0 : index
    %c10 = arith.constant 10 : index
    %c0_3 = arith.constant 0 : index
    %2 = vector.load %arg1[%c0_2, %c10, %c0_3] : memref<1x120x128xbf16, #tpu.memory_space<vmem>>, vector<1x80x128xbf16>
    %3 = vector.shape_cast %2 : vector<1x80x128xbf16> to vector<80x128xbf16>
    %c0_4 = arith.constant 0 : index
    %c20 = arith.constant 20 : index
    %c0_5 = arith.constant 0 : index
    %4 = vector.load %arg1[%c0_4, %c20, %c0_5] : memref<1x120x128xbf16, #tpu.memory_space<vmem>>, vector<1x80x128xbf16>
    %5 = vector.shape_cast %4 : vector<1x80x128xbf16> to vector<80x128xbf16>
    %6 = tpu.concatenate %1, %3, %5 in 1 : vector<80x128xbf16>, vector<80x128xbf16>, vector<80x128xbf16> -> vector<80x384xbf16>
    %c0_6 = arith.constant 0 : index
    %c0_7 = arith.constant 0 : index
    %c0_8 = arith.constant 0 : index
    %7 = vector.load %arg2[%c0_6, %c0_7, %c0_8] : memref<3x384x128xbf16, #tpu.memory_space<vmem>>, vector<1x384x128xbf16>
    %8 = vector.shape_cast %7 : vector<1x384x128xbf16> to vector<384x128xbf16>
    %cst = arith.constant dense<0.000000e+00> : vector<80x128xf32>
    %9 = tpu.matmul %6, %8, %cst {dimension_numbers = #tpu.dot_dimension_numbers<[1], [0], [0], [1], [0, 0, 1, 1], [], []>} : vector<80x384xbf16>, vector<384x128xbf16>, vector<80x128xf32> -> vector<80x128xf32>
    %c0_9 = arith.constant 0 : index
    %c1 = arith.constant 1 : index
    %c0_10 = arith.constant 0 : index
    %10 = vector.load %arg1[%c0_9, %c1, %c0_10] : memref<1x120x128xbf16, #tpu.memory_space<vmem>>, vector<1x80x128xbf16>
    %11 = vector.shape_cast %10 : vector<1x80x128xbf16> to vector<80x128xbf16>
    %c0_11 = arith.constant 0 : index
    %c11 = arith.constant 11 : index
    %c0_12 = arith.constant 0 : index
    %12 = vector.load %arg1[%c0_11, %c11, %c0_12] : memref<1x120x128xbf16, #tpu.memory_space<vmem>>, vector<1x80x128xbf16>
    %13 = vector.shape_cast %12 : vector<1x80x128xbf16> to vector<80x128xbf16>
    %c0_13 = arith.constant 0 : index
    %c21 = arith.constant 21 : index
    %c0_14 = arith.constant 0 : index
    %14 = vector.load %arg1[%c0_13, %c21, %c0_14] : memref<1x120x128xbf16, #tpu.memory_space<vmem>>, vector<1x80x128xbf16>
    %15 = vector.shape_cast %14 : vector<1x80x128xbf16> to vector<80x128xbf16>
    %16 = tpu.concatenate %11, %13, %15 in 1 : vector<80x128xbf16>, vector<80x128xbf16>, vector<80x128xbf16> -> vector<80x384xbf16>
    %c1_15 = arith.constant 1 : index
    %c0_16 = arith.constant 0 : index
    %c0_17 = arith.constant 0 : index
    %17 = vector.load %arg2[%c1_15, %c0_16, %c0_17] : memref<3x384x128xbf16, #tpu.memory_space<vmem>>, vector<1x384x128xbf16>
    %18 = vector.shape_cast %17 : vector<1x384x128xbf16> to vector<384x128xbf16>
    %cst_18 = arith.constant dense<0.000000e+00> : vector<80x128xf32>
    %19 = tpu.matmul %16, %18, %cst_18 {dimension_numbers = #tpu.dot_dimension_numbers<[1], [0], [0], [1], [0, 0, 1, 1], [], []>} : vector<80x384xbf16>, vector<384x128xbf16>, vector<80x128xf32> -> vector<80x128xf32>
    %20 = arith.addf %9, %19 : vector<80x128xf32>
    %c0_19 = arith.constant 0 : index
    %c2 = arith.constant 2 : index
    %c0_20 = arith.constant 0 : index
    %21 = vector.load %arg1[%c0_19, %c2, %c0_20] : memref<1x120x128xbf16, #tpu.memory_space<vmem>>, vector<1x80x128xbf16>
    %22 = vector.shape_cast %21 : vector<1x80x128xbf16> to vector<80x128xbf16>
    %c0_21 = arith.constant 0 : index
    %c12 = arith.constant 12 : index
    %c0_22 = arith.constant 0 : index
    %23 = vector.load %arg1[%c0_21, %c12, %c0_22] : memref<1x120x128xbf16, #tpu.memory_space<vmem>>, vector<1x80x128xbf16>
    %24 = vector.shape_cast %23 : vector<1x80x128xbf16> to vector<80x128xbf16>
    %c0_23 = arith.constant 0 : index
    %c22 = arith.constant 22 : index
    %c0_24 = arith.constant 0 : index
    %25 = vector.load %arg1[%c0_23, %c22, %c0_24] : memref<1x120x128xbf16, #tpu.memory_space<vmem>>, vector<1x80x128xbf16>
    %26 = vector.shape_cast %25 : vector<1x80x128xbf16> to vector<80x128xbf16>
    %27 = tpu.concatenate %22, %24, %26 in 1 : vector<80x128xbf16>, vector<80x128xbf16>, vector<80x128xbf16> -> vector<80x384xbf16>
    %c2_25 = arith.constant 2 : index
    %c0_26 = arith.constant 0 : index
    %c0_27 = arith.constant 0 : index
    %28 = vector.load %arg2[%c2_25, %c0_26, %c0_27] : memref<3x384x128xbf16, #tpu.memory_space<vmem>>, vector<1x384x128xbf16>
    %29 = vector.shape_cast %28 : vector<1x384x128xbf16> to vector<384x128xbf16>
    %cst_28 = arith.constant dense<0.000000e+00> : vector<80x128xf32>
    %30 = tpu.matmul %27, %29, %cst_28 {dimension_numbers = #tpu.dot_dimension_numbers<[1], [0], [0], [1], [0, 0, 1, 1], [], []>} : vector<80x384xbf16>, vector<384x128xbf16>, vector<80x128xf32> -> vector<80x128xf32>
    %31 = arith.addf %20, %30 : vector<80x128xf32>
    %c0_29 = arith.constant 0 : index
    %c0_30 = arith.constant 0 : index
    %32 = vector.load %arg3[%c0_29, %c0_30] : memref<1x128xf32, #tpu.memory_space<vmem>>, vector<1x128xf32>
    %33 = vector.broadcast %32 : vector<1x128xf32> to vector<80x128xf32>
    %34 = arith.addf %31, %33 : vector<80x128xf32>
    %cst_31 = arith.constant 0.000000e+00 : f32
    %35 = vector.broadcast %cst_31 : f32 to vector<80x128xf32>
    %36 = arith.maximumf %34, %35 : vector<80x128xf32>
    %37 = arith.truncf %36 : vector<80x128xf32> to vector<80x128xbf16>
    %c0_32 = arith.constant 0 : index
    %c0_33 = arith.constant 0 : index
    %c0_34 = arith.constant 0 : index
    %38 = vector.load %arg4[%c0_32, %c0_33, %c0_34] : memref<1x80x128xbf16, #tpu.memory_space<vmem>>, vector<1x80x128xbf16>
    %39 = vector.shape_cast %38 : vector<1x80x128xbf16> to vector<80x128xbf16>
    %40 = vector.shape_cast %37 : vector<80x128xbf16> to vector<1x80x128xbf16>
    tpu.vector_store %arg4[%c0_32, %c0_33, %c0_34], %40 {strides = array<i32>} : memref<1x80x128xbf16, #tpu.memory_space<vmem>>, vector<1x80x128xbf16>,
    return
  }
  func.func @transform_0(%arg0: i32) -> (i32, i32, i32) {
    %c0_i32 = arith.constant 0 : i32
    %c0_i32_0 = arith.constant 0 : i32
    %c0_i32_1 = arith.constant 0 : i32
    return %arg0, %c0_i32, %c0_i32_0 : i32, i32, i32
  }
  func.func @transform_1(%arg0: i32) -> (i32, i32, i32) {
    %c0_i32 = arith.constant 0 : i32
    %c0_i32_0 = arith.constant 0 : i32
    %c0_i32_1 = arith.constant 0 : i32
    %c0_i32_2 = arith.constant 0 : i32
    return %c0_i32, %c0_i32_0, %c0_i32_1 : i32, i32, i32
  }
  func.func @transform_2(%arg0: i32) -> (i32, i32) {
    %c0_i32 = arith.constant 0 : i32
    %c0_i32_0 = arith.constant 0 : i32
    %c0_i32_1 = arith.constant 0 : i32
    return %c0_i32, %c0_i32_0 : i32, i32
  }
  func.func @transform_3(%arg0: i32) -> (i32, i32, i32) {
    %c0_i32 = arith.constant 0 : i32
    %c0_i32_0 = arith.constant 0 : i32
    %c0_i32_1 = arith.constant 0 : i32
    return %arg0, %c0_i32, %c0_i32_0 : i32, i32, i32
  }
}

module attributes {stable_mosaic.version = 11 : i64} {
  func.func @_matmul_bn_kernel(%arg0: i32, %arg1: i32, %arg2: memref<128x128xbf16, #tpu.memory_space<vmem>>, %arg3: memref<128x128xbf16, #tpu.memory_space<vmem>>, %arg4: memref<1x128xf32, #tpu.memory_space<vmem>>, %arg5: memref<128x128xbf16, #tpu.memory_space<vmem>>) attributes {dimension_semantics = [#tpu.dimension_semantics<parallel>, #tpu.dimension_semantics<parallel>], iteration_bounds = array<i64: 1, 1>, scalar_prefetch = 0 : i64, scratch_operands = 0 : i64, tpu.core_type = #tpu.core_type<tc>, window_params = [{transform_indices = @transform_0, window_bounds = array<i64: 128, 128>}, {transform_indices = @transform_1, window_bounds = array<i64: 128, 128>}, {transform_indices = @transform_2, window_bounds = array<i64: 1, 128>}, {transform_indices = @transform_3, window_bounds = array<i64: 128, 128>}]} {
    %c0 = arith.constant 0 : index
    %c0_0 = arith.constant 0 : index
    %0 = vector.load %arg2[%c0, %c0_0] : memref<128x128xbf16, #tpu.memory_space<vmem>>, vector<128x128xbf16>
    %c0_1 = arith.constant 0 : index
    %c0_2 = arith.constant 0 : index
    %1 = vector.load %arg3[%c0_1, %c0_2] : memref<128x128xbf16, #tpu.memory_space<vmem>>, vector<128x128xbf16>
    %cst = arith.constant dense<0.000000e+00> : vector<128x128xf32>
    %2 = tpu.matmul %0, %1, %cst {dimension_numbers = #tpu.dot_dimension_numbers<[1], [0], [0], [1], [0, 0, 1, 1], [], []>} : vector<128x128xbf16>, vector<128x128xbf16>, vector<128x128xf32> -> vector<128x128xf32>
    %c0_3 = arith.constant 0 : index
    %c0_4 = arith.constant 0 : index
    %3 = vector.load %arg4[%c0_3, %c0_4] : memref<1x128xf32, #tpu.memory_space<vmem>>, vector<1x128xf32>
    %4 = vector.broadcast %3 : vector<1x128xf32> to vector<128x128xf32>
    %5 = arith.addf %2, %4 : vector<128x128xf32>
    %6 = arith.truncf %5 : vector<128x128xf32> to vector<128x128xbf16>
    %c0_5 = arith.constant 0 : index
    %c0_6 = arith.constant 0 : index
    %7 = vector.load %arg5[%c0_5, %c0_6] : memref<128x128xbf16, #tpu.memory_space<vmem>>, vector<128x128xbf16>
    tpu.vector_store %arg5[%c0_5, %c0_6], %6 {strides = array<i32>} : memref<128x128xbf16, #tpu.memory_space<vmem>>, vector<128x128xbf16>,
    return
  }
  func.func @transform_0(%arg0: i32, %arg1: i32) -> (i32, i32) {
    %c0_i32 = arith.constant 0 : i32
    %c0_i32_0 = arith.constant 0 : i32
    return %arg0, %c0_i32 : i32, i32
  }
  func.func @transform_1(%arg0: i32, %arg1: i32) -> (i32, i32) {
    %c0_i32 = arith.constant 0 : i32
    %c0_i32_0 = arith.constant 0 : i32
    return %c0_i32, %arg1 : i32, i32
  }
  func.func @transform_2(%arg0: i32, %arg1: i32) -> (i32, i32) {
    %c0_i32 = arith.constant 0 : i32
    %c0_i32_0 = arith.constant 0 : i32
    return %c0_i32, %arg1 : i32, i32
  }
  func.func @transform_3(%arg0: i32, %arg1: i32) -> (i32, i32) {
    %c0_i32 = arith.constant 0 : i32
    return %arg0, %arg1 : i32, i32
  }
}

module attributes {stable_mosaic.version = 11 : i64} {
  func.func @_matmul_bn_res_kernel(%arg0: i32, %arg1: i32, %arg2: memref<128x128xbf16, #tpu.memory_space<vmem>>, %arg3: memref<128x128xbf16, #tpu.memory_space<vmem>>, %arg4: memref<1x128xf32, #tpu.memory_space<vmem>>, %arg5: memref<128x128xbf16, #tpu.memory_space<vmem>>, %arg6: memref<128x128xbf16, #tpu.memory_space<vmem>>) attributes {dimension_semantics = [#tpu.dimension_semantics<parallel>, #tpu.dimension_semantics<parallel>], iteration_bounds = array<i64: 1, 1>, scalar_prefetch = 0 : i64, scratch_operands = 0 : i64, tpu.core_type = #tpu.core_type<tc>, window_params = [{transform_indices = @transform_0, window_bounds = array<i64: 128, 128>}, {transform_indices = @transform_1, window_bounds = array<i64: 128, 128>}, {transform_indices = @transform_2, window_bounds = array<i64: 1, 128>}, {transform_indices = @transform_3, window_bounds = array<i64: 128, 128>}, {transform_indices = @transform_4, window_bounds = array<i64: 128, 128>}]} {
    %c0 = arith.constant 0 : index
    %c0_0 = arith.constant 0 : index
    %0 = vector.load %arg2[%c0, %c0_0] : memref<128x128xbf16, #tpu.memory_space<vmem>>, vector<128x128xbf16>
    %c0_1 = arith.constant 0 : index
    %c0_2 = arith.constant 0 : index
    %1 = vector.load %arg3[%c0_1, %c0_2] : memref<128x128xbf16, #tpu.memory_space<vmem>>, vector<128x128xbf16>
    %cst = arith.constant dense<0.000000e+00> : vector<128x128xf32>
    %2 = tpu.matmul %0, %1, %cst {dimension_numbers = #tpu.dot_dimension_numbers<[1], [0], [0], [1], [0, 0, 1, 1], [], []>} : vector<128x128xbf16>, vector<128x128xbf16>, vector<128x128xf32> -> vector<128x128xf32>
    %c0_3 = arith.constant 0 : index
    %c0_4 = arith.constant 0 : index
    %3 = vector.load %arg4[%c0_3, %c0_4] : memref<1x128xf32, #tpu.memory_space<vmem>>, vector<1x128xf32>
    %4 = vector.broadcast %3 : vector<1x128xf32> to vector<128x128xf32>
    %5 = arith.addf %2, %4 : vector<128x128xf32>
    %c0_5 = arith.constant 0 : index
    %c0_6 = arith.constant 0 : index
    %6 = vector.load %arg5[%c0_5, %c0_6] : memref<128x128xbf16, #tpu.memory_space<vmem>>, vector<128x128xbf16>
    %7 = arith.extf %6 : vector<128x128xbf16> to vector<128x128xf32>
    %8 = arith.addf %5, %7 : vector<128x128xf32>
    %cst_7 = arith.constant 0.000000e+00 : f32
    %9 = vector.broadcast %cst_7 : f32 to vector<128x128xf32>
    %10 = arith.maximumf %8, %9 : vector<128x128xf32>
    %11 = arith.truncf %10 : vector<128x128xf32> to vector<128x128xbf16>
    %c0_8 = arith.constant 0 : index
    %c0_9 = arith.constant 0 : index
    %12 = vector.load %arg6[%c0_8, %c0_9] : memref<128x128xbf16, #tpu.memory_space<vmem>>, vector<128x128xbf16>
    tpu.vector_store %arg6[%c0_8, %c0_9], %11 {strides = array<i32>} : memref<128x128xbf16, #tpu.memory_space<vmem>>, vector<128x128xbf16>,
    return
  }
  func.func @transform_0(%arg0: i32, %arg1: i32) -> (i32, i32) {
    %c0_i32 = arith.constant 0 : i32
    %c0_i32_0 = arith.constant 0 : i32
    return %arg0, %c0_i32 : i32, i32
  }
  func.func @transform_1(%arg0: i32, %arg1: i32) -> (i32, i32) {
    %c0_i32 = arith.constant 0 : i32
    %c0_i32_0 = arith.constant 0 : i32
    return %c0_i32, %arg1 : i32, i32
  }
  func.func @transform_2(%arg0: i32, %arg1: i32) -> (i32, i32) {
    %c0_i32 = arith.constant 0 : i32
    %c0_i32_0 = arith.constant 0 : i32
    return %c0_i32, %arg1 : i32, i32
  }
  func.func @transform_3(%arg0: i32, %arg1: i32) -> (i32, i32) {
    %c0_i32 = arith.constant 0 : i32
    return %arg0, %arg1 : i32, i32
  }
  func.func @transform_4(%arg0: i32, %arg1: i32) -> (i32, i32) {
    %c0_i32 = arith.constant 0 : i32
    return %arg0, %arg1 : i32, i32
  }
}

module attributes {stable_mosaic.version = 11 : i64} {
  func.func @_matmul_bn_kernel(%arg0: i32, %arg1: i32, %arg2: memref<128x1152xbf16, #tpu.memory_space<vmem>>, %arg3: memref<1152x128xbf16, #tpu.memory_space<vmem>>, %arg4: memref<1x128xf32, #tpu.memory_space<vmem>>, %arg5: memref<128x128xbf16, #tpu.memory_space<vmem>>) attributes {dimension_semantics = [#tpu.dimension_semantics<parallel>, #tpu.dimension_semantics<parallel>], iteration_bounds = array<i64: 1, 1>, scalar_prefetch = 0 : i64, scratch_operands = 0 : i64, tpu.core_type = #tpu.core_type<tc>, window_params = [{transform_indices = @transform_0, window_bounds = array<i64: 128, 1152>}, {transform_indices = @transform_1, window_bounds = array<i64: 1152, 128>}, {transform_indices = @transform_2, window_bounds = array<i64: 1, 128>}, {transform_indices = @transform_3, window_bounds = array<i64: 128, 128>}]} {
    %c0 = arith.constant 0 : index
    %c0_0 = arith.constant 0 : index
    %0 = vector.load %arg2[%c0, %c0_0] : memref<128x1152xbf16, #tpu.memory_space<vmem>>, vector<128x1152xbf16>
    %c0_1 = arith.constant 0 : index
    %c0_2 = arith.constant 0 : index
    %1 = vector.load %arg3[%c0_1, %c0_2] : memref<1152x128xbf16, #tpu.memory_space<vmem>>, vector<1152x128xbf16>
    %cst = arith.constant dense<0.000000e+00> : vector<128x128xf32>
    %2 = tpu.matmul %0, %1, %cst {dimension_numbers = #tpu.dot_dimension_numbers<[1], [0], [0], [1], [0, 0, 1, 1], [], []>} : vector<128x1152xbf16>, vector<1152x128xbf16>, vector<128x128xf32> -> vector<128x128xf32>
    %c0_3 = arith.constant 0 : index
    %c0_4 = arith.constant 0 : index
    %3 = vector.load %arg4[%c0_3, %c0_4] : memref<1x128xf32, #tpu.memory_space<vmem>>, vector<1x128xf32>
    %4 = vector.broadcast %3 : vector<1x128xf32> to vector<128x128xf32>
    %5 = arith.addf %2, %4 : vector<128x128xf32>
    %cst_5 = arith.constant 0.000000e+00 : f32
    %6 = vector.broadcast %cst_5 : f32 to vector<128x128xf32>
    %7 = arith.maximumf %5, %6 : vector<128x128xf32>
    %8 = arith.truncf %7 : vector<128x128xf32> to vector<128x128xbf16>
    %c0_6 = arith.constant 0 : index
    %c0_7 = arith.constant 0 : index
    %9 = vector.load %arg5[%c0_6, %c0_7] : memref<128x128xbf16, #tpu.memory_space<vmem>>, vector<128x128xbf16>
    tpu.vector_store %arg5[%c0_6, %c0_7], %8 {strides = array<i32>} : memref<128x128xbf16, #tpu.memory_space<vmem>>, vector<128x128xbf16>,
    return
  }
  func.func @transform_0(%arg0: i32, %arg1: i32) -> (i32, i32) {
    %c0_i32 = arith.constant 0 : i32
    %c0_i32_0 = arith.constant 0 : i32
    return %arg0, %c0_i32 : i32, i32
  }
  func.func @transform_1(%arg0: i32, %arg1: i32) -> (i32, i32) {
    %c0_i32 = arith.constant 0 : i32
    %c0_i32_0 = arith.constant 0 : i32
    return %c0_i32, %arg1 : i32, i32
  }
  func.func @transform_2(%arg0: i32, %arg1: i32) -> (i32, i32) {
    %c0_i32 = arith.constant 0 : i32
    %c0_i32_0 = arith.constant 0 : i32
    return %c0_i32, %arg1 : i32, i32
  }
  func.func @transform_3(%arg0: i32, %arg1: i32) -> (i32, i32) {
    %c0_i32 = arith.constant 0 : i32
    return %arg0, %arg1 : i32, i32
  }
}

module attributes {stable_mosaic.version = 11 : i64} {
  func.func @_conv3x3_kernel(%arg0: i32, %arg1: memref<1x48x128xbf16, #tpu.memory_space<vmem>>, %arg2: memref<3x384x128xbf16, #tpu.memory_space<vmem>>, %arg3: memref<1x128xf32, #tpu.memory_space<vmem>>, %arg4: memref<1x24x128xbf16, #tpu.memory_space<vmem>>) attributes {dimension_semantics = [#tpu.dimension_semantics<parallel>], iteration_bounds = array<i64: 2>, scalar_prefetch = 0 : i64, scratch_operands = 0 : i64, tpu.core_type = #tpu.core_type<tc>, window_params = [{transform_indices = @transform_0, window_bounds = array<i64: 1, 48, 128>}, {pipeline_mode = #tpu.pipeline_mode<synchronous>, transform_indices = @transform_1, window_bounds = array<i64: 3, 384, 128>}, {pipeline_mode = #tpu.pipeline_mode<synchronous>, transform_indices = @transform_2, window_bounds = array<i64: 1, 128>}, {transform_indices = @transform_3, window_bounds = array<i64: 1, 24, 128>}]} {
    %c0 = arith.constant 0 : index
    %c0_0 = arith.constant 0 : index
    %c0_1 = arith.constant 0 : index
    %0 = vector.load %arg1[%c0, %c0_0, %c0_1] : memref<1x48x128xbf16, #tpu.memory_space<vmem>>, vector<1x24x128xbf16>
    %1 = vector.shape_cast %0 : vector<1x24x128xbf16> to vector<24x128xbf16>
    %c0_2 = arith.constant 0 : index
    %c6 = arith.constant 6 : index
    %c0_3 = arith.constant 0 : index
    %2 = vector.load %arg1[%c0_2, %c6, %c0_3] : memref<1x48x128xbf16, #tpu.memory_space<vmem>>, vector<1x24x128xbf16>
    %3 = vector.shape_cast %2 : vector<1x24x128xbf16> to vector<24x128xbf16>
    %c0_4 = arith.constant 0 : index
    %c12 = arith.constant 12 : index
    %c0_5 = arith.constant 0 : index
    %4 = vector.load %arg1[%c0_4, %c12, %c0_5] : memref<1x48x128xbf16, #tpu.memory_space<vmem>>, vector<1x24x128xbf16>
    %5 = vector.shape_cast %4 : vector<1x24x128xbf16> to vector<24x128xbf16>
    %6 = tpu.concatenate %1, %3, %5 in 1 : vector<24x128xbf16>, vector<24x128xbf16>, vector<24x128xbf16> -> vector<24x384xbf16>
    %c0_6 = arith.constant 0 : index
    %c0_7 = arith.constant 0 : index
    %c0_8 = arith.constant 0 : index
    %7 = vector.load %arg2[%c0_6, %c0_7, %c0_8] : memref<3x384x128xbf16, #tpu.memory_space<vmem>>, vector<1x384x128xbf16>
    %8 = vector.shape_cast %7 : vector<1x384x128xbf16> to vector<384x128xbf16>
    %cst = arith.constant dense<0.000000e+00> : vector<24x128xf32>
    %9 = tpu.matmul %6, %8, %cst {dimension_numbers = #tpu.dot_dimension_numbers<[1], [0], [0], [1], [0, 0, 1, 1], [], []>} : vector<24x384xbf16>, vector<384x128xbf16>, vector<24x128xf32> -> vector<24x128xf32>
    %c0_9 = arith.constant 0 : index
    %c1 = arith.constant 1 : index
    %c0_10 = arith.constant 0 : index
    %10 = vector.load %arg1[%c0_9, %c1, %c0_10] : memref<1x48x128xbf16, #tpu.memory_space<vmem>>, vector<1x24x128xbf16>
    %11 = vector.shape_cast %10 : vector<1x24x128xbf16> to vector<24x128xbf16>
    %c0_11 = arith.constant 0 : index
    %c7 = arith.constant 7 : index
    %c0_12 = arith.constant 0 : index
    %12 = vector.load %arg1[%c0_11, %c7, %c0_12] : memref<1x48x128xbf16, #tpu.memory_space<vmem>>, vector<1x24x128xbf16>
    %13 = vector.shape_cast %12 : vector<1x24x128xbf16> to vector<24x128xbf16>
    %c0_13 = arith.constant 0 : index
    %c13 = arith.constant 13 : index
    %c0_14 = arith.constant 0 : index
    %14 = vector.load %arg1[%c0_13, %c13, %c0_14] : memref<1x48x128xbf16, #tpu.memory_space<vmem>>, vector<1x24x128xbf16>
    %15 = vector.shape_cast %14 : vector<1x24x128xbf16> to vector<24x128xbf16>
    %16 = tpu.concatenate %11, %13, %15 in 1 : vector<24x128xbf16>, vector<24x128xbf16>, vector<24x128xbf16> -> vector<24x384xbf16>
    %c1_15 = arith.constant 1 : index
    %c0_16 = arith.constant 0 : index
    %c0_17 = arith.constant 0 : index
    %17 = vector.load %arg2[%c1_15, %c0_16, %c0_17] : memref<3x384x128xbf16, #tpu.memory_space<vmem>>, vector<1x384x128xbf16>
    %18 = vector.shape_cast %17 : vector<1x384x128xbf16> to vector<384x128xbf16>
    %cst_18 = arith.constant dense<0.000000e+00> : vector<24x128xf32>
    %19 = tpu.matmul %16, %18, %cst_18 {dimension_numbers = #tpu.dot_dimension_numbers<[1], [0], [0], [1], [0, 0, 1, 1], [], []>} : vector<24x384xbf16>, vector<384x128xbf16>, vector<24x128xf32> -> vector<24x128xf32>
    %20 = arith.addf %9, %19 : vector<24x128xf32>
    %c0_19 = arith.constant 0 : index
    %c2 = arith.constant 2 : index
    %c0_20 = arith.constant 0 : index
    %21 = vector.load %arg1[%c0_19, %c2, %c0_20] : memref<1x48x128xbf16, #tpu.memory_space<vmem>>, vector<1x24x128xbf16>
    %22 = vector.shape_cast %21 : vector<1x24x128xbf16> to vector<24x128xbf16>
    %c0_21 = arith.constant 0 : index
    %c8 = arith.constant 8 : index
    %c0_22 = arith.constant 0 : index
    %23 = vector.load %arg1[%c0_21, %c8, %c0_22] : memref<1x48x128xbf16, #tpu.memory_space<vmem>>, vector<1x24x128xbf16>
    %24 = vector.shape_cast %23 : vector<1x24x128xbf16> to vector<24x128xbf16>
    %c0_23 = arith.constant 0 : index
    %c14 = arith.constant 14 : index
    %c0_24 = arith.constant 0 : index
    %25 = vector.load %arg1[%c0_23, %c14, %c0_24] : memref<1x48x128xbf16, #tpu.memory_space<vmem>>, vector<1x24x128xbf16>
    %26 = vector.shape_cast %25 : vector<1x24x128xbf16> to vector<24x128xbf16>
    %27 = tpu.concatenate %22, %24, %26 in 1 : vector<24x128xbf16>, vector<24x128xbf16>, vector<24x128xbf16> -> vector<24x384xbf16>
    %c2_25 = arith.constant 2 : index
    %c0_26 = arith.constant 0 : index
    %c0_27 = arith.constant 0 : index
    %28 = vector.load %arg2[%c2_25, %c0_26, %c0_27] : memref<3x384x128xbf16, #tpu.memory_space<vmem>>, vector<1x384x128xbf16>
    %29 = vector.shape_cast %28 : vector<1x384x128xbf16> to vector<384x128xbf16>
    %cst_28 = arith.constant dense<0.000000e+00> : vector<24x128xf32>
    %30 = tpu.matmul %27, %29, %cst_28 {dimension_numbers = #tpu.dot_dimension_numbers<[1], [0], [0], [1], [0, 0, 1, 1], [], []>} : vector<24x384xbf16>, vector<384x128xbf16>, vector<24x128xf32> -> vector<24x128xf32>
    %31 = arith.addf %20, %30 : vector<24x128xf32>
    %c0_29 = arith.constant 0 : index
    %c0_30 = arith.constant 0 : index
    %32 = vector.load %arg3[%c0_29, %c0_30] : memref<1x128xf32, #tpu.memory_space<vmem>>, vector<1x128xf32>
    %33 = vector.broadcast %32 : vector<1x128xf32> to vector<24x128xf32>
    %34 = arith.addf %31, %33 : vector<24x128xf32>
    %cst_31 = arith.constant 0.000000e+00 : f32
    %35 = vector.broadcast %cst_31 : f32 to vector<24x128xf32>
    %36 = arith.maximumf %34, %35 : vector<24x128xf32>
    %37 = arith.truncf %36 : vector<24x128xf32> to vector<24x128xbf16>
    %c0_32 = arith.constant 0 : index
    %c0_33 = arith.constant 0 : index
    %c0_34 = arith.constant 0 : index
    %38 = vector.load %arg4[%c0_32, %c0_33, %c0_34] : memref<1x24x128xbf16, #tpu.memory_space<vmem>>, vector<1x24x128xbf16>
    %39 = vector.shape_cast %38 : vector<1x24x128xbf16> to vector<24x128xbf16>
    %40 = vector.shape_cast %37 : vector<24x128xbf16> to vector<1x24x128xbf16>
    tpu.vector_store %arg4[%c0_32, %c0_33, %c0_34], %40 {strides = array<i32>} : memref<1x24x128xbf16, #tpu.memory_space<vmem>>, vector<1x24x128xbf16>,
    return
  }
  func.func @transform_0(%arg0: i32) -> (i32, i32, i32) {
    %c0_i32 = arith.constant 0 : i32
    %c0_i32_0 = arith.constant 0 : i32
    %c0_i32_1 = arith.constant 0 : i32
    return %arg0, %c0_i32, %c0_i32_0 : i32, i32, i32
  }
  func.func @transform_1(%arg0: i32) -> (i32, i32, i32) {
    %c0_i32 = arith.constant 0 : i32
    %c0_i32_0 = arith.constant 0 : i32
    %c0_i32_1 = arith.constant 0 : i32
    %c0_i32_2 = arith.constant 0 : i32
    return %c0_i32, %c0_i32_0, %c0_i32_1 : i32, i32, i32
  }
  func.func @transform_2(%arg0: i32) -> (i32, i32) {
    %c0_i32 = arith.constant 0 : i32
    %c0_i32_0 = arith.constant 0 : i32
    %c0_i32_1 = arith.constant 0 : i32
    return %c0_i32, %c0_i32_0 : i32, i32
  }
  func.func @transform_3(%arg0: i32) -> (i32, i32, i32) {
    %c0_i32 = arith.constant 0 : i32
    %c0_i32_0 = arith.constant 0 : i32
    %c0_i32_1 = arith.constant 0 : i32
    return %arg0, %c0_i32, %c0_i32_0 : i32, i32, i32
  }
}

module attributes {stable_mosaic.version = 11 : i64} {
  func.func @_conv3x3_kernel(%arg0: i32, %arg1: memref<1x24x128xbf16, #tpu.memory_space<vmem>>, %arg2: memref<3x384x128xbf16, #tpu.memory_space<vmem>>, %arg3: memref<1x128xf32, #tpu.memory_space<vmem>>, %arg4: memref<1x8x128xbf16, #tpu.memory_space<vmem>>) attributes {dimension_semantics = [#tpu.dimension_semantics<parallel>], iteration_bounds = array<i64: 2>, scalar_prefetch = 0 : i64, scratch_operands = 0 : i64, tpu.core_type = #tpu.core_type<tc>, window_params = [{transform_indices = @transform_0, window_bounds = array<i64: 1, 24, 128>}, {pipeline_mode = #tpu.pipeline_mode<synchronous>, transform_indices = @transform_1, window_bounds = array<i64: 3, 384, 128>}, {pipeline_mode = #tpu.pipeline_mode<synchronous>, transform_indices = @transform_2, window_bounds = array<i64: 1, 128>}, {transform_indices = @transform_3, window_bounds = array<i64: 1, 8, 128>}]} {
    %c0 = arith.constant 0 : index
    %c0_0 = arith.constant 0 : index
    %c0_1 = arith.constant 0 : index
    %0 = vector.load %arg1[%c0, %c0_0, %c0_1] : memref<1x24x128xbf16, #tpu.memory_space<vmem>>, vector<1x8x128xbf16>
    %1 = vector.shape_cast %0 : vector<1x8x128xbf16> to vector<8x128xbf16>
    %c0_2 = arith.constant 0 : index
    %c4 = arith.constant 4 : index
    %c0_3 = arith.constant 0 : index
    %2 = vector.load %arg1[%c0_2, %c4, %c0_3] : memref<1x24x128xbf16, #tpu.memory_space<vmem>>, vector<1x8x128xbf16>
    %3 = vector.shape_cast %2 : vector<1x8x128xbf16> to vector<8x128xbf16>
    %c0_4 = arith.constant 0 : index
    %c8 = arith.constant 8 : index
    %c0_5 = arith.constant 0 : index
    %4 = vector.load %arg1[%c0_4, %c8, %c0_5] : memref<1x24x128xbf16, #tpu.memory_space<vmem>>, vector<1x8x128xbf16>
    %5 = vector.shape_cast %4 : vector<1x8x128xbf16> to vector<8x128xbf16>
    %6 = tpu.concatenate %1, %3, %5 in 1 : vector<8x128xbf16>, vector<8x128xbf16>, vector<8x128xbf16> -> vector<8x384xbf16>
    %c0_6 = arith.constant 0 : index
    %c0_7 = arith.constant 0 : index
    %c0_8 = arith.constant 0 : index
    %7 = vector.load %arg2[%c0_6, %c0_7, %c0_8] : memref<3x384x128xbf16, #tpu.memory_space<vmem>>, vector<1x384x128xbf16>
    %8 = vector.shape_cast %7 : vector<1x384x128xbf16> to vector<384x128xbf16>
    %cst = arith.constant dense<0.000000e+00> : vector<8x128xf32>
    %9 = tpu.matmul %6, %8, %cst {dimension_numbers = #tpu.dot_dimension_numbers<[1], [0], [0], [1], [0, 0, 1, 1], [], []>} : vector<8x384xbf16>, vector<384x128xbf16>, vector<8x128xf32> -> vector<8x128xf32>
    %c0_9 = arith.constant 0 : index
    %c1 = arith.constant 1 : index
    %c0_10 = arith.constant 0 : index
    %10 = vector.load %arg1[%c0_9, %c1, %c0_10] : memref<1x24x128xbf16, #tpu.memory_space<vmem>>, vector<1x8x128xbf16>
    %11 = vector.shape_cast %10 : vector<1x8x128xbf16> to vector<8x128xbf16>
    %c0_11 = arith.constant 0 : index
    %c5 = arith.constant 5 : index
    %c0_12 = arith.constant 0 : index
    %12 = vector.load %arg1[%c0_11, %c5, %c0_12] : memref<1x24x128xbf16, #tpu.memory_space<vmem>>, vector<1x8x128xbf16>
    %13 = vector.shape_cast %12 : vector<1x8x128xbf16> to vector<8x128xbf16>
    %c0_13 = arith.constant 0 : index
    %c9 = arith.constant 9 : index
    %c0_14 = arith.constant 0 : index
    %14 = vector.load %arg1[%c0_13, %c9, %c0_14] : memref<1x24x128xbf16, #tpu.memory_space<vmem>>, vector<1x8x128xbf16>
    %15 = vector.shape_cast %14 : vector<1x8x128xbf16> to vector<8x128xbf16>
    %16 = tpu.concatenate %11, %13, %15 in 1 : vector<8x128xbf16>, vector<8x128xbf16>, vector<8x128xbf16> -> vector<8x384xbf16>
    %c1_15 = arith.constant 1 : index
    %c0_16 = arith.constant 0 : index
    %c0_17 = arith.constant 0 : index
    %17 = vector.load %arg2[%c1_15, %c0_16, %c0_17] : memref<3x384x128xbf16, #tpu.memory_space<vmem>>, vector<1x384x128xbf16>
    %18 = vector.shape_cast %17 : vector<1x384x128xbf16> to vector<384x128xbf16>
    %cst_18 = arith.constant dense<0.000000e+00> : vector<8x128xf32>
    %19 = tpu.matmul %16, %18, %cst_18 {dimension_numbers = #tpu.dot_dimension_numbers<[1], [0], [0], [1], [0, 0, 1, 1], [], []>} : vector<8x384xbf16>, vector<384x128xbf16>, vector<8x128xf32> -> vector<8x128xf32>
    %20 = arith.addf %9, %19 : vector<8x128xf32>
    %c0_19 = arith.constant 0 : index
    %c2 = arith.constant 2 : index
    %c0_20 = arith.constant 0 : index
    %21 = vector.load %arg1[%c0_19, %c2, %c0_20] : memref<1x24x128xbf16, #tpu.memory_space<vmem>>, vector<1x8x128xbf16>
    %22 = vector.shape_cast %21 : vector<1x8x128xbf16> to vector<8x128xbf16>
    %c0_21 = arith.constant 0 : index
    %c6 = arith.constant 6 : index
    %c0_22 = arith.constant 0 : index
    %23 = vector.load %arg1[%c0_21, %c6, %c0_22] : memref<1x24x128xbf16, #tpu.memory_space<vmem>>, vector<1x8x128xbf16>
    %24 = vector.shape_cast %23 : vector<1x8x128xbf16> to vector<8x128xbf16>
    %c0_23 = arith.constant 0 : index
    %c10 = arith.constant 10 : index
    %c0_24 = arith.constant 0 : index
    %25 = vector.load %arg1[%c0_23, %c10, %c0_24] : memref<1x24x128xbf16, #tpu.memory_space<vmem>>, vector<1x8x128xbf16>
    %26 = vector.shape_cast %25 : vector<1x8x128xbf16> to vector<8x128xbf16>
    %27 = tpu.concatenate %22, %24, %26 in 1 : vector<8x128xbf16>, vector<8x128xbf16>, vector<8x128xbf16> -> vector<8x384xbf16>
    %c2_25 = arith.constant 2 : index
    %c0_26 = arith.constant 0 : index
    %c0_27 = arith.constant 0 : index
    %28 = vector.load %arg2[%c2_25, %c0_26, %c0_27] : memref<3x384x128xbf16, #tpu.memory_space<vmem>>, vector<1x384x128xbf16>
    %29 = vector.shape_cast %28 : vector<1x384x128xbf16> to vector<384x128xbf16>
    %cst_28 = arith.constant dense<0.000000e+00> : vector<8x128xf32>
    %30 = tpu.matmul %27, %29, %cst_28 {dimension_numbers = #tpu.dot_dimension_numbers<[1], [0], [0], [1], [0, 0, 1, 1], [], []>} : vector<8x384xbf16>, vector<384x128xbf16>, vector<8x128xf32> -> vector<8x128xf32>
    %31 = arith.addf %20, %30 : vector<8x128xf32>
    %c0_29 = arith.constant 0 : index
    %c0_30 = arith.constant 0 : index
    %32 = vector.load %arg3[%c0_29, %c0_30] : memref<1x128xf32, #tpu.memory_space<vmem>>, vector<1x128xf32>
    %33 = vector.broadcast %32 : vector<1x128xf32> to vector<8x128xf32>
    %34 = arith.addf %31, %33 : vector<8x128xf32>
    %cst_31 = arith.constant 0.000000e+00 : f32
    %35 = vector.broadcast %cst_31 : f32 to vector<8x128xf32>
    %36 = arith.maximumf %34, %35 : vector<8x128xf32>
    %37 = arith.truncf %36 : vector<8x128xf32> to vector<8x128xbf16>
    %c0_32 = arith.constant 0 : index
    %c0_33 = arith.constant 0 : index
    %c0_34 = arith.constant 0 : index
    %38 = vector.load %arg4[%c0_32, %c0_33, %c0_34] : memref<1x8x128xbf16, #tpu.memory_space<vmem>>, vector<1x8x128xbf16>
    %39 = vector.shape_cast %38 : vector<1x8x128xbf16> to vector<8x128xbf16>
    %40 = vector.shape_cast %37 : vector<8x128xbf16> to vector<1x8x128xbf16>
    tpu.vector_store %arg4[%c0_32, %c0_33, %c0_34], %40 {strides = array<i32>} : memref<1x8x128xbf16, #tpu.memory_space<vmem>>, vector<1x8x128xbf16>,
    return
  }
  func.func @transform_0(%arg0: i32) -> (i32, i32, i32) {
    %c0_i32 = arith.constant 0 : i32
    %c0_i32_0 = arith.constant 0 : i32
    %c0_i32_1 = arith.constant 0 : i32
    return %arg0, %c0_i32, %c0_i32_0 : i32, i32, i32
  }
  func.func @transform_1(%arg0: i32) -> (i32, i32, i32) {
    %c0_i32 = arith.constant 0 : i32
    %c0_i32_0 = arith.constant 0 : i32
    %c0_i32_1 = arith.constant 0 : i32
    %c0_i32_2 = arith.constant 0 : i32
    return %c0_i32, %c0_i32_0, %c0_i32_1 : i32, i32, i32
  }
  func.func @transform_2(%arg0: i32) -> (i32, i32) {
    %c0_i32 = arith.constant 0 : i32
    %c0_i32_0 = arith.constant 0 : i32
    %c0_i32_1 = arith.constant 0 : i32
    return %c0_i32, %c0_i32_0 : i32, i32
  }
  func.func @transform_3(%arg0: i32) -> (i32, i32, i32) {
    %c0_i32 = arith.constant 0 : i32
    %c0_i32_0 = arith.constant 0 : i32
    %c0_i32_1 = arith.constant 0 : i32
    return %arg0, %c0_i32, %c0_i32_0 : i32, i32, i32
  }
}

</mosaic_0001>

<llo_original>
// kernel: _lambda_.25
$region0: #{_lambda_.25}
  #allocation0 [shape = 'u32[]', space=smem, size = 0x4, offset = 0x4, fixed_abs, tag = 'smem constant byte address 0x4 - core index']
  #allocation1 [shape = 'u32[144,128]{1,0:T(1,128)}', space=vmem, size = 0x12000, scoped, tag = 'internal scratch']
  %s0 = inlined_call_operand.vmem [shape: bf16[128,128], index: 0, kind: input, shape index: {}]
  %s1 = inlined_call_operand.vmem [shape: bf16[128,128], index: 1, kind: input, shape index: {}]
  %s2 = inlined_call_operand.vmem [shape: f32[1,128], index: 2, kind: input, shape index: {}]
  %s3 = inlined_call_operand.vmem [shape: bf16[128,128], index: 3, kind: output, shape index: {}]
  %s4 = sld [smem:[#allocation0]]
  $region22: #{_lambda_.25} parent=0
    _
  %s6 = ssub.s32 1, %s4
  %s7 = scalar_select 0, %s6, %s4
  // Predicated region
  $region2: #{_lambda_.25} parent=0 // pred_check
    _
  $region3: #{_lambda_.25} parent=0 // pred_check_branch
    %9 = sbr.rel (0) target = $region5
  $region4: #{_lambda_.25} parent=0 // pred_region
    _
  $region5: #{_lambda_.25} parent=0 // pred_fallthru
    _
  // Predicated region
  $region6: #{_lambda_.25} parent=0 // pred_check
    _
  $region7: #{_lambda_.25} parent=0 // pred_check_branch
    %11 = sbr.rel (0) target = $region9
  $region8: #{_lambda_.25} parent=0 // pred_region
    _
  $region9: #{_lambda_.25} parent=0 // pred_fallthru
    _
  // Predicated region
  $region10: #{_lambda_.25} parent=0 // pred_check
    _
  $region11: #{_lambda_.25} parent=0 // pred_check_branch
    %13 = sbr.rel (0) target = $region13
  $region12: #{_lambda_.25} parent=0 // pred_region
    _
  $region13: #{_lambda_.25} parent=0 // pred_fallthru
    _
  %v15 = vld [vmem:[%s0] sm:$0xf]
  %v16 = vld [vmem:[%s0 + $0x4] sm:$0xf]
  %v17 = vld [vmem:[%s0 + $0x8] sm:$0xf]
  %v18 = vld [vmem:[%s0 + $0xc] sm:$0xf]
  %v19 = vld [vmem:[%s0 + $0x10] sm:$0xf]
  %v20 = vld [vmem:[%s0 + $0x14] sm:$0xf]
  %v21 = vld [vmem:[%s0 + $0x18] sm:$0xf]
  %v22 = vld [vmem:[%s0 + $0x1c] sm:$0xf]
  %v23 = vld [vmem:[%s0 + $0x20] sm:$0xf]
  %v24 = vld [vmem:[%s0 + $0x24] sm:$0xf]
  %v25 = vld [vmem:[%s0 + $0x28] sm:$0xf]
  %v26 = vld [vmem:[%s0 + $0x2c] sm:$0xf]
  %v27 = vld [vmem:[%s0 + $0x30] sm:$0xf]
  %v28 = vld [vmem:[%s0 + $0x34] sm:$0xf]
  %v29 = vld [vmem:[%s0 + $0x38] sm:$0xf]
  %v30 = vld [vmem:[%s0 + $0x3c] sm:$0xf]
  %v31 = vld [vmem:[%s1] sm:$0xf]
  %v32 = vld [vmem:[%s1 + $0x4] sm:$0xf]
  %v33 = vld [vmem:[%s1 + $0x8] sm:$0xf]
  %v34 = vld [vmem:[%s1 + $0xc] sm:$0xf]
  %v35 = vld [vmem:[%s1 + $0x10] sm:$0xf]
  %v36 = vld [vmem:[%s1 + $0x14] sm:$0xf]
  %v37 = vld [vmem:[%s1 + $0x18] sm:$0xf]
  %v38 = vld [vmem:[%s1 + $0x1c] sm:$0xf]
  %v39 = vld [vmem:[%s1 + $0x20] sm:$0xf]
  %v40 = vld [vmem:[%s1 + $0x24] sm:$0xf]
  %v41 = vld [vmem:[%s1 + $0x28] sm:$0xf]
  %v42 = vld [vmem:[%s1 + $0x2c] sm:$0xf]
  %v43 = vld [vmem:[%s1 + $0x30] sm:$0xf]
  %v44 = vld [vmem:[%s1 + $0x34] sm:$0xf]
  %v45 = vld [vmem:[%s1 + $0x38] sm:$0xf]
  %v46 = vld [vmem:[%s1 + $0x3c] sm:$0xf]
  %v47 = vld [vmem:[%s2] sm:$0x1]
  %v49 = vlaneseq
  %v50 = vshrl.u32 %v49, 7
  %v51 = vsub.s32 0, %v50
  %v52 = vrot.slane %v47, %v51
  %v70 = vunpack.c.l.b16 %v15
  %v71 = vunpack.c.l.b16 %v16
  %v72 = vunpack.c.l.b16 %v17
  %v73 = vunpack.c.l.b16 %v18
  %v74 = vunpack.c.l.b16 %v19
  %v75 = vunpack.c.l.b16 %v20
  %v76 = vunpack.c.l.b16 %v21
  %v77 = vunpack.c.l.b16 %v22
  %v78 = vunpack.c.l.b16 %v23
  %v79 = vunpack.c.l.b16 %v24
  %v80 = vunpack.c.l.b16 %v25
  %v81 = vunpack.c.l.b16 %v26
  %v82 = vunpack.c.l.b16 %v27
  %v83 = vunpack.c.l.b16 %v28
  %v84 = vunpack.c.l.b16 %v29
  %v85 = vunpack.c.l.b16 %v30
  %v86 = vpack.c.b16 %v71, %v70
  %v87 = vpack.c.b16 %v73, %v72
  %v88 = vpack.c.b16 %v75, %v74
  %v89 = vpack.c.b16 %v77, %v76
  %v90 = vpack.c.b16 %v79, %v78
  %v91 = vpack.c.b16 %v81, %v80
  %v92 = vpack.c.b16 %v83, %v82
  %v93 = vpack.c.b16 %v85, %v84
  %v118 = vunpack.c.l.b16 %v31
  %v119 = vunpack.c.l.b16 %v32
  %v120 = vunpack.c.l.b16 %v33
  %v121 = vunpack.c.l.b16 %v34
  %v122 = vunpack.c.l.b16 %v35
  %v123 = vunpack.c.l.b16 %v36
  %v124 = vunpack.c.l.b16 %v37
  %v125 = vunpack.c.l.b16 %v38
  %v126 = vunpack.c.l.b16 %v39
  %v127 = vunpack.c.l.b16 %v40
  %v128 = vunpack.c.l.b16 %v41
  %v129 = vunpack.c.l.b16 %v42
  %v130 = vunpack.c.l.b16 %v43
  %v131 = vunpack.c.l.b16 %v44
  %v132 = vunpack.c.l.b16 %v45
  %v133 = vunpack.c.l.b16 %v46
  %v134 = vpack.c.b16 %v119, %v118
  %v135 = vpack.c.b16 %v121, %v120
  %v136 = vpack.c.b16 %v123, %v122
  %v137 = vpack.c.b16 %v125, %v124
  %v138 = vpack.c.b16 %v127, %v126
  %v139 = vpack.c.b16 %v129, %v128
  %v140 = vpack.c.b16 %v131, %v130
  %v141 = vpack.c.b16 %v133, %v132
  %150 = vmatprep.subr.bf16.mxu0 0
  %151 = vmatpush1.bf16.msra.mxu0 %v141
  %152 = vmatprep.subr.bf16.mxu0 0
  %153 = vmatpush1.bf16.msra.mxu0 %v140
  %154 = vmatprep.subr.bf16.mxu0 0
  %155 = vmatpush1.bf16.msra.mxu0 %v139
  %156 = vmatprep.subr.bf16.mxu0 0
  %157 = vmatpush1.bf16.msra.mxu0 %v138
  %158 = vmatprep.subr.bf16.mxu0 0
  %159 = vmatpush1.bf16.msra.mxu0 %v137
  %160 = vmatprep.subr.bf16.mxu0 0
  %161 = vmatpush1.bf16.msra.mxu0 %v136
  %162 = vmatprep.subr.bf16.mxu0 0
  %163 = vmatpush1.bf16.msra.mxu0 %v135
  %164 = vmatprep.subr.bf16.mxu0 0
  %165 = vmatpush1.bf16.msra.mxu0 %v134
  %166 = vmatprep.subr.bf16.mxu0 0
  %167 = vmatpush2.bf16.msra.mxu0 0
  %168 = vmatprep.subr.bf16.mxu0 0
  %169 = vmatpush2.bf16.msra.mxu0 0
  %170 = vmatprep.subr.bf16.mxu0 0
  %171 = vmatpush2.bf16.msra.mxu0 0
  %172 = vmatprep.subr.bf16.mxu0 0
  %173 = vmatpush2.bf16.msra.mxu0 0
  %174 = vmatprep.subr.bf16.mxu0 0
  %175 = vmatpush2.bf16.msra.mxu0 0
  %176 = vmatprep.subr.bf16.mxu0 0
  %177 = vmatpush2.bf16.msra.mxu0 0
  %178 = vmatprep.subr.bf16.mxu0 0
  %179 = vmatpush2.bf16.msra.mxu0 0
  %180 = vmatprep.subr.bf16.mxu0 0
  %181 = vmatpush2.bf16.msra.mxu0 0
  %182 = vmatprep.mubr.bf16.mxu0 0
  %183 = vmatmul.mubr.bf16.gmra.mxu0 %v86
  %v184 = vpop.f32.mrf.mxu0
  %v185 = vadd.f32 %v52, %v184
  %v186 = vpop.f32.mrf.mxu0
  %v187 = vpop.f32.mrf.mxu0
  %v188 = vadd.f32 %v52, %v187
  %v189 = vpop.f32.mrf.mxu0
  %190 = vmatprep.mubr.bf16.mxu0 0
  %191 = vmatmul.mubr.bf16.gmra.mxu0 %v87
  %v192 = vpop.f32.mrf.mxu0
  %v193 = vadd.f32 %v52, %v192
  %v194 = vpop.f32.mrf.mxu0
  %v195 = vpop.f32.mrf.mxu0
  %v196 = vadd.f32 %v52, %v195
  %v197 = vpop.f32.mrf.mxu0
  %198 = vmatprep.mubr.bf16.mxu0 0
  %199 = vmatmul.mubr.bf16.gmra.mxu0 %v88
  %v200 = vpop.f32.mrf.mxu0
  %v201 = vadd.f32 %v52, %v200
  %v202 = vpop.f32.mrf.mxu0
  %v203 = vpop.f32.mrf.mxu0
  %v204 = vadd.f32 %v52, %v203
  %v205 = vpop.f32.mrf.mxu0
  %206 = vmatprep.mubr.bf16.mxu0 0
  %207 = vmatmul.mubr.bf16.gmra.mxu0 %v89
  %v208 = vpop.f32.mrf.mxu0
  %v209 = vadd.f32 %v52, %v208
  %v210 = vpop.f32.mrf.mxu0
  %v211 = vpop.f32.mrf.mxu0
  %v212 = vadd.f32 %v52, %v211
  %v213 = vpop.f32.mrf.mxu0
  %214 = vmatprep.mubr.bf16.mxu0 0
  %215 = vmatmul.mubr.bf16.gmra.mxu0 %v90
  %v216 = vpop.f32.mrf.mxu0
  %v217 = vadd.f32 %v52, %v216
  %v218 = vpop.f32.mrf.mxu0
  %v219 = vpop.f32.mrf.mxu0
  %v220 = vadd.f32 %v52, %v219
  %v221 = vpop.f32.mrf.mxu0
  %222 = vmatprep.mubr.bf16.mxu0 0
  %223 = vmatmul.mubr.bf16.gmra.mxu0 %v91
  %v224 = vpop.f32.mrf.mxu0
  %v225 = vadd.f32 %v52, %v224
  %v226 = vpop.f32.mrf.mxu0
  %v227 = vpop.f32.mrf.mxu0
  %v228 = vadd.f32 %v52, %v227
  %v229 = vpop.f32.mrf.mxu0
  %230 = vmatprep.mubr.bf16.mxu0 0
  %231 = vmatmul.mubr.bf16.gmra.mxu0 %v92
  %v232 = vpop.f32.mrf.mxu0
  %v233 = vadd.f32 %v52, %v232
  %v234 = vpop.f32.mrf.mxu0
  %v235 = vpop.f32.mrf.mxu0
  %v236 = vadd.f32 %v52, %v235
  %v237 = vpop.f32.mrf.mxu0
  %238 = vmatprep.mubr.bf16.mxu0 0
  %239 = vmatmul.mubr.bf16.gmra.mxu0 %v93
  %v240 = vpop.f32.mrf.mxu0
  %v241 = vadd.f32 %v52, %v240
  %v242 = vpop.f32.mrf.mxu0
  %v243 = vpop.f32.mrf.mxu0
  %v244 = vadd.f32 %v52, %v243
  %v245 = vpop.f32.mrf.mxu0
  %246 = vdwg.mxu0
  %v247 = vmax.f32 %v185, 0.0
  %v248 = vmax.f32 %v188, 0.0
  %v249 = vmax.f32 %v193, 0.0
  %v250 = vmax.f32 %v196, 0.0
  %v251 = vmax.f32 %v201, 0.0
  %v252 = vmax.f32 %v204, 0.0
  %v253 = vmax.f32 %v209, 0.0
  %v254 = vmax.f32 %v212, 0.0
  %v255 = vmax.f32 %v217, 0.0
  %v256 = vmax.f32 %v220, 0.0
  %v257 = vmax.f32 %v225, 0.0
  %v258 = vmax.f32 %v228, 0.0
  %v259 = vmax.f32 %v233, 0.0
  %v260 = vmax.f32 %v236, 0.0
  %v261 = vmax.f32 %v241, 0.0
  %v262 = vmax.f32 %v244, 0.0
  %v263 = vpack.c.bf16 %v248, %v247
  %v264 = vpack.c.bf16 %v250, %v249
  %v265 = vpack.c.bf16 %v252, %v251
  %v266 = vpack.c.bf16 %v254, %v253
  %v267 = vpack.c.bf16 %v256, %v255
  %v268 = vpack.c.bf16 %v258, %v257
  %v269 = vpack.c.bf16 %v260, %v259
  %v270 = vpack.c.bf16 %v262, %v261
  %v279 = vunpack.c.l.b16 %v263
  %v280 = vunpack.c.h.b16 %v263
  %v281 = vunpack.c.l.b16 %v264
  %v282 = vunpack.c.h.b16 %v264
  %v283 = vunpack.c.l.b16 %v265
  %v284 = vunpack.c.h.b16 %v265
  %v285 = vunpack.c.l.b16 %v266
  %v286 = vunpack.c.h.b16 %v266
  %v287 = vunpack.c.l.b16 %v267
  %v288 = vunpack.c.h.b16 %v267
  %v289 = vunpack.c.l.b16 %v268
  %v290 = vunpack.c.h.b16 %v268
  %v291 = vunpack.c.l.b16 %v269
  %v292 = vunpack.c.h.b16 %v269
  %v293 = vunpack.c.l.b16 %v270
  %v294 = vunpack.c.h.b16 %v270
  %v295 = vpack.c.b16 %v279, %v279
  %v296 = vpack.c.b16 %v280, %v280
  %v297 = vpack.c.b16 %v281, %v281
  %v298 = vpack.c.b16 %v282, %v282
  %v299 = vpack.c.b16 %v283, %v283
  %v300 = vpack.c.b16 %v284, %v284
  %v301 = vpack.c.b16 %v285, %v285
  %v302 = vpack.c.b16 %v286, %v286
  %v303 = vpack.c.b16 %v287, %v287
  %v304 = vpack.c.b16 %v288, %v288
  %v305 = vpack.c.b16 %v289, %v289
  %v306 = vpack.c.b16 %v290, %v290
  %v307 = vpack.c.b16 %v291, %v291
  %v308 = vpack.c.b16 %v292, %v292
  %v309 = vpack.c.b16 %v293, %v293
  %v310 = vpack.c.b16 %v294, %v294
  %327 = vst [vmem:[%s3] sm:$0xf] %v295
  %328 = vst [vmem:[%s3 + $0x4] sm:$0xf] %v296
  %329 = vst [vmem:[%s3 + $0x8] sm:$0xf] %v297
  %330 = vst [vmem:[%s3 + $0xc] sm:$0xf] %v298
  %331 = vst [vmem:[%s3 + $0x10] sm:$0xf] %v299
  %332 = vst [vmem:[%s3 + $0x14] sm:$0xf] %v300
  %333 = vst [vmem:[%s3 + $0x18] sm:$0xf] %v301
  %334 = vst [vmem:[%s3 + $0x1c] sm:$0xf] %v302
  %335 = vst [vmem:[%s3 + $0x20] sm:$0xf] %v303
  %336 = vst [vmem:[%s3 + $0x24] sm:$0xf] %v304
  %337 = vst [vmem:[%s3 + $0x28] sm:$0xf] %v305
  %338 = vst [vmem:[%s3 + $0x2c] sm:$0xf] %v306
  %339 = vst [vmem:[%s3 + $0x30] sm:$0xf] %v307
  %340 = vst [vmem:[%s3 + $0x34] sm:$0xf] %v308
  %341 = vst [vmem:[%s3 + $0x38] sm:$0xf] %v309
  %342 = vst [vmem:[%s3 + $0x3c] sm:$0xf] %v310
  // Predicated region
  $region14: #{_lambda_.25} parent=0 // pred_check
    _
  $region15: #{_lambda_.25} parent=0 // pred_check_branch
    %344 = sbr.rel (0) target = $region17
  $region16: #{_lambda_.25} parent=0 // pred_region
    _
  $region17: #{_lambda_.25} parent=0 // pred_fallthru
    _
  // Predicated region
  $region18: #{_lambda_.25} parent=0 // pred_check
    _
  $region19: #{_lambda_.25} parent=0 // pred_check_branch
    %346 = sbr.rel (0) target = $region21
  $region20: #{_lambda_.25} parent=0 // pred_region
    _
  $region21: #{_lambda_.25} parent=0 // pred_fallthru
    _

// kernel: _lambda_.24
$region0: #{_lambda_.24}
  #allocation0 [shape = 'u32[]', space=smem, size = 0x4, offset = 0x4, fixed_abs, tag = 'smem constant byte address 0x4 - core index']
  #allocation1 [shape = 'u32[144,128]{1,0:T(1,128)}', space=vmem, size = 0x12000, scoped, tag = 'internal scratch']
  %s0 = inlined_call_operand.vmem [shape: bf16[2,9,2,9,256], index: 0, kind: input, shape index: {}]
  %s1 = inlined_call_operand.vmem [shape: bf16[2,8,8,128], index: 1, kind: output, shape index: {}]
  %s2 = sld [smem:[#allocation0]]
  $region37: #{_lambda_.24} parent=0
    _
  %s4 = ssub.s32 1, %s2
  %s5 = scalar_select 0, %s4, %s2
  loop: start=0, step=1, limit=4
  $region2: #{_lambda_.24} parent=0 // loop_pre_header
    _
  $region3: #{_lambda_.24} parent=0 // loop_header
    %s7 = sphi 0, %s11
    %p8 = scmp.ge.s32.totalorder %s7, 4
    %s17 = sphi 0, %s19
    %s20 = sphi 0, %s17
    %s21 = sphi 0, %s20
    %s37 = sphi 0, %s21
    %s43 = sphi 0, %s45
    %s46 = sphi 0, %s43
    %s47 = sphi 0, %s46
    %s63 = sphi 0, %s47
  $region4: #{_lambda_.24} parent=0 // loop_header_branch
    %10 = sbr.rel (%p8) target = $region8
  $region5: #{_lambda_.24} parent=0 // loop_body
    %s12 = ssub.s32 %s7, 1
    %s13 = ssub.s32 %s7, 2
    %s14 = sadd.s32 %s7, 1
    %s15 = ssub.s32 %s7, %s14
    %p16 = scmp.eq.s32.totalorder %s15, 0
    %s18 = sadd.s32 %s17, 1
    %s19 = scalar_select %p16, %s17, %s18
    %p22 = pneg %p16
    %p23 = scmp.eq.s32.totalorder %s7, 1
    %p24 = por %p22, %p23
    %p25 = scmp.ne.s32.totalorder %s17, %s20
    %p26 = scmp.eq.s32.totalorder %s7, 0
    %p27 = por %p25, %p26
    %p28 = scmp.ne.s32.totalorder %s17, %s20
    %p29 = scmp.eq.s32.totalorder %s12, 1
    %p30 = por %p28, %p29
    %p31 = scmp.ne.s32.totalorder %s20, %s21
    %p32 = scmp.eq.s32.totalorder %s12, 0
    %p33 = por %p31, %p32
    %p34 = scmp.ne.s32.totalorder %s20, %s21
    %p35 = scmp.eq.s32.totalorder %s13, 1
    %p36 = por %p34, %p35
    %p38 = scmp.ne.s32.totalorder %s21, %s37
    %p39 = scmp.eq.s32.totalorder %s13, 0
    %p40 = por %p38, %p39
    %s41 = ssub.s32 %s7, %s14
    %p42 = scmp.eq.s32.totalorder %s41, 0
    %s44 = sadd.s32 %s43, 1
    %s45 = scalar_select %p42, %s43, %s44
    %p48 = pneg %p42
    %p49 = scmp.eq.s32.totalorder %s7, 1
    %p50 = por %p48, %p49
    %p51 = scmp.ne.s32.totalorder %s43, %s46
    %p52 = scmp.eq.s32.totalorder %s7, 0
    %p53 = por %p51, %p52
    %p54 = scmp.ne.s32.totalorder %s43, %s46
    %p55 = scmp.eq.s32.totalorder %s12, 1
    %p56 = por %p54, %p55
    %p57 = scmp.ne.s32.totalorder %s46, %s47
    %p58 = scmp.eq.s32.totalorder %s12, 0
    %p59 = por %p57, %p58
    %p60 = scmp.ne.s32.totalorder %s46, %s47
    %p61 = scmp.eq.s32.totalorder %s13, 1
    %p62 = por %p60, %p61
    %p64 = scmp.ne.s32.totalorder %s47, %s63
    %p65 = scmp.eq.s32.totalorder %s13, 0
    %p66 = por %p64, %p65
    %p67 = scmp.le.s32.totalorder 1, %s7
    %p68 = scmp.lt.s32.totalorder %s7, 3
    %p69 = pnand %p67, %p68
    %p70 = pneg %p69
    // Predicated region
    $region9: #{_lambda_.24} parent=5 // pred_check
      _
    $region10: #{_lambda_.24} parent=5 // pred_check_branch
      %72 = sbr.rel (%p69) target = $region12
    $region11: #{_lambda_.24} parent=5 // pred_region
      %s73 = ssub.s32 %s7, 1
    $region12: #{_lambda_.24} parent=5 // pred_fallthru
      _
    %p74 = scmp.lt.s32.totalorder %s7, 2
    // Predicated region
    $region13: #{_lambda_.24} parent=5 // pred_check
      %p75 = pneg %p74
    $region14: #{_lambda_.24} parent=5 // pred_check_branch
      %77 = sbr.rel (%p75) target = $region16
    $region15: #{_lambda_.24} parent=5 // pred_region
      // Predicated region
      $region17: #{_lambda_.24} parent=15 // pred_check
        %p78 = pneg %p27
      $region18: #{_lambda_.24} parent=15 // pred_check_branch
        %80 = sbr.rel (%p78) target = $region20
      $region19: #{_lambda_.24} parent=15 // pred_region
        %p81 = scmp.lt.s32.totalorder %s7, 1
        %s82 = scalar_select %p81, %s7, 1
        %s83 = smul.addr %s82, 72
        %s84 = smul.addr %s83, 4
        %s85 = scalar_lea.vmem %s0, %s84
      $region20: #{_lambda_.24} parent=15 // pred_fallthru
        _
    $region16: #{_lambda_.24} parent=5 // pred_fallthru
      _
    %p86 = scmp.le.s32.totalorder 1, %s7
    %p87 = scmp.lt.s32.totalorder %s7, 3
    %p88 = pnand %p86, %p87
    %p89 = pneg %p88
    // Predicated region
    $region21: #{_lambda_.24} parent=5 // pred_check
      _
    $region22: #{_lambda_.24} parent=5 // pred_check_branch
      %91 = sbr.rel (%p88) target = $region24
    $region23: #{_lambda_.24} parent=5 // pred_region
      %s92 = ssub.s32 %s7, 1
      %p93 = scmp.lt.s32.totalorder %s12, 1
      %s94 = scalar_select %p93, %s12, 1
      %s95 = smul.addr %s94, 72
      %s96 = smul.addr %s95, 4
      %s97 = scalar_lea.vmem %s0, %s96
      %p98 = pneg %p33
      %p99 = pneg %p30
      %p100 = pneg %p59
      %p101 = pneg %p56
      %p102 = scmp.lt.s32.totalorder %s12, 1
      %s103 = scalar_select %p102, %s12, 1
      %s104 = smul.addr %s103, 8
      %s105 = smul.addr %s104, 4
      %s106 = scalar_lea.vmem %s1, %s105
      %p107 = scmp.lt.s32.totalorder %s12, 1
      %s108 = scalar_select %p107, %s12, 1
      %s109 = smul.addr %s108, 72
      %s110 = smul.addr %s109, 4
      %s111 = scalar_lea.vmem %s0, %s110
      %p112 = scmp.lt.s32.totalorder %s12, 1
      %s113 = scalar_select %p112, %s12, 1
      %s114 = smul.addr %s113, 8
      %s115 = smul.addr %s114, 4
      %s116 = scalar_lea.vmem %s1, %s115
      %v117 = vld [vmem:[%s111] sm:$0xff]
      %v118 = vld [vmem:[%s111 + $0x8] sm:$0x11]
      %v119 = vld [vmem:[%s111 + $0x20] sm:$0xff]
      %v120 = vld [vmem:[%s111 + $0x28] sm:$0x11]
      %v121 = vld [vmem:[%s111 + $0x40] sm:$0xff]
      %v122 = vld [vmem:[%s111 + $0x48] sm:$0x11]
      %v123 = vld [vmem:[%s111 + $0x60] sm:$0xff]
      %v124 = vld [vmem:[%s111 + $0x68] sm:$0x11]
      %v125 = vld [vmem:[%s111 + $0x80] sm:$0xff]
      %v126 = vld [vmem:[%s111 + $0x88] sm:$0x11]
      %v127 = vld [vmem:[%s111 + $0xa0] sm:$0xff]
      %v128 = vld [vmem:[%s111 + $0xa8] sm:$0x11]
      %v129 = vld [vmem:[%s111 + $0xc0] sm:$0xff]
      %v130 = vld [vmem:[%s111 + $0xc8] sm:$0x11]
      %v131 = vld [vmem:[%s111 + $0xe0] sm:$0xff]
      %v132 = vld [vmem:[%s111 + $0xe8] sm:$0x11]
      %s133 = scalar_lea.vmem %s111, 16
      %v134 = vld [vmem:[%s133] sm:$0xff]
      %v135 = vld [vmem:[%s133 + $0x8] sm:$0x11]
      %v136 = vld [vmem:[%s133 + $0x20] sm:$0xff]
      %v137 = vld [vmem:[%s133 + $0x28] sm:$0x11]
      %v138 = vld [vmem:[%s133 + $0x40] sm:$0xff]
      %v139 = vld [vmem:[%s133 + $0x48] sm:$0x11]
      %v140 = vld [vmem:[%s133 + $0x60] sm:$0xff]
      %v141 = vld [vmem:[%s133 + $0x68] sm:$0x11]
      %v142 = vld [vmem:[%s133 + $0x80] sm:$0xff]
      %v143 = vld [vmem:[%s133 + $0x88] sm:$0x11]
      %v144 = vld [vmem:[%s133 + $0xa0] sm:$0xff]
      %v145 = vld [vmem:[%s133 + $0xa8] sm:$0x11]
      %v146 = vld [vmem:[%s133 + $0xc0] sm:$0xff]
      %v147 = vld [vmem:[%s133 + $0xc8] sm:$0x11]
      %v148 = vld [vmem:[%s133 + $0xe0] sm:$0xff]
      %v149 = vld [vmem:[%s133 + $0xe8] sm:$0x11]
      %s150 = scalar_lea.vmem %s111, 32
      %v151 = vld [vmem:[%s150] sm:$0xff]
      %v152 = vld [vmem:[%s150 + $0x8] sm:$0x11]
      %v153 = vld [vmem:[%s150 + $0x20] sm:$0xff]
      %v154 = vld [vmem:[%s150 + $0x28] sm:$0x11]
      %v155 = vld [vmem:[%s150 + $0x40] sm:$0xff]
      %v156 = vld [vmem:[%s150 + $0x48] sm:$0x11]
      %v157 = vld [vmem:[%s150 + $0x60] sm:$0xff]
      %v158 = vld [vmem:[%s150 + $0x68] sm:$0x11]
      %v159 = vld [vmem:[%s150 + $0x80] sm:$0xff]
      %v160 = vld [vmem:[%s150 + $0x88] sm:$0x11]
      %v161 = vld [vmem:[%s150 + $0xa0] sm:$0xff]
      %v162 = vld [vmem:[%s150 + $0xa8] sm:$0x11]
      %v163 = vld [vmem:[%s150 + $0xc0] sm:$0xff]
      %v164 = vld [vmem:[%s150 + $0xc8] sm:$0x11]
      %v165 = vld [vmem:[%s150 + $0xe0] sm:$0xff]
      %v166 = vld [vmem:[%s150 + $0xe8] sm:$0x11]
      %v167 = vmax.bf16 %v117, %v134
      %v168 = vmax.bf16 %v118, %v135
      %v169 = vmax.bf16 %v119, %v136
      %v170 = vmax.bf16 %v120, %v137
      %v171 = vmax.bf16 %v121, %v138
      %v172 = vmax.bf16 %v122, %v139
      %v173 = vmax.bf16 %v123, %v140
      %v174 = vmax.bf16 %v124, %v141
      %v175 = vmax.bf16 %v125, %v142
      %v176 = vmax.bf16 %v126, %v143
      %v177 = vmax.bf16 %v127, %v144
      %v178 = vmax.bf16 %v128, %v145
      %v179 = vmax.bf16 %v129, %v146
      %v180 = vmax.bf16 %v130, %v147
      %v181 = vmax.bf16 %v131, %v148
      %v182 = vmax.bf16 %v132, %v149
      %v183 = vmax.bf16 %v167, %v151
      %v184 = vmax.bf16 %v168, %v152
      %v185 = vmax.bf16 %v169, %v153
      %v186 = vmax.bf16 %v170, %v154
      %v187 = vmax.bf16 %v171, %v155
      %v188 = vmax.bf16 %v172, %v156
      %v189 = vmax.bf16 %v173, %v157
      %v190 = vmax.bf16 %v174, %v158
      %v191 = vmax.bf16 %v175, %v159
      %v192 = vmax.bf16 %v176, %v160
      %v193 = vmax.bf16 %v177, %v161
      %v194 = vmax.bf16 %v178, %v162
      %v195 = vmax.bf16 %v179, %v163
      %v196 = vmax.bf16 %v180, %v164
      %v197 = vmax.bf16 %v181, %v165
      %v198 = vmax.bf16 %v182, %v166
      %v207 = vrot.slane %v183, 4
      %v208 = vrot.slane %v185, 4
      %v209 = vrot.slane %v187, 4
      %v210 = vrot.slane %v189, 4
      %v211 = vrot.slane %v191, 4
      %v212 = vrot.slane %v193, 4
      %v213 = vrot.slane %v195, 4
      %v214 = vrot.slane %v197, 4
      %v223 = vmax.bf16 %v183, %v207
      %v224 = vmax.bf16 %v185, %v208
      %v225 = vmax.bf16 %v187, %v209
      %v226 = vmax.bf16 %v189, %v210
      %v227 = vmax.bf16 %v191, %v211
      %v228 = vmax.bf16 %v193, %v212
      %v229 = vmax.bf16 %v195, %v213
      %v230 = vmax.bf16 %v197, %v214
      %vm231 = vsmask.f32 3328
      %vm232 = vsmask.f32 7440
      %vm233 = vmor %vm231, %vm232
      %v235 = vshrl.u32 %v183, 16
      %v237 = vrot.slane %v235, 4
      %v238 = vshll.u32 %v183, 16
      %v240 = vrot.slane %v238, 5
      %v241 = vor.u32 %v237, %v240
      %v242 = vrot.slane %v241, 4
      %v244 = vshll.u32 %v184, 16
      %v246 = vrot.slane %v244, 5
      %v247 = vsel %vm233, %v242, %v246
      %v249 = vshrl.u32 %v185, 16
      %v251 = vrot.slane %v249, 4
      %v252 = vshll.u32 %v185, 16
      %v254 = vrot.slane %v252, 5
      %v255 = vor.u32 %v251, %v254
      %v256 = vrot.slane %v255, 4
      %v258 = vshll.u32 %v186, 16
      %v260 = vrot.slane %v258, 5
      %v261 = vsel %vm233, %v256, %v260
      %v263 = vshrl.u32 %v187, 16
      %v265 = vrot.slane %v263, 4
      %v266 = vshll.u32 %v187, 16
      %v268 = vrot.slane %v266, 5
      %v269 = vor.u32 %v265, %v268
      %v270 = vrot.slane %v269, 4
      %v272 = vshll.u32 %v188, 16
      %v274 = vrot.slane %v272, 5
      %v275 = vsel %vm233, %v270, %v274
      %v277 = vshrl.u32 %v189, 16
      %v279 = vrot.slane %v277, 4
      %v280 = vshll.u32 %v189, 16
      %v282 = vrot.slane %v280, 5
      %v283 = vor.u32 %v279, %v282
      %v284 = vrot.slane %v283, 4
      %v286 = vshll.u32 %v190, 16
      %v288 = vrot.slane %v286, 5
      %v289 = vsel %vm233, %v284, %v288
      %v291 = vshrl.u32 %v191, 16
      %v293 = vrot.slane %v291, 4
      %v294 = vshll.u32 %v191, 16
      %v296 = vrot.slane %v294, 5
      %v297 = vor.u32 %v293, %v296
      %v298 = vrot.slane %v297, 4
      %v300 = vshll.u32 %v192, 16
      %v302 = vrot.slane %v300, 5
      %v303 = vsel %vm233, %v298, %v302
      %v305 = vshrl.u32 %v193, 16
      %v307 = vrot.slane %v305, 4
      %v308 = vshll.u32 %v193, 16
      %v310 = vrot.slane %v308, 5
      %v311 = vor.u32 %v307, %v310
      %v312 = vrot.slane %v311, 4
      %v314 = vshll.u32 %v194, 16
      %v316 = vrot.slane %v314, 5
      %v317 = vsel %vm233, %v312, %v316
      %v319 = vshrl.u32 %v195, 16
      %v321 = vrot.slane %v319, 4
      %v322 = vshll.u32 %v195, 16
      %v324 = vrot.slane %v322, 5
      %v325 = vor.u32 %v321, %v324
      %v326 = vrot.slane %v325, 4
      %v328 = vshll.u32 %v196, 16
      %v330 = vrot.slane %v328, 5
      %v331 = vsel %vm233, %v326, %v330
      %v333 = vshrl.u32 %v197, 16
      %v335 = vrot.slane %v333, 4
      %v336 = vshll.u32 %v197, 16
      %v338 = vrot.slane %v336, 5
      %v339 = vor.u32 %v335, %v338
      %v340 = vrot.slane %v339, 4
      %v342 = vshll.u32 %v198, 16
      %v344 = vrot.slane %v342, 5
      %v345 = vsel %vm233, %v340, %v344
      %v354 = vmax.bf16 %v223, %v247
      %v355 = vmax.bf16 %v224, %v261
      %v356 = vmax.bf16 %v225, %v275
      %v357 = vmax.bf16 %v226, %v289
      %v358 = vmax.bf16 %v227, %v303
      %v359 = vmax.bf16 %v228, %v317
      %v360 = vmax.bf16 %v229, %v331
      %v361 = vmax.bf16 %v230, %v345
      %362 = vst [vmem:[%s116] sm:$0xf] %v354
      %363 = vst [vmem:[%s116 + $0x4] sm:$0xf] %v355
      %364 = vst [vmem:[%s116 + $0x8] sm:$0xf] %v356
      %365 = vst [vmem:[%s116 + $0xc] sm:$0xf] %v357
      %366 = vst [vmem:[%s116 + $0x10] sm:$0xf] %v358
      %367 = vst [vmem:[%s116 + $0x14] sm:$0xf] %v359
      %368 = vst [vmem:[%s116 + $0x18] sm:$0xf] %v360
      %369 = vst [vmem:[%s116 + $0x1c] sm:$0xf] %v361
      %p370 = scmp.lt.s32.totalorder %s12, 1
      %s371 = scalar_select %p370, %s12, 1
      %s372 = smul.addr %s371, 8
      %s373 = smul.addr %s372, 4
      %s374 = scalar_lea.vmem %s1, %s373
      // Predicated region
      $region25: #{_lambda_.24} parent=23 // pred_check
        %p375 = pneg %p56
      $region26: #{_lambda_.24} parent=23 // pred_check_branch
        %377 = sbr.rel (%p375) target = $region28
      $region27: #{_lambda_.24} parent=23 // pred_region
        _
      $region28: #{_lambda_.24} parent=23 // pred_fallthru
        _
    $region24: #{_lambda_.24} parent=5 // pred_fallthru
      _
    %p378 = scmp.le.s32.totalorder 2, %s7
    // Predicated region
    $region29: #{_lambda_.24} parent=5 // pred_check
      %p379 = pneg %p378
    $region30: #{_lambda_.24} parent=5 // pred_check_branch
      %381 = sbr.rel (%p379) target = $region32
    $region31: #{_lambda_.24} parent=5 // pred_region
      %s382 = ssub.s32 %s7, 2
      // Predicated region
      $region33: #{_lambda_.24} parent=31 // pred_check
        %p383 = pneg %p62
      $region34: #{_lambda_.24} parent=31 // pred_check_branch
        %385 = sbr.rel (%p383) target = $region36
      $region35: #{_lambda_.24} parent=31 // pred_region
        %p386 = scmp.lt.s32.totalorder %s13, 1
        %s387 = scalar_select %p386, %s13, 1
        %s388 = smul.addr %s387, 8
        %s389 = smul.addr %s388, 4
        %s390 = scalar_lea.vmem %s1, %s389
      $region36: #{_lambda_.24} parent=31 // pred_fallthru
        _
    $region32: #{_lambda_.24} parent=5 // pred_fallthru
      _
  $region6: #{_lambda_.24} parent=0 // loop_footer
    %s11 = sadd.s32 1, %s7
  $region7: #{_lambda_.24} parent=0 // loop_footer_branch
    %6 = sbr.rel target = $region3
  $region8: #{_lambda_.24} parent=0 // loop_exit
    _

// kernel: _lambda_.23
$region0: #{_lambda_.23}
  #allocation0 [shape = 'u32[]', space=smem, size = 0x4, offset = 0x4, fixed_abs, tag = 'smem constant byte address 0x4 - core index']
  #allocation1 [shape = 'u32[144,128]{1,0:T(1,128)}', space=vmem, size = 0x12000, scoped, tag = 'internal scratch']
  %s0 = inlined_call_operand.vmem [shape: bf16[512,256], index: 0, kind: input, shape index: {}]
  %s1 = inlined_call_operand.vmem [shape: bf16[256,128], index: 1, kind: input, shape index: {}]
  %s2 = inlined_call_operand.vmem [shape: f32[1,128], index: 2, kind: input, shape index: {}]
  %s3 = inlined_call_operand.vmem [shape: bf16[512,128], index: 3, kind: output, shape index: {}]
  %s4 = sld [smem:[#allocation0]]
  $region45: #{_lambda_.23} parent=0
    _
  %s6 = ssub.s32 1, %s4
  %s7 = scalar_select 0, %s6, %s4
  loop: start=0, step=1, limit=4
  $region2: #{_lambda_.23} parent=0 // loop_pre_header
    _
  $region3: #{_lambda_.23} parent=0 // loop_header
    %s9 = sphi 0, %s13
    %p10 = scmp.ge.s32.totalorder %s9, 4
    %s16 = sphi 0, %s28
    %s17 = sphi 0, %s24
    %s18 = sphi 0, %s16
    %s19 = sphi 0, %s17
    %s20 = sphi 0, %s18
    %s21 = sphi 0, %s19
    %s31 = sphi 0, %s33
    %s34 = sphi 0, %s31
    %s35 = sphi 0, %s34
    %s51 = sphi 0, %s35
    %s57 = sphi 0, %s59
    %s60 = sphi 0, %s57
    %s61 = sphi 0, %s60
    %s77 = sphi 0, %s61
    %s83 = sphi 0, %s85
    %s86 = sphi 0, %s83
    %s87 = sphi 0, %s86
    %s103 = sphi 0, %s87
    %s111 = sphi 0, %s113
    %s114 = sphi 0, %s111
    %s115 = sphi 0, %s114
    %s131 = sphi 0, %s115
  $region4: #{_lambda_.23} parent=0 // loop_header_branch
    %12 = sbr.rel (%p10) target = $region8
  $region5: #{_lambda_.23} parent=0 // loop_body
    %s14 = ssub.s32 %s9, 1
    %s15 = ssub.s32 %s9, 2
    %s22 = sadd.s32 1, %s17
    %p23 = scmp.ge.s32.totalorder %s22, 1
    %s24 = scalar_select %p23, 0, %s22
    %s25 = sadd.s32 1, %s16
    %s26 = scalar_select %p23, %s25, %s16
    %p27 = scmp.ge.s32.totalorder %s26, 2
    %s28 = scalar_select %p27, 0, %s26
    %s29 = ssub.s32 %s16, %s28
    %p30 = scmp.eq.s32.totalorder %s29, 0
    %s32 = sadd.s32 %s31, 1
    %s33 = scalar_select %p30, %s31, %s32
    %p36 = pneg %p30
    %p37 = scmp.eq.s32.totalorder %s9, 1
    %p38 = por %p36, %p37
    %p39 = scmp.ne.s32.totalorder %s31, %s34
    %p40 = scmp.eq.s32.totalorder %s9, 0
    %p41 = por %p39, %p40
    %p42 = scmp.ne.s32.totalorder %s31, %s34
    %p43 = scmp.eq.s32.totalorder %s14, 1
    %p44 = por %p42, %p43
    %p45 = scmp.ne.s32.totalorder %s34, %s35
    %p46 = scmp.eq.s32.totalorder %s14, 0
    %p47 = por %p45, %p46
    %p48 = scmp.ne.s32.totalorder %s34, %s35
    %p49 = scmp.eq.s32.totalorder %s15, 1
    %p50 = por %p48, %p49
    %p52 = scmp.ne.s32.totalorder %s35, %s51
    %p53 = scmp.eq.s32.totalorder %s15, 0
    %p54 = por %p52, %p53
    %s55 = ssub.s32 %s17, %s24
    %p56 = scmp.eq.s32.totalorder %s55, 0
    %s58 = sadd.s32 %s57, 1
    %s59 = scalar_select %p56, %s57, %s58
    %p62 = pneg %p56
    %p63 = scmp.eq.s32.totalorder %s9, 1
    %p64 = por %p62, %p63
    %p65 = scmp.ne.s32.totalorder %s57, %s60
    %p66 = scmp.eq.s32.totalorder %s9, 0
    %p67 = por %p65, %p66
    %p68 = scmp.ne.s32.totalorder %s57, %s60
    %p69 = scmp.eq.s32.totalorder %s14, 1
    %p70 = por %p68, %p69
    %p71 = scmp.ne.s32.totalorder %s60, %s61
    %p72 = scmp.eq.s32.totalorder %s14, 0
    %p73 = por %p71, %p72
    %p74 = scmp.ne.s32.totalorder %s60, %s61
    %p75 = scmp.eq.s32.totalorder %s15, 1
    %p76 = por %p74, %p75
    %p78 = scmp.ne.s32.totalorder %s61, %s77
    %p79 = scmp.eq.s32.totalorder %s15, 0
    %p80 = por %p78, %p79
    %s81 = ssub.s32 %s17, %s24
    %p82 = scmp.eq.s32.totalorder %s81, 0
    %s84 = sadd.s32 %s83, 1
    %s85 = scalar_select %p82, %s83, %s84
    %p88 = pneg %p82
    %p89 = scmp.eq.s32.totalorder %s9, 1
    %p90 = por %p88, %p89
    %p91 = scmp.ne.s32.totalorder %s83, %s86
    %p92 = scmp.eq.s32.totalorder %s9, 0
    %p93 = por %p91, %p92
    %p94 = scmp.ne.s32.totalorder %s83, %s86
    %p95 = scmp.eq.s32.totalorder %s14, 1
    %p96 = por %p94, %p95
    %p97 = scmp.ne.s32.totalorder %s86, %s87
    %p98 = scmp.eq.s32.totalorder %s14, 0
    %p99 = por %p97, %p98
    %p100 = scmp.ne.s32.totalorder %s86, %s87
    %p101 = scmp.eq.s32.totalorder %s15, 1
    %p102 = por %p100, %p101
    %p104 = scmp.ne.s32.totalorder %s87, %s103
    %p105 = scmp.eq.s32.totalorder %s15, 0
    %p106 = por %p104, %p105
    %s107 = ssub.s32 %s16, %s28
    %s108 = ssub.s32 %s17, %s24
    %s109 = sor.u32 %s107, %s108
    %p110 = scmp.eq.s32.totalorder %s109, 0
    %s112 = sadd.s32 %s111, 1
    %s113 = scalar_select %p110, %s111, %s112
    %p116 = pneg %p110
    %p117 = scmp.eq.s32.totalorder %s9, 1
    %p118 = por %p116, %p117
    %p119 = scmp.ne.s32.totalorder %s111, %s114
    %p120 = scmp.eq.s32.totalorder %s9, 0
    %p121 = por %p119, %p120
    %p122 = scmp.ne.s32.totalorder %s111, %s114
    %p123 = scmp.eq.s32.totalorder %s14, 1
    %p124 = por %p122, %p123
    %p125 = scmp.ne.s32.totalorder %s114, %s115
    %p126 = scmp.eq.s32.totalorder %s14, 0
    %p127 = por %p125, %p126
    %p128 = scmp.ne.s32.totalorder %s114, %s115
    %p129 = scmp.eq.s32.totalorder %s15, 1
    %p130 = por %p128, %p129
    %p132 = scmp.ne.s32.totalorder %s115, %s131
    %p133 = scmp.eq.s32.totalorder %s15, 0
    %p134 = por %p132, %p133
    %p135 = scmp.le.s32.totalorder 1, %s9
    %p136 = scmp.lt.s32.totalorder %s9, 3
    %p137 = pnand %p135, %p136
    %p138 = pneg %p137
    // Predicated region
    $region9: #{_lambda_.23} parent=5 // pred_check
      _
    $region10: #{_lambda_.23} parent=5 // pred_check_branch
      %140 = sbr.rel (%p137) target = $region12
    $region11: #{_lambda_.23} parent=5 // pred_region
      %s141 = ssub.s32 %s9, 1
      // Predicated region
      $region13: #{_lambda_.23} parent=11 // pred_check
        %p142 = pneg %p73
      $region14: #{_lambda_.23} parent=11 // pred_check_branch
        %144 = sbr.rel (%p142) target = $region16
      $region15: #{_lambda_.23} parent=11 // pred_region
        %p145 = scmp.lt.s32.totalorder %s19, 0
        %s146 = scalar_select %p145, %s19, 0
        %s147 = smul.addr %s146, 4
        %s148 = scalar_lea.vmem %s1, %s147
      $region16: #{_lambda_.23} parent=11 // pred_fallthru
        _
      // Predicated region
      $region17: #{_lambda_.23} parent=11 // pred_check
        %p149 = pneg %p99
      $region18: #{_lambda_.23} parent=11 // pred_check_branch
        %151 = sbr.rel (%p149) target = $region20
      $region19: #{_lambda_.23} parent=11 // pred_region
        %p152 = scmp.lt.s32.totalorder %s19, 0
        %s153 = scalar_select %p152, %s19, 0
        %s154 = scalar_lea.vmem %s2, %s153
      $region20: #{_lambda_.23} parent=11 // pred_fallthru
        _
    $region12: #{_lambda_.23} parent=5 // pred_fallthru
      _
    %p155 = scmp.lt.s32.totalorder %s9, 2
    // Predicated region
    $region21: #{_lambda_.23} parent=5 // pred_check
      %p156 = pneg %p155
    $region22: #{_lambda_.23} parent=5 // pred_check_branch
      %158 = sbr.rel (%p156) target = $region24
    $region23: #{_lambda_.23} parent=5 // pred_region
      // Predicated region
      $region25: #{_lambda_.23} parent=23 // pred_check
        %p159 = pneg %p41
      $region26: #{_lambda_.23} parent=23 // pred_check_branch
        %161 = sbr.rel (%p159) target = $region28
      $region27: #{_lambda_.23} parent=23 // pred_region
        %s162 = smul.u32 32, %s16
        %p163 = scmp.lt.s32.totalorder %s162, 63
        %s164 = scalar_select %p163, %s162, 63
        %s165 = smul.addr %s164, 2
        %s166 = smul.addr %s165, 4
        %s167 = scalar_lea.vmem %s0, %s166
        %s168 = smul.u32 32, %s16
      $region28: #{_lambda_.23} parent=23 // pred_fallthru
        _
    $region24: #{_lambda_.23} parent=5 // pred_fallthru
      _
    %p169 = scmp.le.s32.totalorder 1, %s9
    %p170 = scmp.lt.s32.totalorder %s9, 3
    %p171 = pnand %p169, %p170
    %p172 = pneg %p171
    // Predicated region
    $region29: #{_lambda_.23} parent=5 // pred_check
      _
    $region30: #{_lambda_.23} parent=5 // pred_check_branch
      %174 = sbr.rel (%p171) target = $region32
    $region31: #{_lambda_.23} parent=5 // pred_region
      %s175 = ssub.s32 %s9, 1
      %s176 = smul.u32 32, %s18
      %p177 = scmp.lt.s32.totalorder %s176, 63
      %s178 = scalar_select %p177, %s176, 63
      %s179 = smul.addr %s178, 2
      %s180 = smul.addr %s179, 4
      %s181 = scalar_lea.vmem %s0, %s180
      %p182 = pneg %p47
      %p183 = pneg %p44
      %p184 = scmp.lt.s32.totalorder %s19, 0
      %s185 = scalar_select %p184, %s19, 0
      %s186 = smul.addr %s185, 4
      %s187 = scalar_lea.vmem %s1, %s186
      %p188 = pneg %p73
      %p189 = pneg %p70
      %p190 = scmp.lt.s32.totalorder %s19, 0
      %s191 = scalar_select %p190, %s19, 0
      %s192 = scalar_lea.vmem %s2, %s191
      %p193 = pneg %p99
      %p194 = pneg %p96
      %p195 = pneg %p127
      %p196 = pneg %p124
      %s197 = smul.u32 32, %s18
      %p198 = scmp.lt.s32.totalorder %s197, 63
      %s199 = scalar_select %p198, %s197, 63
      %p200 = scmp.lt.s32.totalorder %s19, 0
      %s201 = scalar_select %p200, %s19, 0
      %s202 = sadd.s32 %s201, %s199
      %s203 = smul.addr %s202, 4
      %s204 = scalar_lea.vmem %s3, %s203
      %s205 = smul.u32 32, %s18
      %p206 = scmp.lt.s32.totalorder %s205, 63
      %s207 = scalar_select %p206, %s205, 63
      %s208 = smul.addr %s207, 2
      %s209 = smul.addr %s208, 4
      %s210 = scalar_lea.vmem %s0, %s209
      %s211 = smul.u32 32, %s18
      %p212 = scmp.lt.s32.totalorder %s19, 0
      %s213 = scalar_select %p212, %s19, 0
      %s214 = smul.addr %s213, 4
      %s215 = scalar_lea.vmem %s1, %s214
      %p216 = scmp.lt.s32.totalorder %s19, 0
      %s217 = scalar_select %p216, %s19, 0
      %s218 = scalar_lea.vmem %s2, %s217
      %s219 = smul.u32 32, %s18
      %p220 = scmp.lt.s32.totalorder %s219, 63
      %s221 = scalar_select %p220, %s219, 63
      %p222 = scmp.lt.s32.totalorder %s19, 0
      %s223 = scalar_select %p222, %s19, 0
      %s224 = sadd.s32 %s223, %s221
      %s225 = smul.addr %s224, 4
      %s226 = scalar_lea.vmem %s3, %s225
      %s227 = smul.u32 32, %s18
      %v229 = vld [vmem:[%s210] sm:$0xff]
      %v230 = vld [vmem:[%s210 + $0x8] sm:$0xff]
      %v231 = vld [vmem:[%s210 + $0x10] sm:$0xff]
      %v232 = vld [vmem:[%s210 + $0x18] sm:$0xff]
      %v233 = vld [vmem:[%s210 + $0x20] sm:$0xff]
      %v234 = vld [vmem:[%s210 + $0x28] sm:$0xff]
      %v235 = vld [vmem:[%s210 + $0x30] sm:$0xff]
      %v236 = vld [vmem:[%s210 + $0x38] sm:$0xff]
      %v237 = vld [vmem:[%s210 + $0x40] sm:$0xff]
      %v238 = vld [vmem:[%s210 + $0x48] sm:$0xff]
      %v239 = vld [vmem:[%s210 + $0x50] sm:$0xff]
      %v240 = vld [vmem:[%s210 + $0x58] sm:$0xff]
      %v241 = vld [vmem:[%s210 + $0x60] sm:$0xff]
      %v242 = vld [vmem:[%s210 + $0x68] sm:$0xff]
      %v243 = vld [vmem:[%s210 + $0x70] sm:$0xff]
      %v244 = vld [vmem:[%s210 + $0x78] sm:$0xff]
      %v245 = vld [vmem:[%s210 + $0x80] sm:$0xff]
      %v246 = vld [vmem:[%s210 + $0x88] sm:$0xff]
      %v247 = vld [vmem:[%s210 + $0x90] sm:$0xff]
      %v248 = vld [vmem:[%s210 + $0x98] sm:$0xff]
      %v249 = vld [vmem:[%s210 + $0xa0] sm:$0xff]
      %v250 = vld [vmem:[%s210 + $0xa8] sm:$0xff]
      %v251 = vld [vmem:[%s210 + $0xb0] sm:$0xff]
      %v252 = vld [vmem:[%s210 + $0xb8] sm:$0xff]
      %v253 = vld [vmem:[%s210 + $0xc0] sm:$0xff]
      %v254 = vld [vmem:[%s210 + $0xc8] sm:$0xff]
      %v255 = vld [vmem:[%s210 + $0xd0] sm:$0xff]
      %v256 = vld [vmem:[%s210 + $0xd8] sm:$0xff]
      %v257 = vld [vmem:[%s210 + $0xe0] sm:$0xff]
      %v258 = vld [vmem:[%s210 + $0xe8] sm:$0xff]
      %v259 = vld [vmem:[%s210 + $0xf0] sm:$0xff]
      %v260 = vld [vmem:[%s210 + $0xf8] sm:$0xff]
      %v261 = vld [vmem:[%s215] sm:$0xf]
      %v262 = vld [vmem:[%s215 + $0x4] sm:$0xf]
      %v263 = vld [vmem:[%s215 + $0x8] sm:$0xf]
      %v264 = vld [vmem:[%s215 + $0xc] sm:$0xf]
      %v265 = vld [vmem:[%s215 + $0x10] sm:$0xf]
      %v266 = vld [vmem:[%s215 + $0x14] sm:$0xf]
      %v267 = vld [vmem:[%s215 + $0x18] sm:$0xf]
      %v268 = vld [vmem:[%s215 + $0x1c] sm:$0xf]
      %v269 = vld [vmem:[%s215 + $0x20] sm:$0xf]
      %v270 = vld [vmem:[%s215 + $0x24] sm:$0xf]
      %v271 = vld [vmem:[%s215 + $0x28] sm:$0xf]
      %v272 = vld [vmem:[%s215 + $0x2c] sm:$0xf]
      %v273 = vld [vmem:[%s215 + $0x30] sm:$0xf]
      %v274 = vld [vmem:[%s215 + $0x34] sm:$0xf]
      %v275 = vld [vmem:[%s215 + $0x38] sm:$0xf]
      %v276 = vld [vmem:[%s215 + $0x3c] sm:$0xf]
      %v277 = vld [vmem:[%s215 + $0x40] sm:$0xf]
      %v278 = vld [vmem:[%s215 + $0x44] sm:$0xf]
      %v279 = vld [vmem:[%s215 + $0x48] sm:$0xf]
      %v280 = vld [vmem:[%s215 + $0x4c] sm:$0xf]
      %v281 = vld [vmem:[%s215 + $0x50] sm:$0xf]
      %v282 = vld [vmem:[%s215 + $0x54] sm:$0xf]
      %v283 = vld [vmem:[%s215 + $0x58] sm:$0xf]
      %v284 = vld [vmem:[%s215 + $0x5c] sm:$0xf]
      %v285 = vld [vmem:[%s215 + $0x60] sm:$0xf]
      %v286 = vld [vmem:[%s215 + $0x64] sm:$0xf]
      %v287 = vld [vmem:[%s215 + $0x68] sm:$0xf]
      %v288 = vld [vmem:[%s215 + $0x6c] sm:$0xf]
      %v289 = vld [vmem:[%s215 + $0x70] sm:$0xf]
      %v290 = vld [vmem:[%s215 + $0x74] sm:$0xf]
      %v291 = vld [vmem:[%s215 + $0x78] sm:$0xf]
      %v292 = vld [vmem:[%s215 + $0x7c] sm:$0xf]
      %v293 = vld [vmem:[%s218] sm:$0x1]
      %v295 = vlaneseq
      %v296 = vshrl.u32 %v295, 7
      %v297 = vsub.s32 0, %v296
      %v298 = vrot.slane %v293, %v297
      %v332 = vunpack.c.l.b16 %v229
      %v333 = vunpack.c.h.b16 %v229
      %v334 = vunpack.c.l.b16 %v230
      %v335 = vunpack.c.h.b16 %v230
      %v336 = vunpack.c.l.b16 %v231
      %v337 = vunpack.c.h.b16 %v231
      %v338 = vunpack.c.l.b16 %v232
      %v339 = vunpack.c.h.b16 %v232
      %v340 = vunpack.c.l.b16 %v233
      %v341 = vunpack.c.h.b16 %v233
      %v342 = vunpack.c.l.b16 %v234
      %v343 = vunpack.c.h.b16 %v234
      %v344 = vunpack.c.l.b16 %v235
      %v345 = vunpack.c.h.b16 %v235
      %v346 = vunpack.c.l.b16 %v236
      %v347 = vunpack.c.h.b16 %v236
      %v348 = vunpack.c.l.b16 %v237
      %v349 = vunpack.c.h.b16 %v237
      %v350 = vunpack.c.l.b16 %v238
      %v351 = vunpack.c.h.b16 %v238
      %v352 = vunpack.c.l.b16 %v239
      %v353 = vunpack.c.h.b16 %v239
      %v354 = vunpack.c.l.b16 %v240
      %v355 = vunpack.c.h.b16 %v240
      %v356 = vunpack.c.l.b16 %v241
      %v357 = vunpack.c.h.b16 %v241
      %v358 = vunpack.c.l.b16 %v242
      %v359 = vunpack.c.h.b16 %v242
      %v360 = vunpack.c.l.b16 %v243
      %v361 = vunpack.c.h.b16 %v243
      %v362 = vunpack.c.l.b16 %v244
      %v363 = vunpack.c.h.b16 %v244
      %v364 = vunpack.c.l.b16 %v245
      %v365 = vunpack.c.h.b16 %v245
      %v366 = vunpack.c.l.b16 %v246
      %v367 = vunpack.c.h.b16 %v246
      %v368 = vunpack.c.l.b16 %v247
      %v369 = vunpack.c.h.b16 %v247
      %v370 = vunpack.c.l.b16 %v248
      %v371 = vunpack.c.h.b16 %v248
      %v372 = vunpack.c.l.b16 %v249
      %v373 = vunpack.c.h.b16 %v249
      %v374 = vunpack.c.l.b16 %v250
      %v375 = vunpack.c.h.b16 %v250
      %v376 = vunpack.c.l.b16 %v251
      %v377 = vunpack.c.h.b16 %v251
      %v378 = vunpack.c.l.b16 %v252
      %v379 = vunpack.c.h.b16 %v252
      %v380 = vunpack.c.l.b16 %v253
      %v381 = vunpack.c.h.b16 %v253
      %v382 = vunpack.c.l.b16 %v254
      %v383 = vunpack.c.h.b16 %v254
      %v384 = vunpack.c.l.b16 %v255
      %v385 = vunpack.c.h.b16 %v255
      %v386 = vunpack.c.l.b16 %v256
      %v387 = vunpack.c.h.b16 %v256
      %v388 = vunpack.c.l.b16 %v257
      %v389 = vunpack.c.h.b16 %v257
      %v390 = vunpack.c.l.b16 %v258
      %v391 = vunpack.c.h.b16 %v258
      %v392 = vunpack.c.l.b16 %v259
      %v393 = vunpack.c.h.b16 %v259
      %v394 = vunpack.c.l.b16 %v260
      %v395 = vunpack.c.h.b16 %v260
      %v396 = vpack.c.b16 %v334, %v332
      %v397 = vpack.c.b16 %v335, %v333
      %v398 = vpack.c.b16 %v338, %v336
      %v399 = vpack.c.b16 %v339, %v337
      %v400 = vpack.c.b16 %v342, %v340
      %v401 = vpack.c.b16 %v343, %v341
      %v402 = vpack.c.b16 %v346, %v344
      %v403 = vpack.c.b16 %v347, %v345
      %v404 = vpack.c.b16 %v350, %v348
      %v405 = vpack.c.b16 %v351, %v349
      %v406 = vpack.c.b16 %v354, %v352
      %v407 = vpack.c.b16 %v355, %v353
      %v408 = vpack.c.b16 %v358, %v356
      %v409 = vpack.c.b16 %v359, %v357
      %v410 = vpack.c.b16 %v362, %v360
      %v411 = vpack.c.b16 %v363, %v361
      %v412 = vpack.c.b16 %v366, %v364
      %v413 = vpack.c.b16 %v367, %v365
      %v414 = vpack.c.b16 %v370, %v368
      %v415 = vpack.c.b16 %v371, %v369
      %v416 = vpack.c.b16 %v374, %v372
      %v417 = vpack.c.b16 %v375, %v373
      %v418 = vpack.c.b16 %v378, %v376
      %v419 = vpack.c.b16 %v379, %v377
      %v420 = vpack.c.b16 %v382, %v380
      %v421 = vpack.c.b16 %v383, %v381
      %v422 = vpack.c.b16 %v386, %v384
      %v423 = vpack.c.b16 %v387, %v385
      %v424 = vpack.c.b16 %v390, %v388
      %v425 = vpack.c.b16 %v391, %v389
      %v426 = vpack.c.b16 %v394, %v392
      %v427 = vpack.c.b16 %v395, %v393
      %v492 = vunpack.c.l.b16 %v261
      %v493 = vunpack.c.l.b16 %v262
      %v494 = vunpack.c.l.b16 %v263
      %v495 = vunpack.c.l.b16 %v264
      %v496 = vunpack.c.l.b16 %v265
      %v497 = vunpack.c.l.b16 %v266
      %v498 = vunpack.c.l.b16 %v267
      %v499 = vunpack.c.l.b16 %v268
      %v500 = vunpack.c.l.b16 %v269
      %v501 = vunpack.c.l.b16 %v270
      %v502 = vunpack.c.l.b16 %v271
      %v503 = vunpack.c.l.b16 %v272
      %v504 = vunpack.c.l.b16 %v273
      %v505 = vunpack.c.l.b16 %v274
      %v506 = vunpack.c.l.b16 %v275
      %v507 = vunpack.c.l.b16 %v276
      %v508 = vunpack.c.l.b16 %v277
      %v509 = vunpack.c.l.b16 %v278
      %v510 = vunpack.c.l.b16 %v279
      %v511 = vunpack.c.l.b16 %v280
      %v512 = vunpack.c.l.b16 %v281
      %v513 = vunpack.c.l.b16 %v282
      %v514 = vunpack.c.l.b16 %v283
      %v515 = vunpack.c.l.b16 %v284
      %v516 = vunpack.c.l.b16 %v285
      %v517 = vunpack.c.l.b16 %v286
      %v518 = vunpack.c.l.b16 %v287
      %v519 = vunpack.c.l.b16 %v288
      %v520 = vunpack.c.l.b16 %v289
      %v521 = vunpack.c.l.b16 %v290
      %v522 = vunpack.c.l.b16 %v291
      %v523 = vunpack.c.l.b16 %v292
      %v524 = vpack.c.b16 %v493, %v492
      %v525 = vpack.c.b16 %v495, %v494
      %v526 = vpack.c.b16 %v497, %v496
      %v527 = vpack.c.b16 %v499, %v498
      %v528 = vpack.c.b16 %v501, %v500
      %v529 = vpack.c.b16 %v503, %v502
      %v530 = vpack.c.b16 %v505, %v504
      %v531 = vpack.c.b16 %v507, %v506
      %v532 = vpack.c.b16 %v509, %v508
      %v533 = vpack.c.b16 %v511, %v510
      %v534 = vpack.c.b16 %v513, %v512
      %v535 = vpack.c.b16 %v515, %v514
      %v536 = vpack.c.b16 %v517, %v516
      %v537 = vpack.c.b16 %v519, %v518
      %v538 = vpack.c.b16 %v521, %v520
      %v539 = vpack.c.b16 %v523, %v522
      %556 = vmatprep.subr.bf16.mxu0 0
      %557 = vmatpush1.bf16.msra.mxu0 %v531
      %558 = vmatprep.subr.bf16.mxu0 0
      %559 = vmatpush1.bf16.msra.mxu0 %v530
      %560 = vmatprep.subr.bf16.mxu0 0
      %561 = vmatpush1.bf16.msra.mxu0 %v529
      %562 = vmatprep.subr.bf16.mxu0 0
      %563 = vmatpush1.bf16.msra.mxu0 %v528
      %564 = vmatprep.subr.bf16.mxu0 0
      %565 = vmatpush1.bf16.msra.mxu0 %v527
      %566 = vmatprep.subr.bf16.mxu0 0
      %567 = vmatpush1.bf16.msra.mxu0 %v526
      %568 = vmatprep.subr.bf16.mxu0 0
      %569 = vmatpush1.bf16.msra.mxu0 %v525
      %570 = vmatprep.subr.bf16.mxu0 0
      %571 = vmatpush1.bf16.msra.mxu0 %v524
      %572 = vmatprep.subr.bf16.mxu0 0
      %573 = vmatpush2.bf16.msra.mxu0 %v539
      %574 = vmatprep.subr.bf16.mxu0 0
      %575 = vmatpush2.bf16.msra.mxu0 %v538
      %576 = vmatprep.subr.bf16.mxu0 0
      %577 = vmatpush2.bf16.msra.mxu0 %v537
      %578 = vmatprep.subr.bf16.mxu0 0
      %579 = vmatpush2.bf16.msra.mxu0 %v536
      %580 = vmatprep.subr.bf16.mxu0 0
      %581 = vmatpush2.bf16.msra.mxu0 %v535
      %582 = vmatprep.subr.bf16.mxu0 0
      %583 = vmatpush2.bf16.msra.mxu0 %v534
      %584 = vmatprep.subr.bf16.mxu0 0
      %585 = vmatpush2.bf16.msra.mxu0 %v533
      %586 = vmatprep.subr.bf16.mxu0 0
      %587 = vmatpush2.bf16.msra.mxu0 %v532
      %588 = vmatprep.mubr.bf16.mxu0 %v397
      %589 = vmatmul.mubr.bf16.gmra.mxu0 %v396
      %v590 = vpop.f32.mrf.mxu0
      %v591 = vadd.f32 %v298, %v590
      %v592 = vpop.f32.mrf.mxu0
      %v593 = vpop.f32.mrf.mxu0
      %v594 = vadd.f32 %v298, %v593
      %v595 = vpop.f32.mrf.mxu0
      %596 = vmatprep.mubr.bf16.mxu0 %v399
      %597 = vmatmul.mubr.bf16.gmra.mxu0 %v398
      %v598 = vpop.f32.mrf.mxu0
      %v599 = vadd.f32 %v298, %v598
      %v600 = vpop.f32.mrf.mxu0
      %v601 = vpop.f32.mrf.mxu0
      %v602 = vadd.f32 %v298, %v601
      %v603 = vpop.f32.mrf.mxu0
      %604 = vmatprep.mubr.bf16.mxu0 %v401
      %605 = vmatmul.mubr.bf16.gmra.mxu0 %v400
      %v606 = vpop.f32.mrf.mxu0
      %v607 = vadd.f32 %v298, %v606
      %v608 = vpop.f32.mrf.mxu0
      %v609 = vpop.f32.mrf.mxu0
      %v610 = vadd.f32 %v298, %v609
      %v611 = vpop.f32.mrf.mxu0
      %612 = vmatprep.mubr.bf16.mxu0 %v403
      %613 = vmatmul.mubr.bf16.gmra.mxu0 %v402
      %v614 = vpop.f32.mrf.mxu0
      %v615 = vadd.f32 %v298, %v614
      %v616 = vpop.f32.mrf.mxu0
      %v617 = vpop.f32.mrf.mxu0
      %v618 = vadd.f32 %v298, %v617
      %v619 = vpop.f32.mrf.mxu0
      %620 = vmatprep.mubr.bf16.mxu0 %v405
      %621 = vmatmul.mubr.bf16.gmra.mxu0 %v404
      %v622 = vpop.f32.mrf.mxu0
      %v623 = vadd.f32 %v298, %v622
      %v624 = vpop.f32.mrf.mxu0
      %v625 = vpop.f32.mrf.mxu0
      %v626 = vadd.f32 %v298, %v625
      %v627 = vpop.f32.mrf.mxu0
      %628 = vmatprep.mubr.bf16.mxu0 %v407
      %629 = vmatmul.mubr.bf16.gmra.mxu0 %v406
      %v630 = vpop.f32.mrf.mxu0
      %v631 = vadd.f32 %v298, %v630
      %v632 = vpop.f32.mrf.mxu0
      %v633 = vpop.f32.mrf.mxu0
      %v634 = vadd.f32 %v298, %v633
      %v635 = vpop.f32.mrf.mxu0
      %636 = vmatprep.mubr.bf16.mxu0 %v409
      %637 = vmatmul.mubr.bf16.gmra.mxu0 %v408
      %v638 = vpop.f32.mrf.mxu0
      %v639 = vadd.f32 %v298, %v638
      %v640 = vpop.f32.mrf.mxu0
      %v641 = vpop.f32.mrf.mxu0
      %v642 = vadd.f32 %v298, %v641
      %v643 = vpop.f32.mrf.mxu0
      %644 = vmatprep.mubr.bf16.mxu0 %v411
      %645 = vmatmul.mubr.bf16.gmra.mxu0 %v410
      %v646 = vpop.f32.mrf.mxu0
      %v647 = vadd.f32 %v298, %v646
      %v648 = vpop.f32.mrf.mxu0
      %v649 = vpop.f32.mrf.mxu0
      %v650 = vadd.f32 %v298, %v649
      %v651 = vpop.f32.mrf.mxu0
      %652 = vmatprep.mubr.bf16.mxu0 %v413
      %653 = vmatmul.mubr.bf16.gmra.mxu0 %v412
      %v654 = vpop.f32.mrf.mxu0
      %v655 = vadd.f32 %v298, %v654
      %v656 = vpop.f32.mrf.mxu0
      %v657 = vpop.f32.mrf.mxu0
      %v658 = vadd.f32 %v298, %v657
      %v659 = vpop.f32.mrf.mxu0
      %660 = vmatprep.mubr.bf16.mxu0 %v415
      %661 = vmatmul.mubr.bf16.gmra.mxu0 %v414
      %v662 = vpop.f32.mrf.mxu0
      %v663 = vadd.f32 %v298, %v662
      %v664 = vpop.f32.mrf.mxu0
      %v665 = vpop.f32.mrf.mxu0
      %v666 = vadd.f32 %v298, %v665
      %v667 = vpop.f32.mrf.mxu0
      %668 = vmatprep.mubr.bf16.mxu0 %v417
      %669 = vmatmul.mubr.bf16.gmra.mxu0 %v416
      %v670 = vpop.f32.mrf.mxu0
      %v671 = vadd.f32 %v298, %v670
      %v672 = vpop.f32.mrf.mxu0
      %v673 = vpop.f32.mrf.mxu0
      %v674 = vadd.f32 %v298, %v673
      %v675 = vpop.f32.mrf.mxu0
      %676 = vmatprep.mubr.bf16.mxu0 %v419
      %677 = vmatmul.mubr.bf16.gmra.mxu0 %v418
      %v678 = vpop.f32.mrf.mxu0
      %v679 = vadd.f32 %v298, %v678
      %v680 = vpop.f32.mrf.mxu0
      %v681 = vpop.f32.mrf.mxu0
      %v682 = vadd.f32 %v298, %v681
      %v683 = vpop.f32.mrf.mxu0
      %684 = vmatprep.mubr.bf16.mxu0 %v421
      %685 = vmatmul.mubr.bf16.gmra.mxu0 %v420
      %v686 = vpop.f32.mrf.mxu0
      %v687 = vadd.f32 %v298, %v686
      %v688 = vpop.f32.mrf.mxu0
      %v689 = vpop.f32.mrf.mxu0
      %v690 = vadd.f32 %v298, %v689
      %v691 = vpop.f32.mrf.mxu0
      %692 = vmatprep.mubr.bf16.mxu0 %v423
      %693 = vmatmul.mubr.bf16.gmra.mxu0 %v422
      %v694 = vpop.f32.mrf.mxu0
      %v695 = vadd.f32 %v298, %v694
      %v696 = vpop.f32.mrf.mxu0
      %v697 = vpop.f32.mrf.mxu0
      %v698 = vadd.f32 %v298, %v697
      %v699 = vpop.f32.mrf.mxu0
      %700 = vmatprep.mubr.bf16.mxu0 %v425
      %701 = vmatmul.mubr.bf16.gmra.mxu0 %v424
      %v702 = vpop.f32.mrf.mxu0
      %v703 = vadd.f32 %v298, %v702
      %v704 = vpop.f32.mrf.mxu0
      %v705 = vpop.f32.mrf.mxu0
      %v706 = vadd.f32 %v298, %v705
      %v707 = vpop.f32.mrf.mxu0
      %708 = vmatprep.mubr.bf16.mxu0 %v427
      %709 = vmatmul.mubr.bf16.gmra.mxu0 %v426
      %v710 = vpop.f32.mrf.mxu0
      %v711 = vadd.f32 %v298, %v710
      %v712 = vpop.f32.mrf.mxu0
      %v713 = vpop.f32.mrf.mxu0
      %v714 = vadd.f32 %v298, %v713
      %v715 = vpop.f32.mrf.mxu0
      %716 = vdwg.mxu0
      %v717 = vmax.f32 %v591, 0.0
      %v718 = vmax.f32 %v594, 0.0
      %v719 = vmax.f32 %v599, 0.0
      %v720 = vmax.f32 %v602, 0.0
      %v721 = vmax.f32 %v607, 0.0
      %v722 = vmax.f32 %v610, 0.0
      %v723 = vmax.f32 %v615, 0.0
      %v724 = vmax.f32 %v618, 0.0
      %v725 = vmax.f32 %v623, 0.0
      %v726 = vmax.f32 %v626, 0.0
      %v727 = vmax.f32 %v631, 0.0
      %v728 = vmax.f32 %v634, 0.0
      %v729 = vmax.f32 %v639, 0.0
      %v730 = vmax.f32 %v642, 0.0
      %v731 = vmax.f32 %v647, 0.0
      %v732 = vmax.f32 %v650, 0.0
      %v733 = vmax.f32 %v655, 0.0
      %v734 = vmax.f32 %v658, 0.0
      %v735 = vmax.f32 %v663, 0.0
      %v736 = vmax.f32 %v666, 0.0
      %v737 = vmax.f32 %v671, 0.0
      %v738 = vmax.f32 %v674, 0.0
      %v739 = vmax.f32 %v679, 0.0
      %v740 = vmax.f32 %v682, 0.0
      %v741 = vmax.f32 %v687, 0.0
      %v742 = vmax.f32 %v690, 0.0
      %v743 = vmax.f32 %v695, 0.0
      %v744 = vmax.f32 %v698, 0.0
      %v745 = vmax.f32 %v703, 0.0
      %v746 = vmax.f32 %v706, 0.0
      %v747 = vmax.f32 %v711, 0.0
      %v748 = vmax.f32 %v714, 0.0
      %v749 = vpack.c.bf16 %v718, %v717
      %v750 = vpack.c.bf16 %v720, %v719
      %v751 = vpack.c.bf16 %v722, %v721
      %v752 = vpack.c.bf16 %v724, %v723
      %v753 = vpack.c.bf16 %v726, %v725
      %v754 = vpack.c.bf16 %v728, %v727
      %v755 = vpack.c.bf16 %v730, %v729
      %v756 = vpack.c.bf16 %v732, %v731
      %v757 = vpack.c.bf16 %v734, %v733
      %v758 = vpack.c.bf16 %v736, %v735
      %v759 = vpack.c.bf16 %v738, %v737
      %v760 = vpack.c.bf16 %v740, %v739
      %v761 = vpack.c.bf16 %v742, %v741
      %v762 = vpack.c.bf16 %v744, %v743
      %v763 = vpack.c.bf16 %v746, %v745
      %v764 = vpack.c.bf16 %v748, %v747
      %v781 = vunpack.c.l.b16 %v749
      %v782 = vunpack.c.h.b16 %v749
      %v783 = vunpack.c.l.b16 %v750
      %v784 = vunpack.c.h.b16 %v750
      %v785 = vunpack.c.l.b16 %v751
      %v786 = vunpack.c.h.b16 %v751
      %v787 = vunpack.c.l.b16 %v752
      %v788 = vunpack.c.h.b16 %v752
      %v789 = vunpack.c.l.b16 %v753
      %v790 = vunpack.c.h.b16 %v753
      %v791 = vunpack.c.l.b16 %v754
      %v792 = vunpack.c.h.b16 %v754
      %v793 = vunpack.c.l.b16 %v755
      %v794 = vunpack.c.h.b16 %v755
      %v795 = vunpack.c.l.b16 %v756
      %v796 = vunpack.c.h.b16 %v756
      %v797 = vunpack.c.l.b16 %v757
      %v798 = vunpack.c.h.b16 %v757
      %v799 = vunpack.c.l.b16 %v758
      %v800 = vunpack.c.h.b16 %v758
      %v801 = vunpack.c.l.b16 %v759
      %v802 = vunpack.c.h.b16 %v759
      %v803 = vunpack.c.l.b16 %v760
      %v804 = vunpack.c.h.b16 %v760
      %v805 = vunpack.c.l.b16 %v761
      %v806 = vunpack.c.h.b16 %v761
      %v807 = vunpack.c.l.b16 %v762
      %v808 = vunpack.c.h.b16 %v762
      %v809 = vunpack.c.l.b16 %v763
      %v810 = vunpack.c.h.b16 %v763
      %v811 = vunpack.c.l.b16 %v764
      %v812 = vunpack.c.h.b16 %v764
      %v813 = vpack.c.b16 %v781, %v781
      %v814 = vpack.c.b16 %v782, %v782
      %v815 = vpack.c.b16 %v783, %v783
      %v816 = vpack.c.b16 %v784, %v784
      %v817 = vpack.c.b16 %v785, %v785
      %v818 = vpack.c.b16 %v786, %v786
      %v819 = vpack.c.b16 %v787, %v787
      %v820 = vpack.c.b16 %v788, %v788
      %v821 = vpack.c.b16 %v789, %v789
      %v822 = vpack.c.b16 %v790, %v790
      %v823 = vpack.c.b16 %v791, %v791
      %v824 = vpack.c.b16 %v792, %v792
      %v825 = vpack.c.b16 %v793, %v793
      %v826 = vpack.c.b16 %v794, %v794
      %v827 = vpack.c.b16 %v795, %v795
      %v828 = vpack.c.b16 %v796, %v796
      %v829 = vpack.c.b16 %v797, %v797
      %v830 = vpack.c.b16 %v798, %v798
      %v831 = vpack.c.b16 %v799, %v799
      %v832 = vpack.c.b16 %v800, %v800
      %v833 = vpack.c.b16 %v801, %v801
      %v834 = vpack.c.b16 %v802, %v802
      %v835 = vpack.c.b16 %v803, %v803
      %v836 = vpack.c.b16 %v804, %v804
      %v837 = vpack.c.b16 %v805, %v805
      %v838 = vpack.c.b16 %v806, %v806
      %v839 = vpack.c.b16 %v807, %v807
      %v840 = vpack.c.b16 %v808, %v808
      %v841 = vpack.c.b16 %v809, %v809
      %v842 = vpack.c.b16 %v810, %v810
      %v843 = vpack.c.b16 %v811, %v811
      %v844 = vpack.c.b16 %v812, %v812
      %877 = vst [vmem:[%s226] sm:$0xf] %v813
      %878 = vst [vmem:[%s226 + $0x4] sm:$0xf] %v814
      %879 = vst [vmem:[%s226 + $0x8] sm:$0xf] %v815
      %880 = vst [vmem:[%s226 + $0xc] sm:$0xf] %v816
      %881 = vst [vmem:[%s226 + $0x10] sm:$0xf] %v817
      %882 = vst [vmem:[%s226 + $0x14] sm:$0xf] %v818
      %883 = vst [vmem:[%s226 + $0x18] sm:$0xf] %v819
      %884 = vst [vmem:[%s226 + $0x1c] sm:$0xf] %v820
      %885 = vst [vmem:[%s226 + $0x20] sm:$0xf] %v821
      %886 = vst [vmem:[%s226 + $0x24] sm:$0xf] %v822
      %887 = vst [vmem:[%s226 + $0x28] sm:$0xf] %v823
      %888 = vst [vmem:[%s226 + $0x2c] sm:$0xf] %v824
      %889 = vst [vmem:[%s226 + $0x30] sm:$0xf] %v825
      %890 = vst [vmem:[%s226 + $0x34] sm:$0xf] %v826
      %891 = vst [vmem:[%s226 + $0x38] sm:$0xf] %v827
      %892 = vst [vmem:[%s226 + $0x3c] sm:$0xf] %v828
      %893 = vst [vmem:[%s226 + $0x40] sm:$0xf] %v829
      %894 = vst [vmem:[%s226 + $0x44] sm:$0xf] %v830
      %895 = vst [vmem:[%s226 + $0x48] sm:$0xf] %v831
      %896 = vst [vmem:[%s226 + $0x4c] sm:$0xf] %v832
      %897 = vst [vmem:[%s226 + $0x50] sm:$0xf] %v833
      %898 = vst [vmem:[%s226 + $0x54] sm:$0xf] %v834
      %899 = vst [vmem:[%s226 + $0x58] sm:$0xf] %v835
      %900 = vst [vmem:[%s226 + $0x5c] sm:$0xf] %v836
      %901 = vst [vmem:[%s226 + $0x60] sm:$0xf] %v837
      %902 = vst [vmem:[%s226 + $0x64] sm:$0xf] %v838
      %903 = vst [vmem:[%s226 + $0x68] sm:$0xf] %v839
      %904 = vst [vmem:[%s226 + $0x6c] sm:$0xf] %v840
      %905 = vst [vmem:[%s226 + $0x70] sm:$0xf] %v841
      %906 = vst [vmem:[%s226 + $0x74] sm:$0xf] %v842
      %907 = vst [vmem:[%s226 + $0x78] sm:$0xf] %v843
      %908 = vst [vmem:[%s226 + $0x7c] sm:$0xf] %v844
      %s909 = smul.u32 32, %s18
      %p910 = scmp.lt.s32.totalorder %s909, 63
      %s911 = scalar_select %p910, %s909, 63
      %p912 = scmp.lt.s32.totalorder %s19, 0
      %s913 = scalar_select %p912, %s19, 0
      %s914 = sadd.s32 %s913, %s911
      %s915 = smul.addr %s914, 4
      %s916 = scalar_lea.vmem %s3, %s915
      // Predicated region
      $region33: #{_lambda_.23} parent=31 // pred_check
        %p917 = pneg %p124
      $region34: #{_lambda_.23} parent=31 // pred_check_branch
        %919 = sbr.rel (%p917) target = $region36
      $region35: #{_lambda_.23} parent=31 // pred_region
        %s920 = smul.u32 32, %s18
      $region36: #{_lambda_.23} parent=31 // pred_fallthru
        _
    $region32: #{_lambda_.23} parent=5 // pred_fallthru
      _
    %p921 = scmp.le.s32.totalorder 2, %s9
    // Predicated region
    $region37: #{_lambda_.23} parent=5 // pred_check
      %p922 = pneg %p921
    $region38: #{_lambda_.23} parent=5 // pred_check_branch
      %924 = sbr.rel (%p922) target = $region40
    $region39: #{_lambda_.23} parent=5 // pred_region
      %s925 = ssub.s32 %s9, 2
      // Predicated region
      $region41: #{_lambda_.23} parent=39 // pred_check
        %p926 = pneg %p130
      $region42: #{_lambda_.23} parent=39 // pred_check_branch
        %928 = sbr.rel (%p926) target = $region44
      $region43: #{_lambda_.23} parent=39 // pred_region
        %s929 = smul.u32 32, %s20
        %p930 = scmp.lt.s32.totalorder %s929, 63
        %s931 = scalar_select %p930, %s929, 63
        %p932 = scmp.lt.s32.totalorder %s21, 0
        %s933 = scalar_select %p932, %s21, 0
        %s934 = sadd.s32 %s933, %s931
        %s935 = smul.addr %s934, 4
        %s936 = scalar_lea.vmem %s3, %s935
      $region44: #{_lambda_.23} parent=39 // pred_fallthru
        _
    $region40: #{_lambda_.23} parent=5 // pred_fallthru
      _
  $region6: #{_lambda_.23} parent=0 // loop_footer
    %s13 = sadd.s32 1, %s9
  $region7: #{_lambda_.23} parent=0 // loop_footer_branch
    %8 = sbr.rel target = $region3
  $region8: #{_lambda_.23} parent=0 // loop_exit
    _

// kernel: _lambda_.27
$region0: #{_lambda_.27}
  #allocation0 [shape = 'u32[]', space=smem, size = 0x4, offset = 0x4, fixed_abs, tag = 'smem constant byte address 0x4 - core index']
  #allocation1 [shape = 'u32[144,128]{1,0:T(1,128)}', space=vmem, size = 0x12000, scoped, tag = 'internal scratch']
  %s0 = inlined_call_operand.vmem [shape: bf16[128,128], index: 0, kind: input, shape index: {}]
  %s1 = inlined_call_operand.vmem [shape: bf16[128,128], index: 1, kind: input, shape index: {}]
  %s2 = inlined_call_operand.vmem [shape: f32[1,128], index: 2, kind: input, shape index: {}]
  %s3 = inlined_call_operand.vmem [shape: bf16[128,128], index: 3, kind: output, shape index: {}]
  %s4 = sld [smem:[#allocation0]]
  $region22: #{_lambda_.27} parent=0
    _
  %s6 = ssub.s32 1, %s4
  %s7 = scalar_select 0, %s6, %s4
  // Predicated region
  $region2: #{_lambda_.27} parent=0 // pred_check
    _
  $region3: #{_lambda_.27} parent=0 // pred_check_branch
    %9 = sbr.rel (0) target = $region5
  $region4: #{_lambda_.27} parent=0 // pred_region
    _
  $region5: #{_lambda_.27} parent=0 // pred_fallthru
    _
  // Predicated region
  $region6: #{_lambda_.27} parent=0 // pred_check
    _
  $region7: #{_lambda_.27} parent=0 // pred_check_branch
    %11 = sbr.rel (0) target = $region9
  $region8: #{_lambda_.27} parent=0 // pred_region
    _
  $region9: #{_lambda_.27} parent=0 // pred_fallthru
    _
  // Predicated region
  $region10: #{_lambda_.27} parent=0 // pred_check
    _
  $region11: #{_lambda_.27} parent=0 // pred_check_branch
    %13 = sbr.rel (0) target = $region13
  $region12: #{_lambda_.27} parent=0 // pred_region
    _
  $region13: #{_lambda_.27} parent=0 // pred_fallthru
    _
  %v15 = vld [vmem:[%s0] sm:$0xf]
  %v16 = vld [vmem:[%s0 + $0x4] sm:$0xf]
  %v17 = vld [vmem:[%s0 + $0x8] sm:$0xf]
  %v18 = vld [vmem:[%s0 + $0xc] sm:$0xf]
  %v19 = vld [vmem:[%s0 + $0x10] sm:$0xf]
  %v20 = vld [vmem:[%s0 + $0x14] sm:$0xf]
  %v21 = vld [vmem:[%s0 + $0x18] sm:$0xf]
  %v22 = vld [vmem:[%s0 + $0x1c] sm:$0xf]
  %v23 = vld [vmem:[%s0 + $0x20] sm:$0xf]
  %v24 = vld [vmem:[%s0 + $0x24] sm:$0xf]
  %v25 = vld [vmem:[%s0 + $0x28] sm:$0xf]
  %v26 = vld [vmem:[%s0 + $0x2c] sm:$0xf]
  %v27 = vld [vmem:[%s0 + $0x30] sm:$0xf]
  %v28 = vld [vmem:[%s0 + $0x34] sm:$0xf]
  %v29 = vld [vmem:[%s0 + $0x38] sm:$0xf]
  %v30 = vld [vmem:[%s0 + $0x3c] sm:$0xf]
  %v31 = vld [vmem:[%s1] sm:$0xf]
  %v32 = vld [vmem:[%s1 + $0x4] sm:$0xf]
  %v33 = vld [vmem:[%s1 + $0x8] sm:$0xf]
  %v34 = vld [vmem:[%s1 + $0xc] sm:$0xf]
  %v35 = vld [vmem:[%s1 + $0x10] sm:$0xf]
  %v36 = vld [vmem:[%s1 + $0x14] sm:$0xf]
  %v37 = vld [vmem:[%s1 + $0x18] sm:$0xf]
  %v38 = vld [vmem:[%s1 + $0x1c] sm:$0xf]
  %v39 = vld [vmem:[%s1 + $0x20] sm:$0xf]
  %v40 = vld [vmem:[%s1 + $0x24] sm:$0xf]
  %v41 = vld [vmem:[%s1 + $0x28] sm:$0xf]
  %v42 = vld [vmem:[%s1 + $0x2c] sm:$0xf]
  %v43 = vld [vmem:[%s1 + $0x30] sm:$0xf]
  %v44 = vld [vmem:[%s1 + $0x34] sm:$0xf]
  %v45 = vld [vmem:[%s1 + $0x38] sm:$0xf]
  %v46 = vld [vmem:[%s1 + $0x3c] sm:$0xf]
  %v47 = vld [vmem:[%s2] sm:$0x1]
  %v49 = vlaneseq
  %v50 = vshrl.u32 %v49, 7
  %v51 = vsub.s32 0, %v50
  %v52 = vrot.slane %v47, %v51
  %v70 = vunpack.c.l.b16 %v15
  %v71 = vunpack.c.l.b16 %v16
  %v72 = vunpack.c.l.b16 %v17
  %v73 = vunpack.c.l.b16 %v18
  %v74 = vunpack.c.l.b16 %v19
  %v75 = vunpack.c.l.b16 %v20
  %v76 = vunpack.c.l.b16 %v21
  %v77 = vunpack.c.l.b16 %v22
  %v78 = vunpack.c.l.b16 %v23
  %v79 = vunpack.c.l.b16 %v24
  %v80 = vunpack.c.l.b16 %v25
  %v81 = vunpack.c.l.b16 %v26
  %v82 = vunpack.c.l.b16 %v27
  %v83 = vunpack.c.l.b16 %v28
  %v84 = vunpack.c.l.b16 %v29
  %v85 = vunpack.c.l.b16 %v30
  %v86 = vpack.c.b16 %v71, %v70
  %v87 = vpack.c.b16 %v73, %v72
  %v88 = vpack.c.b16 %v75, %v74
  %v89 = vpack.c.b16 %v77, %v76
  %v90 = vpack.c.b16 %v79, %v78
  %v91 = vpack.c.b16 %v81, %v80
  %v92 = vpack.c.b16 %v83, %v82
  %v93 = vpack.c.b16 %v85, %v84
  %v118 = vunpack.c.l.b16 %v31
  %v119 = vunpack.c.l.b16 %v32
  %v120 = vunpack.c.l.b16 %v33
  %v121 = vunpack.c.l.b16 %v34
  %v122 = vunpack.c.l.b16 %v35
  %v123 = vunpack.c.l.b16 %v36
  %v124 = vunpack.c.l.b16 %v37
  %v125 = vunpack.c.l.b16 %v38
  %v126 = vunpack.c.l.b16 %v39
  %v127 = vunpack.c.l.b16 %v40
  %v128 = vunpack.c.l.b16 %v41
  %v129 = vunpack.c.l.b16 %v42
  %v130 = vunpack.c.l.b16 %v43
  %v131 = vunpack.c.l.b16 %v44
  %v132 = vunpack.c.l.b16 %v45
  %v133 = vunpack.c.l.b16 %v46
  %v134 = vpack.c.b16 %v119, %v118
  %v135 = vpack.c.b16 %v121, %v120
  %v136 = vpack.c.b16 %v123, %v122
  %v137 = vpack.c.b16 %v125, %v124
  %v138 = vpack.c.b16 %v127, %v126
  %v139 = vpack.c.b16 %v129, %v128
  %v140 = vpack.c.b16 %v131, %v130
  %v141 = vpack.c.b16 %v133, %v132
  %150 = vmatprep.subr.bf16.mxu0 0
  %151 = vmatpush1.bf16.msra.mxu0 %v141
  %152 = vmatprep.subr.bf16.mxu0 0
  %153 = vmatpush1.bf16.msra.mxu0 %v140
  %154 = vmatprep.subr.bf16.mxu0 0
  %155 = vmatpush1.bf16.msra.mxu0 %v139
  %156 = vmatprep.subr.bf16.mxu0 0
  %157 = vmatpush1.bf16.msra.mxu0 %v138
  %158 = vmatprep.subr.bf16.mxu0 0
  %159 = vmatpush1.bf16.msra.mxu0 %v137
  %160 = vmatprep.subr.bf16.mxu0 0
  %161 = vmatpush1.bf16.msra.mxu0 %v136
  %162 = vmatprep.subr.bf16.mxu0 0
  %163 = vmatpush1.bf16.msra.mxu0 %v135
  %164 = vmatprep.subr.bf16.mxu0 0
  %165 = vmatpush1.bf16.msra.mxu0 %v134
  %166 = vmatprep.subr.bf16.mxu0 0
  %167 = vmatpush2.bf16.msra.mxu0 0
  %168 = vmatprep.subr.bf16.mxu0 0
  %169 = vmatpush2.bf16.msra.mxu0 0
  %170 = vmatprep.subr.bf16.mxu0 0
  %171 = vmatpush2.bf16.msra.mxu0 0
  %172 = vmatprep.subr.bf16.mxu0 0
  %173 = vmatpush2.bf16.msra.mxu0 0
  %174 = vmatprep.subr.bf16.mxu0 0
  %175 = vmatpush2.bf16.msra.mxu0 0
  %176 = vmatprep.subr.bf16.mxu0 0
  %177 = vmatpush2.bf16.msra.mxu0 0
  %178 = vmatprep.subr.bf16.mxu0 0
  %179 = vmatpush2.bf16.msra.mxu0 0
  %180 = vmatprep.subr.bf16.mxu0 0
  %181 = vmatpush2.bf16.msra.mxu0 0
  %182 = vmatprep.mubr.bf16.mxu0 0
  %183 = vmatmul.mubr.bf16.gmra.mxu0 %v86
  %v184 = vpop.f32.mrf.mxu0
  %v185 = vadd.f32 %v52, %v184
  %v186 = vpop.f32.mrf.mxu0
  %v187 = vpop.f32.mrf.mxu0
  %v188 = vadd.f32 %v52, %v187
  %v189 = vpop.f32.mrf.mxu0
  %190 = vmatprep.mubr.bf16.mxu0 0
  %191 = vmatmul.mubr.bf16.gmra.mxu0 %v87
  %v192 = vpop.f32.mrf.mxu0
  %v193 = vadd.f32 %v52, %v192
  %v194 = vpop.f32.mrf.mxu0
  %v195 = vpop.f32.mrf.mxu0
  %v196 = vadd.f32 %v52, %v195
  %v197 = vpop.f32.mrf.mxu0
  %198 = vmatprep.mubr.bf16.mxu0 0
  %199 = vmatmul.mubr.bf16.gmra.mxu0 %v88
  %v200 = vpop.f32.mrf.mxu0
  %v201 = vadd.f32 %v52, %v200
  %v202 = vpop.f32.mrf.mxu0
  %v203 = vpop.f32.mrf.mxu0
  %v204 = vadd.f32 %v52, %v203
  %v205 = vpop.f32.mrf.mxu0
  %206 = vmatprep.mubr.bf16.mxu0 0
  %207 = vmatmul.mubr.bf16.gmra.mxu0 %v89
  %v208 = vpop.f32.mrf.mxu0
  %v209 = vadd.f32 %v52, %v208
  %v210 = vpop.f32.mrf.mxu0
  %v211 = vpop.f32.mrf.mxu0
  %v212 = vadd.f32 %v52, %v211
  %v213 = vpop.f32.mrf.mxu0
  %214 = vmatprep.mubr.bf16.mxu0 0
  %215 = vmatmul.mubr.bf16.gmra.mxu0 %v90
  %v216 = vpop.f32.mrf.mxu0
  %v217 = vadd.f32 %v52, %v216
  %v218 = vpop.f32.mrf.mxu0
  %v219 = vpop.f32.mrf.mxu0
  %v220 = vadd.f32 %v52, %v219
  %v221 = vpop.f32.mrf.mxu0
  %222 = vmatprep.mubr.bf16.mxu0 0
  %223 = vmatmul.mubr.bf16.gmra.mxu0 %v91
  %v224 = vpop.f32.mrf.mxu0
  %v225 = vadd.f32 %v52, %v224
  %v226 = vpop.f32.mrf.mxu0
  %v227 = vpop.f32.mrf.mxu0
  %v228 = vadd.f32 %v52, %v227
  %v229 = vpop.f32.mrf.mxu0
  %230 = vmatprep.mubr.bf16.mxu0 0
  %231 = vmatmul.mubr.bf16.gmra.mxu0 %v92
  %v232 = vpop.f32.mrf.mxu0
  %v233 = vadd.f32 %v52, %v232
  %v234 = vpop.f32.mrf.mxu0
  %v235 = vpop.f32.mrf.mxu0
  %v236 = vadd.f32 %v52, %v235
  %v237 = vpop.f32.mrf.mxu0
  %238 = vmatprep.mubr.bf16.mxu0 0
  %239 = vmatmul.mubr.bf16.gmra.mxu0 %v93
  %v240 = vpop.f32.mrf.mxu0
  %v241 = vadd.f32 %v52, %v240
  %v242 = vpop.f32.mrf.mxu0
  %v243 = vpop.f32.mrf.mxu0
  %v244 = vadd.f32 %v52, %v243
  %v245 = vpop.f32.mrf.mxu0
  %246 = vdwg.mxu0
  %v247 = vpack.c.bf16 %v188, %v185
  %v248 = vpack.c.bf16 %v196, %v193
  %v249 = vpack.c.bf16 %v204, %v201
  %v250 = vpack.c.bf16 %v212, %v209
  %v251 = vpack.c.bf16 %v220, %v217
  %v252 = vpack.c.bf16 %v228, %v225
  %v253 = vpack.c.bf16 %v236, %v233
  %v254 = vpack.c.bf16 %v244, %v241
  %v263 = vunpack.c.l.b16 %v247
  %v264 = vunpack.c.h.b16 %v247
  %v265 = vunpack.c.l.b16 %v248
  %v266 = vunpack.c.h.b16 %v248
  %v267 = vunpack.c.l.b16 %v249
  %v268 = vunpack.c.h.b16 %v249
  %v269 = vunpack.c.l.b16 %v250
  %v270 = vunpack.c.h.b16 %v250
  %v271 = vunpack.c.l.b16 %v251
  %v272 = vunpack.c.h.b16 %v251
  %v273 = vunpack.c.l.b16 %v252
  %v274 = vunpack.c.h.b16 %v252
  %v275 = vunpack.c.l.b16 %v253
  %v276 = vunpack.c.h.b16 %v253
  %v277 = vunpack.c.l.b16 %v254
  %v278 = vunpack.c.h.b16 %v254
  %v279 = vpack.c.b16 %v263, %v263
  %v280 = vpack.c.b16 %v264, %v264
  %v281 = vpack.c.b16 %v265, %v265
  %v282 = vpack.c.b16 %v266, %v266
  %v283 = vpack.c.b16 %v267, %v267
  %v284 = vpack.c.b16 %v268, %v268
  %v285 = vpack.c.b16 %v269, %v269
  %v286 = vpack.c.b16 %v270, %v270
  %v287 = vpack.c.b16 %v271, %v271
  %v288 = vpack.c.b16 %v272, %v272
  %v289 = vpack.c.b16 %v273, %v273
  %v290 = vpack.c.b16 %v274, %v274
  %v291 = vpack.c.b16 %v275, %v275
  %v292 = vpack.c.b16 %v276, %v276
  %v293 = vpack.c.b16 %v277, %v277
  %v294 = vpack.c.b16 %v278, %v278
  %311 = vst [vmem:[%s3] sm:$0xf] %v279
  %312 = vst [vmem:[%s3 + $0x4] sm:$0xf] %v280
  %313 = vst [vmem:[%s3 + $0x8] sm:$0xf] %v281
  %314 = vst [vmem:[%s3 + $0xc] sm:$0xf] %v282
  %315 = vst [vmem:[%s3 + $0x10] sm:$0xf] %v283
  %316 = vst [vmem:[%s3 + $0x14] sm:$0xf] %v284
  %317 = vst [vmem:[%s3 + $0x18] sm:$0xf] %v285
  %318 = vst [vmem:[%s3 + $0x1c] sm:$0xf] %v286
  %319 = vst [vmem:[%s3 + $0x20] sm:$0xf] %v287
  %320 = vst [vmem:[%s3 + $0x24] sm:$0xf] %v288
  %321 = vst [vmem:[%s3 + $0x28] sm:$0xf] %v289
  %322 = vst [vmem:[%s3 + $0x2c] sm:$0xf] %v290
  %323 = vst [vmem:[%s3 + $0x30] sm:$0xf] %v291
  %324 = vst [vmem:[%s3 + $0x34] sm:$0xf] %v292
  %325 = vst [vmem:[%s3 + $0x38] sm:$0xf] %v293
  %326 = vst [vmem:[%s3 + $0x3c] sm:$0xf] %v294
  // Predicated region
  $region14: #{_lambda_.27} parent=0 // pred_check
    _
  $region15: #{_lambda_.27} parent=0 // pred_check_branch
    %328 = sbr.rel (0) target = $region17
  $region16: #{_lambda_.27} parent=0 // pred_region
    _
  $region17: #{_lambda_.27} parent=0 // pred_fallthru
    _
  // Predicated region
  $region18: #{_lambda_.27} parent=0 // pred_check
    _
  $region19: #{_lambda_.27} parent=0 // pred_check_branch
    %330 = sbr.rel (0) target = $region21
  $region20: #{_lambda_.27} parent=0 // pred_region
    _
  $region21: #{_lambda_.27} parent=0 // pred_fallthru
    _

// kernel: _lambda_.28
$region0: #{_lambda_.28}
  #allocation0 [shape = 'u32[]', space=smem, size = 0x4, offset = 0x4, fixed_abs, tag = 'smem constant byte address 0x4 - core index']
  #allocation1 [shape = 'u32[144,128]{1,0:T(1,128)}', space=vmem, size = 0x12000, scoped, tag = 'internal scratch']
  %s0 = inlined_call_operand.vmem [shape: bf16[128,128], index: 0, kind: input, shape index: {}]
  %s1 = inlined_call_operand.vmem [shape: bf16[128,128], index: 1, kind: input, shape index: {}]
  %s2 = inlined_call_operand.vmem [shape: f32[1,128], index: 2, kind: input, shape index: {}]
  %s3 = inlined_call_operand.vmem [shape: bf16[128,128], index: 3, kind: input, shape index: {}]
  %s4 = inlined_call_operand.vmem [shape: bf16[128,128], index: 4, kind: output, shape index: {}]
  %s5 = sld [smem:[#allocation0]]
  $region26: #{_lambda_.28} parent=0
    _
  %s7 = ssub.s32 1, %s5
  %s8 = scalar_select 0, %s7, %s5
  // Predicated region
  $region2: #{_lambda_.28} parent=0 // pred_check
    _
  $region3: #{_lambda_.28} parent=0 // pred_check_branch
    %10 = sbr.rel (0) target = $region5
  $region4: #{_lambda_.28} parent=0 // pred_region
    _
  $region5: #{_lambda_.28} parent=0 // pred_fallthru
    _
  // Predicated region
  $region6: #{_lambda_.28} parent=0 // pred_check
    _
  $region7: #{_lambda_.28} parent=0 // pred_check_branch
    %12 = sbr.rel (0) target = $region9
  $region8: #{_lambda_.28} parent=0 // pred_region
    _
  $region9: #{_lambda_.28} parent=0 // pred_fallthru
    _
  // Predicated region
  $region10: #{_lambda_.28} parent=0 // pred_check
    _
  $region11: #{_lambda_.28} parent=0 // pred_check_branch
    %14 = sbr.rel (0) target = $region13
  $region12: #{_lambda_.28} parent=0 // pred_region
    _
  $region13: #{_lambda_.28} parent=0 // pred_fallthru
    _
  // Predicated region
  $region14: #{_lambda_.28} parent=0 // pred_check
    _
  $region15: #{_lambda_.28} parent=0 // pred_check_branch
    %16 = sbr.rel (0) target = $region17
  $region16: #{_lambda_.28} parent=0 // pred_region
    _
  $region17: #{_lambda_.28} parent=0 // pred_fallthru
    _
  %v18 = vld [vmem:[%s0] sm:$0xf]
  %v19 = vld [vmem:[%s0 + $0x4] sm:$0xf]
  %v20 = vld [vmem:[%s0 + $0x8] sm:$0xf]
  %v21 = vld [vmem:[%s0 + $0xc] sm:$0xf]
  %v22 = vld [vmem:[%s0 + $0x10] sm:$0xf]
  %v23 = vld [vmem:[%s0 + $0x14] sm:$0xf]
  %v24 = vld [vmem:[%s0 + $0x18] sm:$0xf]
  %v25 = vld [vmem:[%s0 + $0x1c] sm:$0xf]
  %v26 = vld [vmem:[%s0 + $0x20] sm:$0xf]
  %v27 = vld [vmem:[%s0 + $0x24] sm:$0xf]
  %v28 = vld [vmem:[%s0 + $0x28] sm:$0xf]
  %v29 = vld [vmem:[%s0 + $0x2c] sm:$0xf]
  %v30 = vld [vmem:[%s0 + $0x30] sm:$0xf]
  %v31 = vld [vmem:[%s0 + $0x34] sm:$0xf]
  %v32 = vld [vmem:[%s0 + $0x38] sm:$0xf]
  %v33 = vld [vmem:[%s0 + $0x3c] sm:$0xf]
  %v34 = vld [vmem:[%s1] sm:$0xf]
  %v35 = vld [vmem:[%s1 + $0x4] sm:$0xf]
  %v36 = vld [vmem:[%s1 + $0x8] sm:$0xf]
  %v37 = vld [vmem:[%s1 + $0xc] sm:$0xf]
  %v38 = vld [vmem:[%s1 + $0x10] sm:$0xf]
  %v39 = vld [vmem:[%s1 + $0x14] sm:$0xf]
  %v40 = vld [vmem:[%s1 + $0x18] sm:$0xf]
  %v41 = vld [vmem:[%s1 + $0x1c] sm:$0xf]
  %v42 = vld [vmem:[%s1 + $0x20] sm:$0xf]
  %v43 = vld [vmem:[%s1 + $0x24] sm:$0xf]
  %v44 = vld [vmem:[%s1 + $0x28] sm:$0xf]
  %v45 = vld [vmem:[%s1 + $0x2c] sm:$0xf]
  %v46 = vld [vmem:[%s1 + $0x30] sm:$0xf]
  %v47 = vld [vmem:[%s1 + $0x34] sm:$0xf]
  %v48 = vld [vmem:[%s1 + $0x38] sm:$0xf]
  %v49 = vld [vmem:[%s1 + $0x3c] sm:$0xf]
  %v50 = vld [vmem:[%s2] sm:$0x1]
  %v52 = vlaneseq
  %v53 = vshrl.u32 %v52, 7
  %v54 = vsub.s32 0, %v53
  %v55 = vrot.slane %v50, %v54
  %v73 = vunpack.c.l.b16 %v18
  %v74 = vunpack.c.l.b16 %v19
  %v75 = vunpack.c.l.b16 %v20
  %v76 = vunpack.c.l.b16 %v21
  %v77 = vunpack.c.l.b16 %v22
  %v78 = vunpack.c.l.b16 %v23
  %v79 = vunpack.c.l.b16 %v24
  %v80 = vunpack.c.l.b16 %v25
  %v81 = vunpack.c.l.b16 %v26
  %v82 = vunpack.c.l.b16 %v27
  %v83 = vunpack.c.l.b16 %v28
  %v84 = vunpack.c.l.b16 %v29
  %v85 = vunpack.c.l.b16 %v30
  %v86 = vunpack.c.l.b16 %v31
  %v87 = vunpack.c.l.b16 %v32
  %v88 = vunpack.c.l.b16 %v33
  %v89 = vpack.c.b16 %v74, %v73
  %v90 = vpack.c.b16 %v76, %v75
  %v91 = vpack.c.b16 %v78, %v77
  %v92 = vpack.c.b16 %v80, %v79
  %v93 = vpack.c.b16 %v82, %v81
  %v94 = vpack.c.b16 %v84, %v83
  %v95 = vpack.c.b16 %v86, %v85
  %v96 = vpack.c.b16 %v88, %v87
  %v121 = vunpack.c.l.b16 %v34
  %v122 = vunpack.c.l.b16 %v35
  %v123 = vunpack.c.l.b16 %v36
  %v124 = vunpack.c.l.b16 %v37
  %v125 = vunpack.c.l.b16 %v38
  %v126 = vunpack.c.l.b16 %v39
  %v127 = vunpack.c.l.b16 %v40
  %v128 = vunpack.c.l.b16 %v41
  %v129 = vunpack.c.l.b16 %v42
  %v130 = vunpack.c.l.b16 %v43
  %v131 = vunpack.c.l.b16 %v44
  %v132 = vunpack.c.l.b16 %v45
  %v133 = vunpack.c.l.b16 %v46
  %v134 = vunpack.c.l.b16 %v47
  %v135 = vunpack.c.l.b16 %v48
  %v136 = vunpack.c.l.b16 %v49
  %v137 = vpack.c.b16 %v122, %v121
  %v138 = vpack.c.b16 %v124, %v123
  %v139 = vpack.c.b16 %v126, %v125
  %v140 = vpack.c.b16 %v128, %v127
  %v141 = vpack.c.b16 %v130, %v129
  %v142 = vpack.c.b16 %v132, %v131
  %v143 = vpack.c.b16 %v134, %v133
  %v144 = vpack.c.b16 %v136, %v135
  %153 = vmatprep.subr.bf16.mxu0 0
  %154 = vmatpush1.bf16.msra.mxu0 %v144
  %155 = vmatprep.subr.bf16.mxu0 0
  %156 = vmatpush1.bf16.msra.mxu0 %v143
  %157 = vmatprep.subr.bf16.mxu0 0
  %158 = vmatpush1.bf16.msra.mxu0 %v142
  %159 = vmatprep.subr.bf16.mxu0 0
  %160 = vmatpush1.bf16.msra.mxu0 %v141
  %161 = vmatprep.subr.bf16.mxu0 0
  %162 = vmatpush1.bf16.msra.mxu0 %v140
  %163 = vmatprep.subr.bf16.mxu0 0
  %164 = vmatpush1.bf16.msra.mxu0 %v139
  %165 = vmatprep.subr.bf16.mxu0 0
  %166 = vmatpush1.bf16.msra.mxu0 %v138
  %167 = vmatprep.subr.bf16.mxu0 0
  %168 = vmatpush1.bf16.msra.mxu0 %v137
  %169 = vmatprep.subr.bf16.mxu0 0
  %170 = vmatpush2.bf16.msra.mxu0 0
  %171 = vmatprep.subr.bf16.mxu0 0
  %172 = vmatpush2.bf16.msra.mxu0 0
  %173 = vmatprep.subr.bf16.mxu0 0
  %174 = vmatpush2.bf16.msra.mxu0 0
  %175 = vmatprep.subr.bf16.mxu0 0
  %176 = vmatpush2.bf16.msra.mxu0 0
  %177 = vmatprep.subr.bf16.mxu0 0
  %178 = vmatpush2.bf16.msra.mxu0 0
  %179 = vmatprep.subr.bf16.mxu0 0
  %180 = vmatpush2.bf16.msra.mxu0 0
  %181 = vmatprep.subr.bf16.mxu0 0
  %182 = vmatpush2.bf16.msra.mxu0 0
  %183 = vmatprep.subr.bf16.mxu0 0
  %184 = vmatpush2.bf16.msra.mxu0 0
  %185 = vmatprep.mubr.bf16.mxu0 0
  %186 = vmatmul.mubr.bf16.gmra.mxu0 %v89
  %v187 = vpop.f32.mrf.mxu0
  %v188 = vadd.f32 %v55, %v187
  %v189 = vpop.f32.mrf.mxu0
  %v190 = vpop.f32.mrf.mxu0
  %v191 = vadd.f32 %v55, %v190
  %v192 = vpop.f32.mrf.mxu0
  %193 = vmatprep.mubr.bf16.mxu0 0
  %194 = vmatmul.mubr.bf16.gmra.mxu0 %v90
  %v195 = vpop.f32.mrf.mxu0
  %v196 = vadd.f32 %v55, %v195
  %v197 = vpop.f32.mrf.mxu0
  %v198 = vpop.f32.mrf.mxu0
  %v199 = vadd.f32 %v55, %v198
  %v200 = vpop.f32.mrf.mxu0
  %201 = vmatprep.mubr.bf16.mxu0 0
  %202 = vmatmul.mubr.bf16.gmra.mxu0 %v91
  %v203 = vpop.f32.mrf.mxu0
  %v204 = vadd.f32 %v55, %v203
  %v205 = vpop.f32.mrf.mxu0
  %v206 = vpop.f32.mrf.mxu0
  %v207 = vadd.f32 %v55, %v206
  %v208 = vpop.f32.mrf.mxu0
  %209 = vmatprep.mubr.bf16.mxu0 0
  %210 = vmatmul.mubr.bf16.gmra.mxu0 %v92
  %v211 = vpop.f32.mrf.mxu0
  %v212 = vadd.f32 %v55, %v211
  %v213 = vpop.f32.mrf.mxu0
  %v214 = vpop.f32.mrf.mxu0
  %v215 = vadd.f32 %v55, %v214
  %v216 = vpop.f32.mrf.mxu0
  %217 = vmatprep.mubr.bf16.mxu0 0
  %218 = vmatmul.mubr.bf16.gmra.mxu0 %v93
  %v219 = vpop.f32.mrf.mxu0
  %v220 = vadd.f32 %v55, %v219
  %v221 = vpop.f32.mrf.mxu0
  %v222 = vpop.f32.mrf.mxu0
  %v223 = vadd.f32 %v55, %v222
  %v224 = vpop.f32.mrf.mxu0
  %225 = vmatprep.mubr.bf16.mxu0 0
  %226 = vmatmul.mubr.bf16.gmra.mxu0 %v94
  %v227 = vpop.f32.mrf.mxu0
  %v228 = vadd.f32 %v55, %v227
  %v229 = vpop.f32.mrf.mxu0
  %v230 = vpop.f32.mrf.mxu0
  %v231 = vadd.f32 %v55, %v230
  %v232 = vpop.f32.mrf.mxu0
  %233 = vmatprep.mubr.bf16.mxu0 0
  %234 = vmatmul.mubr.bf16.gmra.mxu0 %v95
  %v235 = vpop.f32.mrf.mxu0
  %v236 = vadd.f32 %v55, %v235
  %v237 = vpop.f32.mrf.mxu0
  %v238 = vpop.f32.mrf.mxu0
  %v239 = vadd.f32 %v55, %v238
  %v240 = vpop.f32.mrf.mxu0
  %241 = vmatprep.mubr.bf16.mxu0 0
  %242 = vmatmul.mubr.bf16.gmra.mxu0 %v96
  %v243 = vpop.f32.mrf.mxu0
  %v244 = vadd.f32 %v55, %v243
  %v245 = vpop.f32.mrf.mxu0
  %v246 = vpop.f32.mrf.mxu0
  %v247 = vadd.f32 %v55, %v246
  %v248 = vpop.f32.mrf.mxu0
  %249 = vdwg.mxu0
  %v250 = vld [vmem:[%s3] sm:$0xf]
  %v251 = vld [vmem:[%s3 + $0x4] sm:$0xf]
  %v252 = vld [vmem:[%s3 + $0x8] sm:$0xf]
  %v253 = vld [vmem:[%s3 + $0xc] sm:$0xf]
  %v254 = vld [vmem:[%s3 + $0x10] sm:$0xf]
  %v255 = vld [vmem:[%s3 + $0x14] sm:$0xf]
  %v256 = vld [vmem:[%s3 + $0x18] sm:$0xf]
  %v257 = vld [vmem:[%s3 + $0x1c] sm:$0xf]
  %v258 = vld [vmem:[%s3 + $0x20] sm:$0xf]
  %v259 = vld [vmem:[%s3 + $0x24] sm:$0xf]
  %v260 = vld [vmem:[%s3 + $0x28] sm:$0xf]
  %v261 = vld [vmem:[%s3 + $0x2c] sm:$0xf]
  %v262 = vld [vmem:[%s3 + $0x30] sm:$0xf]
  %v263 = vld [vmem:[%s3 + $0x34] sm:$0xf]
  %v264 = vld [vmem:[%s3 + $0x38] sm:$0xf]
  %v265 = vld [vmem:[%s3 + $0x3c] sm:$0xf]
  %v266 = vunpack.c.l.bf16 %v250
  %v267 = vunpack.c.l.bf16 %v251
  %v268 = vunpack.c.l.bf16 %v252
  %v269 = vunpack.c.l.bf16 %v253
  %v270 = vunpack.c.l.bf16 %v254
  %v271 = vunpack.c.l.bf16 %v255
  %v272 = vunpack.c.l.bf16 %v256
  %v273 = vunpack.c.l.bf16 %v257
  %v274 = vunpack.c.l.bf16 %v258
  %v275 = vunpack.c.l.bf16 %v259
  %v276 = vunpack.c.l.bf16 %v260
  %v277 = vunpack.c.l.bf16 %v261
  %v278 = vunpack.c.l.bf16 %v262
  %v279 = vunpack.c.l.bf16 %v263
  %v280 = vunpack.c.l.bf16 %v264
  %v281 = vunpack.c.l.bf16 %v265
  %v282 = vadd.f32 %v188, %v266
  %v283 = vadd.f32 %v191, %v267
  %v284 = vadd.f32 %v196, %v268
  %v285 = vadd.f32 %v199, %v269
  %v286 = vadd.f32 %v204, %v270
  %v287 = vadd.f32 %v207, %v271
  %v288 = vadd.f32 %v212, %v272
  %v289 = vadd.f32 %v215, %v273
  %v290 = vadd.f32 %v220, %v274
  %v291 = vadd.f32 %v223, %v275
  %v292 = vadd.f32 %v228, %v276
  %v293 = vadd.f32 %v231, %v277
  %v294 = vadd.f32 %v236, %v278
  %v295 = vadd.f32 %v239, %v279
  %v296 = vadd.f32 %v244, %v280
  %v297 = vadd.f32 %v247, %v281
  %v298 = vmax.f32 %v282, 0.0
  %v299 = vmax.f32 %v283, 0.0
  %v300 = vmax.f32 %v284, 0.0
  %v301 = vmax.f32 %v285, 0.0
  %v302 = vmax.f32 %v286, 0.0
  %v303 = vmax.f32 %v287, 0.0
  %v304 = vmax.f32 %v288, 0.0
  %v305 = vmax.f32 %v289, 0.0
  %v306 = vmax.f32 %v290, 0.0
  %v307 = vmax.f32 %v291, 0.0
  %v308 = vmax.f32 %v292, 0.0
  %v309 = vmax.f32 %v293, 0.0
  %v310 = vmax.f32 %v294, 0.0
  %v311 = vmax.f32 %v295, 0.0
  %v312 = vmax.f32 %v296, 0.0
  %v313 = vmax.f32 %v297, 0.0
  %v314 = vpack.c.bf16 %v299, %v298
  %v315 = vpack.c.bf16 %v301, %v300
  %v316 = vpack.c.bf16 %v303, %v302
  %v317 = vpack.c.bf16 %v305, %v304
  %v318 = vpack.c.bf16 %v307, %v306
  %v319 = vpack.c.bf16 %v309, %v308
  %v320 = vpack.c.bf16 %v311, %v310
  %v321 = vpack.c.bf16 %v313, %v312
  %v330 = vunpack.c.l.b16 %v314
  %v331 = vunpack.c.h.b16 %v314
  %v332 = vunpack.c.l.b16 %v315
  %v333 = vunpack.c.h.b16 %v315
  %v334 = vunpack.c.l.b16 %v316
  %v335 = vunpack.c.h.b16 %v316
  %v336 = vunpack.c.l.b16 %v317
  %v337 = vunpack.c.h.b16 %v317
  %v338 = vunpack.c.l.b16 %v318
  %v339 = vunpack.c.h.b16 %v318
  %v340 = vunpack.c.l.b16 %v319
  %v341 = vunpack.c.h.b16 %v319
  %v342 = vunpack.c.l.b16 %v320
  %v343 = vunpack.c.h.b16 %v320
  %v344 = vunpack.c.l.b16 %v321
  %v345 = vunpack.c.h.b16 %v321
  %v346 = vpack.c.b16 %v330, %v330
  %v347 = vpack.c.b16 %v331, %v331
  %v348 = vpack.c.b16 %v332, %v332
  %v349 = vpack.c.b16 %v333, %v333
  %v350 = vpack.c.b16 %v334, %v334
  %v351 = vpack.c.b16 %v335, %v335
  %v352 = vpack.c.b16 %v336, %v336
  %v353 = vpack.c.b16 %v337, %v337
  %v354 = vpack.c.b16 %v338, %v338
  %v355 = vpack.c.b16 %v339, %v339
  %v356 = vpack.c.b16 %v340, %v340
  %v357 = vpack.c.b16 %v341, %v341
  %v358 = vpack.c.b16 %v342, %v342
  %v359 = vpack.c.b16 %v343, %v343
  %v360 = vpack.c.b16 %v344, %v344
  %v361 = vpack.c.b16 %v345, %v345
  %378 = vst [vmem:[%s4] sm:$0xf] %v346
  %379 = vst [vmem:[%s4 + $0x4] sm:$0xf] %v347
  %380 = vst [vmem:[%s4 + $0x8] sm:$0xf] %v348
  %381 = vst [vmem:[%s4 + $0xc] sm:$0xf] %v349
  %382 = vst [vmem:[%s4 + $0x10] sm:$0xf] %v350
  %383 = vst [vmem:[%s4 + $0x14] sm:$0xf] %v351
  %384 = vst [vmem:[%s4 + $0x18] sm:$0xf] %v352
  %385 = vst [vmem:[%s4 + $0x1c] sm:$0xf] %v353
  %386 = vst [vmem:[%s4 + $0x20] sm:$0xf] %v354
  %387 = vst [vmem:[%s4 + $0x24] sm:$0xf] %v355
  %388 = vst [vmem:[%s4 + $0x28] sm:$0xf] %v356
  %389 = vst [vmem:[%s4 + $0x2c] sm:$0xf] %v357
  %390 = vst [vmem:[%s4 + $0x30] sm:$0xf] %v358
  %391 = vst [vmem:[%s4 + $0x34] sm:$0xf] %v359
  %392 = vst [vmem:[%s4 + $0x38] sm:$0xf] %v360
  %393 = vst [vmem:[%s4 + $0x3c] sm:$0xf] %v361
  // Predicated region
  $region18: #{_lambda_.28} parent=0 // pred_check
    _
  $region19: #{_lambda_.28} parent=0 // pred_check_branch
    %395 = sbr.rel (0) target = $region21
  $region20: #{_lambda_.28} parent=0 // pred_region
    _
  $region21: #{_lambda_.28} parent=0 // pred_fallthru
    _
  // Predicated region
  $region22: #{_lambda_.28} parent=0 // pred_check
    _
  $region23: #{_lambda_.28} parent=0 // pred_check_branch
    %397 = sbr.rel (0) target = $region25
  $region24: #{_lambda_.28} parent=0 // pred_region
    _
  $region25: #{_lambda_.28} parent=0 // pred_fallthru
    _

// kernel: _lambda_.26
$region0: #{_lambda_.26}
  #allocation0 [shape = 'u32[]', space=smem, size = 0x4, offset = 0x4, fixed_abs, tag = 'smem constant byte address 0x4 - core index']
  #allocation1 [shape = 'u32[144,128]{1,0:T(1,128)}', space=vmem, size = 0x12000, scoped, tag = 'internal scratch']
  %s0 = inlined_call_operand.vmem [shape: bf16[2,120,128], index: 0, kind: input, shape index: {}]
  %s1 = inlined_call_operand.vmem [shape: bf16[3,384,128], index: 1, kind: input, shape index: {}]
  %s2 = inlined_call_operand.vmem [shape: f32[1,128], index: 2, kind: input, shape index: {}]
  %s3 = inlined_call_operand.vmem [shape: bf16[2,80,128], index: 3, kind: output, shape index: {}]
  %s4 = sld [smem:[#allocation0]]
  $region45: #{_lambda_.26} parent=0
    _
  %s6 = ssub.s32 1, %s4
  %s7 = scalar_select 0, %s6, %s4
  loop: start=0, step=1, limit=4
  $region2: #{_lambda_.26} parent=0 // loop_pre_header
    _
  $region3: #{_lambda_.26} parent=0 // loop_header
    %s9 = sphi 0, %s13
    %p10 = scmp.ge.s32.totalorder %s9, 4
    %s19 = sphi 0, %s21
    %s22 = sphi 0, %s19
    %s23 = sphi 0, %s22
    %s39 = sphi 0, %s23
    %s43 = sphi 0, %s43
    %s45 = sphi 0, %s43
    %s46 = sphi 0, %s45
    %s60 = sphi 0, %s46
    %s64 = sphi 0, %s64
    %s66 = sphi 0, %s64
    %s67 = sphi 0, %s66
    %s81 = sphi 0, %s67
    %s87 = sphi 0, %s89
    %s90 = sphi 0, %s87
    %s91 = sphi 0, %s90
    %s107 = sphi 0, %s91
  $region4: #{_lambda_.26} parent=0 // loop_header_branch
    %12 = sbr.rel (%p10) target = $region8
  $region5: #{_lambda_.26} parent=0 // loop_body
    %s14 = ssub.s32 %s9, 1
    %s15 = ssub.s32 %s9, 2
    %s16 = sadd.s32 %s9, 1
    %s17 = ssub.s32 %s9, %s16
    %p18 = scmp.eq.s32.totalorder %s17, 0
    %s20 = sadd.s32 %s19, 1
    %s21 = scalar_select %p18, %s19, %s20
    %p24 = pneg %p18
    %p25 = scmp.eq.s32.totalorder %s9, 1
    %p26 = por %p24, %p25
    %p27 = scmp.ne.s32.totalorder %s19, %s22
    %p28 = scmp.eq.s32.totalorder %s9, 0
    %p29 = por %p27, %p28
    %p30 = scmp.ne.s32.totalorder %s19, %s22
    %p31 = scmp.eq.s32.totalorder %s14, 1
    %p32 = por %p30, %p31
    %p33 = scmp.ne.s32.totalorder %s22, %s23
    %p34 = scmp.eq.s32.totalorder %s14, 0
    %p35 = por %p33, %p34
    %p36 = scmp.ne.s32.totalorder %s22, %s23
    %p37 = scmp.eq.s32.totalorder %s15, 1
    %p38 = por %p36, %p37
    %p40 = scmp.ne.s32.totalorder %s23, %s39
    %p41 = scmp.eq.s32.totalorder %s15, 0
    %p42 = por %p40, %p41
    %s44 = sadd.s32 %s43, 1
    %p47 = scmp.eq.s32.totalorder %s9, 1
    %p48 = scmp.ne.s32.totalorder %s43, %s45
    %p49 = scmp.eq.s32.totalorder %s9, 0
    %p50 = por %p48, %p49
    %p51 = scmp.ne.s32.totalorder %s43, %s45
    %p52 = scmp.eq.s32.totalorder %s14, 1
    %p53 = por %p51, %p52
    %p54 = scmp.ne.s32.totalorder %s45, %s46
    %p55 = scmp.eq.s32.totalorder %s14, 0
    %p56 = por %p54, %p55
    %p57 = scmp.ne.s32.totalorder %s45, %s46
    %p58 = scmp.eq.s32.totalorder %s15, 1
    %p59 = por %p57, %p58
    %p61 = scmp.ne.s32.totalorder %s46, %s60
    %p62 = scmp.eq.s32.totalorder %s15, 0
    %p63 = por %p61, %p62
    %s65 = sadd.s32 %s64, 1
    %p68 = scmp.eq.s32.totalorder %s9, 1
    %p69 = scmp.ne.s32.totalorder %s64, %s66
    %p70 = scmp.eq.s32.totalorder %s9, 0
    %p71 = por %p69, %p70
    %p72 = scmp.ne.s32.totalorder %s64, %s66
    %p73 = scmp.eq.s32.totalorder %s14, 1
    %p74 = por %p72, %p73
    %p75 = scmp.ne.s32.totalorder %s66, %s67
    %p76 = scmp.eq.s32.totalorder %s14, 0
    %p77 = por %p75, %p76
    %p78 = scmp.ne.s32.totalorder %s66, %s67
    %p79 = scmp.eq.s32.totalorder %s15, 1
    %p80 = por %p78, %p79
    %p82 = scmp.ne.s32.totalorder %s67, %s81
    %p83 = scmp.eq.s32.totalorder %s15, 0
    %p84 = por %p82, %p83
    %s85 = ssub.s32 %s9, %s16
    %p86 = scmp.eq.s32.totalorder %s85, 0
    %s88 = sadd.s32 %s87, 1
    %s89 = scalar_select %p86, %s87, %s88
    %p92 = pneg %p86
    %p93 = scmp.eq.s32.totalorder %s9, 1
    %p94 = por %p92, %p93
    %p95 = scmp.ne.s32.totalorder %s87, %s90
    %p96 = scmp.eq.s32.totalorder %s9, 0
    %p97 = por %p95, %p96
    %p98 = scmp.ne.s32.totalorder %s87, %s90
    %p99 = scmp.eq.s32.totalorder %s14, 1
    %p100 = por %p98, %p99
    %p101 = scmp.ne.s32.totalorder %s90, %s91
    %p102 = scmp.eq.s32.totalorder %s14, 0
    %p103 = por %p101, %p102
    %p104 = scmp.ne.s32.totalorder %s90, %s91
    %p105 = scmp.eq.s32.totalorder %s15, 1
    %p106 = por %p104, %p105
    %p108 = scmp.ne.s32.totalorder %s91, %s107
    %p109 = scmp.eq.s32.totalorder %s15, 0
    %p110 = por %p108, %p109
    %p111 = scmp.le.s32.totalorder 1, %s9
    %p112 = scmp.lt.s32.totalorder %s9, 3
    %p113 = pnand %p111, %p112
    %p114 = pneg %p113
    // Predicated region
    $region9: #{_lambda_.26} parent=5 // pred_check
      _
    $region10: #{_lambda_.26} parent=5 // pred_check_branch
      %116 = sbr.rel (%p113) target = $region12
    $region11: #{_lambda_.26} parent=5 // pred_region
      %s117 = ssub.s32 %s9, 1
      // Predicated region
      $region13: #{_lambda_.26} parent=11 // pred_check
        %p118 = pneg %p56
      $region14: #{_lambda_.26} parent=11 // pred_check_branch
        %120 = sbr.rel (%p118) target = $region16
      $region15: #{_lambda_.26} parent=11 // pred_region
        _
      $region16: #{_lambda_.26} parent=11 // pred_fallthru
        _
      // Predicated region
      $region17: #{_lambda_.26} parent=11 // pred_check
        %p121 = pneg %p77
      $region18: #{_lambda_.26} parent=11 // pred_check_branch
        %123 = sbr.rel (%p121) target = $region20
      $region19: #{_lambda_.26} parent=11 // pred_region
        _
      $region20: #{_lambda_.26} parent=11 // pred_fallthru
        _
    $region12: #{_lambda_.26} parent=5 // pred_fallthru
      _
    %p124 = scmp.lt.s32.totalorder %s9, 2
    // Predicated region
    $region21: #{_lambda_.26} parent=5 // pred_check
      %p125 = pneg %p124
    $region22: #{_lambda_.26} parent=5 // pred_check_branch
      %127 = sbr.rel (%p125) target = $region24
    $region23: #{_lambda_.26} parent=5 // pred_region
      // Predicated region
      $region25: #{_lambda_.26} parent=23 // pred_check
        %p128 = pneg %p29
      $region26: #{_lambda_.26} parent=23 // pred_check_branch
        %130 = sbr.rel (%p128) target = $region28
      $region27: #{_lambda_.26} parent=23 // pred_region
        %p131 = scmp.lt.s32.totalorder %s9, 1
        %s132 = scalar_select %p131, %s9, 1
        %s133 = smul.addr %s132, 15
        %s134 = smul.addr %s133, 4
        %s135 = scalar_lea.vmem %s0, %s134
      $region28: #{_lambda_.26} parent=23 // pred_fallthru
        _
    $region24: #{_lambda_.26} parent=5 // pred_fallthru
      _
    %p136 = scmp.le.s32.totalorder 1, %s9
    %p137 = scmp.lt.s32.totalorder %s9, 3
    %p138 = pnand %p136, %p137
    %p139 = pneg %p138
    // Predicated region
    $region29: #{_lambda_.26} parent=5 // pred_check
      _
    $region30: #{_lambda_.26} parent=5 // pred_check_branch
      %141 = sbr.rel (%p138) target = $region32
    $region31: #{_lambda_.26} parent=5 // pred_region
      %s142 = ssub.s32 %s9, 1
      %p143 = scmp.lt.s32.totalorder %s14, 1
      %s144 = scalar_select %p143, %s14, 1
      %s145 = smul.addr %s144, 15
      %s146 = smul.addr %s145, 4
      %s147 = scalar_lea.vmem %s0, %s146
      %p148 = pneg %p35
      %p149 = pneg %p32
      %p150 = pneg %p56
      %p151 = pneg %p53
      %p152 = pneg %p77
      %p153 = pneg %p74
      %p154 = pneg %p103
      %p155 = pneg %p100
      %p156 = scmp.lt.s32.totalorder %s14, 1
      %s157 = scalar_select %p156, %s14, 1
      %s158 = smul.addr %s157, 10
      %s159 = smul.addr %s158, 4
      %s160 = scalar_lea.vmem %s3, %s159
      %p161 = scmp.lt.s32.totalorder %s14, 1
      %s162 = scalar_select %p161, %s14, 1
      %s163 = smul.addr %s162, 15
      %s164 = smul.addr %s163, 4
      %s165 = scalar_lea.vmem %s0, %s164
      %p166 = scmp.lt.s32.totalorder %s14, 1
      %s167 = scalar_select %p166, %s14, 1
      %s168 = smul.addr %s167, 10
      %s169 = smul.addr %s168, 4
      %s170 = scalar_lea.vmem %s3, %s169
      %v172 = vld [vmem:[%s165] sm:$0xf]
      %v173 = vld [vmem:[%s165 + $0x4] sm:$0xf]
      %v174 = vld [vmem:[%s165 + $0x8] sm:$0xf]
      %v175 = vld [vmem:[%s165 + $0xc] sm:$0xf]
      %v176 = vld [vmem:[%s165 + $0x10] sm:$0xf]
      %v177 = vld [vmem:[%s165 + $0x14] sm:$0xf]
      %v178 = vld [vmem:[%s165 + $0x18] sm:$0xf]
      %v179 = vld [vmem:[%s165 + $0x1c] sm:$0xf]
      %v180 = vld [vmem:[%s165 + $0x20] sm:$0xf]
      %v181 = vld [vmem:[%s165 + $0x24] sm:$0xf]
      %v182 = vld [vmem:[%s165 + $0x4] sm:$0xe]
      %v183 = vld [vmem:[%s165 + $0x28] sm:$0xf]
      %v184 = vld [vmem:[%s165 + $0x2c] sm:$0x1]
      %v185 = vld [vmem:[%s165 + $0x8] sm:$0xc]
      %v186 = vld [vmem:[%s165 + $0x2c] sm:$0xf]
      %v187 = vld [vmem:[%s165 + $0x30] sm:$0x3]
      %v198 = vunpack.c.l.b16 %v172
      %v199 = vunpack.c.l.b16 %v173
      %v200 = vunpack.c.l.b16 %v174
      %v201 = vunpack.c.l.b16 %v175
      %v202 = vunpack.c.l.b16 %v176
      %v203 = vunpack.c.l.b16 %v177
      %v204 = vunpack.c.l.b16 %v178
      %v205 = vunpack.c.l.b16 %v179
      %v206 = vunpack.c.l.b16 %v180
      %v207 = vunpack.c.l.b16 %v181
      %v208 = vpack.c.b16 %v199, %v198
      %v209 = vpack.c.b16 %v201, %v200
      %v210 = vpack.c.b16 %v203, %v202
      %v211 = vpack.c.b16 %v205, %v204
      %v212 = vpack.c.b16 %v207, %v206
      %v221 = vunpack.c.l.b16 %v182
      %v222 = vunpack.c.l.b16 %v183
      %v223 = vunpack.c.l.b16 %v184
      %v224 = vpack.c.b16 %v200, %v221
      %v225 = vpack.c.b16 %v202, %v201
      %v226 = vpack.c.b16 %v204, %v203
      %v227 = vpack.c.b16 %v206, %v205
      %v228 = vpack.c.b16 %v222, %v207
      %v229 = vpack.c.b16 %v223, %v223
      %vm230 = vcmask 1046528
      %v231 = vrot.slane %v224, 1
      %v232 = vrot.slane %v225, 1
      %v233 = vsel %vm230, %v231, %v232
      %v234 = vrot.slane %v226, 1
      %v235 = vsel %vm230, %v232, %v234
      %v236 = vrot.slane %v227, 1
      %v237 = vsel %vm230, %v234, %v236
      %v238 = vrot.slane %v228, 1
      %v239 = vsel %vm230, %v236, %v238
      %v240 = vrot.slane %v229, 1
      %v241 = vsel %vm230, %v238, %v240
      %v250 = vunpack.c.l.b16 %v185
      %v251 = vunpack.c.l.b16 %v186
      %v252 = vunpack.c.l.b16 %v187
      %v253 = vpack.c.b16 %v201, %v250
      %v254 = vpack.c.b16 %v251, %v222
      %v255 = vpack.c.b16 %v252, %v252
      %vm256 = vcmask 1045504
      %v257 = vrot.slane %v253, 2
      %v258 = vrot.slane %v210, 2
      %v259 = vsel %vm256, %v257, %v258
      %v260 = vrot.slane %v211, 2
      %v261 = vsel %vm256, %v258, %v260
      %v262 = vrot.slane %v212, 2
      %v263 = vsel %vm256, %v260, %v262
      %v264 = vrot.slane %v254, 2
      %v265 = vsel %vm256, %v262, %v264
      %v266 = vrot.slane %v255, 2
      %v267 = vsel %vm256, %v264, %v266
      %v273 = vld [vmem:[%s1] sm:$0xf]
      %v274 = vld [vmem:[%s1 + $0x4] sm:$0xf]
      %v275 = vld [vmem:[%s1 + $0x8] sm:$0xf]
      %v276 = vld [vmem:[%s1 + $0xc] sm:$0xf]
      %v277 = vld [vmem:[%s1 + $0x10] sm:$0xf]
      %v278 = vld [vmem:[%s1 + $0x14] sm:$0xf]
      %v279 = vld [vmem:[%s1 + $0x18] sm:$0xf]
      %v280 = vld [vmem:[%s1 + $0x1c] sm:$0xf]
      %v281 = vld [vmem:[%s1 + $0x20] sm:$0xf]
      %v282 = vld [vmem:[%s1 + $0x24] sm:$0xf]
      %v283 = vld [vmem:[%s1 + $0x28] sm:$0xf]
      %v284 = vld [vmem:[%s1 + $0x2c] sm:$0xf]
      %v285 = vld [vmem:[%s1 + $0x30] sm:$0xf]
      %v286 = vld [vmem:[%s1 + $0x34] sm:$0xf]
      %v287 = vld [vmem:[%s1 + $0x38] sm:$0xf]
      %v288 = vld [vmem:[%s1 + $0x3c] sm:$0xf]
      %v289 = vld [vmem:[%s1 + $0x40] sm:$0xf]
      %v290 = vld [vmem:[%s1 + $0x44] sm:$0xf]
      %v291 = vld [vmem:[%s1 + $0x48] sm:$0xf]
      %v292 = vld [vmem:[%s1 + $0x4c] sm:$0xf]
      %v293 = vld [vmem:[%s1 + $0x50] sm:$0xf]
      %v294 = vld [vmem:[%s1 + $0x54] sm:$0xf]
      %v295 = vld [vmem:[%s1 + $0x58] sm:$0xf]
      %v296 = vld [vmem:[%s1 + $0x5c] sm:$0xf]
      %v297 = vld [vmem:[%s1 + $0x60] sm:$0xf]
      %v298 = vld [vmem:[%s1 + $0x64] sm:$0xf]
      %v299 = vld [vmem:[%s1 + $0x68] sm:$0xf]
      %v300 = vld [vmem:[%s1 + $0x6c] sm:$0xf]
      %v301 = vld [vmem:[%s1 + $0x70] sm:$0xf]
      %v302 = vld [vmem:[%s1 + $0x74] sm:$0xf]
      %v303 = vld [vmem:[%s1 + $0x78] sm:$0xf]
      %v304 = vld [vmem:[%s1 + $0x7c] sm:$0xf]
      %v305 = vld [vmem:[%s1 + $0x80] sm:$0xf]
      %v306 = vld [vmem:[%s1 + $0x84] sm:$0xf]
      %v307 = vld [vmem:[%s1 + $0x88] sm:$0xf]
      %v308 = vld [vmem:[%s1 + $0x8c] sm:$0xf]
      %v309 = vld [vmem:[%s1 + $0x90] sm:$0xf]
      %v310 = vld [vmem:[%s1 + $0x94] sm:$0xf]
      %v311 = vld [vmem:[%s1 + $0x98] sm:$0xf]
      %v312 = vld [vmem:[%s1 + $0x9c] sm:$0xf]
      %v313 = vld [vmem:[%s1 + $0xa0] sm:$0xf]
      %v314 = vld [vmem:[%s1 + $0xa4] sm:$0xf]
      %v315 = vld [vmem:[%s1 + $0xa8] sm:$0xf]
      %v316 = vld [vmem:[%s1 + $0xac] sm:$0xf]
      %v317 = vld [vmem:[%s1 + $0xb0] sm:$0xf]
      %v318 = vld [vmem:[%s1 + $0xb4] sm:$0xf]
      %v319 = vld [vmem:[%s1 + $0xb8] sm:$0xf]
      %v320 = vld [vmem:[%s1 + $0xbc] sm:$0xf]
      %v321 = vld [vmem:[%s165 + $0x28] sm:$0x1]
      %v322 = vld [vmem:[%s165 + $0x2c] sm:$0x3]
      %v323 = vld [vmem:[%s165 + $0x30] sm:$0x7]
      %v325 = vunpack.c.l.b16 %v321
      %v326 = vpack.c.b16 %v325, %v325
      %v328 = vunpack.c.l.b16 %v322
      %v329 = vpack.c.b16 %v328, %v328
      %v330 = vrot.slane %v329, 1
      %v331 = vsel %vm230, %v238, %v330
      %v333 = vunpack.c.l.b16 %v323
      %v334 = vpack.c.b16 %v333, %v333
      %v335 = vrot.slane %v334, 2
      %v336 = vsel %vm256, %v264, %v335
      %s337 = scalar_lea.vmem %s1, 192
      %v338 = vld [vmem:[%s337] sm:$0xf]
      %v339 = vld [vmem:[%s337 + $0x4] sm:$0xf]
      %v340 = vld [vmem:[%s337 + $0x8] sm:$0xf]
      %v341 = vld [vmem:[%s337 + $0xc] sm:$0xf]
      %v342 = vld [vmem:[%s337 + $0x10] sm:$0xf]
      %v343 = vld [vmem:[%s337 + $0x14] sm:$0xf]
      %v344 = vld [vmem:[%s337 + $0x18] sm:$0xf]
      %v345 = vld [vmem:[%s337 + $0x1c] sm:$0xf]
      %v346 = vld [vmem:[%s337 + $0x20] sm:$0xf]
      %v347 = vld [vmem:[%s337 + $0x24] sm:$0xf]
      %v348 = vld [vmem:[%s337 + $0x28] sm:$0xf]
      %v349 = vld [vmem:[%s337 + $0x2c] sm:$0xf]
      %v350 = vld [vmem:[%s337 + $0x30] sm:$0xf]
      %v351 = vld [vmem:[%s337 + $0x34] sm:$0xf]
      %v352 = vld [vmem:[%s337 + $0x38] sm:$0xf]
      %v353 = vld [vmem:[%s337 + $0x3c] sm:$0xf]
      %v354 = vld [vmem:[%s337 + $0x40] sm:$0xf]
      %v355 = vld [vmem:[%s337 + $0x44] sm:$0xf]
      %v356 = vld [vmem:[%s337 + $0x48] sm:$0xf]
      %v357 = vld [vmem:[%s337 + $0x4c] sm:$0xf]
      %v358 = vld [vmem:[%s337 + $0x50] sm:$0xf]
      %v359 = vld [vmem:[%s337 + $0x54] sm:$0xf]
      %v360 = vld [vmem:[%s337 + $0x58] sm:$0xf]
      %v361 = vld [vmem:[%s337 + $0x5c] sm:$0xf]
      %v362 = vld [vmem:[%s337 + $0x60] sm:$0xf]
      %v363 = vld [vmem:[%s337 + $0x64] sm:$0xf]
      %v364 = vld [vmem:[%s337 + $0x68] sm:$0xf]
      %v365 = vld [vmem:[%s337 + $0x6c] sm:$0xf]
      %v366 = vld [vmem:[%s337 + $0x70] sm:$0xf]
      %v367 = vld [vmem:[%s337 + $0x74] sm:$0xf]
      %v368 = vld [vmem:[%s337 + $0x78] sm:$0xf]
      %v369 = vld [vmem:[%s337 + $0x7c] sm:$0xf]
      %v370 = vld [vmem:[%s337 + $0x80] sm:$0xf]
      %v371 = vld [vmem:[%s337 + $0x84] sm:$0xf]
      %v372 = vld [vmem:[%s337 + $0x88] sm:$0xf]
      %v373 = vld [vmem:[%s337 + $0x8c] sm:$0xf]
      %v374 = vld [vmem:[%s337 + $0x90] sm:$0xf]
      %v375 = vld [vmem:[%s337 + $0x94] sm:$0xf]
      %v376 = vld [vmem:[%s337 + $0x98] sm:$0xf]
      %v377 = vld [vmem:[%s337 + $0x9c] sm:$0xf]
      %v378 = vld [vmem:[%s337 + $0xa0] sm:$0xf]
      %v379 = vld [vmem:[%s337 + $0xa4] sm:$0xf]
      %v380 = vld [vmem:[%s337 + $0xa8] sm:$0xf]
      %v381 = vld [vmem:[%s337 + $0xac] sm:$0xf]
      %v382 = vld [vmem:[%s337 + $0xb0] sm:$0xf]
      %v383 = vld [vmem:[%s337 + $0xb4] sm:$0xf]
      %v384 = vld [vmem:[%s337 + $0xb8] sm:$0xf]
      %v385 = vld [vmem:[%s337 + $0xbc] sm:$0xf]
      %vm386 = vsmask.f32 7424
      %v388 = vshrl.u32 %v208, 16
      %v390 = vshll.u32 %v208, 16
      %v392 = vrot.slane %v390, 1
      %v393 = vor.u32 %v388, %v392
      %v395 = vshll.u32 %v209, 16
      %v397 = vrot.slane %v395, 1
      %v398 = vsel %vm386, %v393, %v397
      %v400 = vshrl.u32 %v233, 16
      %v402 = vshll.u32 %v233, 16
      %v404 = vrot.slane %v402, 1
      %v405 = vor.u32 %v400, %v404
      %v407 = vshll.u32 %v235, 16
      %v409 = vrot.slane %v407, 1
      %v410 = vsel %vm386, %v405, %v409
      %v412 = vshrl.u32 %v259, 16
      %v414 = vshll.u32 %v259, 16
      %v416 = vrot.slane %v414, 1
      %v417 = vor.u32 %v412, %v416
      %v419 = vshll.u32 %v261, 16
      %v421 = vrot.slane %v419, 1
      %v422 = vsel %vm386, %v417, %v421
      %v423 = vshrl.u32 %v209, 16
      %v425 = vor.u32 %v423, %v397
      %v427 = vshll.u32 %v210, 16
      %v429 = vrot.slane %v427, 1
      %v430 = vsel %vm386, %v425, %v429
      %v431 = vshrl.u32 %v235, 16
      %v433 = vor.u32 %v431, %v409
      %v435 = vshll.u32 %v237, 16
      %v437 = vrot.slane %v435, 1
      %v438 = vsel %vm386, %v433, %v437
      %v439 = vshrl.u32 %v261, 16
      %v441 = vor.u32 %v439, %v421
      %v443 = vshll.u32 %v263, 16
      %v445 = vrot.slane %v443, 1
      %v446 = vsel %vm386, %v441, %v445
      %v447 = vshrl.u32 %v210, 16
      %v449 = vor.u32 %v447, %v429
      %v451 = vshll.u32 %v211, 16
      %v453 = vrot.slane %v451, 1
      %v454 = vsel %vm386, %v449, %v453
      %v455 = vshrl.u32 %v237, 16
      %v457 = vor.u32 %v455, %v437
      %v459 = vshll.u32 %v239, 16
      %v461 = vrot.slane %v459, 1
      %v462 = vsel %vm386, %v457, %v461
      %v463 = vshrl.u32 %v263, 16
      %v465 = vor.u32 %v463, %v445
      %v467 = vshll.u32 %v265, 16
      %v469 = vrot.slane %v467, 1
      %v470 = vsel %vm386, %v465, %v469
      %v471 = vshrl.u32 %v211, 16
      %v473 = vor.u32 %v471, %v453
      %v475 = vshll.u32 %v212, 16
      %v477 = vrot.slane %v475, 1
      %v478 = vsel %vm386, %v473, %v477
      %v479 = vshrl.u32 %v239, 16
      %v481 = vor.u32 %v479, %v461
      %v483 = vshll.u32 %v331, 16
      %v485 = vrot.slane %v483, 1
      %v486 = vsel %vm386, %v481, %v485
      %v487 = vshrl.u32 %v265, 16
      %v489 = vor.u32 %v487, %v469
      %v491 = vshll.u32 %v336, 16
      %v493 = vrot.slane %v491, 1
      %v494 = vsel %vm386, %v489, %v493
      %v495 = vshrl.u32 %v212, 16
      %v497 = vor.u32 %v495, %v477
      %v499 = vshll.u32 %v326, 16
      %v501 = vrot.slane %v499, 1
      %v502 = vsel %vm386, %v497, %v501
      %v503 = vshrl.u32 %v331, 16
      %v505 = vor.u32 %v503, %v485
      %v507 = vshll.u32 %v330, 16
      %v509 = vrot.slane %v507, 1
      %v510 = vsel %vm386, %v505, %v509
      %v511 = vshrl.u32 %v336, 16
      %v513 = vor.u32 %v511, %v493
      %v515 = vshll.u32 %v335, 16
      %v517 = vrot.slane %v515, 1
      %v518 = vsel %vm386, %v513, %v517
      %v582 = vunpack.c.l.b16 %v338
      %v583 = vunpack.c.l.b16 %v339
      %v584 = vunpack.c.l.b16 %v340
      %v585 = vunpack.c.l.b16 %v341
      %v586 = vunpack.c.l.b16 %v342
      %v587 = vunpack.c.l.b16 %v343
      %v588 = vunpack.c.l.b16 %v344
      %v589 = vunpack.c.l.b16 %v345
      %v590 = vunpack.c.l.b16 %v346
      %v591 = vunpack.c.l.b16 %v347
      %v592 = vunpack.c.l.b16 %v348
      %v593 = vunpack.c.l.b16 %v349
      %v594 = vunpack.c.l.b16 %v350
      %v595 = vunpack.c.l.b16 %v351
      %v596 = vunpack.c.l.b16 %v352
      %v597 = vunpack.c.l.b16 %v353
      %v598 = vunpack.c.l.b16 %v354
      %v599 = vunpack.c.l.b16 %v355
      %v600 = vunpack.c.l.b16 %v356
      %v601 = vunpack.c.l.b16 %v357
      %v602 = vunpack.c.l.b16 %v358
      %v603 = vunpack.c.l.b16 %v359
      %v604 = vunpack.c.l.b16 %v360
      %v605 = vunpack.c.l.b16 %v361
      %v606 = vunpack.c.l.b16 %v362
      %v607 = vunpack.c.l.b16 %v363
      %v608 = vunpack.c.l.b16 %v364
      %v609 = vunpack.c.l.b16 %v365
      %v610 = vunpack.c.l.b16 %v366
      %v611 = vunpack.c.l.b16 %v367
      %v612 = vunpack.c.l.b16 %v368
      %v613 = vunpack.c.l.b16 %v369
      %v614 = vunpack.c.l.b16 %v370
      %v615 = vunpack.c.l.b16 %v371
      %v616 = vunpack.c.l.b16 %v372
      %v617 = vunpack.c.l.b16 %v373
      %v618 = vunpack.c.l.b16 %v374
      %v619 = vunpack.c.l.b16 %v375
      %v620 = vunpack.c.l.b16 %v376
      %v621 = vunpack.c.l.b16 %v377
      %v622 = vunpack.c.l.b16 %v378
      %v623 = vunpack.c.l.b16 %v379
      %v624 = vunpack.c.l.b16 %v380
      %v625 = vunpack.c.l.b16 %v381
      %v626 = vunpack.c.l.b16 %v382
      %v627 = vunpack.c.l.b16 %v383
      %v628 = vunpack.c.l.b16 %v384
      %v629 = vunpack.c.l.b16 %v385
      %v630 = vpack.c.b16 %v583, %v582
      %v631 = vpack.c.b16 %v585, %v584
      %v632 = vpack.c.b16 %v587, %v586
      %v633 = vpack.c.b16 %v589, %v588
      %v634 = vpack.c.b16 %v591, %v590
      %v635 = vpack.c.b16 %v593, %v592
      %v636 = vpack.c.b16 %v595, %v594
      %v637 = vpack.c.b16 %v597, %v596
      %v638 = vpack.c.b16 %v599, %v598
      %v639 = vpack.c.b16 %v601, %v600
      %v640 = vpack.c.b16 %v603, %v602
      %v641 = vpack.c.b16 %v605, %v604
      %v642 = vpack.c.b16 %v607, %v606
      %v643 = vpack.c.b16 %v609, %v608
      %v644 = vpack.c.b16 %v611, %v610
      %v645 = vpack.c.b16 %v613, %v612
      %v646 = vpack.c.b16 %v615, %v614
      %v647 = vpack.c.b16 %v617, %v616
      %v648 = vpack.c.b16 %v619, %v618
      %v649 = vpack.c.b16 %v621, %v620
      %v650 = vpack.c.b16 %v623, %v622
      %v651 = vpack.c.b16 %v625, %v624
      %v652 = vpack.c.b16 %v627, %v626
      %v653 = vpack.c.b16 %v629, %v628
      %678 = vmatprep.subr.bf16.mxu0 0
      %679 = vmatpush1.bf16.msra.mxu0 %v637
      %680 = vmatprep.subr.bf16.mxu0 0
      %681 = vmatpush1.bf16.msra.mxu0 %v636
      %682 = vmatprep.subr.bf16.mxu0 0
      %683 = vmatpush1.bf16.msra.mxu0 %v635
      %684 = vmatprep.subr.bf16.mxu0 0
      %685 = vmatpush1.bf16.msra.mxu0 %v634
      %686 = vmatprep.subr.bf16.mxu0 0
      %687 = vmatpush1.bf16.msra.mxu0 %v633
      %688 = vmatprep.subr.bf16.mxu0 0
      %689 = vmatpush1.bf16.msra.mxu0 %v632
      %690 = vmatprep.subr.bf16.mxu0 0
      %691 = vmatpush1.bf16.msra.mxu0 %v631
      %692 = vmatprep.subr.bf16.mxu0 0
      %693 = vmatpush1.bf16.msra.mxu0 %v630
      %694 = vmatprep.subr.bf16.mxu0 0
      %695 = vmatpush2.bf16.msra.mxu0 %v645
      %696 = vmatprep.subr.bf16.mxu0 0
      %697 = vmatpush2.bf16.msra.mxu0 %v644
      %698 = vmatprep.subr.bf16.mxu0 0
      %699 = vmatpush2.bf16.msra.mxu0 %v643
      %700 = vmatprep.subr.bf16.mxu0 0
      %701 = vmatpush2.bf16.msra.mxu0 %v642
      %702 = vmatprep.subr.bf16.mxu0 0
      %703 = vmatpush2.bf16.msra.mxu0 %v641
      %704 = vmatprep.subr.bf16.mxu0 0
      %705 = vmatpush2.bf16.msra.mxu0 %v640
      %706 = vmatprep.subr.bf16.mxu0 0
      %707 = vmatpush2.bf16.msra.mxu0 %v639
      %708 = vmatprep.subr.bf16.mxu0 0
      %709 = vmatpush2.bf16.msra.mxu0 %v638
      %710 = vmatprep.mubr.bf16.mxu0 %v410
      %711 = vmatmul.mubr.bf16.gmra.mxu0 %v398
      %v712 = vpop.f32.mrf.mxu0
      %v713 = vadd.f32 0.0, %v712
      %v714 = vpop.f32.mrf.mxu0
      %v715 = vpop.f32.mrf.mxu0
      %v716 = vadd.f32 0.0, %v715
      %v717 = vpop.f32.mrf.mxu0
      %718 = vmatprep.mubr.bf16.mxu0 %v438
      %719 = vmatmul.mubr.bf16.gmra.mxu0 %v430
      %v720 = vpop.f32.mrf.mxu0
      %v721 = vadd.f32 0.0, %v720
      %v722 = vpop.f32.mrf.mxu0
      %v723 = vpop.f32.mrf.mxu0
      %v724 = vadd.f32 0.0, %v723
      %v725 = vpop.f32.mrf.mxu0
      %726 = vmatprep.mubr.bf16.mxu0 %v462
      %727 = vmatmul.mubr.bf16.gmra.mxu0 %v454
      %v728 = vpop.f32.mrf.mxu0
      %v729 = vadd.f32 0.0, %v728
      %v730 = vpop.f32.mrf.mxu0
      %v731 = vpop.f32.mrf.mxu0
      %v732 = vadd.f32 0.0, %v731
      %v733 = vpop.f32.mrf.mxu0
      %734 = vmatprep.mubr.bf16.mxu0 %v486
      %735 = vmatmul.mubr.bf16.gmra.mxu0 %v478
      %v736 = vpop.f32.mrf.mxu0
      %v737 = vadd.f32 0.0, %v736
      %v738 = vpop.f32.mrf.mxu0
      %v739 = vpop.f32.mrf.mxu0
      %v740 = vadd.f32 0.0, %v739
      %v741 = vpop.f32.mrf.mxu0
      %742 = vmatprep.mubr.bf16.mxu0 %v510
      %743 = vmatmul.mubr.bf16.gmra.mxu0 %v502
      %v744 = vpop.f32.mrf.mxu0
      %v745 = vadd.f32 0.0, %v744
      %v746 = vpop.f32.mrf.mxu0
      %v747 = vpop.f32.mrf.mxu0
      %v748 = vadd.f32 0.0, %v747
      %v749 = vpop.f32.mrf.mxu0
      %750 = vdwg.mxu0
      %751 = vmatprep.subr.bf16.mxu0 0
      %752 = vmatpush1.bf16.msra.mxu0 %v653
      %753 = vmatprep.subr.bf16.mxu0 0
      %754 = vmatpush1.bf16.msra.mxu0 %v652
      %755 = vmatprep.subr.bf16.mxu0 0
      %756 = vmatpush1.bf16.msra.mxu0 %v651
      %757 = vmatprep.subr.bf16.mxu0 0
      %758 = vmatpush1.bf16.msra.mxu0 %v650
      %759 = vmatprep.subr.bf16.mxu0 0
      %760 = vmatpush1.bf16.msra.mxu0 %v649
      %761 = vmatprep.subr.bf16.mxu0 0
      %762 = vmatpush1.bf16.msra.mxu0 %v648
      %763 = vmatprep.subr.bf16.mxu0 0
      %764 = vmatpush1.bf16.msra.mxu0 %v647
      %765 = vmatprep.subr.bf16.mxu0 0
      %766 = vmatpush1.bf16.msra.mxu0 %v646
      %767 = vmatprep.subr.bf16.mxu0 0
      %768 = vmatpush2.bf16.msra.mxu0 0
      %769 = vmatprep.subr.bf16.mxu0 0
      %770 = vmatpush2.bf16.msra.mxu0 0
      %771 = vmatprep.subr.bf16.mxu0 0
      %772 = vmatpush2.bf16.msra.mxu0 0
      %773 = vmatprep.subr.bf16.mxu0 0
      %774 = vmatpush2.bf16.msra.mxu0 0
      %775 = vmatprep.subr.bf16.mxu0 0
      %776 = vmatpush2.bf16.msra.mxu0 0
      %777 = vmatprep.subr.bf16.mxu0 0
      %778 = vmatpush2.bf16.msra.mxu0 0
      %779 = vmatprep.subr.bf16.mxu0 0
      %780 = vmatpush2.bf16.msra.mxu0 0
      %781 = vmatprep.subr.bf16.mxu0 0
      %782 = vmatpush2.bf16.msra.mxu0 0
      %783 = vmatprep.mubr.bf16.mxu0 0
      %784 = vmatmul.mubr.bf16.gmra.mxu0 %v422
      %v785 = vpop.f32.mrf.mxu0
      %v786 = vadd.f32 %v713, %v785
      %v787 = vpop.f32.mrf.mxu0
      %v788 = vpop.f32.mrf.mxu0
      %v789 = vadd.f32 %v716, %v788
      %v790 = vpop.f32.mrf.mxu0
      %791 = vmatprep.mubr.bf16.mxu0 0
      %792 = vmatmul.mubr.bf16.gmra.mxu0 %v446
      %v793 = vpop.f32.mrf.mxu0
      %v794 = vadd.f32 %v721, %v793
      %v795 = vpop.f32.mrf.mxu0
      %v796 = vpop.f32.mrf.mxu0
      %v797 = vadd.f32 %v724, %v796
      %v798 = vpop.f32.mrf.mxu0
      %799 = vmatprep.mubr.bf16.mxu0 0
      %800 = vmatmul.mubr.bf16.gmra.mxu0 %v470
      %v801 = vpop.f32.mrf.mxu0
      %v802 = vadd.f32 %v729, %v801
      %v803 = vpop.f32.mrf.mxu0
      %v804 = vpop.f32.mrf.mxu0
      %v805 = vadd.f32 %v732, %v804
      %v806 = vpop.f32.mrf.mxu0
      %807 = vmatprep.mubr.bf16.mxu0 0
      %808 = vmatmul.mubr.bf16.gmra.mxu0 %v494
      %v809 = vpop.f32.mrf.mxu0
      %v810 = vadd.f32 %v737, %v809
      %v811 = vpop.f32.mrf.mxu0
      %v812 = vpop.f32.mrf.mxu0
      %v813 = vadd.f32 %v740, %v812
      %v814 = vpop.f32.mrf.mxu0
      %815 = vmatprep.mubr.bf16.mxu0 0
      %816 = vmatmul.mubr.bf16.gmra.mxu0 %v518
      %v817 = vpop.f32.mrf.mxu0
      %v818 = vadd.f32 %v745, %v817
      %v819 = vpop.f32.mrf.mxu0
      %v820 = vpop.f32.mrf.mxu0
      %v821 = vadd.f32 %v748, %v820
      %v822 = vpop.f32.mrf.mxu0
      %823 = vdwg.mxu0
      %v872 = vunpack.c.l.b16 %v273
      %v873 = vunpack.c.l.b16 %v274
      %v874 = vunpack.c.l.b16 %v275
      %v875 = vunpack.c.l.b16 %v276
      %v876 = vunpack.c.l.b16 %v277
      %v877 = vunpack.c.l.b16 %v278
      %v878 = vunpack.c.l.b16 %v279
      %v879 = vunpack.c.l.b16 %v280
      %v880 = vunpack.c.l.b16 %v281
      %v881 = vunpack.c.l.b16 %v282
      %v882 = vunpack.c.l.b16 %v283
      %v883 = vunpack.c.l.b16 %v284
      %v884 = vunpack.c.l.b16 %v285
      %v885 = vunpack.c.l.b16 %v286
      %v886 = vunpack.c.l.b16 %v287
      %v887 = vunpack.c.l.b16 %v288
      %v888 = vunpack.c.l.b16 %v289
      %v889 = vunpack.c.l.b16 %v290
      %v890 = vunpack.c.l.b16 %v291
      %v891 = vunpack.c.l.b16 %v292
      %v892 = vunpack.c.l.b16 %v293
      %v893 = vunpack.c.l.b16 %v294
      %v894 = vunpack.c.l.b16 %v295
      %v895 = vunpack.c.l.b16 %v296
      %v896 = vunpack.c.l.b16 %v297
      %v897 = vunpack.c.l.b16 %v298
      %v898 = vunpack.c.l.b16 %v299
      %v899 = vunpack.c.l.b16 %v300
      %v900 = vunpack.c.l.b16 %v301
      %v901 = vunpack.c.l.b16 %v302
      %v902 = vunpack.c.l.b16 %v303
      %v903 = vunpack.c.l.b16 %v304
      %v904 = vunpack.c.l.b16 %v305
      %v905 = vunpack.c.l.b16 %v306
      %v906 = vunpack.c.l.b16 %v307
      %v907 = vunpack.c.l.b16 %v308
      %v908 = vunpack.c.l.b16 %v309
      %v909 = vunpack.c.l.b16 %v310
      %v910 = vunpack.c.l.b16 %v311
      %v911 = vunpack.c.l.b16 %v312
      %v912 = vunpack.c.l.b16 %v313
      %v913 = vunpack.c.l.b16 %v314
      %v914 = vunpack.c.l.b16 %v315
      %v915 = vunpack.c.l.b16 %v316
      %v916 = vunpack.c.l.b16 %v317
      %v917 = vunpack.c.l.b16 %v318
      %v918 = vunpack.c.l.b16 %v319
      %v919 = vunpack.c.l.b16 %v320
      %v920 = vpack.c.b16 %v873, %v872
      %v921 = vpack.c.b16 %v875, %v874
      %v922 = vpack.c.b16 %v877, %v876
      %v923 = vpack.c.b16 %v879, %v878
      %v924 = vpack.c.b16 %v881, %v880
      %v925 = vpack.c.b16 %v883, %v882
      %v926 = vpack.c.b16 %v885, %v884
      %v927 = vpack.c.b16 %v887, %v886
      %v928 = vpack.c.b16 %v889, %v888
      %v929 = vpack.c.b16 %v891, %v890
      %v930 = vpack.c.b16 %v893, %v892
      %v931 = vpack.c.b16 %v895, %v894
      %v932 = vpack.c.b16 %v897, %v896
      %v933 = vpack.c.b16 %v899, %v898
      %v934 = vpack.c.b16 %v901, %v900
      %v935 = vpack.c.b16 %v903, %v902
      %v936 = vpack.c.b16 %v905, %v904
      %v937 = vpack.c.b16 %v907, %v906
      %v938 = vpack.c.b16 %v909, %v908
      %v939 = vpack.c.b16 %v911, %v910
      %v940 = vpack.c.b16 %v913, %v912
      %v941 = vpack.c.b16 %v915, %v914
      %v942 = vpack.c.b16 %v917, %v916
      %v943 = vpack.c.b16 %v919, %v918
      %968 = vmatprep.subr.bf16.mxu0 0
      %969 = vmatpush1.bf16.msra.mxu0 %v927
      %970 = vmatprep.subr.bf16.mxu0 0
      %971 = vmatpush1.bf16.msra.mxu0 %v926
      %972 = vmatprep.subr.bf16.mxu0 0
      %973 = vmatpush1.bf16.msra.mxu0 %v925
      %974 = vmatprep.subr.bf16.mxu0 0
      %975 = vmatpush1.bf16.msra.mxu0 %v924
      %976 = vmatprep.subr.bf16.mxu0 0
      %977 = vmatpush1.bf16.msra.mxu0 %v923
      %978 = vmatprep.subr.bf16.mxu0 0
      %979 = vmatpush1.bf16.msra.mxu0 %v922
      %980 = vmatprep.subr.bf16.mxu0 0
      %981 = vmatpush1.bf16.msra.mxu0 %v921
      %982 = vmatprep.subr.bf16.mxu0 0
      %983 = vmatpush1.bf16.msra.mxu0 %v920
      %984 = vmatprep.subr.bf16.mxu0 0
      %985 = vmatpush2.bf16.msra.mxu0 %v935
      %986 = vmatprep.subr.bf16.mxu0 0
      %987 = vmatpush2.bf16.msra.mxu0 %v934
      %988 = vmatprep.subr.bf16.mxu0 0
      %989 = vmatpush2.bf16.msra.mxu0 %v933
      %990 = vmatprep.subr.bf16.mxu0 0
      %991 = vmatpush2.bf16.msra.mxu0 %v932
      %992 = vmatprep.subr.bf16.mxu0 0
      %993 = vmatpush2.bf16.msra.mxu0 %v931
      %994 = vmatprep.subr.bf16.mxu0 0
      %995 = vmatpush2.bf16.msra.mxu0 %v930
      %996 = vmatprep.subr.bf16.mxu0 0
      %997 = vmatpush2.bf16.msra.mxu0 %v929
      %998 = vmatprep.subr.bf16.mxu0 0
      %999 = vmatpush2.bf16.msra.mxu0 %v928
      %1000 = vmatprep.mubr.bf16.mxu0 %v233
      %1001 = vmatmul.mubr.bf16.gmra.mxu0 %v208
      %v1002 = vpop.f32.mrf.mxu0
      %v1003 = vadd.f32 %v786, %v1002
      %v1004 = vpop.f32.mrf.mxu0
      %v1005 = vpop.f32.mrf.mxu0
      %v1006 = vadd.f32 %v789, %v1005
      %v1007 = vpop.f32.mrf.mxu0
      %1008 = vmatprep.mubr.bf16.mxu0 %v235
      %1009 = vmatmul.mubr.bf16.gmra.mxu0 %v209
      %v1010 = vpop.f32.mrf.mxu0
      %v1011 = vadd.f32 %v794, %v1010
      %v1012 = vpop.f32.mrf.mxu0
      %v1013 = vpop.f32.mrf.mxu0
      %v1014 = vadd.f32 %v797, %v1013
      %v1015 = vpop.f32.mrf.mxu0
      %1016 = vmatprep.mubr.bf16.mxu0 %v237
      %1017 = vmatmul.mubr.bf16.gmra.mxu0 %v210
      %v1018 = vpop.f32.mrf.mxu0
      %v1019 = vadd.f32 %v802, %v1018
      %v1020 = vpop.f32.mrf.mxu0
      %v1021 = vpop.f32.mrf.mxu0
      %v1022 = vadd.f32 %v805, %v1021
      %v1023 = vpop.f32.mrf.mxu0
      %1024 = vmatprep.mubr.bf16.mxu0 %v239
      %1025 = vmatmul.mubr.bf16.gmra.mxu0 %v211
      %v1026 = vpop.f32.mrf.mxu0
      %v1027 = vadd.f32 %v810, %v1026
      %v1028 = vpop.f32.mrf.mxu0
      %v1029 = vpop.f32.mrf.mxu0
      %v1030 = vadd.f32 %v813, %v1029
      %v1031 = vpop.f32.mrf.mxu0
      %1032 = vmatprep.mubr.bf16.mxu0 %v241
      %1033 = vmatmul.mubr.bf16.gmra.mxu0 %v212
      %v1034 = vpop.f32.mrf.mxu0
      %v1035 = vadd.f32 %v818, %v1034
      %v1036 = vpop.f32.mrf.mxu0
      %v1037 = vpop.f32.mrf.mxu0
      %v1038 = vadd.f32 %v821, %v1037
      %v1039 = vpop.f32.mrf.mxu0
      %1040 = vdwg.mxu0
      %1041 = vmatprep.subr.bf16.mxu0 0
      %1042 = vmatpush1.bf16.msra.mxu0 %v943
      %1043 = vmatprep.subr.bf16.mxu0 0
      %1044 = vmatpush1.bf16.msra.mxu0 %v942
      %1045 = vmatprep.subr.bf16.mxu0 0
      %1046 = vmatpush1.bf16.msra.mxu0 %v941
      %1047 = vmatprep.subr.bf16.mxu0 0
      %1048 = vmatpush1.bf16.msra.mxu0 %v940
      %1049 = vmatprep.subr.bf16.mxu0 0
      %1050 = vmatpush1.bf16.msra.mxu0 %v939
      %1051 = vmatprep.subr.bf16.mxu0 0
      %1052 = vmatpush1.bf16.msra.mxu0 %v938
      %1053 = vmatprep.subr.bf16.mxu0 0
      %1054 = vmatpush1.bf16.msra.mxu0 %v937
      %1055 = vmatprep.subr.bf16.mxu0 0
      %1056 = vmatpush1.bf16.msra.mxu0 %v936
      %1057 = vmatprep.subr.bf16.mxu0 0
      %1058 = vmatpush2.bf16.msra.mxu0 0
      %1059 = vmatprep.subr.bf16.mxu0 0
      %1060 = vmatpush2.bf16.msra.mxu0 0
      %1061 = vmatprep.subr.bf16.mxu0 0
      %1062 = vmatpush2.bf16.msra.mxu0 0
      %1063 = vmatprep.subr.bf16.mxu0 0
      %1064 = vmatpush2.bf16.msra.mxu0 0
      %1065 = vmatprep.subr.bf16.mxu0 0
      %1066 = vmatpush2.bf16.msra.mxu0 0
      %1067 = vmatprep.subr.bf16.mxu0 0
      %1068 = vmatpush2.bf16.msra.mxu0 0
      %1069 = vmatprep.subr.bf16.mxu0 0
      %1070 = vmatpush2.bf16.msra.mxu0 0
      %1071 = vmatprep.subr.bf16.mxu0 0
      %1072 = vmatpush2.bf16.msra.mxu0 0
      %1073 = vmatprep.mubr.bf16.mxu0 0
      %1074 = vmatmul.mubr.bf16.gmra.mxu0 %v259
      %v1075 = vpop.f32.mrf.mxu0
      %v1076 = vadd.f32 %v1003, %v1075
      %v1077 = vpop.f32.mrf.mxu0
      %v1078 = vpop.f32.mrf.mxu0
      %v1079 = vadd.f32 %v1006, %v1078
      %v1080 = vpop.f32.mrf.mxu0
      %1081 = vmatprep.mubr.bf16.mxu0 0
      %1082 = vmatmul.mubr.bf16.gmra.mxu0 %v261
      %v1083 = vpop.f32.mrf.mxu0
      %v1084 = vadd.f32 %v1011, %v1083
      %v1085 = vpop.f32.mrf.mxu0
      %v1086 = vpop.f32.mrf.mxu0
      %v1087 = vadd.f32 %v1014, %v1086
      %v1088 = vpop.f32.mrf.mxu0
      %1089 = vmatprep.mubr.bf16.mxu0 0
      %1090 = vmatmul.mubr.bf16.gmra.mxu0 %v263
      %v1091 = vpop.f32.mrf.mxu0
      %v1092 = vadd.f32 %v1019, %v1091
      %v1093 = vpop.f32.mrf.mxu0
      %v1094 = vpop.f32.mrf.mxu0
      %v1095 = vadd.f32 %v1022, %v1094
      %v1096 = vpop.f32.mrf.mxu0
      %1097 = vmatprep.mubr.bf16.mxu0 0
      %1098 = vmatmul.mubr.bf16.gmra.mxu0 %v265
      %v1099 = vpop.f32.mrf.mxu0
      %v1100 = vadd.f32 %v1027, %v1099
      %v1101 = vpop.f32.mrf.mxu0
      %v1102 = vpop.f32.mrf.mxu0
      %v1103 = vadd.f32 %v1030, %v1102
      %v1104 = vpop.f32.mrf.mxu0
      %1105 = vmatprep.mubr.bf16.mxu0 0
      %1106 = vmatmul.mubr.bf16.gmra.mxu0 %v267
      %v1107 = vpop.f32.mrf.mxu0
      %v1108 = vadd.f32 %v1035, %v1107
      %v1109 = vpop.f32.mrf.mxu0
      %v1110 = vpop.f32.mrf.mxu0
      %v1111 = vadd.f32 %v1038, %v1110
      %v1112 = vpop.f32.mrf.mxu0
      %1113 = vdwg.mxu0
      %v1114 = vld [vmem:[%s165] sm:$0xe]
      %v1115 = vld [vmem:[%s165 + $0x4] sm:$0xc]
      %v1116 = vld [vmem:[%s165 + $0x8] sm:$0x8]
      %v1118 = vunpack.c.l.b16 %v1114
      %v1119 = vpack.c.b16 %v199, %v1118
      %v1121 = vunpack.c.l.b16 %v1115
      %v1122 = vpack.c.b16 %v200, %v1121
      %v1123 = vrot.slane %v1122, 1
      %v1124 = vsel %vm230, %v1123, %v232
      %v1126 = vunpack.c.l.b16 %v1116
      %v1127 = vpack.c.b16 %v201, %v1126
      %v1128 = vrot.slane %v1127, 2
      %v1129 = vsel %vm256, %v1128, %v258
      %s1130 = scalar_lea.vmem %s1, 384
      %v1131 = vld [vmem:[%s1130] sm:$0xf]
      %v1132 = vld [vmem:[%s1130 + $0x4] sm:$0xf]
      %v1133 = vld [vmem:[%s1130 + $0x8] sm:$0xf]
      %v1134 = vld [vmem:[%s1130 + $0xc] sm:$0xf]
      %v1135 = vld [vmem:[%s1130 + $0x10] sm:$0xf]
      %v1136 = vld [vmem:[%s1130 + $0x14] sm:$0xf]
      %v1137 = vld [vmem:[%s1130 + $0x18] sm:$0xf]
      %v1138 = vld [vmem:[%s1130 + $0x1c] sm:$0xf]
      %v1139 = vld [vmem:[%s1130 + $0x20] sm:$0xf]
      %v1140 = vld [vmem:[%s1130 + $0x24] sm:$0xf]
      %v1141 = vld [vmem:[%s1130 + $0x28] sm:$0xf]
      %v1142 = vld [vmem:[%s1130 + $0x2c] sm:$0xf]
      %v1143 = vld [vmem:[%s1130 + $0x30] sm:$0xf]
      %v1144 = vld [vmem:[%s1130 + $0x34] sm:$0xf]
      %v1145 = vld [vmem:[%s1130 + $0x38] sm:$0xf]
      %v1146 = vld [vmem:[%s1130 + $0x3c] sm:$0xf]
      %v1147 = vld [vmem:[%s1130 + $0x40] sm:$0xf]
      %v1148 = vld [vmem:[%s1130 + $0x44] sm:$0xf]
      %v1149 = vld [vmem:[%s1130 + $0x48] sm:$0xf]
      %v1150 = vld [vmem:[%s1130 + $0x4c] sm:$0xf]
      %v1151 = vld [vmem:[%s1130 + $0x50] sm:$0xf]
      %v1152 = vld [vmem:[%s1130 + $0x54] sm:$0xf]
      %v1153 = vld [vmem:[%s1130 + $0x58] sm:$0xf]
      %v1154 = vld [vmem:[%s1130 + $0x5c] sm:$0xf]
      %v1155 = vld [vmem:[%s1130 + $0x60] sm:$0xf]
      %v1156 = vld [vmem:[%s1130 + $0x64] sm:$0xf]
      %v1157 = vld [vmem:[%s1130 + $0x68] sm:$0xf]
      %v1158 = vld [vmem:[%s1130 + $0x6c] sm:$0xf]
      %v1159 = vld [vmem:[%s1130 + $0x70] sm:$0xf]
      %v1160 = vld [vmem:[%s1130 + $0x74] sm:$0xf]
      %v1161 = vld [vmem:[%s1130 + $0x78] sm:$0xf]
      %v1162 = vld [vmem:[%s1130 + $0x7c] sm:$0xf]
      %v1163 = vld [vmem:[%s1130 + $0x80] sm:$0xf]
      %v1164 = vld [vmem:[%s1130 + $0x84] sm:$0xf]
      %v1165 = vld [vmem:[%s1130 + $0x88] sm:$0xf]
      %v1166 = vld [vmem:[%s1130 + $0x8c] sm:$0xf]
      %v1167 = vld [vmem:[%s1130 + $0x90] sm:$0xf]
      %v1168 = vld [vmem:[%s1130 + $0x94] sm:$0xf]
      %v1169 = vld [vmem:[%s1130 + $0x98] sm:$0xf]
      %v1170 = vld [vmem:[%s1130 + $0x9c] sm:$0xf]
      %v1171 = vld [vmem:[%s1130 + $0xa0] sm:$0xf]
      %v1172 = vld [vmem:[%s1130 + $0xa4] sm:$0xf]
      %v1173 = vld [vmem:[%s1130 + $0xa8] sm:$0xf]
      %v1174 = vld [vmem:[%s1130 + $0xac] sm:$0xf]
      %v1175 = vld [vmem:[%s1130 + $0xb0] sm:$0xf]
      %v1176 = vld [vmem:[%s1130 + $0xb4] sm:$0xf]
      %v1177 = vld [vmem:[%s1130 + $0xb8] sm:$0xf]
      %v1178 = vld [vmem:[%s1130 + $0xbc] sm:$0xf]
      %v1179 = vrot.slane %v1119, 1
      %v1180 = vrot.slane %v209, 1
      %v1181 = vsel %vm230, %v1179, %v1180
      %v1182 = vrot.slane %v1124, 1
      %v1183 = vrot.slane %v235, 1
      %v1184 = vsel %vm230, %v1182, %v1183
      %v1185 = vrot.slane %v1129, 1
      %v1186 = vrot.slane %v261, 1
      %v1187 = vsel %vm230, %v1185, %v1186
      %v1188 = vrot.slane %v210, 1
      %v1189 = vsel %vm230, %v1180, %v1188
      %v1190 = vrot.slane %v237, 1
      %v1191 = vsel %vm230, %v1183, %v1190
      %v1192 = vrot.slane %v263, 1
      %v1193 = vsel %vm230, %v1186, %v1192
      %v1194 = vrot.slane %v211, 1
      %v1195 = vsel %vm230, %v1188, %v1194
      %v1196 = vrot.slane %v239, 1
      %v1197 = vsel %vm230, %v1190, %v1196
      %v1198 = vrot.slane %v265, 1
      %v1199 = vsel %vm230, %v1192, %v1198
      %v1200 = vrot.slane %v212, 1
      %v1201 = vsel %vm230, %v1194, %v1200
      %v1202 = vrot.slane %v331, 1
      %v1203 = vsel %vm230, %v1196, %v1202
      %v1204 = vrot.slane %v336, 1
      %v1205 = vsel %vm230, %v1198, %v1204
      %v1206 = vrot.slane %v326, 1
      %v1207 = vsel %vm230, %v1200, %v1206
      %v1208 = vrot.slane %v330, 1
      %v1209 = vsel %vm230, %v1202, %v1208
      %v1210 = vrot.slane %v335, 1
      %v1211 = vsel %vm230, %v1204, %v1210
      %v1275 = vunpack.c.l.b16 %v1131
      %v1276 = vunpack.c.l.b16 %v1132
      %v1277 = vunpack.c.l.b16 %v1133
      %v1278 = vunpack.c.l.b16 %v1134
      %v1279 = vunpack.c.l.b16 %v1135
      %v1280 = vunpack.c.l.b16 %v1136
      %v1281 = vunpack.c.l.b16 %v1137
      %v1282 = vunpack.c.l.b16 %v1138
      %v1283 = vunpack.c.l.b16 %v1139
      %v1284 = vunpack.c.l.b16 %v1140
      %v1285 = vunpack.c.l.b16 %v1141
      %v1286 = vunpack.c.l.b16 %v1142
      %v1287 = vunpack.c.l.b16 %v1143
      %v1288 = vunpack.c.l.b16 %v1144
      %v1289 = vunpack.c.l.b16 %v1145
      %v1290 = vunpack.c.l.b16 %v1146
      %v1291 = vunpack.c.l.b16 %v1147
      %v1292 = vunpack.c.l.b16 %v1148
      %v1293 = vunpack.c.l.b16 %v1149
      %v1294 = vunpack.c.l.b16 %v1150
      %v1295 = vunpack.c.l.b16 %v1151
      %v1296 = vunpack.c.l.b16 %v1152
      %v1297 = vunpack.c.l.b16 %v1153
      %v1298 = vunpack.c.l.b16 %v1154
      %v1299 = vunpack.c.l.b16 %v1155
      %v1300 = vunpack.c.l.b16 %v1156
      %v1301 = vunpack.c.l.b16 %v1157
      %v1302 = vunpack.c.l.b16 %v1158
      %v1303 = vunpack.c.l.b16 %v1159
      %v1304 = vunpack.c.l.b16 %v1160
      %v1305 = vunpack.c.l.b16 %v1161
      %v1306 = vunpack.c.l.b16 %v1162
      %v1307 = vunpack.c.l.b16 %v1163
      %v1308 = vunpack.c.l.b16 %v1164
      %v1309 = vunpack.c.l.b16 %v1165
      %v1310 = vunpack.c.l.b16 %v1166
      %v1311 = vunpack.c.l.b16 %v1167
      %v1312 = vunpack.c.l.b16 %v1168
      %v1313 = vunpack.c.l.b16 %v1169
      %v1314 = vunpack.c.l.b16 %v1170
      %v1315 = vunpack.c.l.b16 %v1171
      %v1316 = vunpack.c.l.b16 %v1172
      %v1317 = vunpack.c.l.b16 %v1173
      %v1318 = vunpack.c.l.b16 %v1174
      %v1319 = vunpack.c.l.b16 %v1175
      %v1320 = vunpack.c.l.b16 %v1176
      %v1321 = vunpack.c.l.b16 %v1177
      %v1322 = vunpack.c.l.b16 %v1178
      %v1323 = vpack.c.b16 %v1276, %v1275
      %v1324 = vpack.c.b16 %v1278, %v1277
      %v1325 = vpack.c.b16 %v1280, %v1279
      %v1326 = vpack.c.b16 %v1282, %v1281
      %v1327 = vpack.c.b16 %v1284, %v1283
      %v1328 = vpack.c.b16 %v1286, %v1285
      %v1329 = vpack.c.b16 %v1288, %v1287
      %v1330 = vpack.c.b16 %v1290, %v1289
      %v1331 = vpack.c.b16 %v1292, %v1291
      %v1332 = vpack.c.b16 %v1294, %v1293
      %v1333 = vpack.c.b16 %v1296, %v1295
      %v1334 = vpack.c.b16 %v1298, %v1297
      %v1335 = vpack.c.b16 %v1300, %v1299
      %v1336 = vpack.c.b16 %v1302, %v1301
      %v1337 = vpack.c.b16 %v1304, %v1303
      %v1338 = vpack.c.b16 %v1306, %v1305
      %v1339 = vpack.c.b16 %v1308, %v1307
      %v1340 = vpack.c.b16 %v1310, %v1309
      %v1341 = vpack.c.b16 %v1312, %v1311
      %v1342 = vpack.c.b16 %v1314, %v1313
      %v1343 = vpack.c.b16 %v1316, %v1315
      %v1344 = vpack.c.b16 %v1318, %v1317
      %v1345 = vpack.c.b16 %v1320, %v1319
      %v1346 = vpack.c.b16 %v1322, %v1321
      %1371 = vmatprep.subr.bf16.mxu0 0
      %1372 = vmatpush1.bf16.msra.mxu0 %v1330
      %1373 = vmatprep.subr.bf16.mxu0 0
      %1374 = vmatpush1.bf16.msra.mxu0 %v1329
      %1375 = vmatprep.subr.bf16.mxu0 0
      %1376 = vmatpush1.bf16.msra.mxu0 %v1328
      %1377 = vmatprep.subr.bf16.mxu0 0
      %1378 = vmatpush1.bf16.msra.mxu0 %v1327
      %1379 = vmatprep.subr.bf16.mxu0 0
      %1380 = vmatpush1.bf16.msra.mxu0 %v1326
      %1381 = vmatprep.subr.bf16.mxu0 0
      %1382 = vmatpush1.bf16.msra.mxu0 %v1325
      %1383 = vmatprep.subr.bf16.mxu0 0
      %1384 = vmatpush1.bf16.msra.mxu0 %v1324
      %1385 = vmatprep.subr.bf16.mxu0 0
      %1386 = vmatpush1.bf16.msra.mxu0 %v1323
      %1387 = vmatprep.subr.bf16.mxu0 0
      %1388 = vmatpush2.bf16.msra.mxu0 %v1338
      %1389 = vmatprep.subr.bf16.mxu0 0
      %1390 = vmatpush2.bf16.msra.mxu0 %v1337
      %1391 = vmatprep.subr.bf16.mxu0 0
      %1392 = vmatpush2.bf16.msra.mxu0 %v1336
      %1393 = vmatprep.subr.bf16.mxu0 0
      %1394 = vmatpush2.bf16.msra.mxu0 %v1335
      %1395 = vmatprep.subr.bf16.mxu0 0
      %1396 = vmatpush2.bf16.msra.mxu0 %v1334
      %1397 = vmatprep.subr.bf16.mxu0 0
      %1398 = vmatpush2.bf16.msra.mxu0 %v1333
      %1399 = vmatprep.subr.bf16.mxu0 0
      %1400 = vmatpush2.bf16.msra.mxu0 %v1332
      %1401 = vmatprep.subr.bf16.mxu0 0
      %1402 = vmatpush2.bf16.msra.mxu0 %v1331
      %1403 = vmatprep.mubr.bf16.mxu0 %v1184
      %1404 = vmatmul.mubr.bf16.gmra.mxu0 %v1181
      %v1405 = vpop.f32.mrf.mxu0
      %v1406 = vadd.f32 0.0, %v1405
      %v1407 = vpop.f32.mrf.mxu0
      %v1408 = vpop.f32.mrf.mxu0
      %v1409 = vadd.f32 0.0, %v1408
      %v1410 = vpop.f32.mrf.mxu0
      %1411 = vmatprep.mubr.bf16.mxu0 %v1191
      %1412 = vmatmul.mubr.bf16.gmra.mxu0 %v1189
      %v1413 = vpop.f32.mrf.mxu0
      %v1414 = vadd.f32 0.0, %v1413
      %v1415 = vpop.f32.mrf.mxu0
      %v1416 = vpop.f32.mrf.mxu0
      %v1417 = vadd.f32 0.0, %v1416
      %v1418 = vpop.f32.mrf.mxu0
      %1419 = vmatprep.mubr.bf16.mxu0 %v1197
      %1420 = vmatmul.mubr.bf16.gmra.mxu0 %v1195
      %v1421 = vpop.f32.mrf.mxu0
      %v1422 = vadd.f32 0.0, %v1421
      %v1423 = vpop.f32.mrf.mxu0
      %v1424 = vpop.f32.mrf.mxu0
      %v1425 = vadd.f32 0.0, %v1424
      %v1426 = vpop.f32.mrf.mxu0
      %1427 = vmatprep.mubr.bf16.mxu0 %v1203
      %1428 = vmatmul.mubr.bf16.gmra.mxu0 %v1201
      %v1429 = vpop.f32.mrf.mxu0
      %v1430 = vadd.f32 0.0, %v1429
      %v1431 = vpop.f32.mrf.mxu0
      %v1432 = vpop.f32.mrf.mxu0
      %v1433 = vadd.f32 0.0, %v1432
      %v1434 = vpop.f32.mrf.mxu0
      %1435 = vmatprep.mubr.bf16.mxu0 %v1209
      %1436 = vmatmul.mubr.bf16.gmra.mxu0 %v1207
      %v1437 = vpop.f32.mrf.mxu0
      %v1438 = vadd.f32 0.0, %v1437
      %v1439 = vpop.f32.mrf.mxu0
      %v1440 = vpop.f32.mrf.mxu0
      %v1441 = vadd.f32 0.0, %v1440
      %v1442 = vpop.f32.mrf.mxu0
      %1443 = vdwg.mxu0
      %1444 = vmatprep.subr.bf16.mxu0 0
      %1445 = vmatpush1.bf16.msra.mxu0 %v1346
      %1446 = vmatprep.subr.bf16.mxu0 0
      %1447 = vmatpush1.bf16.msra.mxu0 %v1345
      %1448 = vmatprep.subr.bf16.mxu0 0
      %1449 = vmatpush1.bf16.msra.mxu0 %v1344
      %1450 = vmatprep.subr.bf16.mxu0 0
      %1451 = vmatpush1.bf16.msra.mxu0 %v1343
      %1452 = vmatprep.subr.bf16.mxu0 0
      %1453 = vmatpush1.bf16.msra.mxu0 %v1342
      %1454 = vmatprep.subr.bf16.mxu0 0
      %1455 = vmatpush1.bf16.msra.mxu0 %v1341
      %1456 = vmatprep.subr.bf16.mxu0 0
      %1457 = vmatpush1.bf16.msra.mxu0 %v1340
      %1458 = vmatprep.subr.bf16.mxu0 0
      %1459 = vmatpush1.bf16.msra.mxu0 %v1339
      %1460 = vmatprep.subr.bf16.mxu0 0
      %1461 = vmatpush2.bf16.msra.mxu0 0
      %1462 = vmatprep.subr.bf16.mxu0 0
      %1463 = vmatpush2.bf16.msra.mxu0 0
      %1464 = vmatprep.subr.bf16.mxu0 0
      %1465 = vmatpush2.bf16.msra.mxu0 0
      %1466 = vmatprep.subr.bf16.mxu0 0
      %1467 = vmatpush2.bf16.msra.mxu0 0
      %1468 = vmatprep.subr.bf16.mxu0 0
      %1469 = vmatpush2.bf16.msra.mxu0 0
      %1470 = vmatprep.subr.bf16.mxu0 0
      %1471 = vmatpush2.bf16.msra.mxu0 0
      %1472 = vmatprep.subr.bf16.mxu0 0
      %1473 = vmatpush2.bf16.msra.mxu0 0
      %1474 = vmatprep.subr.bf16.mxu0 0
      %1475 = vmatpush2.bf16.msra.mxu0 0
      %1476 = vmatprep.mubr.bf16.mxu0 0
      %1477 = vmatmul.mubr.bf16.gmra.mxu0 %v1187
      %v1478 = vpop.f32.mrf.mxu0
      %v1479 = vadd.f32 %v1406, %v1478
      %v1480 = vpop.f32.mrf.mxu0
      %v1481 = vpop.f32.mrf.mxu0
      %v1482 = vadd.f32 %v1409, %v1481
      %v1483 = vpop.f32.mrf.mxu0
      %1484 = vmatprep.mubr.bf16.mxu0 0
      %1485 = vmatmul.mubr.bf16.gmra.mxu0 %v1193
      %v1486 = vpop.f32.mrf.mxu0
      %v1487 = vadd.f32 %v1414, %v1486
      %v1488 = vpop.f32.mrf.mxu0
      %v1489 = vpop.f32.mrf.mxu0
      %v1490 = vadd.f32 %v1417, %v1489
      %v1491 = vpop.f32.mrf.mxu0
      %1492 = vmatprep.mubr.bf16.mxu0 0
      %1493 = vmatmul.mubr.bf16.gmra.mxu0 %v1199
      %v1494 = vpop.f32.mrf.mxu0
      %v1495 = vadd.f32 %v1422, %v1494
      %v1496 = vpop.f32.mrf.mxu0
      %v1497 = vpop.f32.mrf.mxu0
      %v1498 = vadd.f32 %v1425, %v1497
      %v1499 = vpop.f32.mrf.mxu0
      %1500 = vmatprep.mubr.bf16.mxu0 0
      %1501 = vmatmul.mubr.bf16.gmra.mxu0 %v1205
      %v1502 = vpop.f32.mrf.mxu0
      %v1503 = vadd.f32 %v1430, %v1502
      %v1504 = vpop.f32.mrf.mxu0
      %v1505 = vpop.f32.mrf.mxu0
      %v1506 = vadd.f32 %v1433, %v1505
      %v1507 = vpop.f32.mrf.mxu0
      %1508 = vmatprep.mubr.bf16.mxu0 0
      %1509 = vmatmul.mubr.bf16.gmra.mxu0 %v1211
      %v1510 = vpop.f32.mrf.mxu0
      %v1511 = vadd.f32 %v1438, %v1510
      %v1512 = vpop.f32.mrf.mxu0
      %v1513 = vpop.f32.mrf.mxu0
      %v1514 = vadd.f32 %v1441, %v1513
      %v1515 = vpop.f32.mrf.mxu0
      %1516 = vdwg.mxu0
      %v1517 = vadd.f32 %v1076, %v1479
      %v1518 = vadd.f32 %v1079, %v1482
      %v1519 = vadd.f32 %v1084, %v1487
      %v1520 = vadd.f32 %v1087, %v1490
      %v1521 = vadd.f32 %v1092, %v1495
      %v1522 = vadd.f32 %v1095, %v1498
      %v1523 = vadd.f32 %v1100, %v1503
      %v1524 = vadd.f32 %v1103, %v1506
      %v1525 = vadd.f32 %v1108, %v1511
      %v1526 = vadd.f32 %v1111, %v1514
      %v1527 = vld [vmem:[%s2] sm:$0x1]
      %v1529 = vlaneseq
      %v1530 = vshrl.u32 %v1529, 7
      %v1531 = vsub.s32 0, %v1530
      %v1532 = vrot.slane %v1527, %v1531
      %v1534 = vadd.f32 %v1517, %v1532
      %v1535 = vadd.f32 %v1518, %v1532
      %v1536 = vadd.f32 %v1519, %v1532
      %v1537 = vadd.f32 %v1520, %v1532
      %v1538 = vadd.f32 %v1521, %v1532
      %v1539 = vadd.f32 %v1522, %v1532
      %v1540 = vadd.f32 %v1523, %v1532
      %v1541 = vadd.f32 %v1524, %v1532
      %v1542 = vadd.f32 %v1525, %v1532
      %v1543 = vadd.f32 %v1526, %v1532
      %v1544 = vmax.f32 %v1534, 0.0
      %v1545 = vmax.f32 %v1535, 0.0
      %v1546 = vmax.f32 %v1536, 0.0
      %v1547 = vmax.f32 %v1537, 0.0
      %v1548 = vmax.f32 %v1538, 0.0
      %v1549 = vmax.f32 %v1539, 0.0
      %v1550 = vmax.f32 %v1540, 0.0
      %v1551 = vmax.f32 %v1541, 0.0
      %v1552 = vmax.f32 %v1542, 0.0
      %v1553 = vmax.f32 %v1543, 0.0
      %v1554 = vpack.c.bf16 %v1545, %v1544
      %v1555 = vpack.c.bf16 %v1547, %v1546
      %v1556 = vpack.c.bf16 %v1549, %v1548
      %v1557 = vpack.c.bf16 %v1551, %v1550
      %v1558 = vpack.c.bf16 %v1553, %v1552
      %v1564 = vunpack.c.l.b16 %v1554
      %v1565 = vunpack.c.h.b16 %v1554
      %v1566 = vunpack.c.l.b16 %v1555
      %v1567 = vunpack.c.h.b16 %v1555
      %v1568 = vunpack.c.l.b16 %v1556
      %v1569 = vunpack.c.h.b16 %v1556
      %v1570 = vunpack.c.l.b16 %v1557
      %v1571 = vunpack.c.h.b16 %v1557
      %v1572 = vunpack.c.l.b16 %v1558
      %v1573 = vunpack.c.h.b16 %v1558
      %v1574 = vpack.c.b16 %v1564, %v1564
      %v1575 = vpack.c.b16 %v1565, %v1565
      %v1576 = vpack.c.b16 %v1566, %v1566
      %v1577 = vpack.c.b16 %v1567, %v1567
      %v1578 = vpack.c.b16 %v1568, %v1568
      %v1579 = vpack.c.b16 %v1569, %v1569
      %v1580 = vpack.c.b16 %v1570, %v1570
      %v1581 = vpack.c.b16 %v1571, %v1571
      %v1582 = vpack.c.b16 %v1572, %v1572
      %v1583 = vpack.c.b16 %v1573, %v1573
      %1594 = vst [vmem:[%s170] sm:$0xf] %v1574
      %1595 = vst [vmem:[%s170 + $0x4] sm:$0xf] %v1575
      %1596 = vst [vmem:[%s170 + $0x8] sm:$0xf] %v1576
      %1597 = vst [vmem:[%s170 + $0xc] sm:$0xf] %v1577
      %1598 = vst [vmem:[%s170 + $0x10] sm:$0xf] %v1578
      %1599 = vst [vmem:[%s170 + $0x14] sm:$0xf] %v1579
      %1600 = vst [vmem:[%s170 + $0x18] sm:$0xf] %v1580
      %1601 = vst [vmem:[%s170 + $0x1c] sm:$0xf] %v1581
      %1602 = vst [vmem:[%s170 + $0x20] sm:$0xf] %v1582
      %1603 = vst [vmem:[%s170 + $0x24] sm:$0xf] %v1583
      %p1604 = scmp.lt.s32.totalorder %s14, 1
      %s1605 = scalar_select %p1604, %s14, 1
      %s1606 = smul.addr %s1605, 10
      %s1607 = smul.addr %s1606, 4
      %s1608 = scalar_lea.vmem %s3, %s1607
      // Predicated region
      $region33: #{_lambda_.26} parent=31 // pred_check
        %p1609 = pneg %p100
      $region34: #{_lambda_.26} parent=31 // pred_check_branch
        %1611 = sbr.rel (%p1609) target = $region36
      $region35: #{_lambda_.26} parent=31 // pred_region
        _
      $region36: #{_lambda_.26} parent=31 // pred_fallthru
        _
    $region32: #{_lambda_.26} parent=5 // pred_fallthru
      _
    %p1612 = scmp.le.s32.totalorder 2, %s9
    // Predicated region
    $region37: #{_lambda_.26} parent=5 // pred_check
      %p1613 = pneg %p1612
    $region38: #{_lambda_.26} parent=5 // pred_check_branch
      %1615 = sbr.rel (%p1613) target = $region40
    $region39: #{_lambda_.26} parent=5 // pred_region
      %s1616 = ssub.s32 %s9, 2
      // Predicated region
      $region41: #{_lambda_.26} parent=39 // pred_check
        %p1617 = pneg %p106
      $region42: #{_lambda_.26} parent=39 // pred_check_branch
        %1619 = sbr.rel (%p1617) target = $region44
      $region43: #{_lambda_.26} parent=39 // pred_region
        %p1620 = scmp.lt.s32.totalorder %s15, 1
        %s1621 = scalar_select %p1620, %s15, 1
        %s1622 = smul.addr %s1621, 10
        %s1623 = smul.addr %s1622, 4
        %s1624 = scalar_lea.vmem %s3, %s1623
      $region44: #{_lambda_.26} parent=39 // pred_fallthru
        _
    $region40: #{_lambda_.26} parent=5 // pred_fallthru
      _
  $region6: #{_lambda_.26} parent=0 // loop_footer
    %s13 = sadd.s32 1, %s9
  $region7: #{_lambda_.26} parent=0 // loop_footer_branch
    %8 = sbr.rel target = $region3
  $region8: #{_lambda_.26} parent=0 // loop_exit
    _

// kernel: _lambda_.33
$region0: #{_lambda_.33}
  #allocation0 [shape = 'u32[]', space=smem, size = 0x4, offset = 0x4, fixed_abs, tag = 'smem constant byte address 0x4 - core index']
  #allocation1 [shape = 'u32[144,128]{1,0:T(1,128)}', space=vmem, size = 0x12000, scoped, tag = 'internal scratch']
  %s0 = inlined_call_operand.vmem [shape: bf16[128,1152], index: 0, kind: input, shape index: {}]
  %s1 = inlined_call_operand.vmem [shape: bf16[1152,128], index: 1, kind: input, shape index: {}]
  %s2 = inlined_call_operand.vmem [shape: f32[1,128], index: 2, kind: input, shape index: {}]
  %s3 = inlined_call_operand.vmem [shape: bf16[128,128], index: 3, kind: output, shape index: {}]
  %s4 = sld [smem:[#allocation0]]
  $region22: #{_lambda_.33} parent=0
    _
  %s6 = ssub.s32 1, %s4
  %s7 = scalar_select 0, %s6, %s4
  // Predicated region
  $region2: #{_lambda_.33} parent=0 // pred_check
    _
  $region3: #{_lambda_.33} parent=0 // pred_check_branch
    %9 = sbr.rel (0) target = $region5
  $region4: #{_lambda_.33} parent=0 // pred_region
    _
  $region5: #{_lambda_.33} parent=0 // pred_fallthru
    _
  // Predicated region
  $region6: #{_lambda_.33} parent=0 // pred_check
    _
  $region7: #{_lambda_.33} parent=0 // pred_check_branch
    %11 = sbr.rel (0) target = $region9
  $region8: #{_lambda_.33} parent=0 // pred_region
    _
  $region9: #{_lambda_.33} parent=0 // pred_fallthru
    _
  // Predicated region
  $region10: #{_lambda_.33} parent=0 // pred_check
    _
  $region11: #{_lambda_.33} parent=0 // pred_check_branch
    %13 = sbr.rel (0) target = $region13
  $region12: #{_lambda_.33} parent=0 // pred_region
    _
  $region13: #{_lambda_.33} parent=0 // pred_fallthru
    _
  %v15 = vld [vmem:[%s0] sm:$0xff]
  %v16 = vld [vmem:[%s0 + $0x8] sm:$0xff]
  %v17 = vld [vmem:[%s0 + $0x10] sm:$0xff]
  %v18 = vld [vmem:[%s0 + $0x18] sm:$0xff]
  %v19 = vld [vmem:[%s0 + $0x20] sm:$0xf]
  %v20 = vld [vmem:[%s0 + $0x24] sm:$0xff]
  %v21 = vld [vmem:[%s0 + $0x2c] sm:$0xff]
  %v22 = vld [vmem:[%s0 + $0x34] sm:$0xff]
  %v23 = vld [vmem:[%s0 + $0x3c] sm:$0xff]
  %v24 = vld [vmem:[%s0 + $0x44] sm:$0xf]
  %v25 = vld [vmem:[%s0 + $0x48] sm:$0xff]
  %v26 = vld [vmem:[%s0 + $0x50] sm:$0xff]
  %v27 = vld [vmem:[%s0 + $0x58] sm:$0xff]
  %v28 = vld [vmem:[%s0 + $0x60] sm:$0xff]
  %v29 = vld [vmem:[%s0 + $0x68] sm:$0xf]
  %v30 = vld [vmem:[%s0 + $0x6c] sm:$0xff]
  %v31 = vld [vmem:[%s0 + $0x74] sm:$0xff]
  %v32 = vld [vmem:[%s0 + $0x7c] sm:$0xff]
  %v33 = vld [vmem:[%s0 + $0x84] sm:$0xff]
  %v34 = vld [vmem:[%s0 + $0x8c] sm:$0xf]
  %v35 = vld [vmem:[%s0 + $0x90] sm:$0xff]
  %v36 = vld [vmem:[%s0 + $0x98] sm:$0xff]
  %v37 = vld [vmem:[%s0 + $0xa0] sm:$0xff]
  %v38 = vld [vmem:[%s0 + $0xa8] sm:$0xff]
  %v39 = vld [vmem:[%s0 + $0xb0] sm:$0xf]
  %v40 = vld [vmem:[%s0 + $0xb4] sm:$0xff]
  %v41 = vld [vmem:[%s0 + $0xbc] sm:$0xff]
  %v42 = vld [vmem:[%s0 + $0xc4] sm:$0xff]
  %v43 = vld [vmem:[%s0 + $0xcc] sm:$0xff]
  %v44 = vld [vmem:[%s0 + $0xd4] sm:$0xf]
  %v45 = vld [vmem:[%s0 + $0xd8] sm:$0xff]
  %v46 = vld [vmem:[%s0 + $0xe0] sm:$0xff]
  %v47 = vld [vmem:[%s0 + $0xe8] sm:$0xff]
  %v48 = vld [vmem:[%s0 + $0xf0] sm:$0xff]
  %v49 = vld [vmem:[%s0 + $0xf8] sm:$0xf]
  %v50 = vld [vmem:[%s0 + $0xfc] sm:$0xff]
  %v51 = vld [vmem:[%s0 + $0x104] sm:$0xff]
  %v52 = vld [vmem:[%s0 + $0x10c] sm:$0xff]
  %v53 = vld [vmem:[%s0 + $0x114] sm:$0xff]
  %v54 = vld [vmem:[%s0 + $0x11c] sm:$0xf]
  %v55 = vld [vmem:[%s0 + $0x120] sm:$0xff]
  %v56 = vld [vmem:[%s0 + $0x128] sm:$0xff]
  %v57 = vld [vmem:[%s0 + $0x130] sm:$0xff]
  %v58 = vld [vmem:[%s0 + $0x138] sm:$0xff]
  %v59 = vld [vmem:[%s0 + $0x140] sm:$0xf]
  %v60 = vld [vmem:[%s0 + $0x144] sm:$0xff]
  %v61 = vld [vmem:[%s0 + $0x14c] sm:$0xff]
  %v62 = vld [vmem:[%s0 + $0x154] sm:$0xff]
  %v63 = vld [vmem:[%s0 + $0x15c] sm:$0xff]
  %v64 = vld [vmem:[%s0 + $0x164] sm:$0xf]
  %v65 = vld [vmem:[%s0 + $0x168] sm:$0xff]
  %v66 = vld [vmem:[%s0 + $0x170] sm:$0xff]
  %v67 = vld [vmem:[%s0 + $0x178] sm:$0xff]
  %v68 = vld [vmem:[%s0 + $0x180] sm:$0xff]
  %v69 = vld [vmem:[%s0 + $0x188] sm:$0xf]
  %v70 = vld [vmem:[%s0 + $0x18c] sm:$0xff]
  %v71 = vld [vmem:[%s0 + $0x194] sm:$0xff]
  %v72 = vld [vmem:[%s0 + $0x19c] sm:$0xff]
  %v73 = vld [vmem:[%s0 + $0x1a4] sm:$0xff]
  %v74 = vld [vmem:[%s0 + $0x1ac] sm:$0xf]
  %v75 = vld [vmem:[%s0 + $0x1b0] sm:$0xff]
  %v76 = vld [vmem:[%s0 + $0x1b8] sm:$0xff]
  %v77 = vld [vmem:[%s0 + $0x1c0] sm:$0xff]
  %v78 = vld [vmem:[%s0 + $0x1c8] sm:$0xff]
  %v79 = vld [vmem:[%s0 + $0x1d0] sm:$0xf]
  %v80 = vld [vmem:[%s0 + $0x1d4] sm:$0xff]
  %v81 = vld [vmem:[%s0 + $0x1dc] sm:$0xff]
  %v82 = vld [vmem:[%s0 + $0x1e4] sm:$0xff]
  %v83 = vld [vmem:[%s0 + $0x1ec] sm:$0xff]
  %v84 = vld [vmem:[%s0 + $0x1f4] sm:$0xf]
  %v85 = vld [vmem:[%s0 + $0x1f8] sm:$0xff]
  %v86 = vld [vmem:[%s0 + $0x200] sm:$0xff]
  %v87 = vld [vmem:[%s0 + $0x208] sm:$0xff]
  %v88 = vld [vmem:[%s0 + $0x210] sm:$0xff]
  %v89 = vld [vmem:[%s0 + $0x218] sm:$0xf]
  %v90 = vld [vmem:[%s0 + $0x21c] sm:$0xff]
  %v91 = vld [vmem:[%s0 + $0x224] sm:$0xff]
  %v92 = vld [vmem:[%s0 + $0x22c] sm:$0xff]
  %v93 = vld [vmem:[%s0 + $0x234] sm:$0xff]
  %v94 = vld [vmem:[%s0 + $0x23c] sm:$0xf]
  %v95 = vld [vmem:[%s1] sm:$0xf]
  %v96 = vld [vmem:[%s1 + $0x4] sm:$0xf]
  %v97 = vld [vmem:[%s1 + $0x8] sm:$0xf]
  %v98 = vld [vmem:[%s1 + $0xc] sm:$0xf]
  %v99 = vld [vmem:[%s1 + $0x10] sm:$0xf]
  %v100 = vld [vmem:[%s1 + $0x14] sm:$0xf]
  %v101 = vld [vmem:[%s1 + $0x18] sm:$0xf]
  %v102 = vld [vmem:[%s1 + $0x1c] sm:$0xf]
  %v103 = vld [vmem:[%s1 + $0x20] sm:$0xf]
  %v104 = vld [vmem:[%s1 + $0x24] sm:$0xf]
  %v105 = vld [vmem:[%s1 + $0x28] sm:$0xf]
  %v106 = vld [vmem:[%s1 + $0x2c] sm:$0xf]
  %v107 = vld [vmem:[%s1 + $0x30] sm:$0xf]
  %v108 = vld [vmem:[%s1 + $0x34] sm:$0xf]
  %v109 = vld [vmem:[%s1 + $0x38] sm:$0xf]
  %v110 = vld [vmem:[%s1 + $0x3c] sm:$0xf]
  %v111 = vld [vmem:[%s1 + $0x40] sm:$0xf]
  %v112 = vld [vmem:[%s1 + $0x44] sm:$0xf]
  %v113 = vld [vmem:[%s1 + $0x48] sm:$0xf]
  %v114 = vld [vmem:[%s1 + $0x4c] sm:$0xf]
  %v115 = vld [vmem:[%s1 + $0x50] sm:$0xf]
  %v116 = vld [vmem:[%s1 + $0x54] sm:$0xf]
  %v117 = vld [vmem:[%s1 + $0x58] sm:$0xf]
  %v118 = vld [vmem:[%s1 + $0x5c] sm:$0xf]
  %v119 = vld [vmem:[%s1 + $0x60] sm:$0xf]
  %v120 = vld [vmem:[%s1 + $0x64] sm:$0xf]
  %v121 = vld [vmem:[%s1 + $0x68] sm:$0xf]
  %v122 = vld [vmem:[%s1 + $0x6c] sm:$0xf]
  %v123 = vld [vmem:[%s1 + $0x70] sm:$0xf]
  %v124 = vld [vmem:[%s1 + $0x74] sm:$0xf]
  %v125 = vld [vmem:[%s1 + $0x78] sm:$0xf]
  %v126 = vld [vmem:[%s1 + $0x7c] sm:$0xf]
  %v127 = vld [vmem:[%s1 + $0x80] sm:$0xf]
  %v128 = vld [vmem:[%s1 + $0x84] sm:$0xf]
  %v129 = vld [vmem:[%s1 + $0x88] sm:$0xf]
  %v130 = vld [vmem:[%s1 + $0x8c] sm:$0xf]
  %v131 = vld [vmem:[%s1 + $0x90] sm:$0xf]
  %v132 = vld [vmem:[%s1 + $0x94] sm:$0xf]
  %v133 = vld [vmem:[%s1 + $0x98] sm:$0xf]
  %v134 = vld [vmem:[%s1 + $0x9c] sm:$0xf]
  %v135 = vld [vmem:[%s1 + $0xa0] sm:$0xf]
  %v136 = vld [vmem:[%s1 + $0xa4] sm:$0xf]
  %v137 = vld [vmem:[%s1 + $0xa8] sm:$0xf]
  %v138 = vld [vmem:[%s1 + $0xac] sm:$0xf]
  %v139 = vld [vmem:[%s1 + $0xb0] sm:$0xf]
  %v140 = vld [vmem:[%s1 + $0xb4] sm:$0xf]
  %v141 = vld [vmem:[%s1 + $0xb8] sm:$0xf]
  %v142 = vld [vmem:[%s1 + $0xbc] sm:$0xf]
  %v143 = vld [vmem:[%s1 + $0xc0] sm:$0xf]
  %v144 = vld [vmem:[%s1 + $0xc4] sm:$0xf]
  %v145 = vld [vmem:[%s1 + $0xc8] sm:$0xf]
  %v146 = vld [vmem:[%s1 + $0xcc] sm:$0xf]
  %v147 = vld [vmem:[%s1 + $0xd0] sm:$0xf]
  %v148 = vld [vmem:[%s1 + $0xd4] sm:$0xf]
  %v149 = vld [vmem:[%s1 + $0xd8] sm:$0xf]
  %v150 = vld [vmem:[%s1 + $0xdc] sm:$0xf]
  %v151 = vld [vmem:[%s1 + $0xe0] sm:$0xf]
  %v152 = vld [vmem:[%s1 + $0xe4] sm:$0xf]
  %v153 = vld [vmem:[%s1 + $0xe8] sm:$0xf]
  %v154 = vld [vmem:[%s1 + $0xec] sm:$0xf]
  %v155 = vld [vmem:[%s1 + $0xf0] sm:$0xf]
  %v156 = vld [vmem:[%s1 + $0xf4] sm:$0xf]
  %v157 = vld [vmem:[%s1 + $0xf8] sm:$0xf]
  %v158 = vld [vmem:[%s1 + $0xfc] sm:$0xf]
  %v159 = vld [vmem:[%s1 + $0x100] sm:$0xf]
  %v160 = vld [vmem:[%s1 + $0x104] sm:$0xf]
  %v161 = vld [vmem:[%s1 + $0x108] sm:$0xf]
  %v162 = vld [vmem:[%s1 + $0x10c] sm:$0xf]
  %v163 = vld [vmem:[%s1 + $0x110] sm:$0xf]
  %v164 = vld [vmem:[%s1 + $0x114] sm:$0xf]
  %v165 = vld [vmem:[%s1 + $0x118] sm:$0xf]
  %v166 = vld [vmem:[%s1 + $0x11c] sm:$0xf]
  %v167 = vld [vmem:[%s1 + $0x120] sm:$0xf]
  %v168 = vld [vmem:[%s1 + $0x124] sm:$0xf]
  %v169 = vld [vmem:[%s1 + $0x128] sm:$0xf]
  %v170 = vld [vmem:[%s1 + $0x12c] sm:$0xf]
  %v171 = vld [vmem:[%s1 + $0x130] sm:$0xf]
  %v172 = vld [vmem:[%s1 + $0x134] sm:$0xf]
  %v173 = vld [vmem:[%s1 + $0x138] sm:$0xf]
  %v174 = vld [vmem:[%s1 + $0x13c] sm:$0xf]
  %v175 = vld [vmem:[%s1 + $0x140] sm:$0xf]
  %v176 = vld [vmem:[%s1 + $0x144] sm:$0xf]
  %v177 = vld [vmem:[%s1 + $0x148] sm:$0xf]
  %v178 = vld [vmem:[%s1 + $0x14c] sm:$0xf]
  %v179 = vld [vmem:[%s1 + $0x150] sm:$0xf]
  %v180 = vld [vmem:[%s1 + $0x154] sm:$0xf]
  %v181 = vld [vmem:[%s1 + $0x158] sm:$0xf]
  %v182 = vld [vmem:[%s1 + $0x15c] sm:$0xf]
  %v183 = vld [vmem:[%s1 + $0x160] sm:$0xf]
  %v184 = vld [vmem:[%s1 + $0x164] sm:$0xf]
  %v185 = vld [vmem:[%s1 + $0x168] sm:$0xf]
  %v186 = vld [vmem:[%s1 + $0x16c] sm:$0xf]
  %v187 = vld [vmem:[%s1 + $0x170] sm:$0xf]
  %v188 = vld [vmem:[%s1 + $0x174] sm:$0xf]
  %v189 = vld [vmem:[%s1 + $0x178] sm:$0xf]
  %v190 = vld [vmem:[%s1 + $0x17c] sm:$0xf]
  %v191 = vld [vmem:[%s1 + $0x180] sm:$0xf]
  %v192 = vld [vmem:[%s1 + $0x184] sm:$0xf]
  %v193 = vld [vmem:[%s1 + $0x188] sm:$0xf]
  %v194 = vld [vmem:[%s1 + $0x18c] sm:$0xf]
  %v195 = vld [vmem:[%s1 + $0x190] sm:$0xf]
  %v196 = vld [vmem:[%s1 + $0x194] sm:$0xf]
  %v197 = vld [vmem:[%s1 + $0x198] sm:$0xf]
  %v198 = vld [vmem:[%s1 + $0x19c] sm:$0xf]
  %v199 = vld [vmem:[%s1 + $0x1a0] sm:$0xf]
  %v200 = vld [vmem:[%s1 + $0x1a4] sm:$0xf]
  %v201 = vld [vmem:[%s1 + $0x1a8] sm:$0xf]
  %v202 = vld [vmem:[%s1 + $0x1ac] sm:$0xf]
  %v203 = vld [vmem:[%s1 + $0x1b0] sm:$0xf]
  %v204 = vld [vmem:[%s1 + $0x1b4] sm:$0xf]
  %v205 = vld [vmem:[%s1 + $0x1b8] sm:$0xf]
  %v206 = vld [vmem:[%s1 + $0x1bc] sm:$0xf]
  %v207 = vld [vmem:[%s1 + $0x1c0] sm:$0xf]
  %v208 = vld [vmem:[%s1 + $0x1c4] sm:$0xf]
  %v209 = vld [vmem:[%s1 + $0x1c8] sm:$0xf]
  %v210 = vld [vmem:[%s1 + $0x1cc] sm:$0xf]
  %v211 = vld [vmem:[%s1 + $0x1d0] sm:$0xf]
  %v212 = vld [vmem:[%s1 + $0x1d4] sm:$0xf]
  %v213 = vld [vmem:[%s1 + $0x1d8] sm:$0xf]
  %v214 = vld [vmem:[%s1 + $0x1dc] sm:$0xf]
  %v215 = vld [vmem:[%s1 + $0x1e0] sm:$0xf]
  %v216 = vld [vmem:[%s1 + $0x1e4] sm:$0xf]
  %v217 = vld [vmem:[%s1 + $0x1e8] sm:$0xf]
  %v218 = vld [vmem:[%s1 + $0x1ec] sm:$0xf]
  %v219 = vld [vmem:[%s1 + $0x1f0] sm:$0xf]
  %v220 = vld [vmem:[%s1 + $0x1f4] sm:$0xf]
  %v221 = vld [vmem:[%s1 + $0x1f8] sm:$0xf]
  %v222 = vld [vmem:[%s1 + $0x1fc] sm:$0xf]
  %v223 = vld [vmem:[%s1 + $0x200] sm:$0xf]
  %v224 = vld [vmem:[%s1 + $0x204] sm:$0xf]
  %v225 = vld [vmem:[%s1 + $0x208] sm:$0xf]
  %v226 = vld [vmem:[%s1 + $0x20c] sm:$0xf]
  %v227 = vld [vmem:[%s1 + $0x210] sm:$0xf]
  %v228 = vld [vmem:[%s1 + $0x214] sm:$0xf]
  %v229 = vld [vmem:[%s1 + $0x218] sm:$0xf]
  %v230 = vld [vmem:[%s1 + $0x21c] sm:$0xf]
  %v231 = vld [vmem:[%s1 + $0x220] sm:$0xf]
  %v232 = vld [vmem:[%s1 + $0x224] sm:$0xf]
  %v233 = vld [vmem:[%s1 + $0x228] sm:$0xf]
  %v234 = vld [vmem:[%s1 + $0x22c] sm:$0xf]
  %v235 = vld [vmem:[%s1 + $0x230] sm:$0xf]
  %v236 = vld [vmem:[%s1 + $0x234] sm:$0xf]
  %v237 = vld [vmem:[%s1 + $0x238] sm:$0xf]
  %v238 = vld [vmem:[%s1 + $0x23c] sm:$0xf]
  %v239 = vld [vmem:[%s2] sm:$0x1]
  %v241 = vlaneseq
  %v242 = vshrl.u32 %v241, 7
  %v243 = vsub.s32 0, %v242
  %v244 = vrot.slane %v239, %v243
  %v326 = vunpack.c.l.b16 %v15
  %v327 = vunpack.c.h.b16 %v15
  %v328 = vunpack.c.l.b16 %v16
  %v329 = vunpack.c.h.b16 %v16
  %v330 = vunpack.c.l.b16 %v17
  %v331 = vunpack.c.h.b16 %v17
  %v332 = vunpack.c.l.b16 %v18
  %v333 = vunpack.c.h.b16 %v18
  %v334 = vunpack.c.l.b16 %v19
  %v335 = vunpack.c.l.b16 %v20
  %v336 = vunpack.c.h.b16 %v20
  %v337 = vunpack.c.l.b16 %v21
  %v338 = vunpack.c.h.b16 %v21
  %v339 = vunpack.c.l.b16 %v22
  %v340 = vunpack.c.h.b16 %v22
  %v341 = vunpack.c.l.b16 %v23
  %v342 = vunpack.c.h.b16 %v23
  %v343 = vunpack.c.l.b16 %v24
  %v344 = vunpack.c.l.b16 %v25
  %v345 = vunpack.c.h.b16 %v25
  %v346 = vunpack.c.l.b16 %v26
  %v347 = vunpack.c.h.b16 %v26
  %v348 = vunpack.c.l.b16 %v27
  %v349 = vunpack.c.h.b16 %v27
  %v350 = vunpack.c.l.b16 %v28
  %v351 = vunpack.c.h.b16 %v28
  %v352 = vunpack.c.l.b16 %v29
  %v353 = vunpack.c.l.b16 %v30
  %v354 = vunpack.c.h.b16 %v30
  %v355 = vunpack.c.l.b16 %v31
  %v356 = vunpack.c.h.b16 %v31
  %v357 = vunpack.c.l.b16 %v32
  %v358 = vunpack.c.h.b16 %v32
  %v359 = vunpack.c.l.b16 %v33
  %v360 = vunpack.c.h.b16 %v33
  %v361 = vunpack.c.l.b16 %v34
  %v362 = vunpack.c.l.b16 %v35
  %v363 = vunpack.c.h.b16 %v35
  %v364 = vunpack.c.l.b16 %v36
  %v365 = vunpack.c.h.b16 %v36
  %v366 = vunpack.c.l.b16 %v37
  %v367 = vunpack.c.h.b16 %v37
  %v368 = vunpack.c.l.b16 %v38
  %v369 = vunpack.c.h.b16 %v38
  %v370 = vunpack.c.l.b16 %v39
  %v371 = vunpack.c.l.b16 %v40
  %v372 = vunpack.c.h.b16 %v40
  %v373 = vunpack.c.l.b16 %v41
  %v374 = vunpack.c.h.b16 %v41
  %v375 = vunpack.c.l.b16 %v42
  %v376 = vunpack.c.h.b16 %v42
  %v377 = vunpack.c.l.b16 %v43
  %v378 = vunpack.c.h.b16 %v43
  %v379 = vunpack.c.l.b16 %v44
  %v380 = vunpack.c.l.b16 %v45
  %v381 = vunpack.c.h.b16 %v45
  %v382 = vunpack.c.l.b16 %v46
  %v383 = vunpack.c.h.b16 %v46
  %v384 = vunpack.c.l.b16 %v47
  %v385 = vunpack.c.h.b16 %v47
  %v386 = vunpack.c.l.b16 %v48
  %v387 = vunpack.c.h.b16 %v48
  %v388 = vunpack.c.l.b16 %v49
  %v389 = vunpack.c.l.b16 %v50
  %v390 = vunpack.c.h.b16 %v50
  %v391 = vunpack.c.l.b16 %v51
  %v392 = vunpack.c.h.b16 %v51
  %v393 = vunpack.c.l.b16 %v52
  %v394 = vunpack.c.h.b16 %v52
  %v395 = vunpack.c.l.b16 %v53
  %v396 = vunpack.c.h.b16 %v53
  %v397 = vunpack.c.l.b16 %v54
  %v398 = vunpack.c.l.b16 %v55
  %v399 = vunpack.c.h.b16 %v55
  %v400 = vunpack.c.l.b16 %v56
  %v401 = vunpack.c.h.b16 %v56
  %v402 = vunpack.c.l.b16 %v57
  %v403 = vunpack.c.h.b16 %v57
  %v404 = vunpack.c.l.b16 %v58
  %v405 = vunpack.c.h.b16 %v58
  %v406 = vunpack.c.l.b16 %v59
  %v407 = vunpack.c.l.b16 %v60
  %v408 = vunpack.c.h.b16 %v60
  %v409 = vunpack.c.l.b16 %v61
  %v410 = vunpack.c.h.b16 %v61
  %v411 = vunpack.c.l.b16 %v62
  %v412 = vunpack.c.h.b16 %v62
  %v413 = vunpack.c.l.b16 %v63
  %v414 = vunpack.c.h.b16 %v63
  %v415 = vunpack.c.l.b16 %v64
  %v416 = vunpack.c.l.b16 %v65
  %v417 = vunpack.c.h.b16 %v65
  %v418 = vunpack.c.l.b16 %v66
  %v419 = vunpack.c.h.b16 %v66
  %v420 = vunpack.c.l.b16 %v67
  %v421 = vunpack.c.h.b16 %v67
  %v422 = vunpack.c.l.b16 %v68
  %v423 = vunpack.c.h.b16 %v68
  %v424 = vunpack.c.l.b16 %v69
  %v425 = vunpack.c.l.b16 %v70
  %v426 = vunpack.c.h.b16 %v70
  %v427 = vunpack.c.l.b16 %v71
  %v428 = vunpack.c.h.b16 %v71
  %v429 = vunpack.c.l.b16 %v72
  %v430 = vunpack.c.h.b16 %v72
  %v431 = vunpack.c.l.b16 %v73
  %v432 = vunpack.c.h.b16 %v73
  %v433 = vunpack.c.l.b16 %v74
  %v434 = vunpack.c.l.b16 %v75
  %v435 = vunpack.c.h.b16 %v75
  %v436 = vunpack.c.l.b16 %v76
  %v437 = vunpack.c.h.b16 %v76
  %v438 = vunpack.c.l.b16 %v77
  %v439 = vunpack.c.h.b16 %v77
  %v440 = vunpack.c.l.b16 %v78
  %v441 = vunpack.c.h.b16 %v78
  %v442 = vunpack.c.l.b16 %v79
  %v443 = vunpack.c.l.b16 %v80
  %v444 = vunpack.c.h.b16 %v80
  %v445 = vunpack.c.l.b16 %v81
  %v446 = vunpack.c.h.b16 %v81
  %v447 = vunpack.c.l.b16 %v82
  %v448 = vunpack.c.h.b16 %v82
  %v449 = vunpack.c.l.b16 %v83
  %v450 = vunpack.c.h.b16 %v83
  %v451 = vunpack.c.l.b16 %v84
  %v452 = vunpack.c.l.b16 %v85
  %v453 = vunpack.c.h.b16 %v85
  %v454 = vunpack.c.l.b16 %v86
  %v455 = vunpack.c.h.b16 %v86
  %v456 = vunpack.c.l.b16 %v87
  %v457 = vunpack.c.h.b16 %v87
  %v458 = vunpack.c.l.b16 %v88
  %v459 = vunpack.c.h.b16 %v88
  %v460 = vunpack.c.l.b16 %v89
  %v461 = vunpack.c.l.b16 %v90
  %v462 = vunpack.c.h.b16 %v90
  %v463 = vunpack.c.l.b16 %v91
  %v464 = vunpack.c.h.b16 %v91
  %v465 = vunpack.c.l.b16 %v92
  %v466 = vunpack.c.h.b16 %v92
  %v467 = vunpack.c.l.b16 %v93
  %v468 = vunpack.c.h.b16 %v93
  %v469 = vunpack.c.l.b16 %v94
  %v470 = vpack.c.b16 %v335, %v326
  %v471 = vpack.c.b16 %v336, %v327
  %v472 = vpack.c.b16 %v337, %v328
  %v473 = vpack.c.b16 %v338, %v329
  %v474 = vpack.c.b16 %v339, %v330
  %v475 = vpack.c.b16 %v340, %v331
  %v476 = vpack.c.b16 %v341, %v332
  %v477 = vpack.c.b16 %v342, %v333
  %v478 = vpack.c.b16 %v343, %v334
  %v479 = vpack.c.b16 %v353, %v344
  %v480 = vpack.c.b16 %v354, %v345
  %v481 = vpack.c.b16 %v355, %v346
  %v482 = vpack.c.b16 %v356, %v347
  %v483 = vpack.c.b16 %v357, %v348
  %v484 = vpack.c.b16 %v358, %v349
  %v485 = vpack.c.b16 %v359, %v350
  %v486 = vpack.c.b16 %v360, %v351
  %v487 = vpack.c.b16 %v361, %v352
  %v488 = vpack.c.b16 %v371, %v362
  %v489 = vpack.c.b16 %v372, %v363
  %v490 = vpack.c.b16 %v373, %v364
  %v491 = vpack.c.b16 %v374, %v365
  %v492 = vpack.c.b16 %v375, %v366
  %v493 = vpack.c.b16 %v376, %v367
  %v494 = vpack.c.b16 %v377, %v368
  %v495 = vpack.c.b16 %v378, %v369
  %v496 = vpack.c.b16 %v379, %v370
  %v497 = vpack.c.b16 %v389, %v380
  %v498 = vpack.c.b16 %v390, %v381
  %v499 = vpack.c.b16 %v391, %v382
  %v500 = vpack.c.b16 %v392, %v383
  %v501 = vpack.c.b16 %v393, %v384
  %v502 = vpack.c.b16 %v394, %v385
  %v503 = vpack.c.b16 %v395, %v386
  %v504 = vpack.c.b16 %v396, %v387
  %v505 = vpack.c.b16 %v397, %v388
  %v506 = vpack.c.b16 %v407, %v398
  %v507 = vpack.c.b16 %v408, %v399
  %v508 = vpack.c.b16 %v409, %v400
  %v509 = vpack.c.b16 %v410, %v401
  %v510 = vpack.c.b16 %v411, %v402
  %v511 = vpack.c.b16 %v412, %v403
  %v512 = vpack.c.b16 %v413, %v404
  %v513 = vpack.c.b16 %v414, %v405
  %v514 = vpack.c.b16 %v415, %v406
  %v515 = vpack.c.b16 %v425, %v416
  %v516 = vpack.c.b16 %v426, %v417
  %v517 = vpack.c.b16 %v427, %v418
  %v518 = vpack.c.b16 %v428, %v419
  %v519 = vpack.c.b16 %v429, %v420
  %v520 = vpack.c.b16 %v430, %v421
  %v521 = vpack.c.b16 %v431, %v422
  %v522 = vpack.c.b16 %v432, %v423
  %v523 = vpack.c.b16 %v433, %v424
  %v524 = vpack.c.b16 %v443, %v434
  %v525 = vpack.c.b16 %v444, %v435
  %v526 = vpack.c.b16 %v445, %v436
  %v527 = vpack.c.b16 %v446, %v437
  %v528 = vpack.c.b16 %v447, %v438
  %v529 = vpack.c.b16 %v448, %v439
  %v530 = vpack.c.b16 %v449, %v440
  %v531 = vpack.c.b16 %v450, %v441
  %v532 = vpack.c.b16 %v451, %v442
  %v533 = vpack.c.b16 %v461, %v452
  %v534 = vpack.c.b16 %v462, %v453
  %v535 = vpack.c.b16 %v463, %v454
  %v536 = vpack.c.b16 %v464, %v455
  %v537 = vpack.c.b16 %v465, %v456
  %v538 = vpack.c.b16 %v466, %v457
  %v539 = vpack.c.b16 %v467, %v458
  %v540 = vpack.c.b16 %v468, %v459
  %v541 = vpack.c.b16 %v469, %v460
  %v758 = vunpack.c.l.b16 %v95
  %v759 = vunpack.c.l.b16 %v96
  %v760 = vunpack.c.l.b16 %v97
  %v761 = vunpack.c.l.b16 %v98
  %v762 = vunpack.c.l.b16 %v99
  %v763 = vunpack.c.l.b16 %v100
  %v764 = vunpack.c.l.b16 %v101
  %v765 = vunpack.c.l.b16 %v102
  %v766 = vunpack.c.l.b16 %v103
  %v767 = vunpack.c.l.b16 %v104
  %v768 = vunpack.c.l.b16 %v105
  %v769 = vunpack.c.l.b16 %v106
  %v770 = vunpack.c.l.b16 %v107
  %v771 = vunpack.c.l.b16 %v108
  %v772 = vunpack.c.l.b16 %v109
  %v773 = vunpack.c.l.b16 %v110
  %v774 = vunpack.c.l.b16 %v111
  %v775 = vunpack.c.l.b16 %v112
  %v776 = vunpack.c.l.b16 %v113
  %v777 = vunpack.c.l.b16 %v114
  %v778 = vunpack.c.l.b16 %v115
  %v779 = vunpack.c.l.b16 %v116
  %v780 = vunpack.c.l.b16 %v117
  %v781 = vunpack.c.l.b16 %v118
  %v782 = vunpack.c.l.b16 %v119
  %v783 = vunpack.c.l.b16 %v120
  %v784 = vunpack.c.l.b16 %v121
  %v785 = vunpack.c.l.b16 %v122
  %v786 = vunpack.c.l.b16 %v123
  %v787 = vunpack.c.l.b16 %v124
  %v788 = vunpack.c.l.b16 %v125
  %v789 = vunpack.c.l.b16 %v126
  %v790 = vunpack.c.l.b16 %v127
  %v791 = vunpack.c.l.b16 %v128
  %v792 = vunpack.c.l.b16 %v129
  %v793 = vunpack.c.l.b16 %v130
  %v794 = vunpack.c.l.b16 %v131
  %v795 = vunpack.c.l.b16 %v132
  %v796 = vunpack.c.l.b16 %v133
  %v797 = vunpack.c.l.b16 %v134
  %v798 = vunpack.c.l.b16 %v135
  %v799 = vunpack.c.l.b16 %v136
  %v800 = vunpack.c.l.b16 %v137
  %v801 = vunpack.c.l.b16 %v138
  %v802 = vunpack.c.l.b16 %v139
  %v803 = vunpack.c.l.b16 %v140
  %v804 = vunpack.c.l.b16 %v141
  %v805 = vunpack.c.l.b16 %v142
  %v806 = vunpack.c.l.b16 %v143
  %v807 = vunpack.c.l.b16 %v144
  %v808 = vunpack.c.l.b16 %v145
  %v809 = vunpack.c.l.b16 %v146
  %v810 = vunpack.c.l.b16 %v147
  %v811 = vunpack.c.l.b16 %v148
  %v812 = vunpack.c.l.b16 %v149
  %v813 = vunpack.c.l.b16 %v150
  %v814 = vunpack.c.l.b16 %v151
  %v815 = vunpack.c.l.b16 %v152
  %v816 = vunpack.c.l.b16 %v153
  %v817 = vunpack.c.l.b16 %v154
  %v818 = vunpack.c.l.b16 %v155
  %v819 = vunpack.c.l.b16 %v156
  %v820 = vunpack.c.l.b16 %v157
  %v821 = vunpack.c.l.b16 %v158
  %v822 = vunpack.c.l.b16 %v159
  %v823 = vunpack.c.l.b16 %v160
  %v824 = vunpack.c.l.b16 %v161
  %v825 = vunpack.c.l.b16 %v162
  %v826 = vunpack.c.l.b16 %v163
  %v827 = vunpack.c.l.b16 %v164
  %v828 = vunpack.c.l.b16 %v165
  %v829 = vunpack.c.l.b16 %v166
  %v830 = vunpack.c.l.b16 %v167
  %v831 = vunpack.c.l.b16 %v168
  %v832 = vunpack.c.l.b16 %v169
  %v833 = vunpack.c.l.b16 %v170
  %v834 = vunpack.c.l.b16 %v171
  %v835 = vunpack.c.l.b16 %v172
  %v836 = vunpack.c.l.b16 %v173
  %v837 = vunpack.c.l.b16 %v174
  %v838 = vunpack.c.l.b16 %v175
  %v839 = vunpack.c.l.b16 %v176
  %v840 = vunpack.c.l.b16 %v177
  %v841 = vunpack.c.l.b16 %v178
  %v842 = vunpack.c.l.b16 %v179
  %v843 = vunpack.c.l.b16 %v180
  %v844 = vunpack.c.l.b16 %v181
  %v845 = vunpack.c.l.b16 %v182
  %v846 = vunpack.c.l.b16 %v183
  %v847 = vunpack.c.l.b16 %v184
  %v848 = vunpack.c.l.b16 %v185
  %v849 = vunpack.c.l.b16 %v186
  %v850 = vunpack.c.l.b16 %v187
  %v851 = vunpack.c.l.b16 %v188
  %v852 = vunpack.c.l.b16 %v189
  %v853 = vunpack.c.l.b16 %v190
  %v854 = vunpack.c.l.b16 %v191
  %v855 = vunpack.c.l.b16 %v192
  %v856 = vunpack.c.l.b16 %v193
  %v857 = vunpack.c.l.b16 %v194
  %v858 = vunpack.c.l.b16 %v195
  %v859 = vunpack.c.l.b16 %v196
  %v860 = vunpack.c.l.b16 %v197
  %v861 = vunpack.c.l.b16 %v198
  %v862 = vunpack.c.l.b16 %v199
  %v863 = vunpack.c.l.b16 %v200
  %v864 = vunpack.c.l.b16 %v201
  %v865 = vunpack.c.l.b16 %v202
  %v866 = vunpack.c.l.b16 %v203
  %v867 = vunpack.c.l.b16 %v204
  %v868 = vunpack.c.l.b16 %v205
  %v869 = vunpack.c.l.b16 %v206
  %v870 = vunpack.c.l.b16 %v207
  %v871 = vunpack.c.l.b16 %v208
  %v872 = vunpack.c.l.b16 %v209
  %v873 = vunpack.c.l.b16 %v210
  %v874 = vunpack.c.l.b16 %v211
  %v875 = vunpack.c.l.b16 %v212
  %v876 = vunpack.c.l.b16 %v213
  %v877 = vunpack.c.l.b16 %v214
  %v878 = vunpack.c.l.b16 %v215
  %v879 = vunpack.c.l.b16 %v216
  %v880 = vunpack.c.l.b16 %v217
  %v881 = vunpack.c.l.b16 %v218
  %v882 = vunpack.c.l.b16 %v219
  %v883 = vunpack.c.l.b16 %v220
  %v884 = vunpack.c.l.b16 %v221
  %v885 = vunpack.c.l.b16 %v222
  %v886 = vunpack.c.l.b16 %v223
  %v887 = vunpack.c.l.b16 %v224
  %v888 = vunpack.c.l.b16 %v225
  %v889 = vunpack.c.l.b16 %v226
  %v890 = vunpack.c.l.b16 %v227
  %v891 = vunpack.c.l.b16 %v228
  %v892 = vunpack.c.l.b16 %v229
  %v893 = vunpack.c.l.b16 %v230
  %v894 = vunpack.c.l.b16 %v231
  %v895 = vunpack.c.l.b16 %v232
  %v896 = vunpack.c.l.b16 %v233
  %v897 = vunpack.c.l.b16 %v234
  %v898 = vunpack.c.l.b16 %v235
  %v899 = vunpack.c.l.b16 %v236
  %v900 = vunpack.c.l.b16 %v237
  %v901 = vunpack.c.l.b16 %v238
  %v902 = vpack.c.b16 %v759, %v758
  %v903 = vpack.c.b16 %v761, %v760
  %v904 = vpack.c.b16 %v763, %v762
  %v905 = vpack.c.b16 %v765, %v764
  %v906 = vpack.c.b16 %v767, %v766
  %v907 = vpack.c.b16 %v769, %v768
  %v908 = vpack.c.b16 %v771, %v770
  %v909 = vpack.c.b16 %v773, %v772
  %v910 = vpack.c.b16 %v775, %v774
  %v911 = vpack.c.b16 %v777, %v776
  %v912 = vpack.c.b16 %v779, %v778
  %v913 = vpack.c.b16 %v781, %v780
  %v914 = vpack.c.b16 %v783, %v782
  %v915 = vpack.c.b16 %v785, %v784
  %v916 = vpack.c.b16 %v787, %v786
  %v917 = vpack.c.b16 %v789, %v788
  %v918 = vpack.c.b16 %v791, %v790
  %v919 = vpack.c.b16 %v793, %v792
  %v920 = vpack.c.b16 %v795, %v794
  %v921 = vpack.c.b16 %v797, %v796
  %v922 = vpack.c.b16 %v799, %v798
  %v923 = vpack.c.b16 %v801, %v800
  %v924 = vpack.c.b16 %v803, %v802
  %v925 = vpack.c.b16 %v805, %v804
  %v926 = vpack.c.b16 %v807, %v806
  %v927 = vpack.c.b16 %v809, %v808
  %v928 = vpack.c.b16 %v811, %v810
  %v929 = vpack.c.b16 %v813, %v812
  %v930 = vpack.c.b16 %v815, %v814
  %v931 = vpack.c.b16 %v817, %v816
  %v932 = vpack.c.b16 %v819, %v818
  %v933 = vpack.c.b16 %v821, %v820
  %v934 = vpack.c.b16 %v823, %v822
  %v935 = vpack.c.b16 %v825, %v824
  %v936 = vpack.c.b16 %v827, %v826
  %v937 = vpack.c.b16 %v829, %v828
  %v938 = vpack.c.b16 %v831, %v830
  %v939 = vpack.c.b16 %v833, %v832
  %v940 = vpack.c.b16 %v835, %v834
  %v941 = vpack.c.b16 %v837, %v836
  %v942 = vpack.c.b16 %v839, %v838
  %v943 = vpack.c.b16 %v841, %v840
  %v944 = vpack.c.b16 %v843, %v842
  %v945 = vpack.c.b16 %v845, %v844
  %v946 = vpack.c.b16 %v847, %v846
  %v947 = vpack.c.b16 %v849, %v848
  %v948 = vpack.c.b16 %v851, %v850
  %v949 = vpack.c.b16 %v853, %v852
  %v950 = vpack.c.b16 %v855, %v854
  %v951 = vpack.c.b16 %v857, %v856
  %v952 = vpack.c.b16 %v859, %v858
  %v953 = vpack.c.b16 %v861, %v860
  %v954 = vpack.c.b16 %v863, %v862
  %v955 = vpack.c.b16 %v865, %v864
  %v956 = vpack.c.b16 %v867, %v866
  %v957 = vpack.c.b16 %v869, %v868
  %v958 = vpack.c.b16 %v871, %v870
  %v959 = vpack.c.b16 %v873, %v872
  %v960 = vpack.c.b16 %v875, %v874
  %v961 = vpack.c.b16 %v877, %v876
  %v962 = vpack.c.b16 %v879, %v878
  %v963 = vpack.c.b16 %v881, %v880
  %v964 = vpack.c.b16 %v883, %v882
  %v965 = vpack.c.b16 %v885, %v884
  %v966 = vpack.c.b16 %v887, %v886
  %v967 = vpack.c.b16 %v889, %v888
  %v968 = vpack.c.b16 %v891, %v890
  %v969 = vpack.c.b16 %v893, %v892
  %v970 = vpack.c.b16 %v895, %v894
  %v971 = vpack.c.b16 %v897, %v896
  %v972 = vpack.c.b16 %v899, %v898
  %v973 = vpack.c.b16 %v901, %v900
  %1046 = vmatprep.subr.bf16.mxu0 0
  %1047 = vmatpush1.bf16.msra.mxu0 %v909
  %1048 = vmatprep.subr.bf16.mxu0 0
  %1049 = vmatpush1.bf16.msra.mxu0 %v908
  %1050 = vmatprep.subr.bf16.mxu0 0
  %1051 = vmatpush1.bf16.msra.mxu0 %v907
  %1052 = vmatprep.subr.bf16.mxu0 0
  %1053 = vmatpush1.bf16.msra.mxu0 %v906
  %1054 = vmatprep.subr.bf16.mxu0 0
  %1055 = vmatpush1.bf16.msra.mxu0 %v905
  %1056 = vmatprep.subr.bf16.mxu0 0
  %1057 = vmatpush1.bf16.msra.mxu0 %v904
  %1058 = vmatprep.subr.bf16.mxu0 0
  %1059 = vmatpush1.bf16.msra.mxu0 %v903
  %1060 = vmatprep.subr.bf16.mxu0 0
  %1061 = vmatpush1.bf16.msra.mxu0 %v902
  %1062 = vmatprep.subr.bf16.mxu0 0
  %1063 = vmatpush2.bf16.msra.mxu0 %v917
  %1064 = vmatprep.subr.bf16.mxu0 0
  %1065 = vmatpush2.bf16.msra.mxu0 %v916
  %1066 = vmatprep.subr.bf16.mxu0 0
  %1067 = vmatpush2.bf16.msra.mxu0 %v915
  %1068 = vmatprep.subr.bf16.mxu0 0
  %1069 = vmatpush2.bf16.msra.mxu0 %v914
  %1070 = vmatprep.subr.bf16.mxu0 0
  %1071 = vmatpush2.bf16.msra.mxu0 %v913
  %1072 = vmatprep.subr.bf16.mxu0 0
  %1073 = vmatpush2.bf16.msra.mxu0 %v912
  %1074 = vmatprep.subr.bf16.mxu0 0
  %1075 = vmatpush2.bf16.msra.mxu0 %v911
  %1076 = vmatprep.subr.bf16.mxu0 0
  %1077 = vmatpush2.bf16.msra.mxu0 %v910
  %1078 = vmatprep.mubr.bf16.mxu0 %v471
  %1079 = vmatmul.mubr.bf16.gmra.mxu0 %v470
  %v1080 = vpop.f32.mrf.mxu0
  %v1081 = vadd.f32 %v244, %v1080
  %v1082 = vpop.f32.mrf.mxu0
  %v1083 = vpop.f32.mrf.mxu0
  %v1084 = vadd.f32 %v244, %v1083
  %v1085 = vpop.f32.mrf.mxu0
  %1086 = vmatprep.mubr.bf16.mxu0 %v480
  %1087 = vmatmul.mubr.bf16.gmra.mxu0 %v479
  %v1088 = vpop.f32.mrf.mxu0
  %v1089 = vadd.f32 %v244, %v1088
  %v1090 = vpop.f32.mrf.mxu0
  %v1091 = vpop.f32.mrf.mxu0
  %v1092 = vadd.f32 %v244, %v1091
  %v1093 = vpop.f32.mrf.mxu0
  %1094 = vmatprep.mubr.bf16.mxu0 %v489
  %1095 = vmatmul.mubr.bf16.gmra.mxu0 %v488
  %v1096 = vpop.f32.mrf.mxu0
  %v1097 = vadd.f32 %v244, %v1096
  %v1098 = vpop.f32.mrf.mxu0
  %v1099 = vpop.f32.mrf.mxu0
  %v1100 = vadd.f32 %v244, %v1099
  %v1101 = vpop.f32.mrf.mxu0
  %1102 = vmatprep.mubr.bf16.mxu0 %v498
  %1103 = vmatmul.mubr.bf16.gmra.mxu0 %v497
  %v1104 = vpop.f32.mrf.mxu0
  %v1105 = vadd.f32 %v244, %v1104
  %v1106 = vpop.f32.mrf.mxu0
  %v1107 = vpop.f32.mrf.mxu0
  %v1108 = vadd.f32 %v244, %v1107
  %v1109 = vpop.f32.mrf.mxu0
  %1110 = vmatprep.mubr.bf16.mxu0 %v507
  %1111 = vmatmul.mubr.bf16.gmra.mxu0 %v506
  %v1112 = vpop.f32.mrf.mxu0
  %v1113 = vadd.f32 %v244, %v1112
  %v1114 = vpop.f32.mrf.mxu0
  %v1115 = vpop.f32.mrf.mxu0
  %v1116 = vadd.f32 %v244, %v1115
  %v1117 = vpop.f32.mrf.mxu0
  %1118 = vmatprep.mubr.bf16.mxu0 %v516
  %1119 = vmatmul.mubr.bf16.gmra.mxu0 %v515
  %v1120 = vpop.f32.mrf.mxu0
  %v1121 = vadd.f32 %v244, %v1120
  %v1122 = vpop.f32.mrf.mxu0
  %v1123 = vpop.f32.mrf.mxu0
  %v1124 = vadd.f32 %v244, %v1123
  %v1125 = vpop.f32.mrf.mxu0
  %1126 = vmatprep.mubr.bf16.mxu0 %v525
  %1127 = vmatmul.mubr.bf16.gmra.mxu0 %v524
  %v1128 = vpop.f32.mrf.mxu0
  %v1129 = vadd.f32 %v244, %v1128
  %v1130 = vpop.f32.mrf.mxu0
  %v1131 = vpop.f32.mrf.mxu0
  %v1132 = vadd.f32 %v244, %v1131
  %v1133 = vpop.f32.mrf.mxu0
  %1134 = vmatprep.mubr.bf16.mxu0 %v534
  %1135 = vmatmul.mubr.bf16.gmra.mxu0 %v533
  %v1136 = vpop.f32.mrf.mxu0
  %v1137 = vadd.f32 %v244, %v1136
  %v1138 = vpop.f32.mrf.mxu0
  %v1139 = vpop.f32.mrf.mxu0
  %v1140 = vadd.f32 %v244, %v1139
  %v1141 = vpop.f32.mrf.mxu0
  %1142 = vdwg.mxu0
  %1143 = vmatprep.subr.bf16.mxu0 0
  %1144 = vmatpush1.bf16.msra.mxu0 %v925
  %1145 = vmatprep.subr.bf16.mxu0 0
  %1146 = vmatpush1.bf16.msra.mxu0 %v924
  %1147 = vmatprep.subr.bf16.mxu0 0
  %1148 = vmatpush1.bf16.msra.mxu0 %v923
  %1149 = vmatprep.subr.bf16.mxu0 0
  %1150 = vmatpush1.bf16.msra.mxu0 %v922
  %1151 = vmatprep.subr.bf16.mxu0 0
  %1152 = vmatpush1.bf16.msra.mxu0 %v921
  %1153 = vmatprep.subr.bf16.mxu0 0
  %1154 = vmatpush1.bf16.msra.mxu0 %v920
  %1155 = vmatprep.subr.bf16.mxu0 0
  %1156 = vmatpush1.bf16.msra.mxu0 %v919
  %1157 = vmatprep.subr.bf16.mxu0 0
  %1158 = vmatpush1.bf16.msra.mxu0 %v918
  %1159 = vmatprep.subr.bf16.mxu0 0
  %1160 = vmatpush2.bf16.msra.mxu0 %v933
  %1161 = vmatprep.subr.bf16.mxu0 0
  %1162 = vmatpush2.bf16.msra.mxu0 %v932
  %1163 = vmatprep.subr.bf16.mxu0 0
  %1164 = vmatpush2.bf16.msra.mxu0 %v931
  %1165 = vmatprep.subr.bf16.mxu0 0
  %1166 = vmatpush2.bf16.msra.mxu0 %v930
  %1167 = vmatprep.subr.bf16.mxu0 0
  %1168 = vmatpush2.bf16.msra.mxu0 %v929
  %1169 = vmatprep.subr.bf16.mxu0 0
  %1170 = vmatpush2.bf16.msra.mxu0 %v928
  %1171 = vmatprep.subr.bf16.mxu0 0
  %1172 = vmatpush2.bf16.msra.mxu0 %v927
  %1173 = vmatprep.subr.bf16.mxu0 0
  %1174 = vmatpush2.bf16.msra.mxu0 %v926
  %1175 = vmatprep.mubr.bf16.mxu0 %v473
  %1176 = vmatmul.mubr.bf16.gmra.mxu0 %v472
  %v1177 = vpop.f32.mrf.mxu0
  %v1178 = vadd.f32 %v1081, %v1177
  %v1179 = vpop.f32.mrf.mxu0
  %v1180 = vpop.f32.mrf.mxu0
  %v1181 = vadd.f32 %v1084, %v1180
  %v1182 = vpop.f32.mrf.mxu0
  %1183 = vmatprep.mubr.bf16.mxu0 %v482
  %1184 = vmatmul.mubr.bf16.gmra.mxu0 %v481
  %v1185 = vpop.f32.mrf.mxu0
  %v1186 = vadd.f32 %v1089, %v1185
  %v1187 = vpop.f32.mrf.mxu0
  %v1188 = vpop.f32.mrf.mxu0
  %v1189 = vadd.f32 %v1092, %v1188
  %v1190 = vpop.f32.mrf.mxu0
  %1191 = vmatprep.mubr.bf16.mxu0 %v491
  %1192 = vmatmul.mubr.bf16.gmra.mxu0 %v490
  %v1193 = vpop.f32.mrf.mxu0
  %v1194 = vadd.f32 %v1097, %v1193
  %v1195 = vpop.f32.mrf.mxu0
  %v1196 = vpop.f32.mrf.mxu0
  %v1197 = vadd.f32 %v1100, %v1196
  %v1198 = vpop.f32.mrf.mxu0
  %1199 = vmatprep.mubr.bf16.mxu0 %v500
  %1200 = vmatmul.mubr.bf16.gmra.mxu0 %v499
  %v1201 = vpop.f32.mrf.mxu0
  %v1202 = vadd.f32 %v1105, %v1201
  %v1203 = vpop.f32.mrf.mxu0
  %v1204 = vpop.f32.mrf.mxu0
  %v1205 = vadd.f32 %v1108, %v1204
  %v1206 = vpop.f32.mrf.mxu0
  %1207 = vmatprep.mubr.bf16.mxu0 %v509
  %1208 = vmatmul.mubr.bf16.gmra.mxu0 %v508
  %v1209 = vpop.f32.mrf.mxu0
  %v1210 = vadd.f32 %v1113, %v1209
  %v1211 = vpop.f32.mrf.mxu0
  %v1212 = vpop.f32.mrf.mxu0
  %v1213 = vadd.f32 %v1116, %v1212
  %v1214 = vpop.f32.mrf.mxu0
  %1215 = vmatprep.mubr.bf16.mxu0 %v518
  %1216 = vmatmul.mubr.bf16.gmra.mxu0 %v517
  %v1217 = vpop.f32.mrf.mxu0
  %v1218 = vadd.f32 %v1121, %v1217
  %v1219 = vpop.f32.mrf.mxu0
  %v1220 = vpop.f32.mrf.mxu0
  %v1221 = vadd.f32 %v1124, %v1220
  %v1222 = vpop.f32.mrf.mxu0
  %1223 = vmatprep.mubr.bf16.mxu0 %v527
  %1224 = vmatmul.mubr.bf16.gmra.mxu0 %v526
  %v1225 = vpop.f32.mrf.mxu0
  %v1226 = vadd.f32 %v1129, %v1225
  %v1227 = vpop.f32.mrf.mxu0
  %v1228 = vpop.f32.mrf.mxu0
  %v1229 = vadd.f32 %v1132, %v1228
  %v1230 = vpop.f32.mrf.mxu0
  %1231 = vmatprep.mubr.bf16.mxu0 %v536
  %1232 = vmatmul.mubr.bf16.gmra.mxu0 %v535
  %v1233 = vpop.f32.mrf.mxu0
  %v1234 = vadd.f32 %v1137, %v1233
  %v1235 = vpop.f32.mrf.mxu0
  %v1236 = vpop.f32.mrf.mxu0
  %v1237 = vadd.f32 %v1140, %v1236
  %v1238 = vpop.f32.mrf.mxu0
  %1239 = vdwg.mxu0
  %1240 = vmatprep.subr.bf16.mxu0 0
  %1241 = vmatpush1.bf16.msra.mxu0 %v941
  %1242 = vmatprep.subr.bf16.mxu0 0
  %1243 = vmatpush1.bf16.msra.mxu0 %v940
  %1244 = vmatprep.subr.bf16.mxu0 0
  %1245 = vmatpush1.bf16.msra.mxu0 %v939
  %1246 = vmatprep.subr.bf16.mxu0 0
  %1247 = vmatpush1.bf16.msra.mxu0 %v938
  %1248 = vmatprep.subr.bf16.mxu0 0
  %1249 = vmatpush1.bf16.msra.mxu0 %v937
  %1250 = vmatprep.subr.bf16.mxu0 0
  %1251 = vmatpush1.bf16.msra.mxu0 %v936
  %1252 = vmatprep.subr.bf16.mxu0 0
  %1253 = vmatpush1.bf16.msra.mxu0 %v935
  %1254 = vmatprep.subr.bf16.mxu0 0
  %1255 = vmatpush1.bf16.msra.mxu0 %v934
  %1256 = vmatprep.subr.bf16.mxu0 0
  %1257 = vmatpush2.bf16.msra.mxu0 %v949
  %1258 = vmatprep.subr.bf16.mxu0 0
  %1259 = vmatpush2.bf16.msra.mxu0 %v948
  %1260 = vmatprep.subr.bf16.mxu0 0
  %1261 = vmatpush2.bf16.msra.mxu0 %v947
  %1262 = vmatprep.subr.bf16.mxu0 0
  %1263 = vmatpush2.bf16.msra.mxu0 %v946
  %1264 = vmatprep.subr.bf16.mxu0 0
  %1265 = vmatpush2.bf16.msra.mxu0 %v945
  %1266 = vmatprep.subr.bf16.mxu0 0
  %1267 = vmatpush2.bf16.msra.mxu0 %v944
  %1268 = vmatprep.subr.bf16.mxu0 0
  %1269 = vmatpush2.bf16.msra.mxu0 %v943
  %1270 = vmatprep.subr.bf16.mxu0 0
  %1271 = vmatpush2.bf16.msra.mxu0 %v942
  %1272 = vmatprep.mubr.bf16.mxu0 %v475
  %1273 = vmatmul.mubr.bf16.gmra.mxu0 %v474
  %v1274 = vpop.f32.mrf.mxu0
  %v1275 = vadd.f32 %v1178, %v1274
  %v1276 = vpop.f32.mrf.mxu0
  %v1277 = vpop.f32.mrf.mxu0
  %v1278 = vadd.f32 %v1181, %v1277
  %v1279 = vpop.f32.mrf.mxu0
  %1280 = vmatprep.mubr.bf16.mxu0 %v484
  %1281 = vmatmul.mubr.bf16.gmra.mxu0 %v483
  %v1282 = vpop.f32.mrf.mxu0
  %v1283 = vadd.f32 %v1186, %v1282
  %v1284 = vpop.f32.mrf.mxu0
  %v1285 = vpop.f32.mrf.mxu0
  %v1286 = vadd.f32 %v1189, %v1285
  %v1287 = vpop.f32.mrf.mxu0
  %1288 = vmatprep.mubr.bf16.mxu0 %v493
  %1289 = vmatmul.mubr.bf16.gmra.mxu0 %v492
  %v1290 = vpop.f32.mrf.mxu0
  %v1291 = vadd.f32 %v1194, %v1290
  %v1292 = vpop.f32.mrf.mxu0
  %v1293 = vpop.f32.mrf.mxu0
  %v1294 = vadd.f32 %v1197, %v1293
  %v1295 = vpop.f32.mrf.mxu0
  %1296 = vmatprep.mubr.bf16.mxu0 %v502
  %1297 = vmatmul.mubr.bf16.gmra.mxu0 %v501
  %v1298 = vpop.f32.mrf.mxu0
  %v1299 = vadd.f32 %v1202, %v1298
  %v1300 = vpop.f32.mrf.mxu0
  %v1301 = vpop.f32.mrf.mxu0
  %v1302 = vadd.f32 %v1205, %v1301
  %v1303 = vpop.f32.mrf.mxu0
  %1304 = vmatprep.mubr.bf16.mxu0 %v511
  %1305 = vmatmul.mubr.bf16.gmra.mxu0 %v510
  %v1306 = vpop.f32.mrf.mxu0
  %v1307 = vadd.f32 %v1210, %v1306
  %v1308 = vpop.f32.mrf.mxu0
  %v1309 = vpop.f32.mrf.mxu0
  %v1310 = vadd.f32 %v1213, %v1309
  %v1311 = vpop.f32.mrf.mxu0
  %1312 = vmatprep.mubr.bf16.mxu0 %v520
  %1313 = vmatmul.mubr.bf16.gmra.mxu0 %v519
  %v1314 = vpop.f32.mrf.mxu0
  %v1315 = vadd.f32 %v1218, %v1314
  %v1316 = vpop.f32.mrf.mxu0
  %v1317 = vpop.f32.mrf.mxu0
  %v1318 = vadd.f32 %v1221, %v1317
  %v1319 = vpop.f32.mrf.mxu0
  %1320 = vmatprep.mubr.bf16.mxu0 %v529
  %1321 = vmatmul.mubr.bf16.gmra.mxu0 %v528
  %v1322 = vpop.f32.mrf.mxu0
  %v1323 = vadd.f32 %v1226, %v1322
  %v1324 = vpop.f32.mrf.mxu0
  %v1325 = vpop.f32.mrf.mxu0
  %v1326 = vadd.f32 %v1229, %v1325
  %v1327 = vpop.f32.mrf.mxu0
  %1328 = vmatprep.mubr.bf16.mxu0 %v538
  %1329 = vmatmul.mubr.bf16.gmra.mxu0 %v537
  %v1330 = vpop.f32.mrf.mxu0
  %v1331 = vadd.f32 %v1234, %v1330
  %v1332 = vpop.f32.mrf.mxu0
  %v1333 = vpop.f32.mrf.mxu0
  %v1334 = vadd.f32 %v1237, %v1333
  %v1335 = vpop.f32.mrf.mxu0
  %1336 = vdwg.mxu0
  %1337 = vmatprep.subr.bf16.mxu0 0
  %1338 = vmatpush1.bf16.msra.mxu0 %v957
  %1339 = vmatprep.subr.bf16.mxu0 0
  %1340 = vmatpush1.bf16.msra.mxu0 %v956
  %1341 = vmatprep.subr.bf16.mxu0 0
  %1342 = vmatpush1.bf16.msra.mxu0 %v955
  %1343 = vmatprep.subr.bf16.mxu0 0
  %1344 = vmatpush1.bf16.msra.mxu0 %v954
  %1345 = vmatprep.subr.bf16.mxu0 0
  %1346 = vmatpush1.bf16.msra.mxu0 %v953
  %1347 = vmatprep.subr.bf16.mxu0 0
  %1348 = vmatpush1.bf16.msra.mxu0 %v952
  %1349 = vmatprep.subr.bf16.mxu0 0
  %1350 = vmatpush1.bf16.msra.mxu0 %v951
  %1351 = vmatprep.subr.bf16.mxu0 0
  %1352 = vmatpush1.bf16.msra.mxu0 %v950
  %1353 = vmatprep.subr.bf16.mxu0 0
  %1354 = vmatpush2.bf16.msra.mxu0 %v965
  %1355 = vmatprep.subr.bf16.mxu0 0
  %1356 = vmatpush2.bf16.msra.mxu0 %v964
  %1357 = vmatprep.subr.bf16.mxu0 0
  %1358 = vmatpush2.bf16.msra.mxu0 %v963
  %1359 = vmatprep.subr.bf16.mxu0 0
  %1360 = vmatpush2.bf16.msra.mxu0 %v962
  %1361 = vmatprep.subr.bf16.mxu0 0
  %1362 = vmatpush2.bf16.msra.mxu0 %v961
  %1363 = vmatprep.subr.bf16.mxu0 0
  %1364 = vmatpush2.bf16.msra.mxu0 %v960
  %1365 = vmatprep.subr.bf16.mxu0 0
  %1366 = vmatpush2.bf16.msra.mxu0 %v959
  %1367 = vmatprep.subr.bf16.mxu0 0
  %1368 = vmatpush2.bf16.msra.mxu0 %v958
  %1369 = vmatprep.mubr.bf16.mxu0 %v477
  %1370 = vmatmul.mubr.bf16.gmra.mxu0 %v476
  %v1371 = vpop.f32.mrf.mxu0
  %v1372 = vadd.f32 %v1275, %v1371
  %v1373 = vpop.f32.mrf.mxu0
  %v1374 = vpop.f32.mrf.mxu0
  %v1375 = vadd.f32 %v1278, %v1374
  %v1376 = vpop.f32.mrf.mxu0
  %1377 = vmatprep.mubr.bf16.mxu0 %v486
  %1378 = vmatmul.mubr.bf16.gmra.mxu0 %v485
  %v1379 = vpop.f32.mrf.mxu0
  %v1380 = vadd.f32 %v1283, %v1379
  %v1381 = vpop.f32.mrf.mxu0
  %v1382 = vpop.f32.mrf.mxu0
  %v1383 = vadd.f32 %v1286, %v1382
  %v1384 = vpop.f32.mrf.mxu0
  %1385 = vmatprep.mubr.bf16.mxu0 %v495
  %1386 = vmatmul.mubr.bf16.gmra.mxu0 %v494
  %v1387 = vpop.f32.mrf.mxu0
  %v1388 = vadd.f32 %v1291, %v1387
  %v1389 = vpop.f32.mrf.mxu0
  %v1390 = vpop.f32.mrf.mxu0
  %v1391 = vadd.f32 %v1294, %v1390
  %v1392 = vpop.f32.mrf.mxu0
  %1393 = vmatprep.mubr.bf16.mxu0 %v504
  %1394 = vmatmul.mubr.bf16.gmra.mxu0 %v503
  %v1395 = vpop.f32.mrf.mxu0
  %v1396 = vadd.f32 %v1299, %v1395
  %v1397 = vpop.f32.mrf.mxu0
  %v1398 = vpop.f32.mrf.mxu0
  %v1399 = vadd.f32 %v1302, %v1398
  %v1400 = vpop.f32.mrf.mxu0
  %1401 = vmatprep.mubr.bf16.mxu0 %v513
  %1402 = vmatmul.mubr.bf16.gmra.mxu0 %v512
  %v1403 = vpop.f32.mrf.mxu0
  %v1404 = vadd.f32 %v1307, %v1403
  %v1405 = vpop.f32.mrf.mxu0
  %v1406 = vpop.f32.mrf.mxu0
  %v1407 = vadd.f32 %v1310, %v1406
  %v1408 = vpop.f32.mrf.mxu0
  %1409 = vmatprep.mubr.bf16.mxu0 %v522
  %1410 = vmatmul.mubr.bf16.gmra.mxu0 %v521
  %v1411 = vpop.f32.mrf.mxu0
  %v1412 = vadd.f32 %v1315, %v1411
  %v1413 = vpop.f32.mrf.mxu0
  %v1414 = vpop.f32.mrf.mxu0
  %v1415 = vadd.f32 %v1318, %v1414
  %v1416 = vpop.f32.mrf.mxu0
  %1417 = vmatprep.mubr.bf16.mxu0 %v531
  %1418 = vmatmul.mubr.bf16.gmra.mxu0 %v530
  %v1419 = vpop.f32.mrf.mxu0
  %v1420 = vadd.f32 %v1323, %v1419
  %v1421 = vpop.f32.mrf.mxu0
  %v1422 = vpop.f32.mrf.mxu0
  %v1423 = vadd.f32 %v1326, %v1422
  %v1424 = vpop.f32.mrf.mxu0
  %1425 = vmatprep.mubr.bf16.mxu0 %v540
  %1426 = vmatmul.mubr.bf16.gmra.mxu0 %v539
  %v1427 = vpop.f32.mrf.mxu0
  %v1428 = vadd.f32 %v1331, %v1427
  %v1429 = vpop.f32.mrf.mxu0
  %v1430 = vpop.f32.mrf.mxu0
  %v1431 = vadd.f32 %v1334, %v1430
  %v1432 = vpop.f32.mrf.mxu0
  %1433 = vdwg.mxu0
  %1434 = vmatprep.subr.bf16.mxu0 0
  %1435 = vmatpush1.bf16.msra.mxu0 %v973
  %1436 = vmatprep.subr.bf16.mxu0 0
  %1437 = vmatpush1.bf16.msra.mxu0 %v972
  %1438 = vmatprep.subr.bf16.mxu0 0
  %1439 = vmatpush1.bf16.msra.mxu0 %v971
  %1440 = vmatprep.subr.bf16.mxu0 0
  %1441 = vmatpush1.bf16.msra.mxu0 %v970
  %1442 = vmatprep.subr.bf16.mxu0 0
  %1443 = vmatpush1.bf16.msra.mxu0 %v969
  %1444 = vmatprep.subr.bf16.mxu0 0
  %1445 = vmatpush1.bf16.msra.mxu0 %v968
  %1446 = vmatprep.subr.bf16.mxu0 0
  %1447 = vmatpush1.bf16.msra.mxu0 %v967
  %1448 = vmatprep.subr.bf16.mxu0 0
  %1449 = vmatpush1.bf16.msra.mxu0 %v966
  %1450 = vmatprep.subr.bf16.mxu0 0
  %1451 = vmatpush2.bf16.msra.mxu0 0
  %1452 = vmatprep.subr.bf16.mxu0 0
  %1453 = vmatpush2.bf16.msra.mxu0 0
  %1454 = vmatprep.subr.bf16.mxu0 0
  %1455 = vmatpush2.bf16.msra.mxu0 0
  %1456 = vmatprep.subr.bf16.mxu0 0
  %1457 = vmatpush2.bf16.msra.mxu0 0
  %1458 = vmatprep.subr.bf16.mxu0 0
  %1459 = vmatpush2.bf16.msra.mxu0 0
  %1460 = vmatprep.subr.bf16.mxu0 0
  %1461 = vmatpush2.bf16.msra.mxu0 0
  %1462 = vmatprep.subr.bf16.mxu0 0
  %1463 = vmatpush2.bf16.msra.mxu0 0
  %1464 = vmatprep.subr.bf16.mxu0 0
  %1465 = vmatpush2.bf16.msra.mxu0 0
  %1466 = vmatprep.mubr.bf16.mxu0 0
  %1467 = vmatmul.mubr.bf16.gmra.mxu0 %v478
  %v1468 = vpop.f32.mrf.mxu0
  %v1469 = vadd.f32 %v1372, %v1468
  %v1470 = vpop.f32.mrf.mxu0
  %v1471 = vpop.f32.mrf.mxu0
  %v1472 = vadd.f32 %v1375, %v1471
  %v1473 = vpop.f32.mrf.mxu0
  %1474 = vmatprep.mubr.bf16.mxu0 0
  %1475 = vmatmul.mubr.bf16.gmra.mxu0 %v487
  %v1476 = vpop.f32.mrf.mxu0
  %v1477 = vadd.f32 %v1380, %v1476
  %v1478 = vpop.f32.mrf.mxu0
  %v1479 = vpop.f32.mrf.mxu0
  %v1480 = vadd.f32 %v1383, %v1479
  %v1481 = vpop.f32.mrf.mxu0
  %1482 = vmatprep.mubr.bf16.mxu0 0
  %1483 = vmatmul.mubr.bf16.gmra.mxu0 %v496
  %v1484 = vpop.f32.mrf.mxu0
  %v1485 = vadd.f32 %v1388, %v1484
  %v1486 = vpop.f32.mrf.mxu0
  %v1487 = vpop.f32.mrf.mxu0
  %v1488 = vadd.f32 %v1391, %v1487
  %v1489 = vpop.f32.mrf.mxu0
  %1490 = vmatprep.mubr.bf16.mxu0 0
  %1491 = vmatmul.mubr.bf16.gmra.mxu0 %v505
  %v1492 = vpop.f32.mrf.mxu0
  %v1493 = vadd.f32 %v1396, %v1492
  %v1494 = vpop.f32.mrf.mxu0
  %v1495 = vpop.f32.mrf.mxu0
  %v1496 = vadd.f32 %v1399, %v1495
  %v1497 = vpop.f32.mrf.mxu0
  %1498 = vmatprep.mubr.bf16.mxu0 0
  %1499 = vmatmul.mubr.bf16.gmra.mxu0 %v514
  %v1500 = vpop.f32.mrf.mxu0
  %v1501 = vadd.f32 %v1404, %v1500
  %v1502 = vpop.f32.mrf.mxu0
  %v1503 = vpop.f32.mrf.mxu0
  %v1504 = vadd.f32 %v1407, %v1503
  %v1505 = vpop.f32.mrf.mxu0
  %1506 = vmatprep.mubr.bf16.mxu0 0
  %1507 = vmatmul.mubr.bf16.gmra.mxu0 %v523
  %v1508 = vpop.f32.mrf.mxu0
  %v1509 = vadd.f32 %v1412, %v1508
  %v1510 = vpop.f32.mrf.mxu0
  %v1511 = vpop.f32.mrf.mxu0
  %v1512 = vadd.f32 %v1415, %v1511
  %v1513 = vpop.f32.mrf.mxu0
  %1514 = vmatprep.mubr.bf16.mxu0 0
  %1515 = vmatmul.mubr.bf16.gmra.mxu0 %v532
  %v1516 = vpop.f32.mrf.mxu0
  %v1517 = vadd.f32 %v1420, %v1516
  %v1518 = vpop.f32.mrf.mxu0
  %v1519 = vpop.f32.mrf.mxu0
  %v1520 = vadd.f32 %v1423, %v1519
  %v1521 = vpop.f32.mrf.mxu0
  %1522 = vmatprep.mubr.bf16.mxu0 0
  %1523 = vmatmul.mubr.bf16.gmra.mxu0 %v541
  %v1524 = vpop.f32.mrf.mxu0
  %v1525 = vadd.f32 %v1428, %v1524
  %v1526 = vpop.f32.mrf.mxu0
  %v1527 = vpop.f32.mrf.mxu0
  %v1528 = vadd.f32 %v1431, %v1527
  %v1529 = vpop.f32.mrf.mxu0
  %1530 = vdwg.mxu0
  %v1531 = vmax.f32 %v1469, 0.0
  %v1532 = vmax.f32 %v1472, 0.0
  %v1533 = vmax.f32 %v1477, 0.0
  %v1534 = vmax.f32 %v1480, 0.0
  %v1535 = vmax.f32 %v1485, 0.0
  %v1536 = vmax.f32 %v1488, 0.0
  %v1537 = vmax.f32 %v1493, 0.0
  %v1538 = vmax.f32 %v1496, 0.0
  %v1539 = vmax.f32 %v1501, 0.0
  %v1540 = vmax.f32 %v1504, 0.0
  %v1541 = vmax.f32 %v1509, 0.0
  %v1542 = vmax.f32 %v1512, 0.0
  %v1543 = vmax.f32 %v1517, 0.0
  %v1544 = vmax.f32 %v1520, 0.0
  %v1545 = vmax.f32 %v1525, 0.0
  %v1546 = vmax.f32 %v1528, 0.0
  %v1547 = vpack.c.bf16 %v1532, %v1531
  %v1548 = vpack.c.bf16 %v1534, %v1533
  %v1549 = vpack.c.bf16 %v1536, %v1535
  %v1550 = vpack.c.bf16 %v1538, %v1537
  %v1551 = vpack.c.bf16 %v1540, %v1539
  %v1552 = vpack.c.bf16 %v1542, %v1541
  %v1553 = vpack.c.bf16 %v1544, %v1543
  %v1554 = vpack.c.bf16 %v1546, %v1545
  %v1563 = vunpack.c.l.b16 %v1547
  %v1564 = vunpack.c.h.b16 %v1547
  %v1565 = vunpack.c.l.b16 %v1548
  %v1566 = vunpack.c.h.b16 %v1548
  %v1567 = vunpack.c.l.b16 %v1549
  %v1568 = vunpack.c.h.b16 %v1549
  %v1569 = vunpack.c.l.b16 %v1550
  %v1570 = vunpack.c.h.b16 %v1550
  %v1571 = vunpack.c.l.b16 %v1551
  %v1572 = vunpack.c.h.b16 %v1551
  %v1573 = vunpack.c.l.b16 %v1552
  %v1574 = vunpack.c.h.b16 %v1552
  %v1575 = vunpack.c.l.b16 %v1553
  %v1576 = vunpack.c.h.b16 %v1553
  %v1577 = vunpack.c.l.b16 %v1554
  %v1578 = vunpack.c.h.b16 %v1554
  %v1579 = vpack.c.b16 %v1563, %v1563
  %v1580 = vpack.c.b16 %v1564, %v1564
  %v1581 = vpack.c.b16 %v1565, %v1565
  %v1582 = vpack.c.b16 %v1566, %v1566
  %v1583 = vpack.c.b16 %v1567, %v1567
  %v1584 = vpack.c.b16 %v1568, %v1568
  %v1585 = vpack.c.b16 %v1569, %v1569
  %v1586 = vpack.c.b16 %v1570, %v1570
  %v1587 = vpack.c.b16 %v1571, %v1571
  %v1588 = vpack.c.b16 %v1572, %v1572
  %v1589 = vpack.c.b16 %v1573, %v1573
  %v1590 = vpack.c.b16 %v1574, %v1574
  %v1591 = vpack.c.b16 %v1575, %v1575
  %v1592 = vpack.c.b16 %v1576, %v1576
  %v1593 = vpack.c.b16 %v1577, %v1577
  %v1594 = vpack.c.b16 %v1578, %v1578
  %1611 = vst [vmem:[%s3] sm:$0xf] %v1579
  %1612 = vst [vmem:[%s3 + $0x4] sm:$0xf] %v1580
  %1613 = vst [vmem:[%s3 + $0x8] sm:$0xf] %v1581
  %1614 = vst [vmem:[%s3 + $0xc] sm:$0xf] %v1582
  %1615 = vst [vmem:[%s3 + $0x10] sm:$0xf] %v1583
  %1616 = vst [vmem:[%s3 + $0x14] sm:$0xf] %v1584
  %1617 = vst [vmem:[%s3 + $0x18] sm:$0xf] %v1585
  %1618 = vst [vmem:[%s3 + $0x1c] sm:$0xf] %v1586
  %1619 = vst [vmem:[%s3 + $0x20] sm:$0xf] %v1587
  %1620 = vst [vmem:[%s3 + $0x24] sm:$0xf] %v1588
  %1621 = vst [vmem:[%s3 + $0x28] sm:$0xf] %v1589
  %1622 = vst [vmem:[%s3 + $0x2c] sm:$0xf] %v1590
  %1623 = vst [vmem:[%s3 + $0x30] sm:$0xf] %v1591
  %1624 = vst [vmem:[%s3 + $0x34] sm:$0xf] %v1592
  %1625 = vst [vmem:[%s3 + $0x38] sm:$0xf] %v1593
  %1626 = vst [vmem:[%s3 + $0x3c] sm:$0xf] %v1594
  // Predicated region
  $region14: #{_lambda_.33} parent=0 // pred_check
    _
  $region15: #{_lambda_.33} parent=0 // pred_check_branch
    %1628 = sbr.rel (0) target = $region17
  $region16: #{_lambda_.33} parent=0 // pred_region
    _
  $region17: #{_lambda_.33} parent=0 // pred_fallthru
    _
  // Predicated region
  $region18: #{_lambda_.33} parent=0 // pred_check
    _
  $region19: #{_lambda_.33} parent=0 // pred_check_branch
    %1630 = sbr.rel (0) target = $region21
  $region20: #{_lambda_.33} parent=0 // pred_region
    _
  $region21: #{_lambda_.33} parent=0 // pred_fallthru
    _

// kernel: _lambda_.37
$region0: #{_lambda_.37}
  #allocation0 [shape = 'u32[]', space=smem, size = 0x4, offset = 0x4, fixed_abs, tag = 'smem constant byte address 0x4 - core index']
  #allocation1 [shape = 'u32[144,128]{1,0:T(1,128)}', space=vmem, size = 0x12000, scoped, tag = 'internal scratch']
  %s0 = inlined_call_operand.vmem [shape: bf16[2,48,128], index: 0, kind: input, shape index: {}]
  %s1 = inlined_call_operand.vmem [shape: bf16[3,384,128], index: 1, kind: input, shape index: {}]
  %s2 = inlined_call_operand.vmem [shape: f32[1,128], index: 2, kind: input, shape index: {}]
  %s3 = inlined_call_operand.vmem [shape: bf16[2,24,128], index: 3, kind: output, shape index: {}]
  %s4 = sld [smem:[#allocation0]]
  $region45: #{_lambda_.37} parent=0
    _
  %s6 = ssub.s32 1, %s4
  %s7 = scalar_select 0, %s6, %s4
  loop: start=0, step=1, limit=4
  $region2: #{_lambda_.37} parent=0 // loop_pre_header
    _
  $region3: #{_lambda_.37} parent=0 // loop_header
    %s9 = sphi 0, %s13
    %p10 = scmp.ge.s32.totalorder %s9, 4
    %s19 = sphi 0, %s21
    %s22 = sphi 0, %s19
    %s23 = sphi 0, %s22
    %s39 = sphi 0, %s23
    %s43 = sphi 0, %s43
    %s45 = sphi 0, %s43
    %s46 = sphi 0, %s45
    %s60 = sphi 0, %s46
    %s64 = sphi 0, %s64
    %s66 = sphi 0, %s64
    %s67 = sphi 0, %s66
    %s81 = sphi 0, %s67
    %s87 = sphi 0, %s89
    %s90 = sphi 0, %s87
    %s91 = sphi 0, %s90
    %s107 = sphi 0, %s91
  $region4: #{_lambda_.37} parent=0 // loop_header_branch
    %12 = sbr.rel (%p10) target = $region8
  $region5: #{_lambda_.37} parent=0 // loop_body
    %s14 = ssub.s32 %s9, 1
    %s15 = ssub.s32 %s9, 2
    %s16 = sadd.s32 %s9, 1
    %s17 = ssub.s32 %s9, %s16
    %p18 = scmp.eq.s32.totalorder %s17, 0
    %s20 = sadd.s32 %s19, 1
    %s21 = scalar_select %p18, %s19, %s20
    %p24 = pneg %p18
    %p25 = scmp.eq.s32.totalorder %s9, 1
    %p26 = por %p24, %p25
    %p27 = scmp.ne.s32.totalorder %s19, %s22
    %p28 = scmp.eq.s32.totalorder %s9, 0
    %p29 = por %p27, %p28
    %p30 = scmp.ne.s32.totalorder %s19, %s22
    %p31 = scmp.eq.s32.totalorder %s14, 1
    %p32 = por %p30, %p31
    %p33 = scmp.ne.s32.totalorder %s22, %s23
    %p34 = scmp.eq.s32.totalorder %s14, 0
    %p35 = por %p33, %p34
    %p36 = scmp.ne.s32.totalorder %s22, %s23
    %p37 = scmp.eq.s32.totalorder %s15, 1
    %p38 = por %p36, %p37
    %p40 = scmp.ne.s32.totalorder %s23, %s39
    %p41 = scmp.eq.s32.totalorder %s15, 0
    %p42 = por %p40, %p41
    %s44 = sadd.s32 %s43, 1
    %p47 = scmp.eq.s32.totalorder %s9, 1
    %p48 = scmp.ne.s32.totalorder %s43, %s45
    %p49 = scmp.eq.s32.totalorder %s9, 0
    %p50 = por %p48, %p49
    %p51 = scmp.ne.s32.totalorder %s43, %s45
    %p52 = scmp.eq.s32.totalorder %s14, 1
    %p53 = por %p51, %p52
    %p54 = scmp.ne.s32.totalorder %s45, %s46
    %p55 = scmp.eq.s32.totalorder %s14, 0
    %p56 = por %p54, %p55
    %p57 = scmp.ne.s32.totalorder %s45, %s46
    %p58 = scmp.eq.s32.totalorder %s15, 1
    %p59 = por %p57, %p58
    %p61 = scmp.ne.s32.totalorder %s46, %s60
    %p62 = scmp.eq.s32.totalorder %s15, 0
    %p63 = por %p61, %p62
    %s65 = sadd.s32 %s64, 1
    %p68 = scmp.eq.s32.totalorder %s9, 1
    %p69 = scmp.ne.s32.totalorder %s64, %s66
    %p70 = scmp.eq.s32.totalorder %s9, 0
    %p71 = por %p69, %p70
    %p72 = scmp.ne.s32.totalorder %s64, %s66
    %p73 = scmp.eq.s32.totalorder %s14, 1
    %p74 = por %p72, %p73
    %p75 = scmp.ne.s32.totalorder %s66, %s67
    %p76 = scmp.eq.s32.totalorder %s14, 0
    %p77 = por %p75, %p76
    %p78 = scmp.ne.s32.totalorder %s66, %s67
    %p79 = scmp.eq.s32.totalorder %s15, 1
    %p80 = por %p78, %p79
    %p82 = scmp.ne.s32.totalorder %s67, %s81
    %p83 = scmp.eq.s32.totalorder %s15, 0
    %p84 = por %p82, %p83
    %s85 = ssub.s32 %s9, %s16
    %p86 = scmp.eq.s32.totalorder %s85, 0
    %s88 = sadd.s32 %s87, 1
    %s89 = scalar_select %p86, %s87, %s88
    %p92 = pneg %p86
    %p93 = scmp.eq.s32.totalorder %s9, 1
    %p94 = por %p92, %p93
    %p95 = scmp.ne.s32.totalorder %s87, %s90
    %p96 = scmp.eq.s32.totalorder %s9, 0
    %p97 = por %p95, %p96
    %p98 = scmp.ne.s32.totalorder %s87, %s90
    %p99 = scmp.eq.s32.totalorder %s14, 1
    %p100 = por %p98, %p99
    %p101 = scmp.ne.s32.totalorder %s90, %s91
    %p102 = scmp.eq.s32.totalorder %s14, 0
    %p103 = por %p101, %p102
    %p104 = scmp.ne.s32.totalorder %s90, %s91
    %p105 = scmp.eq.s32.totalorder %s15, 1
    %p106 = por %p104, %p105
    %p108 = scmp.ne.s32.totalorder %s91, %s107
    %p109 = scmp.eq.s32.totalorder %s15, 0
    %p110 = por %p108, %p109
    %p111 = scmp.le.s32.totalorder 1, %s9
    %p112 = scmp.lt.s32.totalorder %s9, 3
    %p113 = pnand %p111, %p112
    %p114 = pneg %p113
    // Predicated region
    $region9: #{_lambda_.37} parent=5 // pred_check
      _
    $region10: #{_lambda_.37} parent=5 // pred_check_branch
      %116 = sbr.rel (%p113) target = $region12
    $region11: #{_lambda_.37} parent=5 // pred_region
      %s117 = ssub.s32 %s9, 1
      // Predicated region
      $region13: #{_lambda_.37} parent=11 // pred_check
        %p118 = pneg %p56
      $region14: #{_lambda_.37} parent=11 // pred_check_branch
        %120 = sbr.rel (%p118) target = $region16
      $region15: #{_lambda_.37} parent=11 // pred_region
        _
      $region16: #{_lambda_.37} parent=11 // pred_fallthru
        _
      // Predicated region
      $region17: #{_lambda_.37} parent=11 // pred_check
        %p121 = pneg %p77
      $region18: #{_lambda_.37} parent=11 // pred_check_branch
        %123 = sbr.rel (%p121) target = $region20
      $region19: #{_lambda_.37} parent=11 // pred_region
        _
      $region20: #{_lambda_.37} parent=11 // pred_fallthru
        _
    $region12: #{_lambda_.37} parent=5 // pred_fallthru
      _
    %p124 = scmp.lt.s32.totalorder %s9, 2
    // Predicated region
    $region21: #{_lambda_.37} parent=5 // pred_check
      %p125 = pneg %p124
    $region22: #{_lambda_.37} parent=5 // pred_check_branch
      %127 = sbr.rel (%p125) target = $region24
    $region23: #{_lambda_.37} parent=5 // pred_region
      // Predicated region
      $region25: #{_lambda_.37} parent=23 // pred_check
        %p128 = pneg %p29
      $region26: #{_lambda_.37} parent=23 // pred_check_branch
        %130 = sbr.rel (%p128) target = $region28
      $region27: #{_lambda_.37} parent=23 // pred_region
        %p131 = scmp.lt.s32.totalorder %s9, 1
        %s132 = scalar_select %p131, %s9, 1
        %s133 = smul.addr %s132, 6
        %s134 = smul.addr %s133, 4
        %s135 = scalar_lea.vmem %s0, %s134
      $region28: #{_lambda_.37} parent=23 // pred_fallthru
        _
    $region24: #{_lambda_.37} parent=5 // pred_fallthru
      _
    %p136 = scmp.le.s32.totalorder 1, %s9
    %p137 = scmp.lt.s32.totalorder %s9, 3
    %p138 = pnand %p136, %p137
    %p139 = pneg %p138
    // Predicated region
    $region29: #{_lambda_.37} parent=5 // pred_check
      _
    $region30: #{_lambda_.37} parent=5 // pred_check_branch
      %141 = sbr.rel (%p138) target = $region32
    $region31: #{_lambda_.37} parent=5 // pred_region
      %s142 = ssub.s32 %s9, 1
      %p143 = scmp.lt.s32.totalorder %s14, 1
      %s144 = scalar_select %p143, %s14, 1
      %s145 = smul.addr %s144, 6
      %s146 = smul.addr %s145, 4
      %s147 = scalar_lea.vmem %s0, %s146
      %p148 = pneg %p35
      %p149 = pneg %p32
      %p150 = pneg %p56
      %p151 = pneg %p53
      %p152 = pneg %p77
      %p153 = pneg %p74
      %p154 = pneg %p103
      %p155 = pneg %p100
      %p156 = scmp.lt.s32.totalorder %s14, 1
      %s157 = scalar_select %p156, %s14, 1
      %s158 = smul.addr %s157, 3
      %s159 = smul.addr %s158, 4
      %s160 = scalar_lea.vmem %s3, %s159
      %p161 = scmp.lt.s32.totalorder %s14, 1
      %s162 = scalar_select %p161, %s14, 1
      %s163 = smul.addr %s162, 6
      %s164 = smul.addr %s163, 4
      %s165 = scalar_lea.vmem %s0, %s164
      %p166 = scmp.lt.s32.totalorder %s14, 1
      %s167 = scalar_select %p166, %s14, 1
      %s168 = smul.addr %s167, 3
      %s169 = smul.addr %s168, 4
      %s170 = scalar_lea.vmem %s3, %s169
      %v172 = vld [vmem:[%s165] sm:$0xf]
      %v173 = vld [vmem:[%s165 + $0x4] sm:$0xf]
      %v174 = vld [vmem:[%s165 + $0x8] sm:$0xf]
      %v175 = vld [vmem:[%s165] sm:$0x8]
      %v176 = vld [vmem:[%s165 + $0xc] sm:$0x7]
      %v177 = vld [vmem:[%s165 + $0x4] sm:$0xc]
      %v178 = vld [vmem:[%s165 + $0xc] sm:$0xf]
      %v179 = vld [vmem:[%s165 + $0x10] sm:$0x3]
      %v183 = vunpack.c.l.b16 %v172
      %v184 = vunpack.c.l.b16 %v173
      %v185 = vunpack.c.l.b16 %v174
      %v186 = vpack.c.b16 %v184, %v183
      %v187 = vpack.c.b16 %v185, %v185
      %v192 = vunpack.c.l.b16 %v175
      %v193 = vunpack.c.l.b16 %v176
      %v194 = vpack.c.b16 %v184, %v192
      %v195 = vpack.c.b16 %v193, %v185
      %vm196 = vcmask 1044480
      %v197 = vrot.slane %v194, 3
      %v198 = vrot.slane %v195, 3
      %v199 = vsel %vm196, %v197, %v198
      %v205 = vunpack.c.l.b16 %v177
      %v206 = vunpack.c.l.b16 %v178
      %v207 = vunpack.c.l.b16 %v179
      %v208 = vpack.c.b16 %v185, %v205
      %v209 = vpack.c.b16 %v207, %v206
      %vm210 = vcmask 1045504
      %v211 = vrot.slane %v208, 2
      %v212 = vrot.slane %v209, 2
      %v213 = vsel %vm210, %v211, %v212
      %v216 = vld [vmem:[%s1] sm:$0xf]
      %v217 = vld [vmem:[%s1 + $0x4] sm:$0xf]
      %v218 = vld [vmem:[%s1 + $0x8] sm:$0xf]
      %v219 = vld [vmem:[%s1 + $0xc] sm:$0xf]
      %v220 = vld [vmem:[%s1 + $0x10] sm:$0xf]
      %v221 = vld [vmem:[%s1 + $0x14] sm:$0xf]
      %v222 = vld [vmem:[%s1 + $0x18] sm:$0xf]
      %v223 = vld [vmem:[%s1 + $0x1c] sm:$0xf]
      %v224 = vld [vmem:[%s1 + $0x20] sm:$0xf]
      %v225 = vld [vmem:[%s1 + $0x24] sm:$0xf]
      %v226 = vld [vmem:[%s1 + $0x28] sm:$0xf]
      %v227 = vld [vmem:[%s1 + $0x2c] sm:$0xf]
      %v228 = vld [vmem:[%s1 + $0x30] sm:$0xf]
      %v229 = vld [vmem:[%s1 + $0x34] sm:$0xf]
      %v230 = vld [vmem:[%s1 + $0x38] sm:$0xf]
      %v231 = vld [vmem:[%s1 + $0x3c] sm:$0xf]
      %v232 = vld [vmem:[%s1 + $0x40] sm:$0xf]
      %v233 = vld [vmem:[%s1 + $0x44] sm:$0xf]
      %v234 = vld [vmem:[%s1 + $0x48] sm:$0xf]
      %v235 = vld [vmem:[%s1 + $0x4c] sm:$0xf]
      %v236 = vld [vmem:[%s1 + $0x50] sm:$0xf]
      %v237 = vld [vmem:[%s1 + $0x54] sm:$0xf]
      %v238 = vld [vmem:[%s1 + $0x58] sm:$0xf]
      %v239 = vld [vmem:[%s1 + $0x5c] sm:$0xf]
      %v240 = vld [vmem:[%s1 + $0x60] sm:$0xf]
      %v241 = vld [vmem:[%s1 + $0x64] sm:$0xf]
      %v242 = vld [vmem:[%s1 + $0x68] sm:$0xf]
      %v243 = vld [vmem:[%s1 + $0x6c] sm:$0xf]
      %v244 = vld [vmem:[%s1 + $0x70] sm:$0xf]
      %v245 = vld [vmem:[%s1 + $0x74] sm:$0xf]
      %v246 = vld [vmem:[%s1 + $0x78] sm:$0xf]
      %v247 = vld [vmem:[%s1 + $0x7c] sm:$0xf]
      %v248 = vld [vmem:[%s1 + $0x80] sm:$0xf]
      %v249 = vld [vmem:[%s1 + $0x84] sm:$0xf]
      %v250 = vld [vmem:[%s1 + $0x88] sm:$0xf]
      %v251 = vld [vmem:[%s1 + $0x8c] sm:$0xf]
      %v252 = vld [vmem:[%s1 + $0x90] sm:$0xf]
      %v253 = vld [vmem:[%s1 + $0x94] sm:$0xf]
      %v254 = vld [vmem:[%s1 + $0x98] sm:$0xf]
      %v255 = vld [vmem:[%s1 + $0x9c] sm:$0xf]
      %v256 = vld [vmem:[%s1 + $0xa0] sm:$0xf]
      %v257 = vld [vmem:[%s1 + $0xa4] sm:$0xf]
      %v258 = vld [vmem:[%s1 + $0xa8] sm:$0xf]
      %v259 = vld [vmem:[%s1 + $0xac] sm:$0xf]
      %v260 = vld [vmem:[%s1 + $0xb0] sm:$0xf]
      %v261 = vld [vmem:[%s1 + $0xb4] sm:$0xf]
      %v262 = vld [vmem:[%s1 + $0xb8] sm:$0xf]
      %v263 = vld [vmem:[%s1 + $0xbc] sm:$0xf]
      %v264 = vld [vmem:[%s165 + $0xc] sm:$0x1]
      %v265 = vld [vmem:[%s165 + $0x10] sm:$0x7]
      %v267 = vunpack.c.l.b16 %v264
      %v268 = vpack.c.b16 %v267, %v185
      %v269 = vpack.c.b16 %v206, %v185
      %v270 = vrot.slane %v269, 3
      %v271 = vsel %vm196, %v197, %v270
      %v273 = vunpack.c.l.b16 %v265
      %v274 = vpack.c.b16 %v273, %v206
      %v275 = vrot.slane %v274, 2
      %v276 = vsel %vm210, %v211, %v275
      %s277 = scalar_lea.vmem %s1, 192
      %v278 = vld [vmem:[%s277] sm:$0xf]
      %v279 = vld [vmem:[%s277 + $0x4] sm:$0xf]
      %v280 = vld [vmem:[%s277 + $0x8] sm:$0xf]
      %v281 = vld [vmem:[%s277 + $0xc] sm:$0xf]
      %v282 = vld [vmem:[%s277 + $0x10] sm:$0xf]
      %v283 = vld [vmem:[%s277 + $0x14] sm:$0xf]
      %v284 = vld [vmem:[%s277 + $0x18] sm:$0xf]
      %v285 = vld [vmem:[%s277 + $0x1c] sm:$0xf]
      %v286 = vld [vmem:[%s277 + $0x20] sm:$0xf]
      %v287 = vld [vmem:[%s277 + $0x24] sm:$0xf]
      %v288 = vld [vmem:[%s277 + $0x28] sm:$0xf]
      %v289 = vld [vmem:[%s277 + $0x2c] sm:$0xf]
      %v290 = vld [vmem:[%s277 + $0x30] sm:$0xf]
      %v291 = vld [vmem:[%s277 + $0x34] sm:$0xf]
      %v292 = vld [vmem:[%s277 + $0x38] sm:$0xf]
      %v293 = vld [vmem:[%s277 + $0x3c] sm:$0xf]
      %v294 = vld [vmem:[%s277 + $0x40] sm:$0xf]
      %v295 = vld [vmem:[%s277 + $0x44] sm:$0xf]
      %v296 = vld [vmem:[%s277 + $0x48] sm:$0xf]
      %v297 = vld [vmem:[%s277 + $0x4c] sm:$0xf]
      %v298 = vld [vmem:[%s277 + $0x50] sm:$0xf]
      %v299 = vld [vmem:[%s277 + $0x54] sm:$0xf]
      %v300 = vld [vmem:[%s277 + $0x58] sm:$0xf]
      %v301 = vld [vmem:[%s277 + $0x5c] sm:$0xf]
      %v302 = vld [vmem:[%s277 + $0x60] sm:$0xf]
      %v303 = vld [vmem:[%s277 + $0x64] sm:$0xf]
      %v304 = vld [vmem:[%s277 + $0x68] sm:$0xf]
      %v305 = vld [vmem:[%s277 + $0x6c] sm:$0xf]
      %v306 = vld [vmem:[%s277 + $0x70] sm:$0xf]
      %v307 = vld [vmem:[%s277 + $0x74] sm:$0xf]
      %v308 = vld [vmem:[%s277 + $0x78] sm:$0xf]
      %v309 = vld [vmem:[%s277 + $0x7c] sm:$0xf]
      %v310 = vld [vmem:[%s277 + $0x80] sm:$0xf]
      %v311 = vld [vmem:[%s277 + $0x84] sm:$0xf]
      %v312 = vld [vmem:[%s277 + $0x88] sm:$0xf]
      %v313 = vld [vmem:[%s277 + $0x8c] sm:$0xf]
      %v314 = vld [vmem:[%s277 + $0x90] sm:$0xf]
      %v315 = vld [vmem:[%s277 + $0x94] sm:$0xf]
      %v316 = vld [vmem:[%s277 + $0x98] sm:$0xf]
      %v317 = vld [vmem:[%s277 + $0x9c] sm:$0xf]
      %v318 = vld [vmem:[%s277 + $0xa0] sm:$0xf]
      %v319 = vld [vmem:[%s277 + $0xa4] sm:$0xf]
      %v320 = vld [vmem:[%s277 + $0xa8] sm:$0xf]
      %v321 = vld [vmem:[%s277 + $0xac] sm:$0xf]
      %v322 = vld [vmem:[%s277 + $0xb0] sm:$0xf]
      %v323 = vld [vmem:[%s277 + $0xb4] sm:$0xf]
      %v324 = vld [vmem:[%s277 + $0xb8] sm:$0xf]
      %v325 = vld [vmem:[%s277 + $0xbc] sm:$0xf]
      %vm326 = vsmask.f32 7424
      %v328 = vshrl.u32 %v186, 16
      %v330 = vshll.u32 %v186, 16
      %v332 = vrot.slane %v330, 1
      %v333 = vor.u32 %v328, %v332
      %v335 = vshll.u32 %v268, 16
      %v337 = vrot.slane %v335, 1
      %v338 = vsel %vm326, %v333, %v337
      %v340 = vshrl.u32 %v271, 16
      %v342 = vshll.u32 %v271, 16
      %v344 = vrot.slane %v342, 1
      %v345 = vor.u32 %v340, %v344
      %v347 = vshll.u32 %v270, 16
      %v349 = vrot.slane %v347, 1
      %v350 = vsel %vm326, %v345, %v349
      %v352 = vshrl.u32 %v276, 16
      %v354 = vshll.u32 %v276, 16
      %v356 = vrot.slane %v354, 1
      %v357 = vor.u32 %v352, %v356
      %v359 = vshll.u32 %v275, 16
      %v361 = vrot.slane %v359, 1
      %v362 = vsel %vm326, %v357, %v361
      %v363 = vshrl.u32 %v268, 16
      %v365 = vor.u32 %v363, %v337
      %v366 = vshrl.u32 %v270, 16
      %v368 = vor.u32 %v366, %v349
      %v369 = vshrl.u32 %v275, 16
      %v371 = vor.u32 %v369, %v361
      %v426 = vunpack.c.l.b16 %v278
      %v427 = vunpack.c.l.b16 %v279
      %v428 = vunpack.c.l.b16 %v280
      %v429 = vunpack.c.l.b16 %v281
      %v430 = vunpack.c.l.b16 %v282
      %v431 = vunpack.c.l.b16 %v283
      %v432 = vunpack.c.l.b16 %v284
      %v433 = vunpack.c.l.b16 %v285
      %v434 = vunpack.c.l.b16 %v286
      %v435 = vunpack.c.l.b16 %v287
      %v436 = vunpack.c.l.b16 %v288
      %v437 = vunpack.c.l.b16 %v289
      %v438 = vunpack.c.l.b16 %v290
      %v439 = vunpack.c.l.b16 %v291
      %v440 = vunpack.c.l.b16 %v292
      %v441 = vunpack.c.l.b16 %v293
      %v442 = vunpack.c.l.b16 %v294
      %v443 = vunpack.c.l.b16 %v295
      %v444 = vunpack.c.l.b16 %v296
      %v445 = vunpack.c.l.b16 %v297
      %v446 = vunpack.c.l.b16 %v298
      %v447 = vunpack.c.l.b16 %v299
      %v448 = vunpack.c.l.b16 %v300
      %v449 = vunpack.c.l.b16 %v301
      %v450 = vunpack.c.l.b16 %v302
      %v451 = vunpack.c.l.b16 %v303
      %v452 = vunpack.c.l.b16 %v304
      %v453 = vunpack.c.l.b16 %v305
      %v454 = vunpack.c.l.b16 %v306
      %v455 = vunpack.c.l.b16 %v307
      %v456 = vunpack.c.l.b16 %v308
      %v457 = vunpack.c.l.b16 %v309
      %v458 = vunpack.c.l.b16 %v310
      %v459 = vunpack.c.l.b16 %v311
      %v460 = vunpack.c.l.b16 %v312
      %v461 = vunpack.c.l.b16 %v313
      %v462 = vunpack.c.l.b16 %v314
      %v463 = vunpack.c.l.b16 %v315
      %v464 = vunpack.c.l.b16 %v316
      %v465 = vunpack.c.l.b16 %v317
      %v466 = vunpack.c.l.b16 %v318
      %v467 = vunpack.c.l.b16 %v319
      %v468 = vunpack.c.l.b16 %v320
      %v469 = vunpack.c.l.b16 %v321
      %v470 = vunpack.c.l.b16 %v322
      %v471 = vunpack.c.l.b16 %v323
      %v472 = vunpack.c.l.b16 %v324
      %v473 = vunpack.c.l.b16 %v325
      %v474 = vpack.c.b16 %v427, %v426
      %v475 = vpack.c.b16 %v429, %v428
      %v476 = vpack.c.b16 %v431, %v430
      %v477 = vpack.c.b16 %v433, %v432
      %v478 = vpack.c.b16 %v435, %v434
      %v479 = vpack.c.b16 %v437, %v436
      %v480 = vpack.c.b16 %v439, %v438
      %v481 = vpack.c.b16 %v441, %v440
      %v482 = vpack.c.b16 %v443, %v442
      %v483 = vpack.c.b16 %v445, %v444
      %v484 = vpack.c.b16 %v447, %v446
      %v485 = vpack.c.b16 %v449, %v448
      %v486 = vpack.c.b16 %v451, %v450
      %v487 = vpack.c.b16 %v453, %v452
      %v488 = vpack.c.b16 %v455, %v454
      %v489 = vpack.c.b16 %v457, %v456
      %v490 = vpack.c.b16 %v459, %v458
      %v491 = vpack.c.b16 %v461, %v460
      %v492 = vpack.c.b16 %v463, %v462
      %v493 = vpack.c.b16 %v465, %v464
      %v494 = vpack.c.b16 %v467, %v466
      %v495 = vpack.c.b16 %v469, %v468
      %v496 = vpack.c.b16 %v471, %v470
      %v497 = vpack.c.b16 %v473, %v472
      %522 = vmatprep.subr.bf16.mxu0 0
      %523 = vmatpush1.bf16.msra.mxu0 %v481
      %524 = vmatprep.subr.bf16.mxu0 0
      %525 = vmatpush1.bf16.msra.mxu0 %v480
      %526 = vmatprep.subr.bf16.mxu0 0
      %527 = vmatpush1.bf16.msra.mxu0 %v479
      %528 = vmatprep.subr.bf16.mxu0 0
      %529 = vmatpush1.bf16.msra.mxu0 %v478
      %530 = vmatprep.subr.bf16.mxu0 0
      %531 = vmatpush1.bf16.msra.mxu0 %v477
      %532 = vmatprep.subr.bf16.mxu0 0
      %533 = vmatpush1.bf16.msra.mxu0 %v476
      %534 = vmatprep.subr.bf16.mxu0 0
      %535 = vmatpush1.bf16.msra.mxu0 %v475
      %536 = vmatprep.subr.bf16.mxu0 0
      %537 = vmatpush1.bf16.msra.mxu0 %v474
      %538 = vmatprep.subr.bf16.mxu0 0
      %539 = vmatpush2.bf16.msra.mxu0 %v489
      %540 = vmatprep.subr.bf16.mxu0 0
      %541 = vmatpush2.bf16.msra.mxu0 %v488
      %542 = vmatprep.subr.bf16.mxu0 0
      %543 = vmatpush2.bf16.msra.mxu0 %v487
      %544 = vmatprep.subr.bf16.mxu0 0
      %545 = vmatpush2.bf16.msra.mxu0 %v486
      %546 = vmatprep.subr.bf16.mxu0 0
      %547 = vmatpush2.bf16.msra.mxu0 %v485
      %548 = vmatprep.subr.bf16.mxu0 0
      %549 = vmatpush2.bf16.msra.mxu0 %v484
      %550 = vmatprep.subr.bf16.mxu0 0
      %551 = vmatpush2.bf16.msra.mxu0 %v483
      %552 = vmatprep.subr.bf16.mxu0 0
      %553 = vmatpush2.bf16.msra.mxu0 %v482
      %554 = vmatprep.mubr.bf16.mxu0 %v350
      %555 = vmatmul.mubr.bf16.gmra.mxu0 %v338
      %v556 = vpop.f32.mrf.mxu0
      %v557 = vadd.f32 0.0, %v556
      %v558 = vpop.f32.mrf.mxu0
      %v559 = vpop.f32.mrf.mxu0
      %v560 = vadd.f32 0.0, %v559
      %v561 = vpop.f32.mrf.mxu0
      %562 = vmatprep.mubr.bf16.mxu0 %v368
      %563 = vmatmul.mubr.bf16.gmra.mxu0 %v365
      %v564 = vpop.f32.mrf.mxu0
      %v565 = vadd.f32 0.0, %v564
      %v566 = vpop.f32.mrf.mxu0
      %v567 = vpop.f32.mrf.mxu0
      %v568 = vpop.f32.mrf.mxu0
      %569 = vdwg.mxu0
      %570 = vmatprep.subr.bf16.mxu0 0
      %571 = vmatpush1.bf16.msra.mxu0 %v497
      %572 = vmatprep.subr.bf16.mxu0 0
      %573 = vmatpush1.bf16.msra.mxu0 %v496
      %574 = vmatprep.subr.bf16.mxu0 0
      %575 = vmatpush1.bf16.msra.mxu0 %v495
      %576 = vmatprep.subr.bf16.mxu0 0
      %577 = vmatpush1.bf16.msra.mxu0 %v494
      %578 = vmatprep.subr.bf16.mxu0 0
      %579 = vmatpush1.bf16.msra.mxu0 %v493
      %580 = vmatprep.subr.bf16.mxu0 0
      %581 = vmatpush1.bf16.msra.mxu0 %v492
      %582 = vmatprep.subr.bf16.mxu0 0
      %583 = vmatpush1.bf16.msra.mxu0 %v491
      %584 = vmatprep.subr.bf16.mxu0 0
      %585 = vmatpush1.bf16.msra.mxu0 %v490
      %586 = vmatprep.subr.bf16.mxu0 0
      %587 = vmatpush2.bf16.msra.mxu0 0
      %588 = vmatprep.subr.bf16.mxu0 0
      %589 = vmatpush2.bf16.msra.mxu0 0
      %590 = vmatprep.subr.bf16.mxu0 0
      %591 = vmatpush2.bf16.msra.mxu0 0
      %592 = vmatprep.subr.bf16.mxu0 0
      %593 = vmatpush2.bf16.msra.mxu0 0
      %594 = vmatprep.subr.bf16.mxu0 0
      %595 = vmatpush2.bf16.msra.mxu0 0
      %596 = vmatprep.subr.bf16.mxu0 0
      %597 = vmatpush2.bf16.msra.mxu0 0
      %598 = vmatprep.subr.bf16.mxu0 0
      %599 = vmatpush2.bf16.msra.mxu0 0
      %600 = vmatprep.subr.bf16.mxu0 0
      %601 = vmatpush2.bf16.msra.mxu0 0
      %602 = vmatprep.mubr.bf16.mxu0 0
      %603 = vmatmul.mubr.bf16.gmra.mxu0 %v362
      %v604 = vpop.f32.mrf.mxu0
      %v605 = vadd.f32 %v557, %v604
      %v606 = vpop.f32.mrf.mxu0
      %v607 = vpop.f32.mrf.mxu0
      %v608 = vadd.f32 %v560, %v607
      %v609 = vpop.f32.mrf.mxu0
      %610 = vmatprep.mubr.bf16.mxu0 0
      %611 = vmatmul.mubr.bf16.gmra.mxu0 %v371
      %v612 = vpop.f32.mrf.mxu0
      %v613 = vadd.f32 %v565, %v612
      %v614 = vpop.f32.mrf.mxu0
      %v615 = vpop.f32.mrf.mxu0
      %v616 = vpop.f32.mrf.mxu0
      %617 = vdwg.mxu0
      %v666 = vunpack.c.l.b16 %v216
      %v667 = vunpack.c.l.b16 %v217
      %v668 = vunpack.c.l.b16 %v218
      %v669 = vunpack.c.l.b16 %v219
      %v670 = vunpack.c.l.b16 %v220
      %v671 = vunpack.c.l.b16 %v221
      %v672 = vunpack.c.l.b16 %v222
      %v673 = vunpack.c.l.b16 %v223
      %v674 = vunpack.c.l.b16 %v224
      %v675 = vunpack.c.l.b16 %v225
      %v676 = vunpack.c.l.b16 %v226
      %v677 = vunpack.c.l.b16 %v227
      %v678 = vunpack.c.l.b16 %v228
      %v679 = vunpack.c.l.b16 %v229
      %v680 = vunpack.c.l.b16 %v230
      %v681 = vunpack.c.l.b16 %v231
      %v682 = vunpack.c.l.b16 %v232
      %v683 = vunpack.c.l.b16 %v233
      %v684 = vunpack.c.l.b16 %v234
      %v685 = vunpack.c.l.b16 %v235
      %v686 = vunpack.c.l.b16 %v236
      %v687 = vunpack.c.l.b16 %v237
      %v688 = vunpack.c.l.b16 %v238
      %v689 = vunpack.c.l.b16 %v239
      %v690 = vunpack.c.l.b16 %v240
      %v691 = vunpack.c.l.b16 %v241
      %v692 = vunpack.c.l.b16 %v242
      %v693 = vunpack.c.l.b16 %v243
      %v694 = vunpack.c.l.b16 %v244
      %v695 = vunpack.c.l.b16 %v245
      %v696 = vunpack.c.l.b16 %v246
      %v697 = vunpack.c.l.b16 %v247
      %v698 = vunpack.c.l.b16 %v248
      %v699 = vunpack.c.l.b16 %v249
      %v700 = vunpack.c.l.b16 %v250
      %v701 = vunpack.c.l.b16 %v251
      %v702 = vunpack.c.l.b16 %v252
      %v703 = vunpack.c.l.b16 %v253
      %v704 = vunpack.c.l.b16 %v254
      %v705 = vunpack.c.l.b16 %v255
      %v706 = vunpack.c.l.b16 %v256
      %v707 = vunpack.c.l.b16 %v257
      %v708 = vunpack.c.l.b16 %v258
      %v709 = vunpack.c.l.b16 %v259
      %v710 = vunpack.c.l.b16 %v260
      %v711 = vunpack.c.l.b16 %v261
      %v712 = vunpack.c.l.b16 %v262
      %v713 = vunpack.c.l.b16 %v263
      %v714 = vpack.c.b16 %v667, %v666
      %v715 = vpack.c.b16 %v669, %v668
      %v716 = vpack.c.b16 %v671, %v670
      %v717 = vpack.c.b16 %v673, %v672
      %v718 = vpack.c.b16 %v675, %v674
      %v719 = vpack.c.b16 %v677, %v676
      %v720 = vpack.c.b16 %v679, %v678
      %v721 = vpack.c.b16 %v681, %v680
      %v722 = vpack.c.b16 %v683, %v682
      %v723 = vpack.c.b16 %v685, %v684
      %v724 = vpack.c.b16 %v687, %v686
      %v725 = vpack.c.b16 %v689, %v688
      %v726 = vpack.c.b16 %v691, %v690
      %v727 = vpack.c.b16 %v693, %v692
      %v728 = vpack.c.b16 %v695, %v694
      %v729 = vpack.c.b16 %v697, %v696
      %v730 = vpack.c.b16 %v699, %v698
      %v731 = vpack.c.b16 %v701, %v700
      %v732 = vpack.c.b16 %v703, %v702
      %v733 = vpack.c.b16 %v705, %v704
      %v734 = vpack.c.b16 %v707, %v706
      %v735 = vpack.c.b16 %v709, %v708
      %v736 = vpack.c.b16 %v711, %v710
      %v737 = vpack.c.b16 %v713, %v712
      %762 = vmatprep.subr.bf16.mxu0 0
      %763 = vmatpush1.bf16.msra.mxu0 %v721
      %764 = vmatprep.subr.bf16.mxu0 0
      %765 = vmatpush1.bf16.msra.mxu0 %v720
      %766 = vmatprep.subr.bf16.mxu0 0
      %767 = vmatpush1.bf16.msra.mxu0 %v719
      %768 = vmatprep.subr.bf16.mxu0 0
      %769 = vmatpush1.bf16.msra.mxu0 %v718
      %770 = vmatprep.subr.bf16.mxu0 0
      %771 = vmatpush1.bf16.msra.mxu0 %v717
      %772 = vmatprep.subr.bf16.mxu0 0
      %773 = vmatpush1.bf16.msra.mxu0 %v716
      %774 = vmatprep.subr.bf16.mxu0 0
      %775 = vmatpush1.bf16.msra.mxu0 %v715
      %776 = vmatprep.subr.bf16.mxu0 0
      %777 = vmatpush1.bf16.msra.mxu0 %v714
      %778 = vmatprep.subr.bf16.mxu0 0
      %779 = vmatpush2.bf16.msra.mxu0 %v729
      %780 = vmatprep.subr.bf16.mxu0 0
      %781 = vmatpush2.bf16.msra.mxu0 %v728
      %782 = vmatprep.subr.bf16.mxu0 0
      %783 = vmatpush2.bf16.msra.mxu0 %v727
      %784 = vmatprep.subr.bf16.mxu0 0
      %785 = vmatpush2.bf16.msra.mxu0 %v726
      %786 = vmatprep.subr.bf16.mxu0 0
      %787 = vmatpush2.bf16.msra.mxu0 %v725
      %788 = vmatprep.subr.bf16.mxu0 0
      %789 = vmatpush2.bf16.msra.mxu0 %v724
      %790 = vmatprep.subr.bf16.mxu0 0
      %791 = vmatpush2.bf16.msra.mxu0 %v723
      %792 = vmatprep.subr.bf16.mxu0 0
      %793 = vmatpush2.bf16.msra.mxu0 %v722
      %794 = vmatprep.mubr.bf16.mxu0 %v199
      %795 = vmatmul.mubr.bf16.gmra.mxu0 %v186
      %v796 = vpop.f32.mrf.mxu0
      %v797 = vadd.f32 %v605, %v796
      %v798 = vpop.f32.mrf.mxu0
      %v799 = vpop.f32.mrf.mxu0
      %v800 = vadd.f32 %v608, %v799
      %v801 = vpop.f32.mrf.mxu0
      %802 = vmatprep.mubr.bf16.mxu0 %v198
      %803 = vmatmul.mubr.bf16.gmra.mxu0 %v187
      %v804 = vpop.f32.mrf.mxu0
      %v805 = vadd.f32 %v613, %v804
      %v806 = vpop.f32.mrf.mxu0
      %v807 = vpop.f32.mrf.mxu0
      %v808 = vpop.f32.mrf.mxu0
      %809 = vdwg.mxu0
      %810 = vmatprep.subr.bf16.mxu0 0
      %811 = vmatpush1.bf16.msra.mxu0 %v737
      %812 = vmatprep.subr.bf16.mxu0 0
      %813 = vmatpush1.bf16.msra.mxu0 %v736
      %814 = vmatprep.subr.bf16.mxu0 0
      %815 = vmatpush1.bf16.msra.mxu0 %v735
      %816 = vmatprep.subr.bf16.mxu0 0
      %817 = vmatpush1.bf16.msra.mxu0 %v734
      %818 = vmatprep.subr.bf16.mxu0 0
      %819 = vmatpush1.bf16.msra.mxu0 %v733
      %820 = vmatprep.subr.bf16.mxu0 0
      %821 = vmatpush1.bf16.msra.mxu0 %v732
      %822 = vmatprep.subr.bf16.mxu0 0
      %823 = vmatpush1.bf16.msra.mxu0 %v731
      %824 = vmatprep.subr.bf16.mxu0 0
      %825 = vmatpush1.bf16.msra.mxu0 %v730
      %826 = vmatprep.subr.bf16.mxu0 0
      %827 = vmatpush2.bf16.msra.mxu0 0
      %828 = vmatprep.subr.bf16.mxu0 0
      %829 = vmatpush2.bf16.msra.mxu0 0
      %830 = vmatprep.subr.bf16.mxu0 0
      %831 = vmatpush2.bf16.msra.mxu0 0
      %832 = vmatprep.subr.bf16.mxu0 0
      %833 = vmatpush2.bf16.msra.mxu0 0
      %834 = vmatprep.subr.bf16.mxu0 0
      %835 = vmatpush2.bf16.msra.mxu0 0
      %836 = vmatprep.subr.bf16.mxu0 0
      %837 = vmatpush2.bf16.msra.mxu0 0
      %838 = vmatprep.subr.bf16.mxu0 0
      %839 = vmatpush2.bf16.msra.mxu0 0
      %840 = vmatprep.subr.bf16.mxu0 0
      %841 = vmatpush2.bf16.msra.mxu0 0
      %842 = vmatprep.mubr.bf16.mxu0 0
      %843 = vmatmul.mubr.bf16.gmra.mxu0 %v213
      %v844 = vpop.f32.mrf.mxu0
      %v845 = vadd.f32 %v797, %v844
      %v846 = vpop.f32.mrf.mxu0
      %v847 = vpop.f32.mrf.mxu0
      %v848 = vadd.f32 %v800, %v847
      %v849 = vpop.f32.mrf.mxu0
      %850 = vmatprep.mubr.bf16.mxu0 0
      %851 = vmatmul.mubr.bf16.gmra.mxu0 %v212
      %v852 = vpop.f32.mrf.mxu0
      %v853 = vadd.f32 %v805, %v852
      %v854 = vpop.f32.mrf.mxu0
      %v855 = vpop.f32.mrf.mxu0
      %v856 = vpop.f32.mrf.mxu0
      %857 = vdwg.mxu0
      %v858 = vld [vmem:[%s165] sm:$0xe]
      %v859 = vld [vmem:[%s165 + $0x4] sm:$0x8]
      %v861 = vunpack.c.l.b16 %v858
      %v862 = vpack.c.b16 %v184, %v861
      %v863 = vpack.c.b16 %v185, %v184
      %v864 = vpack.c.b16 %v206, %v206
      %vm865 = vcmask 1040384
      %v866 = vrot.slane %v863, 7
      %v867 = vrot.slane %v864, 7
      %v868 = vsel %vm865, %v866, %v867
      %v870 = vunpack.c.l.b16 %v859
      %v871 = vpack.c.b16 %v185, %v870
      %v872 = vrot.slane %v871, 2
      %v873 = vsel %vm210, %v872, %v275
      %s874 = scalar_lea.vmem %s1, 384
      %v875 = vld [vmem:[%s874] sm:$0xf]
      %v876 = vld [vmem:[%s874 + $0x4] sm:$0xf]
      %v877 = vld [vmem:[%s874 + $0x8] sm:$0xf]
      %v878 = vld [vmem:[%s874 + $0xc] sm:$0xf]
      %v879 = vld [vmem:[%s874 + $0x10] sm:$0xf]
      %v880 = vld [vmem:[%s874 + $0x14] sm:$0xf]
      %v881 = vld [vmem:[%s874 + $0x18] sm:$0xf]
      %v882 = vld [vmem:[%s874 + $0x1c] sm:$0xf]
      %v883 = vld [vmem:[%s874 + $0x20] sm:$0xf]
      %v884 = vld [vmem:[%s874 + $0x24] sm:$0xf]
      %v885 = vld [vmem:[%s874 + $0x28] sm:$0xf]
      %v886 = vld [vmem:[%s874 + $0x2c] sm:$0xf]
      %v887 = vld [vmem:[%s874 + $0x30] sm:$0xf]
      %v888 = vld [vmem:[%s874 + $0x34] sm:$0xf]
      %v889 = vld [vmem:[%s874 + $0x38] sm:$0xf]
      %v890 = vld [vmem:[%s874 + $0x3c] sm:$0xf]
      %v891 = vld [vmem:[%s874 + $0x40] sm:$0xf]
      %v892 = vld [vmem:[%s874 + $0x44] sm:$0xf]
      %v893 = vld [vmem:[%s874 + $0x48] sm:$0xf]
      %v894 = vld [vmem:[%s874 + $0x4c] sm:$0xf]
      %v895 = vld [vmem:[%s874 + $0x50] sm:$0xf]
      %v896 = vld [vmem:[%s874 + $0x54] sm:$0xf]
      %v897 = vld [vmem:[%s874 + $0x58] sm:$0xf]
      %v898 = vld [vmem:[%s874 + $0x5c] sm:$0xf]
      %v899 = vld [vmem:[%s874 + $0x60] sm:$0xf]
      %v900 = vld [vmem:[%s874 + $0x64] sm:$0xf]
      %v901 = vld [vmem:[%s874 + $0x68] sm:$0xf]
      %v902 = vld [vmem:[%s874 + $0x6c] sm:$0xf]
      %v903 = vld [vmem:[%s874 + $0x70] sm:$0xf]
      %v904 = vld [vmem:[%s874 + $0x74] sm:$0xf]
      %v905 = vld [vmem:[%s874 + $0x78] sm:$0xf]
      %v906 = vld [vmem:[%s874 + $0x7c] sm:$0xf]
      %v907 = vld [vmem:[%s874 + $0x80] sm:$0xf]
      %v908 = vld [vmem:[%s874 + $0x84] sm:$0xf]
      %v909 = vld [vmem:[%s874 + $0x88] sm:$0xf]
      %v910 = vld [vmem:[%s874 + $0x8c] sm:$0xf]
      %v911 = vld [vmem:[%s874 + $0x90] sm:$0xf]
      %v912 = vld [vmem:[%s874 + $0x94] sm:$0xf]
      %v913 = vld [vmem:[%s874 + $0x98] sm:$0xf]
      %v914 = vld [vmem:[%s874 + $0x9c] sm:$0xf]
      %v915 = vld [vmem:[%s874 + $0xa0] sm:$0xf]
      %v916 = vld [vmem:[%s874 + $0xa4] sm:$0xf]
      %v917 = vld [vmem:[%s874 + $0xa8] sm:$0xf]
      %v918 = vld [vmem:[%s874 + $0xac] sm:$0xf]
      %v919 = vld [vmem:[%s874 + $0xb0] sm:$0xf]
      %v920 = vld [vmem:[%s874 + $0xb4] sm:$0xf]
      %v921 = vld [vmem:[%s874 + $0xb8] sm:$0xf]
      %v922 = vld [vmem:[%s874 + $0xbc] sm:$0xf]
      %vm923 = vcmask 1046528
      %v924 = vrot.slane %v862, 1
      %v925 = vrot.slane %v268, 1
      %v926 = vsel %vm923, %v924, %v925
      %v927 = vrot.slane %v866, 1
      %v928 = vrot.slane %v868, 1
      %v929 = vsel %vm923, %v927, %v928
      %v930 = vrot.slane %v873, 1
      %v931 = vrot.slane %v275, 1
      %v932 = vsel %vm923, %v930, %v931
      %v987 = vunpack.c.l.b16 %v875
      %v988 = vunpack.c.l.b16 %v876
      %v989 = vunpack.c.l.b16 %v877
      %v990 = vunpack.c.l.b16 %v878
      %v991 = vunpack.c.l.b16 %v879
      %v992 = vunpack.c.l.b16 %v880
      %v993 = vunpack.c.l.b16 %v881
      %v994 = vunpack.c.l.b16 %v882
      %v995 = vunpack.c.l.b16 %v883
      %v996 = vunpack.c.l.b16 %v884
      %v997 = vunpack.c.l.b16 %v885
      %v998 = vunpack.c.l.b16 %v886
      %v999 = vunpack.c.l.b16 %v887
      %v1000 = vunpack.c.l.b16 %v888
      %v1001 = vunpack.c.l.b16 %v889
      %v1002 = vunpack.c.l.b16 %v890
      %v1003 = vunpack.c.l.b16 %v891
      %v1004 = vunpack.c.l.b16 %v892
      %v1005 = vunpack.c.l.b16 %v893
      %v1006 = vunpack.c.l.b16 %v894
      %v1007 = vunpack.c.l.b16 %v895
      %v1008 = vunpack.c.l.b16 %v896
      %v1009 = vunpack.c.l.b16 %v897
      %v1010 = vunpack.c.l.b16 %v898
      %v1011 = vunpack.c.l.b16 %v899
      %v1012 = vunpack.c.l.b16 %v900
      %v1013 = vunpack.c.l.b16 %v901
      %v1014 = vunpack.c.l.b16 %v902
      %v1015 = vunpack.c.l.b16 %v903
      %v1016 = vunpack.c.l.b16 %v904
      %v1017 = vunpack.c.l.b16 %v905
      %v1018 = vunpack.c.l.b16 %v906
      %v1019 = vunpack.c.l.b16 %v907
      %v1020 = vunpack.c.l.b16 %v908
      %v1021 = vunpack.c.l.b16 %v909
      %v1022 = vunpack.c.l.b16 %v910
      %v1023 = vunpack.c.l.b16 %v911
      %v1024 = vunpack.c.l.b16 %v912
      %v1025 = vunpack.c.l.b16 %v913
      %v1026 = vunpack.c.l.b16 %v914
      %v1027 = vunpack.c.l.b16 %v915
      %v1028 = vunpack.c.l.b16 %v916
      %v1029 = vunpack.c.l.b16 %v917
      %v1030 = vunpack.c.l.b16 %v918
      %v1031 = vunpack.c.l.b16 %v919
      %v1032 = vunpack.c.l.b16 %v920
      %v1033 = vunpack.c.l.b16 %v921
      %v1034 = vunpack.c.l.b16 %v922
      %v1035 = vpack.c.b16 %v988, %v987
      %v1036 = vpack.c.b16 %v990, %v989
      %v1037 = vpack.c.b16 %v992, %v991
      %v1038 = vpack.c.b16 %v994, %v993
      %v1039 = vpack.c.b16 %v996, %v995
      %v1040 = vpack.c.b16 %v998, %v997
      %v1041 = vpack.c.b16 %v1000, %v999
      %v1042 = vpack.c.b16 %v1002, %v1001
      %v1043 = vpack.c.b16 %v1004, %v1003
      %v1044 = vpack.c.b16 %v1006, %v1005
      %v1045 = vpack.c.b16 %v1008, %v1007
      %v1046 = vpack.c.b16 %v1010, %v1009
      %v1047 = vpack.c.b16 %v1012, %v1011
      %v1048 = vpack.c.b16 %v1014, %v1013
      %v1049 = vpack.c.b16 %v1016, %v1015
      %v1050 = vpack.c.b16 %v1018, %v1017
      %v1051 = vpack.c.b16 %v1020, %v1019
      %v1052 = vpack.c.b16 %v1022, %v1021
      %v1053 = vpack.c.b16 %v1024, %v1023
      %v1054 = vpack.c.b16 %v1026, %v1025
      %v1055 = vpack.c.b16 %v1028, %v1027
      %v1056 = vpack.c.b16 %v1030, %v1029
      %v1057 = vpack.c.b16 %v1032, %v1031
      %v1058 = vpack.c.b16 %v1034, %v1033
      %1083 = vmatprep.subr.bf16.mxu0 0
      %1084 = vmatpush1.bf16.msra.mxu0 %v1042
      %1085 = vmatprep.subr.bf16.mxu0 0
      %1086 = vmatpush1.bf16.msra.mxu0 %v1041
      %1087 = vmatprep.subr.bf16.mxu0 0
      %1088 = vmatpush1.bf16.msra.mxu0 %v1040
      %1089 = vmatprep.subr.bf16.mxu0 0
      %1090 = vmatpush1.bf16.msra.mxu0 %v1039
      %1091 = vmatprep.subr.bf16.mxu0 0
      %1092 = vmatpush1.bf16.msra.mxu0 %v1038
      %1093 = vmatprep.subr.bf16.mxu0 0
      %1094 = vmatpush1.bf16.msra.mxu0 %v1037
      %1095 = vmatprep.subr.bf16.mxu0 0
      %1096 = vmatpush1.bf16.msra.mxu0 %v1036
      %1097 = vmatprep.subr.bf16.mxu0 0
      %1098 = vmatpush1.bf16.msra.mxu0 %v1035
      %1099 = vmatprep.subr.bf16.mxu0 0
      %1100 = vmatpush2.bf16.msra.mxu0 %v1050
      %1101 = vmatprep.subr.bf16.mxu0 0
      %1102 = vmatpush2.bf16.msra.mxu0 %v1049
      %1103 = vmatprep.subr.bf16.mxu0 0
      %1104 = vmatpush2.bf16.msra.mxu0 %v1048
      %1105 = vmatprep.subr.bf16.mxu0 0
      %1106 = vmatpush2.bf16.msra.mxu0 %v1047
      %1107 = vmatprep.subr.bf16.mxu0 0
      %1108 = vmatpush2.bf16.msra.mxu0 %v1046
      %1109 = vmatprep.subr.bf16.mxu0 0
      %1110 = vmatpush2.bf16.msra.mxu0 %v1045
      %1111 = vmatprep.subr.bf16.mxu0 0
      %1112 = vmatpush2.bf16.msra.mxu0 %v1044
      %1113 = vmatprep.subr.bf16.mxu0 0
      %1114 = vmatpush2.bf16.msra.mxu0 %v1043
      %1115 = vmatprep.mubr.bf16.mxu0 %v929
      %1116 = vmatmul.mubr.bf16.gmra.mxu0 %v926
      %v1117 = vpop.f32.mrf.mxu0
      %v1118 = vadd.f32 0.0, %v1117
      %v1119 = vpop.f32.mrf.mxu0
      %v1120 = vpop.f32.mrf.mxu0
      %v1121 = vadd.f32 0.0, %v1120
      %v1122 = vpop.f32.mrf.mxu0
      %1123 = vmatprep.mubr.bf16.mxu0 %v928
      %1124 = vmatmul.mubr.bf16.gmra.mxu0 %v925
      %v1125 = vpop.f32.mrf.mxu0
      %v1126 = vadd.f32 0.0, %v1125
      %v1127 = vpop.f32.mrf.mxu0
      %v1128 = vpop.f32.mrf.mxu0
      %v1129 = vpop.f32.mrf.mxu0
      %1130 = vdwg.mxu0
      %1131 = vmatprep.subr.bf16.mxu0 0
      %1132 = vmatpush1.bf16.msra.mxu0 %v1058
      %1133 = vmatprep.subr.bf16.mxu0 0
      %1134 = vmatpush1.bf16.msra.mxu0 %v1057
      %1135 = vmatprep.subr.bf16.mxu0 0
      %1136 = vmatpush1.bf16.msra.mxu0 %v1056
      %1137 = vmatprep.subr.bf16.mxu0 0
      %1138 = vmatpush1.bf16.msra.mxu0 %v1055
      %1139 = vmatprep.subr.bf16.mxu0 0
      %1140 = vmatpush1.bf16.msra.mxu0 %v1054
      %1141 = vmatprep.subr.bf16.mxu0 0
      %1142 = vmatpush1.bf16.msra.mxu0 %v1053
      %1143 = vmatprep.subr.bf16.mxu0 0
      %1144 = vmatpush1.bf16.msra.mxu0 %v1052
      %1145 = vmatprep.subr.bf16.mxu0 0
      %1146 = vmatpush1.bf16.msra.mxu0 %v1051
      %1147 = vmatprep.subr.bf16.mxu0 0
      %1148 = vmatpush2.bf16.msra.mxu0 0
      %1149 = vmatprep.subr.bf16.mxu0 0
      %1150 = vmatpush2.bf16.msra.mxu0 0
      %1151 = vmatprep.subr.bf16.mxu0 0
      %1152 = vmatpush2.bf16.msra.mxu0 0
      %1153 = vmatprep.subr.bf16.mxu0 0
      %1154 = vmatpush2.bf16.msra.mxu0 0
      %1155 = vmatprep.subr.bf16.mxu0 0
      %1156 = vmatpush2.bf16.msra.mxu0 0
      %1157 = vmatprep.subr.bf16.mxu0 0
      %1158 = vmatpush2.bf16.msra.mxu0 0
      %1159 = vmatprep.subr.bf16.mxu0 0
      %1160 = vmatpush2.bf16.msra.mxu0 0
      %1161 = vmatprep.subr.bf16.mxu0 0
      %1162 = vmatpush2.bf16.msra.mxu0 0
      %1163 = vmatprep.mubr.bf16.mxu0 0
      %1164 = vmatmul.mubr.bf16.gmra.mxu0 %v932
      %v1165 = vpop.f32.mrf.mxu0
      %v1166 = vadd.f32 %v1118, %v1165
      %v1167 = vpop.f32.mrf.mxu0
      %v1168 = vpop.f32.mrf.mxu0
      %v1169 = vadd.f32 %v1121, %v1168
      %v1170 = vpop.f32.mrf.mxu0
      %1171 = vmatprep.mubr.bf16.mxu0 0
      %1172 = vmatmul.mubr.bf16.gmra.mxu0 %v931
      %v1173 = vpop.f32.mrf.mxu0
      %v1174 = vadd.f32 %v1126, %v1173
      %v1175 = vpop.f32.mrf.mxu0
      %v1176 = vpop.f32.mrf.mxu0
      %v1177 = vpop.f32.mrf.mxu0
      %1178 = vdwg.mxu0
      %v1179 = vadd.f32 %v845, %v1166
      %v1180 = vadd.f32 %v848, %v1169
      %v1181 = vadd.f32 %v853, %v1174
      %v1182 = vld [vmem:[%s2] sm:$0x1]
      %v1184 = vlaneseq
      %v1185 = vshrl.u32 %v1184, 7
      %v1186 = vsub.s32 0, %v1185
      %v1187 = vrot.slane %v1182, %v1186
      %v1189 = vadd.f32 %v1179, %v1187
      %v1190 = vadd.f32 %v1180, %v1187
      %v1191 = vadd.f32 %v1181, %v1187
      %v1192 = vmax.f32 %v1189, 0.0
      %v1193 = vmax.f32 %v1190, 0.0
      %v1194 = vmax.f32 %v1191, 0.0
      %v1195 = vpack.c.bf16 %v1193, %v1192
      %v1196 = vpack.c.bf16 %v1194, %v1194
      %v1199 = vunpack.c.l.b16 %v1195
      %v1200 = vunpack.c.h.b16 %v1195
      %v1201 = vunpack.c.l.b16 %v1196
      %v1202 = vpack.c.b16 %v1199, %v1199
      %v1203 = vpack.c.b16 %v1200, %v1200
      %v1204 = vpack.c.b16 %v1201, %v1201
      %1208 = vst [vmem:[%s170] sm:$0xf] %v1202
      %1209 = vst [vmem:[%s170 + $0x4] sm:$0xf] %v1203
      %1210 = vst [vmem:[%s170 + $0x8] sm:$0xf] %v1204
      %p1211 = scmp.lt.s32.totalorder %s14, 1
      %s1212 = scalar_select %p1211, %s14, 1
      %s1213 = smul.addr %s1212, 3
      %s1214 = smul.addr %s1213, 4
      %s1215 = scalar_lea.vmem %s3, %s1214
      // Predicated region
      $region33: #{_lambda_.37} parent=31 // pred_check
        %p1216 = pneg %p100
      $region34: #{_lambda_.37} parent=31 // pred_check_branch
        %1218 = sbr.rel (%p1216) target = $region36
      $region35: #{_lambda_.37} parent=31 // pred_region
        _
      $region36: #{_lambda_.37} parent=31 // pred_fallthru
        _
    $region32: #{_lambda_.37} parent=5 // pred_fallthru
      _
    %p1219 = scmp.le.s32.totalorder 2, %s9
    // Predicated region
    $region37: #{_lambda_.37} parent=5 // pred_check
      %p1220 = pneg %p1219
    $region38: #{_lambda_.37} parent=5 // pred_check_branch
      %1222 = sbr.rel (%p1220) target = $region40
    $region39: #{_lambda_.37} parent=5 // pred_region
      %s1223 = ssub.s32 %s9, 2
      // Predicated region
      $region41: #{_lambda_.37} parent=39 // pred_check
        %p1224 = pneg %p106
      $region42: #{_lambda_.37} parent=39 // pred_check_branch
        %1226 = sbr.rel (%p1224) target = $region44
      $region43: #{_lambda_.37} parent=39 // pred_region
        %p1227 = scmp.lt.s32.totalorder %s15, 1
        %s1228 = scalar_select %p1227, %s15, 1
        %s1229 = smul.addr %s1228, 3
        %s1230 = smul.addr %s1229, 4
        %s1231 = scalar_lea.vmem %s3, %s1230
      $region44: #{_lambda_.37} parent=39 // pred_fallthru
        _
    $region40: #{_lambda_.37} parent=5 // pred_fallthru
      _
  $region6: #{_lambda_.37} parent=0 // loop_footer
    %s13 = sadd.s32 1, %s9
  $region7: #{_lambda_.37} parent=0 // loop_footer_branch
    %8 = sbr.rel target = $region3
  $region8: #{_lambda_.37} parent=0 // loop_exit
    _

// kernel: _lambda_.44
$region0: #{_lambda_.44}
  #allocation0 [shape = 'u32[]', space=smem, size = 0x4, offset = 0x4, fixed_abs, tag = 'smem constant byte address 0x4 - core index']
  #allocation1 [shape = 'u32[144,128]{1,0:T(1,128)}', space=vmem, size = 0x12000, scoped, tag = 'internal scratch']
  %s0 = inlined_call_operand.vmem [shape: bf16[2,24,128], index: 0, kind: input, shape index: {}]
  %s1 = inlined_call_operand.vmem [shape: bf16[3,384,128], index: 1, kind: input, shape index: {}]
  %s2 = inlined_call_operand.vmem [shape: f32[1,128], index: 2, kind: input, shape index: {}]
  %s3 = inlined_call_operand.vmem [shape: bf16[2,8,128], index: 3, kind: output, shape index: {}]
  %s4 = sld [smem:[#allocation0]]
  $region45: #{_lambda_.44} parent=0
    _
  %s6 = ssub.s32 1, %s4
  %s7 = scalar_select 0, %s6, %s4
  loop: start=0, step=1, limit=4
  $region2: #{_lambda_.44} parent=0 // loop_pre_header
    _
  $region3: #{_lambda_.44} parent=0 // loop_header
    %s9 = sphi 0, %s13
    %p10 = scmp.ge.s32.totalorder %s9, 4
    %s19 = sphi 0, %s21
    %s22 = sphi 0, %s19
    %s23 = sphi 0, %s22
    %s39 = sphi 0, %s23
    %s43 = sphi 0, %s43
    %s45 = sphi 0, %s43
    %s46 = sphi 0, %s45
    %s60 = sphi 0, %s46
    %s64 = sphi 0, %s64
    %s66 = sphi 0, %s64
    %s67 = sphi 0, %s66
    %s81 = sphi 0, %s67
    %s87 = sphi 0, %s89
    %s90 = sphi 0, %s87
    %s91 = sphi 0, %s90
    %s107 = sphi 0, %s91
  $region4: #{_lambda_.44} parent=0 // loop_header_branch
    %12 = sbr.rel (%p10) target = $region8
  $region5: #{_lambda_.44} parent=0 // loop_body
    %s14 = ssub.s32 %s9, 1
    %s15 = ssub.s32 %s9, 2
    %s16 = sadd.s32 %s9, 1
    %s17 = ssub.s32 %s9, %s16
    %p18 = scmp.eq.s32.totalorder %s17, 0
    %s20 = sadd.s32 %s19, 1
    %s21 = scalar_select %p18, %s19, %s20
    %p24 = pneg %p18
    %p25 = scmp.eq.s32.totalorder %s9, 1
    %p26 = por %p24, %p25
    %p27 = scmp.ne.s32.totalorder %s19, %s22
    %p28 = scmp.eq.s32.totalorder %s9, 0
    %p29 = por %p27, %p28
    %p30 = scmp.ne.s32.totalorder %s19, %s22
    %p31 = scmp.eq.s32.totalorder %s14, 1
    %p32 = por %p30, %p31
    %p33 = scmp.ne.s32.totalorder %s22, %s23
    %p34 = scmp.eq.s32.totalorder %s14, 0
    %p35 = por %p33, %p34
    %p36 = scmp.ne.s32.totalorder %s22, %s23
    %p37 = scmp.eq.s32.totalorder %s15, 1
    %p38 = por %p36, %p37
    %p40 = scmp.ne.s32.totalorder %s23, %s39
    %p41 = scmp.eq.s32.totalorder %s15, 0
    %p42 = por %p40, %p41
    %s44 = sadd.s32 %s43, 1
    %p47 = scmp.eq.s32.totalorder %s9, 1
    %p48 = scmp.ne.s32.totalorder %s43, %s45
    %p49 = scmp.eq.s32.totalorder %s9, 0
    %p50 = por %p48, %p49
    %p51 = scmp.ne.s32.totalorder %s43, %s45
    %p52 = scmp.eq.s32.totalorder %s14, 1
    %p53 = por %p51, %p52
    %p54 = scmp.ne.s32.totalorder %s45, %s46
    %p55 = scmp.eq.s32.totalorder %s14, 0
    %p56 = por %p54, %p55
    %p57 = scmp.ne.s32.totalorder %s45, %s46
    %p58 = scmp.eq.s32.totalorder %s15, 1
    %p59 = por %p57, %p58
    %p61 = scmp.ne.s32.totalorder %s46, %s60
    %p62 = scmp.eq.s32.totalorder %s15, 0
    %p63 = por %p61, %p62
    %s65 = sadd.s32 %s64, 1
    %p68 = scmp.eq.s32.totalorder %s9, 1
    %p69 = scmp.ne.s32.totalorder %s64, %s66
    %p70 = scmp.eq.s32.totalorder %s9, 0
    %p71 = por %p69, %p70
    %p72 = scmp.ne.s32.totalorder %s64, %s66
    %p73 = scmp.eq.s32.totalorder %s14, 1
    %p74 = por %p72, %p73
    %p75 = scmp.ne.s32.totalorder %s66, %s67
    %p76 = scmp.eq.s32.totalorder %s14, 0
    %p77 = por %p75, %p76
    %p78 = scmp.ne.s32.totalorder %s66, %s67
    %p79 = scmp.eq.s32.totalorder %s15, 1
    %p80 = por %p78, %p79
    %p82 = scmp.ne.s32.totalorder %s67, %s81
    %p83 = scmp.eq.s32.totalorder %s15, 0
    %p84 = por %p82, %p83
    %s85 = ssub.s32 %s9, %s16
    %p86 = scmp.eq.s32.totalorder %s85, 0
    %s88 = sadd.s32 %s87, 1
    %s89 = scalar_select %p86, %s87, %s88
    %p92 = pneg %p86
    %p93 = scmp.eq.s32.totalorder %s9, 1
    %p94 = por %p92, %p93
    %p95 = scmp.ne.s32.totalorder %s87, %s90
    %p96 = scmp.eq.s32.totalorder %s9, 0
    %p97 = por %p95, %p96
    %p98 = scmp.ne.s32.totalorder %s87, %s90
    %p99 = scmp.eq.s32.totalorder %s14, 1
    %p100 = por %p98, %p99
    %p101 = scmp.ne.s32.totalorder %s90, %s91
    %p102 = scmp.eq.s32.totalorder %s14, 0
    %p103 = por %p101, %p102
    %p104 = scmp.ne.s32.totalorder %s90, %s91
    %p105 = scmp.eq.s32.totalorder %s15, 1
    %p106 = por %p104, %p105
    %p108 = scmp.ne.s32.totalorder %s91, %s107
    %p109 = scmp.eq.s32.totalorder %s15, 0
    %p110 = por %p108, %p109
    %p111 = scmp.le.s32.totalorder 1, %s9
    %p112 = scmp.lt.s32.totalorder %s9, 3
    %p113 = pnand %p111, %p112
    %p114 = pneg %p113
    // Predicated region
    $region9: #{_lambda_.44} parent=5 // pred_check
      _
    $region10: #{_lambda_.44} parent=5 // pred_check_branch
      %116 = sbr.rel (%p113) target = $region12
    $region11: #{_lambda_.44} parent=5 // pred_region
      %s117 = ssub.s32 %s9, 1
      // Predicated region
      $region13: #{_lambda_.44} parent=11 // pred_check
        %p118 = pneg %p56
      $region14: #{_lambda_.44} parent=11 // pred_check_branch
        %120 = sbr.rel (%p118) target = $region16
      $region15: #{_lambda_.44} parent=11 // pred_region
        _
      $region16: #{_lambda_.44} parent=11 // pred_fallthru
        _
      // Predicated region
      $region17: #{_lambda_.44} parent=11 // pred_check
        %p121 = pneg %p77
      $region18: #{_lambda_.44} parent=11 // pred_check_branch
        %123 = sbr.rel (%p121) target = $region20
      $region19: #{_lambda_.44} parent=11 // pred_region
        _
      $region20: #{_lambda_.44} parent=11 // pred_fallthru
        _
    $region12: #{_lambda_.44} parent=5 // pred_fallthru
      _
    %p124 = scmp.lt.s32.totalorder %s9, 2
    // Predicated region
    $region21: #{_lambda_.44} parent=5 // pred_check
      %p125 = pneg %p124
    $region22: #{_lambda_.44} parent=5 // pred_check_branch
      %127 = sbr.rel (%p125) target = $region24
    $region23: #{_lambda_.44} parent=5 // pred_region
      // Predicated region
      $region25: #{_lambda_.44} parent=23 // pred_check
        %p128 = pneg %p29
      $region26: #{_lambda_.44} parent=23 // pred_check_branch
        %130 = sbr.rel (%p128) target = $region28
      $region27: #{_lambda_.44} parent=23 // pred_region
        %p131 = scmp.lt.s32.totalorder %s9, 1
        %s132 = scalar_select %p131, %s9, 1
        %s133 = smul.addr %s132, 3
        %s134 = smul.addr %s133, 4
        %s135 = scalar_lea.vmem %s0, %s134
      $region28: #{_lambda_.44} parent=23 // pred_fallthru
        _
    $region24: #{_lambda_.44} parent=5 // pred_fallthru
      _
    %p136 = scmp.le.s32.totalorder 1, %s9
    %p137 = scmp.lt.s32.totalorder %s9, 3
    %p138 = pnand %p136, %p137
    %p139 = pneg %p138
    // Predicated region
    $region29: #{_lambda_.44} parent=5 // pred_check
      _
    $region30: #{_lambda_.44} parent=5 // pred_check_branch
      %141 = sbr.rel (%p138) target = $region32
    $region31: #{_lambda_.44} parent=5 // pred_region
      %s142 = ssub.s32 %s9, 1
      %p143 = scmp.lt.s32.totalorder %s14, 1
      %s144 = scalar_select %p143, %s14, 1
      %s145 = smul.addr %s144, 3
      %s146 = smul.addr %s145, 4
      %s147 = scalar_lea.vmem %s0, %s146
      %p148 = pneg %p35
      %p149 = pneg %p32
      %p150 = pneg %p56
      %p151 = pneg %p53
      %p152 = pneg %p77
      %p153 = pneg %p74
      %p154 = pneg %p103
      %p155 = pneg %p100
      %p156 = scmp.lt.s32.totalorder %s14, 1
      %s157 = scalar_select %p156, %s14, 1
      %s158 = smul.addr %s157, 4
      %s159 = scalar_lea.vmem %s3, %s158
      %p160 = scmp.lt.s32.totalorder %s14, 1
      %s161 = scalar_select %p160, %s14, 1
      %s162 = smul.addr %s161, 3
      %s163 = smul.addr %s162, 4
      %s164 = scalar_lea.vmem %s0, %s163
      %p165 = scmp.lt.s32.totalorder %s14, 1
      %s166 = scalar_select %p165, %s14, 1
      %s167 = smul.addr %s166, 4
      %s168 = scalar_lea.vmem %s3, %s167
      %v170 = vld [vmem:[%s164] sm:$0xf]
      %v171 = vld [vmem:[%s164] sm:$0xc]
      %v172 = vld [vmem:[%s164 + $0x4] sm:$0x3]
      %v173 = vld [vmem:[%s164 + $0x4] sm:$0xf]
      %v176 = vunpack.c.l.b16 %v171
      %v177 = vunpack.c.l.b16 %v172
      %v178 = vpack.c.b16 %v177, %v176
      %v179 = vrot.slane %v178, 2
      %v181 = vld [vmem:[%s1] sm:$0xf]
      %v182 = vld [vmem:[%s1 + $0x4] sm:$0xf]
      %v183 = vld [vmem:[%s1 + $0x8] sm:$0xf]
      %v184 = vld [vmem:[%s1 + $0xc] sm:$0xf]
      %v185 = vld [vmem:[%s1 + $0x10] sm:$0xf]
      %v186 = vld [vmem:[%s1 + $0x14] sm:$0xf]
      %v187 = vld [vmem:[%s1 + $0x18] sm:$0xf]
      %v188 = vld [vmem:[%s1 + $0x1c] sm:$0xf]
      %v189 = vld [vmem:[%s1 + $0x20] sm:$0xf]
      %v190 = vld [vmem:[%s1 + $0x24] sm:$0xf]
      %v191 = vld [vmem:[%s1 + $0x28] sm:$0xf]
      %v192 = vld [vmem:[%s1 + $0x2c] sm:$0xf]
      %v193 = vld [vmem:[%s1 + $0x30] sm:$0xf]
      %v194 = vld [vmem:[%s1 + $0x34] sm:$0xf]
      %v195 = vld [vmem:[%s1 + $0x38] sm:$0xf]
      %v196 = vld [vmem:[%s1 + $0x3c] sm:$0xf]
      %v197 = vld [vmem:[%s1 + $0x40] sm:$0xf]
      %v198 = vld [vmem:[%s1 + $0x44] sm:$0xf]
      %v199 = vld [vmem:[%s1 + $0x48] sm:$0xf]
      %v200 = vld [vmem:[%s1 + $0x4c] sm:$0xf]
      %v201 = vld [vmem:[%s1 + $0x50] sm:$0xf]
      %v202 = vld [vmem:[%s1 + $0x54] sm:$0xf]
      %v203 = vld [vmem:[%s1 + $0x58] sm:$0xf]
      %v204 = vld [vmem:[%s1 + $0x5c] sm:$0xf]
      %v205 = vld [vmem:[%s1 + $0x60] sm:$0xf]
      %v206 = vld [vmem:[%s1 + $0x64] sm:$0xf]
      %v207 = vld [vmem:[%s1 + $0x68] sm:$0xf]
      %v208 = vld [vmem:[%s1 + $0x6c] sm:$0xf]
      %v209 = vld [vmem:[%s1 + $0x70] sm:$0xf]
      %v210 = vld [vmem:[%s1 + $0x74] sm:$0xf]
      %v211 = vld [vmem:[%s1 + $0x78] sm:$0xf]
      %v212 = vld [vmem:[%s1 + $0x7c] sm:$0xf]
      %v213 = vld [vmem:[%s1 + $0x80] sm:$0xf]
      %v214 = vld [vmem:[%s1 + $0x84] sm:$0xf]
      %v215 = vld [vmem:[%s1 + $0x88] sm:$0xf]
      %v216 = vld [vmem:[%s1 + $0x8c] sm:$0xf]
      %v217 = vld [vmem:[%s1 + $0x90] sm:$0xf]
      %v218 = vld [vmem:[%s1 + $0x94] sm:$0xf]
      %v219 = vld [vmem:[%s1 + $0x98] sm:$0xf]
      %v220 = vld [vmem:[%s1 + $0x9c] sm:$0xf]
      %v221 = vld [vmem:[%s1 + $0xa0] sm:$0xf]
      %v222 = vld [vmem:[%s1 + $0xa4] sm:$0xf]
      %v223 = vld [vmem:[%s1 + $0xa8] sm:$0xf]
      %v224 = vld [vmem:[%s1 + $0xac] sm:$0xf]
      %v225 = vld [vmem:[%s1 + $0xb0] sm:$0xf]
      %v226 = vld [vmem:[%s1 + $0xb4] sm:$0xf]
      %v227 = vld [vmem:[%s1 + $0xb8] sm:$0xf]
      %v228 = vld [vmem:[%s1 + $0xbc] sm:$0xf]
      %v229 = vld [vmem:[%s164 + $0x4] sm:$0x1]
      %v230 = vld [vmem:[%s164 + $0x4] sm:$0x7]
      %v231 = vld [vmem:[%s164 + $0x4] sm:$0xf]
      %v232 = vld [vmem:[%s164 + $0x8] sm:$0x1]
      %v235 = vunpack.c.l.b16 %v170
      %v236 = vunpack.c.l.b16 %v229
      %v237 = vpack.c.b16 %v236, %v235
      %v239 = vunpack.c.l.b16 %v230
      %v240 = vpack.c.b16 %v239, %v176
      %v241 = vrot.slane %v240, 2
      %v244 = vunpack.c.l.b16 %v231
      %v245 = vunpack.c.l.b16 %v232
      %v246 = vpack.c.b16 %v245, %v244
      %s247 = scalar_lea.vmem %s1, 192
      %v248 = vld [vmem:[%s247] sm:$0xf]
      %v249 = vld [vmem:[%s247 + $0x4] sm:$0xf]
      %v250 = vld [vmem:[%s247 + $0x8] sm:$0xf]
      %v251 = vld [vmem:[%s247 + $0xc] sm:$0xf]
      %v252 = vld [vmem:[%s247 + $0x10] sm:$0xf]
      %v253 = vld [vmem:[%s247 + $0x14] sm:$0xf]
      %v254 = vld [vmem:[%s247 + $0x18] sm:$0xf]
      %v255 = vld [vmem:[%s247 + $0x1c] sm:$0xf]
      %v256 = vld [vmem:[%s247 + $0x20] sm:$0xf]
      %v257 = vld [vmem:[%s247 + $0x24] sm:$0xf]
      %v258 = vld [vmem:[%s247 + $0x28] sm:$0xf]
      %v259 = vld [vmem:[%s247 + $0x2c] sm:$0xf]
      %v260 = vld [vmem:[%s247 + $0x30] sm:$0xf]
      %v261 = vld [vmem:[%s247 + $0x34] sm:$0xf]
      %v262 = vld [vmem:[%s247 + $0x38] sm:$0xf]
      %v263 = vld [vmem:[%s247 + $0x3c] sm:$0xf]
      %v264 = vld [vmem:[%s247 + $0x40] sm:$0xf]
      %v265 = vld [vmem:[%s247 + $0x44] sm:$0xf]
      %v266 = vld [vmem:[%s247 + $0x48] sm:$0xf]
      %v267 = vld [vmem:[%s247 + $0x4c] sm:$0xf]
      %v268 = vld [vmem:[%s247 + $0x50] sm:$0xf]
      %v269 = vld [vmem:[%s247 + $0x54] sm:$0xf]
      %v270 = vld [vmem:[%s247 + $0x58] sm:$0xf]
      %v271 = vld [vmem:[%s247 + $0x5c] sm:$0xf]
      %v272 = vld [vmem:[%s247 + $0x60] sm:$0xf]
      %v273 = vld [vmem:[%s247 + $0x64] sm:$0xf]
      %v274 = vld [vmem:[%s247 + $0x68] sm:$0xf]
      %v275 = vld [vmem:[%s247 + $0x6c] sm:$0xf]
      %v276 = vld [vmem:[%s247 + $0x70] sm:$0xf]
      %v277 = vld [vmem:[%s247 + $0x74] sm:$0xf]
      %v278 = vld [vmem:[%s247 + $0x78] sm:$0xf]
      %v279 = vld [vmem:[%s247 + $0x7c] sm:$0xf]
      %v280 = vld [vmem:[%s247 + $0x80] sm:$0xf]
      %v281 = vld [vmem:[%s247 + $0x84] sm:$0xf]
      %v282 = vld [vmem:[%s247 + $0x88] sm:$0xf]
      %v283 = vld [vmem:[%s247 + $0x8c] sm:$0xf]
      %v284 = vld [vmem:[%s247 + $0x90] sm:$0xf]
      %v285 = vld [vmem:[%s247 + $0x94] sm:$0xf]
      %v286 = vld [vmem:[%s247 + $0x98] sm:$0xf]
      %v287 = vld [vmem:[%s247 + $0x9c] sm:$0xf]
      %v288 = vld [vmem:[%s247 + $0xa0] sm:$0xf]
      %v289 = vld [vmem:[%s247 + $0xa4] sm:$0xf]
      %v290 = vld [vmem:[%s247 + $0xa8] sm:$0xf]
      %v291 = vld [vmem:[%s247 + $0xac] sm:$0xf]
      %v292 = vld [vmem:[%s247 + $0xb0] sm:$0xf]
      %v293 = vld [vmem:[%s247 + $0xb4] sm:$0xf]
      %v294 = vld [vmem:[%s247 + $0xb8] sm:$0xf]
      %v295 = vld [vmem:[%s247 + $0xbc] sm:$0xf]
      %v297 = vshrl.u32 %v237, 16
      %v299 = vshll.u32 %v237, 16
      %v301 = vrot.slane %v299, 1
      %v302 = vor.u32 %v297, %v301
      %v304 = vshrl.u32 %v241, 16
      %v306 = vshll.u32 %v241, 16
      %v308 = vrot.slane %v306, 1
      %v309 = vor.u32 %v304, %v308
      %v311 = vshrl.u32 %v246, 16
      %v313 = vshll.u32 %v246, 16
      %v315 = vrot.slane %v313, 1
      %v316 = vor.u32 %v311, %v315
      %v368 = vunpack.c.l.b16 %v248
      %v369 = vunpack.c.l.b16 %v249
      %v370 = vunpack.c.l.b16 %v250
      %v371 = vunpack.c.l.b16 %v251
      %v372 = vunpack.c.l.b16 %v252
      %v373 = vunpack.c.l.b16 %v253
      %v374 = vunpack.c.l.b16 %v254
      %v375 = vunpack.c.l.b16 %v255
      %v376 = vunpack.c.l.b16 %v256
      %v377 = vunpack.c.l.b16 %v257
      %v378 = vunpack.c.l.b16 %v258
      %v379 = vunpack.c.l.b16 %v259
      %v380 = vunpack.c.l.b16 %v260
      %v381 = vunpack.c.l.b16 %v261
      %v382 = vunpack.c.l.b16 %v262
      %v383 = vunpack.c.l.b16 %v263
      %v384 = vunpack.c.l.b16 %v264
      %v385 = vunpack.c.l.b16 %v265
      %v386 = vunpack.c.l.b16 %v266
      %v387 = vunpack.c.l.b16 %v267
      %v388 = vunpack.c.l.b16 %v268
      %v389 = vunpack.c.l.b16 %v269
      %v390 = vunpack.c.l.b16 %v270
      %v391 = vunpack.c.l.b16 %v271
      %v392 = vunpack.c.l.b16 %v272
      %v393 = vunpack.c.l.b16 %v273
      %v394 = vunpack.c.l.b16 %v274
      %v395 = vunpack.c.l.b16 %v275
      %v396 = vunpack.c.l.b16 %v276
      %v397 = vunpack.c.l.b16 %v277
      %v398 = vunpack.c.l.b16 %v278
      %v399 = vunpack.c.l.b16 %v279
      %v400 = vunpack.c.l.b16 %v280
      %v401 = vunpack.c.l.b16 %v281
      %v402 = vunpack.c.l.b16 %v282
      %v403 = vunpack.c.l.b16 %v283
      %v404 = vunpack.c.l.b16 %v284
      %v405 = vunpack.c.l.b16 %v285
      %v406 = vunpack.c.l.b16 %v286
      %v407 = vunpack.c.l.b16 %v287
      %v408 = vunpack.c.l.b16 %v288
      %v409 = vunpack.c.l.b16 %v289
      %v410 = vunpack.c.l.b16 %v290
      %v411 = vunpack.c.l.b16 %v291
      %v412 = vunpack.c.l.b16 %v292
      %v413 = vunpack.c.l.b16 %v293
      %v414 = vunpack.c.l.b16 %v294
      %v415 = vunpack.c.l.b16 %v295
      %v416 = vpack.c.b16 %v369, %v368
      %v417 = vpack.c.b16 %v371, %v370
      %v418 = vpack.c.b16 %v373, %v372
      %v419 = vpack.c.b16 %v375, %v374
      %v420 = vpack.c.b16 %v377, %v376
      %v421 = vpack.c.b16 %v379, %v378
      %v422 = vpack.c.b16 %v381, %v380
      %v423 = vpack.c.b16 %v383, %v382
      %v424 = vpack.c.b16 %v385, %v384
      %v425 = vpack.c.b16 %v387, %v386
      %v426 = vpack.c.b16 %v389, %v388
      %v427 = vpack.c.b16 %v391, %v390
      %v428 = vpack.c.b16 %v393, %v392
      %v429 = vpack.c.b16 %v395, %v394
      %v430 = vpack.c.b16 %v397, %v396
      %v431 = vpack.c.b16 %v399, %v398
      %v432 = vpack.c.b16 %v401, %v400
      %v433 = vpack.c.b16 %v403, %v402
      %v434 = vpack.c.b16 %v405, %v404
      %v435 = vpack.c.b16 %v407, %v406
      %v436 = vpack.c.b16 %v409, %v408
      %v437 = vpack.c.b16 %v411, %v410
      %v438 = vpack.c.b16 %v413, %v412
      %v439 = vpack.c.b16 %v415, %v414
      %464 = vmatprep.subr.bf16.mxu0 0
      %465 = vmatpush1.bf16.msra.mxu0 %v423
      %466 = vmatprep.subr.bf16.mxu0 0
      %467 = vmatpush1.bf16.msra.mxu0 %v422
      %468 = vmatprep.subr.bf16.mxu0 0
      %469 = vmatpush1.bf16.msra.mxu0 %v421
      %470 = vmatprep.subr.bf16.mxu0 0
      %471 = vmatpush1.bf16.msra.mxu0 %v420
      %472 = vmatprep.subr.bf16.mxu0 0
      %473 = vmatpush1.bf16.msra.mxu0 %v419
      %474 = vmatprep.subr.bf16.mxu0 0
      %475 = vmatpush1.bf16.msra.mxu0 %v418
      %476 = vmatprep.subr.bf16.mxu0 0
      %477 = vmatpush1.bf16.msra.mxu0 %v417
      %478 = vmatprep.subr.bf16.mxu0 0
      %479 = vmatpush1.bf16.msra.mxu0 %v416
      %480 = vmatprep.subr.bf16.mxu0 0
      %481 = vmatpush2.bf16.msra.mxu0 %v431
      %482 = vmatprep.subr.bf16.mxu0 0
      %483 = vmatpush2.bf16.msra.mxu0 %v430
      %484 = vmatprep.subr.bf16.mxu0 0
      %485 = vmatpush2.bf16.msra.mxu0 %v429
      %486 = vmatprep.subr.bf16.mxu0 0
      %487 = vmatpush2.bf16.msra.mxu0 %v428
      %488 = vmatprep.subr.bf16.mxu0 0
      %489 = vmatpush2.bf16.msra.mxu0 %v427
      %490 = vmatprep.subr.bf16.mxu0 0
      %491 = vmatpush2.bf16.msra.mxu0 %v426
      %492 = vmatprep.subr.bf16.mxu0 0
      %493 = vmatpush2.bf16.msra.mxu0 %v425
      %494 = vmatprep.subr.bf16.mxu0 0
      %495 = vmatpush2.bf16.msra.mxu0 %v424
      %496 = vmatprep.mubr.bf16.mxu0 %v309
      %497 = vmatmul.mubr.bf16.gmra.mxu0 %v302
      %v498 = vpop.f32.mrf.mxu0
      %v499 = vadd.f32 0.0, %v498
      %v500 = vpop.f32.mrf.mxu0
      %v501 = vpop.f32.mrf.mxu0
      %v502 = vpop.f32.mrf.mxu0
      %503 = vdwg.mxu0
      %504 = vmatprep.subr.bf16.mxu0 0
      %505 = vmatpush1.bf16.msra.mxu0 %v439
      %506 = vmatprep.subr.bf16.mxu0 0
      %507 = vmatpush1.bf16.msra.mxu0 %v438
      %508 = vmatprep.subr.bf16.mxu0 0
      %509 = vmatpush1.bf16.msra.mxu0 %v437
      %510 = vmatprep.subr.bf16.mxu0 0
      %511 = vmatpush1.bf16.msra.mxu0 %v436
      %512 = vmatprep.subr.bf16.mxu0 0
      %513 = vmatpush1.bf16.msra.mxu0 %v435
      %514 = vmatprep.subr.bf16.mxu0 0
      %515 = vmatpush1.bf16.msra.mxu0 %v434
      %516 = vmatprep.subr.bf16.mxu0 0
      %517 = vmatpush1.bf16.msra.mxu0 %v433
      %518 = vmatprep.subr.bf16.mxu0 0
      %519 = vmatpush1.bf16.msra.mxu0 %v432
      %520 = vmatprep.subr.bf16.mxu0 0
      %521 = vmatpush2.bf16.msra.mxu0 0
      %522 = vmatprep.subr.bf16.mxu0 0
      %523 = vmatpush2.bf16.msra.mxu0 0
      %524 = vmatprep.subr.bf16.mxu0 0
      %525 = vmatpush2.bf16.msra.mxu0 0
      %526 = vmatprep.subr.bf16.mxu0 0
      %527 = vmatpush2.bf16.msra.mxu0 0
      %528 = vmatprep.subr.bf16.mxu0 0
      %529 = vmatpush2.bf16.msra.mxu0 0
      %530 = vmatprep.subr.bf16.mxu0 0
      %531 = vmatpush2.bf16.msra.mxu0 0
      %532 = vmatprep.subr.bf16.mxu0 0
      %533 = vmatpush2.bf16.msra.mxu0 0
      %534 = vmatprep.subr.bf16.mxu0 0
      %535 = vmatpush2.bf16.msra.mxu0 0
      %536 = vmatprep.mubr.bf16.mxu0 0
      %537 = vmatmul.mubr.bf16.gmra.mxu0 %v316
      %v538 = vpop.f32.mrf.mxu0
      %v539 = vadd.f32 %v499, %v538
      %v540 = vpop.f32.mrf.mxu0
      %v541 = vpop.f32.mrf.mxu0
      %v542 = vpop.f32.mrf.mxu0
      %543 = vdwg.mxu0
      %v592 = vunpack.c.l.b16 %v181
      %v593 = vunpack.c.l.b16 %v182
      %v594 = vunpack.c.l.b16 %v183
      %v595 = vunpack.c.l.b16 %v184
      %v596 = vunpack.c.l.b16 %v185
      %v597 = vunpack.c.l.b16 %v186
      %v598 = vunpack.c.l.b16 %v187
      %v599 = vunpack.c.l.b16 %v188
      %v600 = vunpack.c.l.b16 %v189
      %v601 = vunpack.c.l.b16 %v190
      %v602 = vunpack.c.l.b16 %v191
      %v603 = vunpack.c.l.b16 %v192
      %v604 = vunpack.c.l.b16 %v193
      %v605 = vunpack.c.l.b16 %v194
      %v606 = vunpack.c.l.b16 %v195
      %v607 = vunpack.c.l.b16 %v196
      %v608 = vunpack.c.l.b16 %v197
      %v609 = vunpack.c.l.b16 %v198
      %v610 = vunpack.c.l.b16 %v199
      %v611 = vunpack.c.l.b16 %v200
      %v612 = vunpack.c.l.b16 %v201
      %v613 = vunpack.c.l.b16 %v202
      %v614 = vunpack.c.l.b16 %v203
      %v615 = vunpack.c.l.b16 %v204
      %v616 = vunpack.c.l.b16 %v205
      %v617 = vunpack.c.l.b16 %v206
      %v618 = vunpack.c.l.b16 %v207
      %v619 = vunpack.c.l.b16 %v208
      %v620 = vunpack.c.l.b16 %v209
      %v621 = vunpack.c.l.b16 %v210
      %v622 = vunpack.c.l.b16 %v211
      %v623 = vunpack.c.l.b16 %v212
      %v624 = vunpack.c.l.b16 %v213
      %v625 = vunpack.c.l.b16 %v214
      %v626 = vunpack.c.l.b16 %v215
      %v627 = vunpack.c.l.b16 %v216
      %v628 = vunpack.c.l.b16 %v217
      %v629 = vunpack.c.l.b16 %v218
      %v630 = vunpack.c.l.b16 %v219
      %v631 = vunpack.c.l.b16 %v220
      %v632 = vunpack.c.l.b16 %v221
      %v633 = vunpack.c.l.b16 %v222
      %v634 = vunpack.c.l.b16 %v223
      %v635 = vunpack.c.l.b16 %v224
      %v636 = vunpack.c.l.b16 %v225
      %v637 = vunpack.c.l.b16 %v226
      %v638 = vunpack.c.l.b16 %v227
      %v639 = vunpack.c.l.b16 %v228
      %v640 = vpack.c.b16 %v593, %v592
      %v641 = vpack.c.b16 %v595, %v594
      %v642 = vpack.c.b16 %v597, %v596
      %v643 = vpack.c.b16 %v599, %v598
      %v644 = vpack.c.b16 %v601, %v600
      %v645 = vpack.c.b16 %v603, %v602
      %v646 = vpack.c.b16 %v605, %v604
      %v647 = vpack.c.b16 %v607, %v606
      %v648 = vpack.c.b16 %v609, %v608
      %v649 = vpack.c.b16 %v611, %v610
      %v650 = vpack.c.b16 %v613, %v612
      %v651 = vpack.c.b16 %v615, %v614
      %v652 = vpack.c.b16 %v617, %v616
      %v653 = vpack.c.b16 %v619, %v618
      %v654 = vpack.c.b16 %v621, %v620
      %v655 = vpack.c.b16 %v623, %v622
      %v656 = vpack.c.b16 %v625, %v624
      %v657 = vpack.c.b16 %v627, %v626
      %v658 = vpack.c.b16 %v629, %v628
      %v659 = vpack.c.b16 %v631, %v630
      %v660 = vpack.c.b16 %v633, %v632
      %v661 = vpack.c.b16 %v635, %v634
      %v662 = vpack.c.b16 %v637, %v636
      %v663 = vpack.c.b16 %v639, %v638
      %688 = vmatprep.subr.bf16.mxu0 0
      %689 = vmatpush1.bf16.msra.mxu0 %v647
      %690 = vmatprep.subr.bf16.mxu0 0
      %691 = vmatpush1.bf16.msra.mxu0 %v646
      %692 = vmatprep.subr.bf16.mxu0 0
      %693 = vmatpush1.bf16.msra.mxu0 %v645
      %694 = vmatprep.subr.bf16.mxu0 0
      %695 = vmatpush1.bf16.msra.mxu0 %v644
      %696 = vmatprep.subr.bf16.mxu0 0
      %697 = vmatpush1.bf16.msra.mxu0 %v643
      %698 = vmatprep.subr.bf16.mxu0 0
      %699 = vmatpush1.bf16.msra.mxu0 %v642
      %700 = vmatprep.subr.bf16.mxu0 0
      %701 = vmatpush1.bf16.msra.mxu0 %v641
      %702 = vmatprep.subr.bf16.mxu0 0
      %703 = vmatpush1.bf16.msra.mxu0 %v640
      %704 = vmatprep.subr.bf16.mxu0 0
      %705 = vmatpush2.bf16.msra.mxu0 %v655
      %706 = vmatprep.subr.bf16.mxu0 0
      %707 = vmatpush2.bf16.msra.mxu0 %v654
      %708 = vmatprep.subr.bf16.mxu0 0
      %709 = vmatpush2.bf16.msra.mxu0 %v653
      %710 = vmatprep.subr.bf16.mxu0 0
      %711 = vmatpush2.bf16.msra.mxu0 %v652
      %712 = vmatprep.subr.bf16.mxu0 0
      %713 = vmatpush2.bf16.msra.mxu0 %v651
      %714 = vmatprep.subr.bf16.mxu0 0
      %715 = vmatpush2.bf16.msra.mxu0 %v650
      %716 = vmatprep.subr.bf16.mxu0 0
      %717 = vmatpush2.bf16.msra.mxu0 %v649
      %718 = vmatprep.subr.bf16.mxu0 0
      %719 = vmatpush2.bf16.msra.mxu0 %v648
      %720 = vmatprep.mubr.bf16.mxu0 %v179
      %721 = vmatmul.mubr.bf16.gmra.mxu0 %v170
      %v722 = vpop.f32.mrf.mxu0
      %v723 = vadd.f32 %v539, %v722
      %v724 = vpop.f32.mrf.mxu0
      %v725 = vpop.f32.mrf.mxu0
      %v726 = vpop.f32.mrf.mxu0
      %727 = vdwg.mxu0
      %728 = vmatprep.subr.bf16.mxu0 0
      %729 = vmatpush1.bf16.msra.mxu0 %v663
      %730 = vmatprep.subr.bf16.mxu0 0
      %731 = vmatpush1.bf16.msra.mxu0 %v662
      %732 = vmatprep.subr.bf16.mxu0 0
      %733 = vmatpush1.bf16.msra.mxu0 %v661
      %734 = vmatprep.subr.bf16.mxu0 0
      %735 = vmatpush1.bf16.msra.mxu0 %v660
      %736 = vmatprep.subr.bf16.mxu0 0
      %737 = vmatpush1.bf16.msra.mxu0 %v659
      %738 = vmatprep.subr.bf16.mxu0 0
      %739 = vmatpush1.bf16.msra.mxu0 %v658
      %740 = vmatprep.subr.bf16.mxu0 0
      %741 = vmatpush1.bf16.msra.mxu0 %v657
      %742 = vmatprep.subr.bf16.mxu0 0
      %743 = vmatpush1.bf16.msra.mxu0 %v656
      %744 = vmatprep.subr.bf16.mxu0 0
      %745 = vmatpush2.bf16.msra.mxu0 0
      %746 = vmatprep.subr.bf16.mxu0 0
      %747 = vmatpush2.bf16.msra.mxu0 0
      %748 = vmatprep.subr.bf16.mxu0 0
      %749 = vmatpush2.bf16.msra.mxu0 0
      %750 = vmatprep.subr.bf16.mxu0 0
      %751 = vmatpush2.bf16.msra.mxu0 0
      %752 = vmatprep.subr.bf16.mxu0 0
      %753 = vmatpush2.bf16.msra.mxu0 0
      %754 = vmatprep.subr.bf16.mxu0 0
      %755 = vmatpush2.bf16.msra.mxu0 0
      %756 = vmatprep.subr.bf16.mxu0 0
      %757 = vmatpush2.bf16.msra.mxu0 0
      %758 = vmatprep.subr.bf16.mxu0 0
      %759 = vmatpush2.bf16.msra.mxu0 0
      %760 = vmatprep.mubr.bf16.mxu0 0
      %761 = vmatmul.mubr.bf16.gmra.mxu0 %v173
      %v762 = vpop.f32.mrf.mxu0
      %v763 = vadd.f32 %v723, %v762
      %v764 = vpop.f32.mrf.mxu0
      %v765 = vpop.f32.mrf.mxu0
      %v766 = vpop.f32.mrf.mxu0
      %767 = vdwg.mxu0
      %v768 = vld [vmem:[%s164] sm:$0xe]
      %v769 = vld [vmem:[%s164] sm:$0x8]
      %v770 = vld [vmem:[%s164 + $0x4] sm:$0xe]
      %v772 = vunpack.c.l.b16 %v768
      %v773 = vpack.c.b16 %v236, %v772
      %v775 = vunpack.c.l.b16 %v769
      %v776 = vpack.c.b16 %v239, %v775
      %v777 = vrot.slane %v776, 2
      %v779 = vunpack.c.l.b16 %v770
      %v780 = vpack.c.b16 %v245, %v779
      %s781 = scalar_lea.vmem %s1, 384
      %v782 = vld [vmem:[%s781] sm:$0xf]
      %v783 = vld [vmem:[%s781 + $0x4] sm:$0xf]
      %v784 = vld [vmem:[%s781 + $0x8] sm:$0xf]
      %v785 = vld [vmem:[%s781 + $0xc] sm:$0xf]
      %v786 = vld [vmem:[%s781 + $0x10] sm:$0xf]
      %v787 = vld [vmem:[%s781 + $0x14] sm:$0xf]
      %v788 = vld [vmem:[%s781 + $0x18] sm:$0xf]
      %v789 = vld [vmem:[%s781 + $0x1c] sm:$0xf]
      %v790 = vld [vmem:[%s781 + $0x20] sm:$0xf]
      %v791 = vld [vmem:[%s781 + $0x24] sm:$0xf]
      %v792 = vld [vmem:[%s781 + $0x28] sm:$0xf]
      %v793 = vld [vmem:[%s781 + $0x2c] sm:$0xf]
      %v794 = vld [vmem:[%s781 + $0x30] sm:$0xf]
      %v795 = vld [vmem:[%s781 + $0x34] sm:$0xf]
      %v796 = vld [vmem:[%s781 + $0x38] sm:$0xf]
      %v797 = vld [vmem:[%s781 + $0x3c] sm:$0xf]
      %v798 = vld [vmem:[%s781 + $0x40] sm:$0xf]
      %v799 = vld [vmem:[%s781 + $0x44] sm:$0xf]
      %v800 = vld [vmem:[%s781 + $0x48] sm:$0xf]
      %v801 = vld [vmem:[%s781 + $0x4c] sm:$0xf]
      %v802 = vld [vmem:[%s781 + $0x50] sm:$0xf]
      %v803 = vld [vmem:[%s781 + $0x54] sm:$0xf]
      %v804 = vld [vmem:[%s781 + $0x58] sm:$0xf]
      %v805 = vld [vmem:[%s781 + $0x5c] sm:$0xf]
      %v806 = vld [vmem:[%s781 + $0x60] sm:$0xf]
      %v807 = vld [vmem:[%s781 + $0x64] sm:$0xf]
      %v808 = vld [vmem:[%s781 + $0x68] sm:$0xf]
      %v809 = vld [vmem:[%s781 + $0x6c] sm:$0xf]
      %v810 = vld [vmem:[%s781 + $0x70] sm:$0xf]
      %v811 = vld [vmem:[%s781 + $0x74] sm:$0xf]
      %v812 = vld [vmem:[%s781 + $0x78] sm:$0xf]
      %v813 = vld [vmem:[%s781 + $0x7c] sm:$0xf]
      %v814 = vld [vmem:[%s781 + $0x80] sm:$0xf]
      %v815 = vld [vmem:[%s781 + $0x84] sm:$0xf]
      %v816 = vld [vmem:[%s781 + $0x88] sm:$0xf]
      %v817 = vld [vmem:[%s781 + $0x8c] sm:$0xf]
      %v818 = vld [vmem:[%s781 + $0x90] sm:$0xf]
      %v819 = vld [vmem:[%s781 + $0x94] sm:$0xf]
      %v820 = vld [vmem:[%s781 + $0x98] sm:$0xf]
      %v821 = vld [vmem:[%s781 + $0x9c] sm:$0xf]
      %v822 = vld [vmem:[%s781 + $0xa0] sm:$0xf]
      %v823 = vld [vmem:[%s781 + $0xa4] sm:$0xf]
      %v824 = vld [vmem:[%s781 + $0xa8] sm:$0xf]
      %v825 = vld [vmem:[%s781 + $0xac] sm:$0xf]
      %v826 = vld [vmem:[%s781 + $0xb0] sm:$0xf]
      %v827 = vld [vmem:[%s781 + $0xb4] sm:$0xf]
      %v828 = vld [vmem:[%s781 + $0xb8] sm:$0xf]
      %v829 = vld [vmem:[%s781 + $0xbc] sm:$0xf]
      %v830 = vrot.slane %v773, 1
      %v831 = vrot.slane %v777, 1
      %v832 = vrot.slane %v780, 1
      %v884 = vunpack.c.l.b16 %v782
      %v885 = vunpack.c.l.b16 %v783
      %v886 = vunpack.c.l.b16 %v784
      %v887 = vunpack.c.l.b16 %v785
      %v888 = vunpack.c.l.b16 %v786
      %v889 = vunpack.c.l.b16 %v787
      %v890 = vunpack.c.l.b16 %v788
      %v891 = vunpack.c.l.b16 %v789
      %v892 = vunpack.c.l.b16 %v790
      %v893 = vunpack.c.l.b16 %v791
      %v894 = vunpack.c.l.b16 %v792
      %v895 = vunpack.c.l.b16 %v793
      %v896 = vunpack.c.l.b16 %v794
      %v897 = vunpack.c.l.b16 %v795
      %v898 = vunpack.c.l.b16 %v796
      %v899 = vunpack.c.l.b16 %v797
      %v900 = vunpack.c.l.b16 %v798
      %v901 = vunpack.c.l.b16 %v799
      %v902 = vunpack.c.l.b16 %v800
      %v903 = vunpack.c.l.b16 %v801
      %v904 = vunpack.c.l.b16 %v802
      %v905 = vunpack.c.l.b16 %v803
      %v906 = vunpack.c.l.b16 %v804
      %v907 = vunpack.c.l.b16 %v805
      %v908 = vunpack.c.l.b16 %v806
      %v909 = vunpack.c.l.b16 %v807
      %v910 = vunpack.c.l.b16 %v808
      %v911 = vunpack.c.l.b16 %v809
      %v912 = vunpack.c.l.b16 %v810
      %v913 = vunpack.c.l.b16 %v811
      %v914 = vunpack.c.l.b16 %v812
      %v915 = vunpack.c.l.b16 %v813
      %v916 = vunpack.c.l.b16 %v814
      %v917 = vunpack.c.l.b16 %v815
      %v918 = vunpack.c.l.b16 %v816
      %v919 = vunpack.c.l.b16 %v817
      %v920 = vunpack.c.l.b16 %v818
      %v921 = vunpack.c.l.b16 %v819
      %v922 = vunpack.c.l.b16 %v820
      %v923 = vunpack.c.l.b16 %v821
      %v924 = vunpack.c.l.b16 %v822
      %v925 = vunpack.c.l.b16 %v823
      %v926 = vunpack.c.l.b16 %v824
      %v927 = vunpack.c.l.b16 %v825
      %v928 = vunpack.c.l.b16 %v826
      %v929 = vunpack.c.l.b16 %v827
      %v930 = vunpack.c.l.b16 %v828
      %v931 = vunpack.c.l.b16 %v829
      %v932 = vpack.c.b16 %v885, %v884
      %v933 = vpack.c.b16 %v887, %v886
      %v934 = vpack.c.b16 %v889, %v888
      %v935 = vpack.c.b16 %v891, %v890
      %v936 = vpack.c.b16 %v893, %v892
      %v937 = vpack.c.b16 %v895, %v894
      %v938 = vpack.c.b16 %v897, %v896
      %v939 = vpack.c.b16 %v899, %v898
      %v940 = vpack.c.b16 %v901, %v900
      %v941 = vpack.c.b16 %v903, %v902
      %v942 = vpack.c.b16 %v905, %v904
      %v943 = vpack.c.b16 %v907, %v906
      %v944 = vpack.c.b16 %v909, %v908
      %v945 = vpack.c.b16 %v911, %v910
      %v946 = vpack.c.b16 %v913, %v912
      %v947 = vpack.c.b16 %v915, %v914
      %v948 = vpack.c.b16 %v917, %v916
      %v949 = vpack.c.b16 %v919, %v918
      %v950 = vpack.c.b16 %v921, %v920
      %v951 = vpack.c.b16 %v923, %v922
      %v952 = vpack.c.b16 %v925, %v924
      %v953 = vpack.c.b16 %v927, %v926
      %v954 = vpack.c.b16 %v929, %v928
      %v955 = vpack.c.b16 %v931, %v930
      %980 = vmatprep.subr.bf16.mxu0 0
      %981 = vmatpush1.bf16.msra.mxu0 %v939
      %982 = vmatprep.subr.bf16.mxu0 0
      %983 = vmatpush1.bf16.msra.mxu0 %v938
      %984 = vmatprep.subr.bf16.mxu0 0
      %985 = vmatpush1.bf16.msra.mxu0 %v937
      %986 = vmatprep.subr.bf16.mxu0 0
      %987 = vmatpush1.bf16.msra.mxu0 %v936
      %988 = vmatprep.subr.bf16.mxu0 0
      %989 = vmatpush1.bf16.msra.mxu0 %v935
      %990 = vmatprep.subr.bf16.mxu0 0
      %991 = vmatpush1.bf16.msra.mxu0 %v934
      %992 = vmatprep.subr.bf16.mxu0 0
      %993 = vmatpush1.bf16.msra.mxu0 %v933
      %994 = vmatprep.subr.bf16.mxu0 0
      %995 = vmatpush1.bf16.msra.mxu0 %v932
      %996 = vmatprep.subr.bf16.mxu0 0
      %997 = vmatpush2.bf16.msra.mxu0 %v947
      %998 = vmatprep.subr.bf16.mxu0 0
      %999 = vmatpush2.bf16.msra.mxu0 %v946
      %1000 = vmatprep.subr.bf16.mxu0 0
      %1001 = vmatpush2.bf16.msra.mxu0 %v945
      %1002 = vmatprep.subr.bf16.mxu0 0
      %1003 = vmatpush2.bf16.msra.mxu0 %v944
      %1004 = vmatprep.subr.bf16.mxu0 0
      %1005 = vmatpush2.bf16.msra.mxu0 %v943
      %1006 = vmatprep.subr.bf16.mxu0 0
      %1007 = vmatpush2.bf16.msra.mxu0 %v942
      %1008 = vmatprep.subr.bf16.mxu0 0
      %1009 = vmatpush2.bf16.msra.mxu0 %v941
      %1010 = vmatprep.subr.bf16.mxu0 0
      %1011 = vmatpush2.bf16.msra.mxu0 %v940
      %1012 = vmatprep.mubr.bf16.mxu0 %v831
      %1013 = vmatmul.mubr.bf16.gmra.mxu0 %v830
      %v1014 = vpop.f32.mrf.mxu0
      %v1015 = vadd.f32 0.0, %v1014
      %v1016 = vpop.f32.mrf.mxu0
      %v1017 = vpop.f32.mrf.mxu0
      %v1018 = vpop.f32.mrf.mxu0
      %1019 = vdwg.mxu0
      %1020 = vmatprep.subr.bf16.mxu0 0
      %1021 = vmatpush1.bf16.msra.mxu0 %v955
      %1022 = vmatprep.subr.bf16.mxu0 0
      %1023 = vmatpush1.bf16.msra.mxu0 %v954
      %1024 = vmatprep.subr.bf16.mxu0 0
      %1025 = vmatpush1.bf16.msra.mxu0 %v953
      %1026 = vmatprep.subr.bf16.mxu0 0
      %1027 = vmatpush1.bf16.msra.mxu0 %v952
      %1028 = vmatprep.subr.bf16.mxu0 0
      %1029 = vmatpush1.bf16.msra.mxu0 %v951
      %1030 = vmatprep.subr.bf16.mxu0 0
      %1031 = vmatpush1.bf16.msra.mxu0 %v950
      %1032 = vmatprep.subr.bf16.mxu0 0
      %1033 = vmatpush1.bf16.msra.mxu0 %v949
      %1034 = vmatprep.subr.bf16.mxu0 0
      %1035 = vmatpush1.bf16.msra.mxu0 %v948
      %1036 = vmatprep.subr.bf16.mxu0 0
      %1037 = vmatpush2.bf16.msra.mxu0 0
      %1038 = vmatprep.subr.bf16.mxu0 0
      %1039 = vmatpush2.bf16.msra.mxu0 0
      %1040 = vmatprep.subr.bf16.mxu0 0
      %1041 = vmatpush2.bf16.msra.mxu0 0
      %1042 = vmatprep.subr.bf16.mxu0 0
      %1043 = vmatpush2.bf16.msra.mxu0 0
      %1044 = vmatprep.subr.bf16.mxu0 0
      %1045 = vmatpush2.bf16.msra.mxu0 0
      %1046 = vmatprep.subr.bf16.mxu0 0
      %1047 = vmatpush2.bf16.msra.mxu0 0
      %1048 = vmatprep.subr.bf16.mxu0 0
      %1049 = vmatpush2.bf16.msra.mxu0 0
      %1050 = vmatprep.subr.bf16.mxu0 0
      %1051 = vmatpush2.bf16.msra.mxu0 0
      %1052 = vmatprep.mubr.bf16.mxu0 0
      %1053 = vmatmul.mubr.bf16.gmra.mxu0 %v832
      %v1054 = vpop.f32.mrf.mxu0
      %v1055 = vadd.f32 %v1015, %v1054
      %v1056 = vpop.f32.mrf.mxu0
      %v1057 = vpop.f32.mrf.mxu0
      %v1058 = vpop.f32.mrf.mxu0
      %1059 = vdwg.mxu0
      %v1060 = vadd.f32 %v763, %v1055
      %v1061 = vld [vmem:[%s2] sm:$0x1]
      %v1063 = vlaneseq
      %v1064 = vshrl.u32 %v1063, 7
      %v1065 = vsub.s32 0, %v1064
      %v1066 = vrot.slane %v1061, %v1065
      %v1068 = vadd.f32 %v1060, %v1066
      %v1069 = vmax.f32 %v1068, 0.0
      %v1070 = vpack.c.bf16 %v1069, %v1069
      %1071 = vst [vmem:[%s168] sm:$0xf] %v1070
      %p1072 = scmp.lt.s32.totalorder %s14, 1
      %s1073 = scalar_select %p1072, %s14, 1
      %s1074 = smul.addr %s1073, 4
      %s1075 = scalar_lea.vmem %s3, %s1074
      // Predicated region
      $region33: #{_lambda_.44} parent=31 // pred_check
        %p1076 = pneg %p100
      $region34: #{_lambda_.44} parent=31 // pred_check_branch
        %1078 = sbr.rel (%p1076) target = $region36
      $region35: #{_lambda_.44} parent=31 // pred_region
        _
      $region36: #{_lambda_.44} parent=31 // pred_fallthru
        _
    $region32: #{_lambda_.44} parent=5 // pred_fallthru
      _
    %p1079 = scmp.le.s32.totalorder 2, %s9
    // Predicated region
    $region37: #{_lambda_.44} parent=5 // pred_check
      %p1080 = pneg %p1079
    $region38: #{_lambda_.44} parent=5 // pred_check_branch
      %1082 = sbr.rel (%p1080) target = $region40
    $region39: #{_lambda_.44} parent=5 // pred_region
      %s1083 = ssub.s32 %s9, 2
      // Predicated region
      $region41: #{_lambda_.44} parent=39 // pred_check
        %p1084 = pneg %p106
      $region42: #{_lambda_.44} parent=39 // pred_check_branch
        %1086 = sbr.rel (%p1084) target = $region44
      $region43: #{_lambda_.44} parent=39 // pred_region
        %p1087 = scmp.lt.s32.totalorder %s15, 1
        %s1088 = scalar_select %p1087, %s15, 1
        %s1089 = smul.addr %s1088, 4
        %s1090 = scalar_lea.vmem %s3, %s1089
      $region44: #{_lambda_.44} parent=39 // pred_fallthru
        _
    $region40: #{_lambda_.44} parent=5 // pred_fallthru
      _
  $region6: #{_lambda_.44} parent=0 // loop_footer
    %s13 = sadd.s32 1, %s9
  $region7: #{_lambda_.44} parent=0 // loop_footer_branch
    %8 = sbr.rel target = $region3
  $region8: #{_lambda_.44} parent=0 // loop_exit
    _

</llo_original>
